<compile_context>
chip_gen: v7x
topology: tpu7x:2x2x1
jax: 0.10.0
libtpu: 0.0.40
codegen_flags: <defaults>
</compile_context>

<pallas_src>
import math
from functools import partial

import jax
import jax.numpy as jnp
from jax.experimental import pallas as pl
from jax.experimental.pallas import tpu as pltpu

_BN_EPS = 1e-5
_MXU_DT = jnp.bfloat16   # MXU operand dtype (accumulation stays f32)


# ----------------------------------------------------------------------------
# In-kernel helpers
# ----------------------------------------------------------------------------
def _zero_frame(ref, nb, h, w, c):
    """Zero only the 1-pixel halo frame of an (nb, h+2, w+2, c) bf16 scratch ref."""
    z_row = jnp.zeros((nb, 1, w + 2, c), _MXU_DT)
    z_col = jnp.zeros((nb, h + 2, 1, c), _MXU_DT)
    ref[:, 0:1, :, :] = z_row
    ref[:, h + 1:h + 2, :, :] = z_row
    ref[:, :, 0:1, :] = z_col
    ref[:, :, w + 1:w + 2, :] = z_col


def _conv3x3_taps(taps, w_ref, m, c, cout):
    """3x3 conv from its 9 tap tensors as MXU matmul(s); bf16 operands, f32 acc.

    Small c (< 128): lane-concatenate the 9 taps (im2col) -> ONE matmul with
    contraction K = 9*c, filling the MXU contraction depth for narrow layers.
    Large c (>= 128): 9 accumulated matmuls with K = c each, avoiding the
    lane-concat relayout and the 9x im2col buffer.
    """
    if c < 128:
        patch = jnp.concatenate([t.reshape(m, c) for t in taps], axis=-1)
        return jnp.dot(patch, w_ref[...], preferred_element_type=jnp.float32)
    acc = None
    for idx, tap in enumerate(taps):
        part = jnp.dot(tap.reshape(m, c), w_ref[idx * c:(idx + 1) * c, :],
                       preferred_element_type=jnp.float32)
        acc = part if acc is None else acc + part
    return acc


def _conv3x3_from_padded(pad_ref, w_ref, nb, h, w, c, cout):
    """3x3 stride-1 conv over a zero-padded (nb, h+2, w+2, c) bf16 scratch ref."""
    taps = [pad_ref[:, di:di + h, dj:dj + w, :]
            for di in range(3) for dj in range(3)]
    return _conv3x3_taps(taps, w_ref, nb * h * w, c, cout)


# ----------------------------------------------------------------------------
# Fused BasicBlock kernels
# ----------------------------------------------------------------------------
def _make_stride1_kernel(NB, H, W, Cin, Cout, equal_in_out, lane_dense):
    def kernel(*refs):
        if equal_in_out:
            (x_ref, s1_ref, b1_ref, w1_ref, s2_ref, b2_ref, w2_ref,
             o_ref, pad1, pad2) = refs
            wsc_ref = None
        else:
            (x_ref, s1_ref, b1_ref, w1_ref, s2_ref, b2_ref, w2_ref, wsc_ref,
             o_ref, pad1, pad2) = refs

        # Scratch persists across grid steps; interiors are fully rewritten each
        # step, so the halo frames only need to be zeroed once.
        @pl.when(pl.program_id(0) == 0)
        def _():
            _zero_frame(pad1, NB, H, W, Cin)
            _zero_frame(pad2, NB, H, W, Cout)

        M = NB * H * W

        # bn1 (folded affine) + relu in f32 on the VPU.
        h1 = jnp.maximum(x_ref[...] * s1_ref[...] + b1_ref[...], 0.0)

        # conv1: 3x3, stride 1, pad 1 (bf16 MXU operands, f32 accumulation).
        pad1[:, 1:H + 1, 1:W + 1, :] = h1.astype(_MXU_DT)
        c1 = _conv3x3_from_padded(pad1, w1_ref, NB, H, W, Cin, Cout)
        c1 = c1.reshape(NB, H, W, Cout)

        # bn2 + relu, conv2: 3x3, stride 1, pad 1.
        h2 = jnp.maximum(c1 * s2_ref[...] + b2_ref[...], 0.0)
        pad2[:, 1:H + 1, 1:W + 1, :] = h2.astype(_MXU_DT)
        out = _conv3x3_from_padded(pad2, w2_ref, NB, H, W, Cout, Cout)

        # Residual: identity, or fused 1x1 shortcut on relu(bn1(x)) (h1 reused).
        if equal_in_out:
            out = out + x_ref[...].reshape(M, Cout)
        else:
            out = out + jnp.dot(h1.reshape(M, Cin).astype(_MXU_DT), wsc_ref[...],
                                preferred_element_type=jnp.float32)

        if lane_dense:
            o_ref[...] = out.reshape(NB, H, W * Cout)
        else:
            o_ref[...] = out.reshape(NB, H * W, Cout)

    return kernel


def _make_stride2_kernel(NB, H1, W1, Cin, Cout, lane_dense):
    def kernel(xee_ref, xeo_ref, xoe_ref, xoo_ref,
               s1_ref, b1_ref, w1_ref, s2_ref, b2_ref, w2_ref, wsc_ref,
               o_ref, pee, peo, poe, pad2):
        # Zero the parity-plane / pad2 frames once; interiors rewritten each step.
        @pl.when(pl.program_id(0) == 0)
        def _():
            pee[:, 0:1, :, :] = jnp.zeros((NB, 1, W1 + 1, Cin), _MXU_DT)
            pee[:, :, 0:1, :] = jnp.zeros((NB, H1 + 1, 1, Cin), _MXU_DT)
            peo[:, 0:1, :, :] = jnp.zeros((NB, 1, W1, Cin), _MXU_DT)
            poe[:, :, 0:1, :] = jnp.zeros((NB, H1, 1, Cin), _MXU_DT)
            _zero_frame(pad2, NB, H1, W1, Cout)

        M = NB * H1 * W1
        s1 = s1_ref[...]
        b1 = b1_ref[...]

        def bnrelu1(v):
            return jnp.maximum(v * s1 + b1, 0.0)

        # relu(bn1(x)) sampled on the four spatial parity grids of x.
        a_ee = bnrelu1(xee_ref[...])   # h1[even row, even col]
        a_eo = bnrelu1(xeo_ref[...])   # h1[even row, odd  col]
        a_oe = bnrelu1(xoe_ref[...])   # h1[odd  row, even col]
        a_oo = bnrelu1(xoo_ref[...])   # h1[odd  row, odd  col]
        a_ee_b = a_ee.astype(_MXU_DT)

        # Parity planes of the zero-padded h1 (p[r, c] = h1[r-1, c-1]):
        #   P_EE[i, j] = p[2i,   2j  ] -> interior h1[odd,  odd ] = a_oo, pad top+left
        #   P_EO[i, j] = p[2i,   2j+1] -> interior h1[odd,  even] = a_oe, pad top
        #   P_OE[i, j] = p[2i+1, 2j  ] -> interior h1[even, odd ] = a_eo, pad left
        #   P_OO[i, j] = p[2i+1, 2j+1] ->          h1[even, even] = a_ee, no pad
        pee[:, 1:H1 + 1, 1:W1 + 1, :] = a_oo.astype(_MXU_DT)
        peo[:, 1:H1 + 1, :, :] = a_oe.astype(_MXU_DT)
        poe[:, :, 1:W1 + 1, :] = a_eo.astype(_MXU_DT)

        # Strided conv: output (i, j) needs p[2i+di, 2j+dj]; every tap below is a
        # CONTIGUOUS slice of one parity plane (no strided loads, no 4x waste).
        taps = [
            pee[:, 0:H1, 0:W1, :],          # (di=0, dj=0)
            peo[:, 0:H1, 0:W1, :],          # (0, 1)
            pee[:, 0:H1, 1:W1 + 1, :],      # (0, 2)
            poe[:, 0:H1, 0:W1, :],          # (1, 0)
            a_ee_b,                         # (1, 1)
            poe[:, 0:H1, 1:W1 + 1, :],      # (1, 2)
            pee[:, 1:H1 + 1, 0:W1, :],      # (2, 0)
            peo[:, 1:H1 + 1, 0:W1, :],      # (2, 1)
            pee[:, 1:H1 + 1, 1:W1 + 1, :],  # (2, 2)
        ]
        c1 = _conv3x3_taps(taps, w1_ref, M, Cin, Cout).reshape(NB, H1, W1, Cout)

        # bn2 + relu, conv2: 3x3, stride 1, pad 1.
        h2 = jnp.maximum(c1 * s2_ref[...] + b2_ref[...], 0.0)
        pad2[:, 1:H1 + 1, 1:W1 + 1, :] = h2.astype(_MXU_DT)
        out = _conv3x3_from_padded(pad2, w2_ref, NB, H1, W1, Cout, Cout)

        # Fused 1x1 stride-2 shortcut: conv1x1(s=2)(h1)[i, j] = h1[2i, 2j] @ wsc.
        out = out + jnp.dot(a_ee_b.reshape(M, Cin), wsc_ref[...],
                            preferred_element_type=jnp.float32)

        if lane_dense:
            o_ref[...] = out.reshape(NB, H1, W1 * Cout)
        else:
            o_ref[...] = out.reshape(NB, H1 * W1, Cout)

    return kernel


# ----------------------------------------------------------------------------
# Wrapper: one fused pallas_call per BasicBlock
# ----------------------------------------------------------------------------
def _fold_bn(bn):
    scale = bn["gamma"] / jnp.sqrt(bn["var"] + _BN_EPS)
    bias = bn["beta"] - bn["mean"] * scale
    return scale.reshape(1, -1), bias.reshape(1, -1)


def _pick_batch_block(N, rows_per_image, per_image_bytes):
    """Images per grid step: fill the MXU rows (M >= ~512), capped by VMEM budget."""
    target_rows = 512
    nb = max(1, min(N, -(-target_rows // max(1, rows_per_image))))
    cap = max(1, (8 << 20) // max(1, per_image_bytes))
    nb = min(nb, cap)
    while N % nb:
        nb -= 1
    return nb


def basic_block_forward(x, p, stride):
    """Fused BasicBlock forward.  x: (N, H, W, Cin) NHWC float32."""
    N, H, W, Cin = x.shape
    Cout = p["w1"].shape[-1]
    equal_in_out = (Cin == Cout)
    assert stride in (1, 2), "only stride 1 / 2 are supported (WideResNet)"
    assert not (equal_in_out and stride != 1), \
        "identity shortcut requires stride 1 (as in the PyTorch module)"
    assert H % stride == 0 and W % stride == 0
    H1, W1 = H // stride, W // stride

    s1, b1 = _fold_bn(p["bn1"])
    s2, b2 = _fold_bn(p["bn2"])
    # Conv weights as (K, Cout) matrices in bf16 (MXU-native).
    w1r = p["w1"].reshape(9 * Cin, Cout).astype(_MXU_DT)
    w2r = p["w2"].reshape(9 * Cout, Cout).astype(_MXU_DT)
    wsc = None if equal_in_out else p["wsc"].astype(_MXU_DT)

    big_c = max(Cin, Cout)
    per_image_bytes = (4 * H * W * Cin                                # x (f32)
                       + 2 * (H1 + 2) * (W1 + 2) * (Cin + Cout)       # bf16 pads
                       + (2 * 9 * H1 * W1 * big_c if big_c < 128 else 0)  # im2col
                       + 3 * 4 * H1 * W1 * Cout)                      # c1/h2/out f32
    NB = _pick_batch_block(N, H1 * W1, per_image_bytes)
    grid = (N // NB,)

    # Lane-dense output slab whenever possible (all standard WRN shapes qualify).
    lane_dense = (W1 * Cout) % 128 == 0
    if lane_dense:
        out_shape = jax.ShapeDtypeStruct((N, H1, W1 * Cout), jnp.float32)
        out_spec = pl.BlockSpec((NB, H1, W1 * Cout), lambda n: (n, 0, 0))
    else:
        out_shape = jax.ShapeDtypeStruct((N, H1 * W1, Cout), jnp.float32)
        out_spec = pl.BlockSpec((NB, H1 * W1, Cout), lambda n: (n, 0, 0))

    param_inputs = [s1, b1, w1r, s2, b2, w2r]
    param_specs = [
        pl.BlockSpec((1, Cin), lambda n: (0, 0)),
        pl.BlockSpec((1, Cin), lambda n: (0, 0)),
        pl.BlockSpec((9 * Cin, Cout), lambda n: (0, 0)),
        pl.BlockSpec((1, Cout), lambda n: (0, 0)),
        pl.BlockSpec((1, Cout), lambda n: (0, 0)),
        pl.BlockSpec((9 * Cout, Cout), lambda n: (0, 0)),
    ]
    wsc_spec = pl.BlockSpec((Cin, Cout), lambda n: (0, 0))

    if stride == 1:
        kernel = _make_stride1_kernel(NB, H, W, Cin, Cout, equal_in_out, lane_dense)
        inputs = [x] + param_inputs
        in_specs = ([pl.BlockSpec((NB, H, W, Cin), lambda n: (n, 0, 0, 0))]
                    + list(param_specs))
        if not equal_in_out:
            inputs.append(wsc)
            in_specs.append(wsc_spec)
        scratch = [pltpu.VMEM((NB, H + 2, W + 2, Cin), _MXU_DT),
                   pltpu.VMEM((NB, H + 2, W + 2, Cout), _MXU_DT)]
    else:
        kernel = _make_stride2_kernel(NB, H1, W1, Cin, Cout, lane_dense)
        # Spatial parity decomposition of x (done once by XLA); all in-kernel
        # accesses of the strided conv then become contiguous slices.
        x_ee = x[:, 0::2, 0::2, :]
        x_eo = x[:, 0::2, 1::2, :]
        x_oe = x[:, 1::2, 0::2, :]
        x_oo = x[:, 1::2, 1::2, :]
        src_spec = pl.BlockSpec((NB, H1, W1, Cin), lambda n: (n, 0, 0, 0))
        inputs = [x_ee, x_eo, x_oe, x_oo] + param_inputs + [wsc]
        in_specs = [src_spec] * 4 + list(param_specs) + [wsc_spec]
        scratch = [pltpu.VMEM((NB, H1 + 1, W1 + 1, Cin), _MXU_DT),   # P_EE plane
                   pltpu.VMEM((NB, H1 + 1, W1, Cin), _MXU_DT),       # P_EO plane
                   pltpu.VMEM((NB, H1, W1 + 1, Cin), _MXU_DT),       # P_OE plane
                   pltpu.VMEM((NB, H1 + 2, W1 + 2, Cout), _MXU_DT)]  # padded c1

    # VMEM budget from the actual per-step footprint (weights double-buffered).
    weight_bytes = 2 * (9 * Cin * Cout + 9 * Cout * Cout
                        + (0 if equal_in_out else Cin * Cout))       # bf16
    est = 2 * NB * per_image_bytes + 2 * 2 * weight_bytes + (4 << 20)
    vmem_limit = int(min(max(est, 32 << 20), 64 << 20))

    flops = 2 * N * H1 * W1 * (9 * Cin * Cout + 9 * Cout * Cout
                               + (0 if equal_in_out else Cin * Cout))
    in_bytes = 4 * N * H * W * Cin
    if stride == 2:
        in_bytes *= 3   # parity-slab materialization: write + re-read of x
    bytes_accessed = in_bytes + 4 * N * H1 * W1 * Cout + weight_bytes

    out = pl.pallas_call(
        kernel,
        out_shape=out_shape,
        grid=grid,
        in_specs=in_specs,
        out_specs=out_spec,
        scratch_shapes=scratch,
        compiler_params=pltpu.CompilerParams(
            # "arbitrary": the grid runs sequentially, so the once-zeroed halo
            # frames of the persistent scratches remain valid for every step.
            dimension_semantics=("arbitrary",),
            vmem_limit_bytes=vmem_limit),
        cost_estimate=pl.CostEstimate(flops=int(flops), transcendentals=0,
                                      bytes_accessed=int(bytes_accessed)),
    )(*inputs)
    return out.reshape(N, H1, W1, Cout)


@partial(jax.jit, static_argnums=2)
def network_block_forward(x_nchw, params, stride):
    x = jnp.transpose(x_nchw, (0, 2, 3, 1))  # NCHW -> NHWC (C on the lane dim)
    for i, p in enumerate(params):
        x = basic_block_forward(x, p, stride if i == 0 else 1)
    return jnp.transpose(x, (0, 3, 1, 2))    # NHWC -> NCHW


# ----------------------------------------------------------------------------
# Pure-XLA reference of the same math (bf16 conv operands, f32 accumulation)
# ----------------------------------------------------------------------------
def _reference_network_block(x_nchw, params, stride):
    dn = ("NHWC", "HWIO", "NHWC")
    x = jnp.transpose(x_nchw, (0, 2, 3, 1))
    for i, p in enumerate(params):
        s = stride if i == 0 else 1
        cin, cout = x.shape[-1], p["w1"].shape[-1]
        s1, b1 = _fold_bn(p["bn1"])
        s2, b2 = _fold_bn(p["bn2"])
        h1 = jnp.maximum(x * s1.reshape(1, 1, 1, -1) + b1.reshape(1, 1, 1, -1), 0.0)
        c1 = jax.lax.conv_general_dilated(
            h1.astype(_MXU_DT), p["w1"].astype(_MXU_DT), (s, s), ((1, 1), (1, 1)),
            dimension_numbers=dn, preferred_element_type=jnp.float32)
        h2 = jnp.maximum(c1 * s2.reshape(1, 1, 1, -1) + b2.reshape(1, 1, 1, -1), 0.0)
        out = jax.lax.conv_general_dilated(
            h2.astype(_MXU_DT), p["w2"].astype(_MXU_DT), (1, 1), ((1, 1), (1, 1)),
            dimension_numbers=dn, preferred_element_type=jnp.float32)
        if cin == cout:
            res = x
        else:
            res = jax.lax.conv_general_dilated(
                h1.astype(_MXU_DT), p["wsc"].reshape(1, 1, cin, cout).astype(_MXU_DT),
                (s, s), ((0, 0), (0, 0)),
                dimension_numbers=dn, preferred_element_type=jnp.float32)
        x = out + res
    return jnp.transpose(x, (0, 3, 1, 2))


# ----------------------------------------------------------------------------
# Deterministic parameter initialization (synthetic; no checkpoint loading)
# ----------------------------------------------------------------------------
def _init_bn(key, c):
    k1, k2, k3, k4 = jax.random.split(key, 4)
    return dict(
        gamma=jax.random.uniform(k1, (c,), jnp.float32, 0.5, 1.5),
        beta=0.1 * jax.random.normal(k2, (c,), jnp.float32),
        mean=0.1 * jax.random.normal(k3, (c,), jnp.float32),
        var=jax.random.uniform(k4, (c,), jnp.float32, 0.5, 1.5),
    )


def _init_conv(key, kh, kw, cin, cout):
    fan_in = kh * kw * cin
    bound = 1.0 / math.sqrt(fan_in)
    # stored as (kh, kw, Cin, Cout) == transpose of torch's (Cout, Cin, kh, kw)
    return jax.random.uniform(key, (kh, kw, cin, cout), jnp.float32, -bound, bound)


def init_network_block_params(key, nb_layers, in_planes, out_planes):
    params = []
    for i in range(nb_layers):
        cin = in_planes if i == 0 else out_planes
        key, k_bn1, k_bn2, k_w1, k_w2, k_sc = jax.random.split(key, 6)
        layer = dict(
            bn1=_init_bn(k_bn1, cin),
            w1=_init_conv(k_w1, 3, 3, cin, out_planes),
            bn2=_init_bn(k_bn2, out_planes),
            w2=_init_conv(k_w2, 3, 3, out_planes, out_planes),
        )
        if cin != out_planes:
            layer["wsc"] = _init_conv(k_sc, 1, 1, cin, out_planes)[0, 0]  # (Cin, Cout)
        params.append(layer)
    return params


# ----------------------------------------------------------------------------
if __name__ == "__main__":
    key = jax.random.PRNGKey(0)
    # NetworkBlock(nb_layers=2, in_planes=4, out_planes=8, block=BasicBlock,
    #              stride=2, dropRate=0.0)
    nb_layers, in_planes, out_planes, stride = 2, 4, 8, 2
    N, H, W = 2, 16, 16

    k_x, k_p = jax.random.split(key)
    x = jax.random.normal(k_x, (N, in_planes, H, W), jnp.float32)  # NCHW input
    params = init_network_block_params(k_p, nb_layers, in_planes, out_planes)

    y = network_block_forward(x, params, stride)
    y = jax.block_until_ready(y)

    expected_shape = (N, out_planes, H // stride, W // stride)
    assert y.shape == expected_shape, (y.shape, expected_shape)
    assert bool(jnp.all(jnp.isfinite(y)))

    # Numerical sanity check against a pure-XLA reference using the same bf16
    # MXU operand / f32 accumulation numerics (tolerance tightened vs v1).
    y_ref = _reference_network_block(x, params, stride)
    assert bool(jnp.allclose(y, y_ref, rtol=1e-2, atol=1e-2)), \
        float(jnp.max(jnp.abs(y - y_ref)))

    print("KERNEL_OK")
</pallas_src>

<mosaic_0001>
module attributes {stable_mosaic.version = 11 : i64} {
  func.func @kernel(%arg0: i32, %arg1: memref<2x8x8x4xf32, #tpu.memory_space<vmem>>, %arg2: memref<2x8x8x4xf32, #tpu.memory_space<vmem>>, %arg3: memref<2x8x8x4xf32, #tpu.memory_space<vmem>>, %arg4: memref<2x8x8x4xf32, #tpu.memory_space<vmem>>, %arg5: memref<1x4xf32, #tpu.memory_space<vmem>>, %arg6: memref<1x4xf32, #tpu.memory_space<vmem>>, %arg7: memref<36x8xbf16, #tpu.memory_space<vmem>>, %arg8: memref<1x8xf32, #tpu.memory_space<vmem>>, %arg9: memref<1x8xf32, #tpu.memory_space<vmem>>, %arg10: memref<72x8xbf16, #tpu.memory_space<vmem>>, %arg11: memref<4x8xbf16, #tpu.memory_space<vmem>>, %arg12: memref<2x64x8xf32, #tpu.memory_space<vmem>>, %arg13: memref<2x9x9x4xbf16, #tpu.memory_space<vmem>>, %arg14: memref<2x9x8x4xbf16, #tpu.memory_space<vmem>>, %arg15: memref<2x8x9x4xbf16, #tpu.memory_space<vmem>>, %arg16: memref<2x10x10x8xbf16, #tpu.memory_space<vmem>>) attributes {dimension_semantics = [#tpu.dimension_semantics<arbitrary>], iteration_bounds = array<i64: 1>, scalar_prefetch = 0 : i64, scratch_operands = 4 : i64, tpu.core_type = #tpu.core_type<tc>, window_params = [{transform_indices = @transform_0, window_bounds = array<i64: 2, 8, 8, 4>}, {transform_indices = @transform_1, window_bounds = array<i64: 2, 8, 8, 4>}, {transform_indices = @transform_2, window_bounds = array<i64: 2, 8, 8, 4>}, {transform_indices = @transform_3, window_bounds = array<i64: 2, 8, 8, 4>}, {pipeline_mode = #tpu.pipeline_mode<synchronous>, transform_indices = @transform_4, window_bounds = array<i64: 1, 4>}, {pipeline_mode = #tpu.pipeline_mode<synchronous>, transform_indices = @transform_5, window_bounds = array<i64: 1, 4>}, {pipeline_mode = #tpu.pipeline_mode<synchronous>, transform_indices = @transform_6, window_bounds = array<i64: 36, 8>}, {pipeline_mode = #tpu.pipeline_mode<synchronous>, transform_indices = @transform_7, window_bounds = array<i64: 1, 8>}, {pipeline_mode = #tpu.pipeline_mode<synchronous>, transform_indices = @transform_8, window_bounds = array<i64: 1, 8>}, {pipeline_mode = #tpu.pipeline_mode<synchronous>, transform_indices = @transform_9, window_bounds = array<i64: 72, 8>}, {pipeline_mode = #tpu.pipeline_mode<synchronous>, transform_indices = @transform_10, window_bounds = array<i64: 4, 8>}, {transform_indices = @transform_11, window_bounds = array<i64: 2, 64, 8>}]} {
    %c0_i32 = arith.constant 0 : i32
    %0 = arith.cmpi eq, %arg0, %c0_i32 : i32
    %1 = arith.extui %0 : i1 to i32
    %c0_i32_0 = arith.constant 0 : i32
    %2 = arith.cmpi ne, %1, %c0_i32_0 : i32
    scf.if %2 {
      %cst_122 = arith.constant 0.000000e+00 : bf16
      %108 = vector.broadcast %cst_122 : bf16 to vector<2x1x9x4xbf16>
      %c0_123 = arith.constant 0 : index
      %c0_124 = arith.constant 0 : index
      %c0_125 = arith.constant 0 : index
      %c0_126 = arith.constant 0 : index
      %109 = vector.load %arg13[%c0_123, %c0_124, %c0_125, %c0_126] : memref<2x9x9x4xbf16, #tpu.memory_space<vmem>>, vector<2x1x9x4xbf16>
      tpu.vector_store %arg13[%c0_123, %c0_124, %c0_125, %c0_126], %108 {strides = array<i32>} : memref<2x9x9x4xbf16, #tpu.memory_space<vmem>>, vector<2x1x9x4xbf16>,
      %cst_127 = arith.constant 0.000000e+00 : bf16
      %110 = vector.broadcast %cst_127 : bf16 to vector<2x9x1x4xbf16>
      %c0_128 = arith.constant 0 : index
      %c0_129 = arith.constant 0 : index
      %c0_130 = arith.constant 0 : index
      %c0_131 = arith.constant 0 : index
      %111 = vector.load %arg13[%c0_128, %c0_129, %c0_130, %c0_131] : memref<2x9x9x4xbf16, #tpu.memory_space<vmem>>, vector<2x9x1x4xbf16>
      tpu.vector_store %arg13[%c0_128, %c0_129, %c0_130, %c0_131], %110 {strides = array<i32>} : memref<2x9x9x4xbf16, #tpu.memory_space<vmem>>, vector<2x9x1x4xbf16>,
      %cst_132 = arith.constant 0.000000e+00 : bf16
      %112 = vector.broadcast %cst_132 : bf16 to vector<2x1x8x4xbf16>
      %c0_133 = arith.constant 0 : index
      %c0_134 = arith.constant 0 : index
      %c0_135 = arith.constant 0 : index
      %c0_136 = arith.constant 0 : index
      %113 = vector.load %arg14[%c0_133, %c0_134, %c0_135, %c0_136] : memref<2x9x8x4xbf16, #tpu.memory_space<vmem>>, vector<2x1x8x4xbf16>
      tpu.vector_store %arg14[%c0_133, %c0_134, %c0_135, %c0_136], %112 {strides = array<i32>} : memref<2x9x8x4xbf16, #tpu.memory_space<vmem>>, vector<2x1x8x4xbf16>,
      %cst_137 = arith.constant 0.000000e+00 : bf16
      %114 = vector.broadcast %cst_137 : bf16 to vector<2x8x1x4xbf16>
      %c0_138 = arith.constant 0 : index
      %c0_139 = arith.constant 0 : index
      %c0_140 = arith.constant 0 : index
      %c0_141 = arith.constant 0 : index
      %115 = vector.load %arg15[%c0_138, %c0_139, %c0_140, %c0_141] : memref<2x8x9x4xbf16, #tpu.memory_space<vmem>>, vector<2x8x1x4xbf16>
      tpu.vector_store %arg15[%c0_138, %c0_139, %c0_140, %c0_141], %114 {strides = array<i32>} : memref<2x8x9x4xbf16, #tpu.memory_space<vmem>>, vector<2x8x1x4xbf16>,
      %cst_142 = arith.constant 0.000000e+00 : bf16
      %116 = vector.broadcast %cst_142 : bf16 to vector<2x1x10x8xbf16>
      %cst_143 = arith.constant 0.000000e+00 : bf16
      %117 = vector.broadcast %cst_143 : bf16 to vector<2x10x1x8xbf16>
      %c0_144 = arith.constant 0 : index
      %c0_145 = arith.constant 0 : index
      %c0_146 = arith.constant 0 : index
      %c0_147 = arith.constant 0 : index
      %118 = vector.load %arg16[%c0_144, %c0_145, %c0_146, %c0_147] : memref<2x10x10x8xbf16, #tpu.memory_space<vmem>>, vector<2x1x10x8xbf16>
      tpu.vector_store %arg16[%c0_144, %c0_145, %c0_146, %c0_147], %116 {strides = array<i32>} : memref<2x10x10x8xbf16, #tpu.memory_space<vmem>>, vector<2x1x10x8xbf16>,
      %c0_148 = arith.constant 0 : index
      %c9 = arith.constant 9 : index
      %c0_149 = arith.constant 0 : index
      %c0_150 = arith.constant 0 : index
      %119 = vector.load %arg16[%c0_148, %c9, %c0_149, %c0_150] : memref<2x10x10x8xbf16, #tpu.memory_space<vmem>>, vector<2x1x10x8xbf16>
      tpu.vector_store %arg16[%c0_148, %c9, %c0_149, %c0_150], %116 {strides = array<i32>} : memref<2x10x10x8xbf16, #tpu.memory_space<vmem>>, vector<2x1x10x8xbf16>,
      %c0_151 = arith.constant 0 : index
      %c0_152 = arith.constant 0 : index
      %c0_153 = arith.constant 0 : index
      %c0_154 = arith.constant 0 : index
      %120 = vector.load %arg16[%c0_151, %c0_152, %c0_153, %c0_154] : memref<2x10x10x8xbf16, #tpu.memory_space<vmem>>, vector<2x10x1x8xbf16>
      tpu.vector_store %arg16[%c0_151, %c0_152, %c0_153, %c0_154], %117 {strides = array<i32>} : memref<2x10x10x8xbf16, #tpu.memory_space<vmem>>, vector<2x10x1x8xbf16>,
      %c0_155 = arith.constant 0 : index
      %c0_156 = arith.constant 0 : index
      %c9_157 = arith.constant 9 : index
      %c0_158 = arith.constant 0 : index
      %121 = vector.load %arg16[%c0_155, %c0_156, %c9_157, %c0_158] : memref<2x10x10x8xbf16, #tpu.memory_space<vmem>>, vector<2x10x1x8xbf16>
      tpu.vector_store %arg16[%c0_155, %c0_156, %c9_157, %c0_158], %117 {strides = array<i32>} : memref<2x10x10x8xbf16, #tpu.memory_space<vmem>>, vector<2x10x1x8xbf16>,
    } else {
    }
    %c0 = arith.constant 0 : index
    %c0_1 = arith.constant 0 : index
    %3 = vector.load %arg5[%c0, %c0_1] : memref<1x4xf32, #tpu.memory_space<vmem>>, vector<1x4xf32>
    %c0_2 = arith.constant 0 : index
    %c0_3 = arith.constant 0 : index
    %4 = vector.load %arg6[%c0_2, %c0_3] : memref<1x4xf32, #tpu.memory_space<vmem>>, vector<1x4xf32>
    %c0_4 = arith.constant 0 : index
    %c0_5 = arith.constant 0 : index
    %c0_6 = arith.constant 0 : index
    %c0_7 = arith.constant 0 : index
    %5 = vector.load %arg1[%c0_4, %c0_5, %c0_6, %c0_7] : memref<2x8x8x4xf32, #tpu.memory_space<vmem>>, vector<2x8x8x4xf32>
    %6 = vector.shape_cast %3 : vector<1x4xf32> to vector<1x1x1x4xf32>
    %7 = vector.broadcast %6 : vector<1x1x1x4xf32> to vector<2x8x8x4xf32>
    %8 = arith.mulf %5, %7 : vector<2x8x8x4xf32>
    %9 = vector.shape_cast %4 : vector<1x4xf32> to vector<1x1x1x4xf32>
    %10 = vector.broadcast %9 : vector<1x1x1x4xf32> to vector<2x8x8x4xf32>
    %11 = arith.addf %8, %10 : vector<2x8x8x4xf32>
    %cst = arith.constant 0.000000e+00 : f32
    %12 = vector.broadcast %cst : f32 to vector<2x8x8x4xf32>
    %13 = arith.maximumf %11, %12 : vector<2x8x8x4xf32>
    %c0_8 = arith.constant 0 : index
    %c0_9 = arith.constant 0 : index
    %c0_10 = arith.constant 0 : index
    %c0_11 = arith.constant 0 : index
    %14 = vector.load %arg2[%c0_8, %c0_9, %c0_10, %c0_11] : memref<2x8x8x4xf32, #tpu.memory_space<vmem>>, vector<2x8x8x4xf32>
    %15 = vector.shape_cast %3 : vector<1x4xf32> to vector<1x1x1x4xf32>
    %16 = vector.broadcast %15 : vector<1x1x1x4xf32> to vector<2x8x8x4xf32>
    %17 = arith.mulf %14, %16 : vector<2x8x8x4xf32>
    %18 = vector.shape_cast %4 : vector<1x4xf32> to vector<1x1x1x4xf32>
    %19 = vector.broadcast %18 : vector<1x1x1x4xf32> to vector<2x8x8x4xf32>
    %20 = arith.addf %17, %19 : vector<2x8x8x4xf32>
    %cst_12 = arith.constant 0.000000e+00 : f32
    %21 = vector.broadcast %cst_12 : f32 to vector<2x8x8x4xf32>
    %22 = arith.maximumf %20, %21 : vector<2x8x8x4xf32>
    %c0_13 = arith.constant 0 : index
    %c0_14 = arith.constant 0 : index
    %c0_15 = arith.constant 0 : index
    %c0_16 = arith.constant 0 : index
    %23 = vector.load %arg3[%c0_13, %c0_14, %c0_15, %c0_16] : memref<2x8x8x4xf32, #tpu.memory_space<vmem>>, vector<2x8x8x4xf32>
    %24 = vector.shape_cast %3 : vector<1x4xf32> to vector<1x1x1x4xf32>
    %25 = vector.broadcast %24 : vector<1x1x1x4xf32> to vector<2x8x8x4xf32>
    %26 = arith.mulf %23, %25 : vector<2x8x8x4xf32>
    %27 = vector.shape_cast %4 : vector<1x4xf32> to vector<1x1x1x4xf32>
    %28 = vector.broadcast %27 : vector<1x1x1x4xf32> to vector<2x8x8x4xf32>
    %29 = arith.addf %26, %28 : vector<2x8x8x4xf32>
    %cst_17 = arith.constant 0.000000e+00 : f32
    %30 = vector.broadcast %cst_17 : f32 to vector<2x8x8x4xf32>
    %31 = arith.maximumf %29, %30 : vector<2x8x8x4xf32>
    %c0_18 = arith.constant 0 : index
    %c0_19 = arith.constant 0 : index
    %c0_20 = arith.constant 0 : index
    %c0_21 = arith.constant 0 : index
    %32 = vector.load %arg4[%c0_18, %c0_19, %c0_20, %c0_21] : memref<2x8x8x4xf32, #tpu.memory_space<vmem>>, vector<2x8x8x4xf32>
    %33 = vector.shape_cast %3 : vector<1x4xf32> to vector<1x1x1x4xf32>
    %34 = vector.broadcast %33 : vector<1x1x1x4xf32> to vector<2x8x8x4xf32>
    %35 = arith.mulf %32, %34 : vector<2x8x8x4xf32>
    %36 = vector.shape_cast %4 : vector<1x4xf32> to vector<1x1x1x4xf32>
    %37 = vector.broadcast %36 : vector<1x1x1x4xf32> to vector<2x8x8x4xf32>
    %38 = arith.addf %35, %37 : vector<2x8x8x4xf32>
    %cst_22 = arith.constant 0.000000e+00 : f32
    %39 = vector.broadcast %cst_22 : f32 to vector<2x8x8x4xf32>
    %40 = arith.maximumf %38, %39 : vector<2x8x8x4xf32>
    %41 = arith.truncf %13 : vector<2x8x8x4xf32> to vector<2x8x8x4xbf16>
    %42 = arith.truncf %40 : vector<2x8x8x4xf32> to vector<2x8x8x4xbf16>
    %c0_23 = arith.constant 0 : index
    %c1 = arith.constant 1 : index
    %c1_24 = arith.constant 1 : index
    %c0_25 = arith.constant 0 : index
    %43 = vector.load %arg13[%c0_23, %c1, %c1_24, %c0_25] : memref<2x9x9x4xbf16, #tpu.memory_space<vmem>>, vector<2x8x8x4xbf16>
    tpu.vector_store %arg13[%c0_23, %c1, %c1_24, %c0_25], %42 {strides = array<i32>} : memref<2x9x9x4xbf16, #tpu.memory_space<vmem>>, vector<2x8x8x4xbf16>,
    %44 = arith.truncf %31 : vector<2x8x8x4xf32> to vector<2x8x8x4xbf16>
    %c0_26 = arith.constant 0 : index
    %c1_27 = arith.constant 1 : index
    %c0_28 = arith.constant 0 : index
    %c0_29 = arith.constant 0 : index
    %45 = vector.load %arg14[%c0_26, %c1_27, %c0_28, %c0_29] : memref<2x9x8x4xbf16, #tpu.memory_space<vmem>>, vector<2x8x8x4xbf16>
    tpu.vector_store %arg14[%c0_26, %c1_27, %c0_28, %c0_29], %44 {strides = array<i32>} : memref<2x9x8x4xbf16, #tpu.memory_space<vmem>>, vector<2x8x8x4xbf16>,
    %46 = arith.truncf %22 : vector<2x8x8x4xf32> to vector<2x8x8x4xbf16>
    %c0_30 = arith.constant 0 : index
    %c0_31 = arith.constant 0 : index
    %c1_32 = arith.constant 1 : index
    %c0_33 = arith.constant 0 : index
    %47 = vector.load %arg15[%c0_30, %c0_31, %c1_32, %c0_33] : memref<2x8x9x4xbf16, #tpu.memory_space<vmem>>, vector<2x8x8x4xbf16>
    tpu.vector_store %arg15[%c0_30, %c0_31, %c1_32, %c0_33], %46 {strides = array<i32>} : memref<2x8x9x4xbf16, #tpu.memory_space<vmem>>, vector<2x8x8x4xbf16>,
    %c0_34 = arith.constant 0 : index
    %c0_35 = arith.constant 0 : index
    %c0_36 = arith.constant 0 : index
    %c0_37 = arith.constant 0 : index
    %48 = vector.load %arg13[%c0_34, %c0_35, %c0_36, %c0_37] : memref<2x9x9x4xbf16, #tpu.memory_space<vmem>>, vector<2x8x8x4xbf16>
    %c0_38 = arith.constant 0 : index
    %c0_39 = arith.constant 0 : index
    %c0_40 = arith.constant 0 : index
    %c0_41 = arith.constant 0 : index
    %49 = vector.load %arg14[%c0_38, %c0_39, %c0_40, %c0_41] : memref<2x9x8x4xbf16, #tpu.memory_space<vmem>>, vector<2x8x8x4xbf16>
    %c0_42 = arith.constant 0 : index
    %c0_43 = arith.constant 0 : index
    %c1_44 = arith.constant 1 : index
    %c0_45 = arith.constant 0 : index
    %50 = vector.load %arg13[%c0_42, %c0_43, %c1_44, %c0_45] : memref<2x9x9x4xbf16, #tpu.memory_space<vmem>>, vector<2x8x8x4xbf16>
    %c0_46 = arith.constant 0 : index
    %c0_47 = arith.constant 0 : index
    %c0_48 = arith.constant 0 : index
    %c0_49 = arith.constant 0 : index
    %51 = vector.load %arg15[%c0_46, %c0_47, %c0_48, %c0_49] : memref<2x8x9x4xbf16, #tpu.memory_space<vmem>>, vector<2x8x8x4xbf16>
    %c0_50 = arith.constant 0 : index
    %c0_51 = arith.constant 0 : index
    %c1_52 = arith.constant 1 : index
    %c0_53 = arith.constant 0 : index
    %52 = vector.load %arg15[%c0_50, %c0_51, %c1_52, %c0_53] : memref<2x8x9x4xbf16, #tpu.memory_space<vmem>>, vector<2x8x8x4xbf16>
    %c0_54 = arith.constant 0 : index
    %c1_55 = arith.constant 1 : index
    %c0_56 = arith.constant 0 : index
    %c0_57 = arith.constant 0 : index
    %53 = vector.load %arg13[%c0_54, %c1_55, %c0_56, %c0_57] : memref<2x9x9x4xbf16, #tpu.memory_space<vmem>>, vector<2x8x8x4xbf16>
    %c0_58 = arith.constant 0 : index
    %c1_59 = arith.constant 1 : index
    %c0_60 = arith.constant 0 : index
    %c0_61 = arith.constant 0 : index
    %54 = vector.load %arg14[%c0_58, %c1_59, %c0_60, %c0_61] : memref<2x9x8x4xbf16, #tpu.memory_space<vmem>>, vector<2x8x8x4xbf16>
    %c0_62 = arith.constant 0 : index
    %c1_63 = arith.constant 1 : index
    %c1_64 = arith.constant 1 : index
    %c0_65 = arith.constant 0 : index
    %55 = vector.load %arg13[%c0_62, %c1_63, %c1_64, %c0_65] : memref<2x9x9x4xbf16, #tpu.memory_space<vmem>>, vector<2x8x8x4xbf16>
    %56 = vector.shape_cast %48 : vector<2x8x8x4xbf16> to vector<128x4xbf16>
    %57 = vector.shape_cast %49 : vector<2x8x8x4xbf16> to vector<128x4xbf16>
    %58 = vector.shape_cast %50 : vector<2x8x8x4xbf16> to vector<128x4xbf16>
    %59 = vector.shape_cast %51 : vector<2x8x8x4xbf16> to vector<128x4xbf16>
    %60 = vector.shape_cast %41 : vector<2x8x8x4xbf16> to vector<128x4xbf16>
    %61 = vector.shape_cast %52 : vector<2x8x8x4xbf16> to vector<128x4xbf16>
    %62 = vector.shape_cast %53 : vector<2x8x8x4xbf16> to vector<128x4xbf16>
    %63 = vector.shape_cast %54 : vector<2x8x8x4xbf16> to vector<128x4xbf16>
    %64 = vector.shape_cast %55 : vector<2x8x8x4xbf16> to vector<128x4xbf16>
    %65 = tpu.concatenate %56, %57, %58, %59, %60, %61, %62, %63, %64 in 1 : vector<128x4xbf16>, vector<128x4xbf16>, vector<128x4xbf16>, vector<128x4xbf16>, vector<128x4xbf16>, vector<128x4xbf16>, vector<128x4xbf16>, vector<128x4xbf16>, vector<128x4xbf16> -> vector<128x36xbf16>
    %c0_66 = arith.constant 0 : index
    %c0_67 = arith.constant 0 : index
    %66 = vector.load %arg7[%c0_66, %c0_67] : memref<36x8xbf16, #tpu.memory_space<vmem>>, vector<36x8xbf16>
    %cst_68 = arith.constant dense<0.000000e+00> : vector<128x8xf32>
    %67 = tpu.matmul %65, %66, %cst_68 {dimension_numbers = #tpu.dot_dimension_numbers<[1], [0], [0], [1], [0, 0, 1, 1], [], []>} : vector<128x36xbf16>, vector<36x8xbf16>, vector<128x8xf32> -> vector<128x8xf32>
    %68 = vector.shape_cast %67 : vector<128x8xf32> to vector<2x8x8x8xf32>
    %c0_69 = arith.constant 0 : index
    %c0_70 = arith.constant 0 : index
    %69 = vector.load %arg8[%c0_69, %c0_70] : memref<1x8xf32, #tpu.memory_space<vmem>>, vector<1x8xf32>
    %70 = vector.shape_cast %69 : vector<1x8xf32> to vector<1x1x1x8xf32>
    %71 = vector.broadcast %70 : vector<1x1x1x8xf32> to vector<2x8x8x8xf32>
    %72 = arith.mulf %68, %71 : vector<2x8x8x8xf32>
    %c0_71 = arith.constant 0 : index
    %c0_72 = arith.constant 0 : index
    %73 = vector.load %arg9[%c0_71, %c0_72] : memref<1x8xf32, #tpu.memory_space<vmem>>, vector<1x8xf32>
    %74 = vector.shape_cast %73 : vector<1x8xf32> to vector<1x1x1x8xf32>
    %75 = vector.broadcast %74 : vector<1x1x1x8xf32> to vector<2x8x8x8xf32>
    %76 = arith.addf %72, %75 : vector<2x8x8x8xf32>
    %cst_73 = arith.constant 0.000000e+00 : f32
    %77 = vector.broadcast %cst_73 : f32 to vector<2x8x8x8xf32>
    %78 = arith.maximumf %76, %77 : vector<2x8x8x8xf32>
    %79 = arith.truncf %78 : vector<2x8x8x8xf32> to vector<2x8x8x8xbf16>
    %c0_74 = arith.constant 0 : index
    %c1_75 = arith.constant 1 : index
    %c1_76 = arith.constant 1 : index
    %c0_77 = arith.constant 0 : index
    %80 = vector.load %arg16[%c0_74, %c1_75, %c1_76, %c0_77] : memref<2x10x10x8xbf16, #tpu.memory_space<vmem>>, vector<2x8x8x8xbf16>
    tpu.vector_store %arg16[%c0_74, %c1_75, %c1_76, %c0_77], %79 {strides = array<i32>} : memref<2x10x10x8xbf16, #tpu.memory_space<vmem>>, vector<2x8x8x8xbf16>,
    %c0_78 = arith.constant 0 : index
    %c0_79 = arith.constant 0 : index
    %c0_80 = arith.constant 0 : index
    %c0_81 = arith.constant 0 : index
    %81 = vector.load %arg16[%c0_78, %c0_79, %c0_80, %c0_81] : memref<2x10x10x8xbf16, #tpu.memory_space<vmem>>, vector<2x8x8x8xbf16>
    %c0_82 = arith.constant 0 : index
    %c0_83 = arith.constant 0 : index
    %c1_84 = arith.constant 1 : index
    %c0_85 = arith.constant 0 : index
    %82 = vector.load %arg16[%c0_82, %c0_83, %c1_84, %c0_85] : memref<2x10x10x8xbf16, #tpu.memory_space<vmem>>, vector<2x8x8x8xbf16>
    %c0_86 = arith.constant 0 : index
    %c0_87 = arith.constant 0 : index
    %c2 = arith.constant 2 : index
    %c0_88 = arith.constant 0 : index
    %83 = vector.load %arg16[%c0_86, %c0_87, %c2, %c0_88] : memref<2x10x10x8xbf16, #tpu.memory_space<vmem>>, vector<2x8x8x8xbf16>
    %c0_89 = arith.constant 0 : index
    %c1_90 = arith.constant 1 : index
    %c0_91 = arith.constant 0 : index
    %c0_92 = arith.constant 0 : index
    %84 = vector.load %arg16[%c0_89, %c1_90, %c0_91, %c0_92] : memref<2x10x10x8xbf16, #tpu.memory_space<vmem>>, vector<2x8x8x8xbf16>
    %c0_93 = arith.constant 0 : index
    %c1_94 = arith.constant 1 : index
    %c1_95 = arith.constant 1 : index
    %c0_96 = arith.constant 0 : index
    %85 = vector.load %arg16[%c0_93, %c1_94, %c1_95, %c0_96] : memref<2x10x10x8xbf16, #tpu.memory_space<vmem>>, vector<2x8x8x8xbf16>
    %c0_97 = arith.constant 0 : index
    %c1_98 = arith.constant 1 : index
    %c2_99 = arith.constant 2 : index
    %c0_100 = arith.constant 0 : index
    %86 = vector.load %arg16[%c0_97, %c1_98, %c2_99, %c0_100] : memref<2x10x10x8xbf16, #tpu.memory_space<vmem>>, vector<2x8x8x8xbf16>
    %c0_101 = arith.constant 0 : index
    %c2_102 = arith.constant 2 : index
    %c0_103 = arith.constant 0 : index
    %c0_104 = arith.constant 0 : index
    %87 = vector.load %arg16[%c0_101, %c2_102, %c0_103, %c0_104] : memref<2x10x10x8xbf16, #tpu.memory_space<vmem>>, vector<2x8x8x8xbf16>
    %c0_105 = arith.constant 0 : index
    %c2_106 = arith.constant 2 : index
    %c1_107 = arith.constant 1 : index
    %c0_108 = arith.constant 0 : index
    %88 = vector.load %arg16[%c0_105, %c2_106, %c1_107, %c0_108] : memref<2x10x10x8xbf16, #tpu.memory_space<vmem>>, vector<2x8x8x8xbf16>
    %c0_109 = arith.constant 0 : index
    %c2_110 = arith.constant 2 : index
    %c2_111 = arith.constant 2 : index
    %c0_112 = arith.constant 0 : index
    %89 = vector.load %arg16[%c0_109, %c2_110, %c2_111, %c0_112] : memref<2x10x10x8xbf16, #tpu.memory_space<vmem>>, vector<2x8x8x8xbf16>
    %90 = vector.shape_cast %81 : vector<2x8x8x8xbf16> to vector<128x8xbf16>
    %91 = vector.shape_cast %82 : vector<2x8x8x8xbf16> to vector<128x8xbf16>
    %92 = vector.shape_cast %83 : vector<2x8x8x8xbf16> to vector<128x8xbf16>
    %93 = vector.shape_cast %84 : vector<2x8x8x8xbf16> to vector<128x8xbf16>
    %94 = vector.shape_cast %85 : vector<2x8x8x8xbf16> to vector<128x8xbf16>
    %95 = vector.shape_cast %86 : vector<2x8x8x8xbf16> to vector<128x8xbf16>
    %96 = vector.shape_cast %87 : vector<2x8x8x8xbf16> to vector<128x8xbf16>
    %97 = vector.shape_cast %88 : vector<2x8x8x8xbf16> to vector<128x8xbf16>
    %98 = vector.shape_cast %89 : vector<2x8x8x8xbf16> to vector<128x8xbf16>
    %99 = tpu.concatenate %90, %91, %92, %93, %94, %95, %96, %97, %98 in 1 : vector<128x8xbf16>, vector<128x8xbf16>, vector<128x8xbf16>, vector<128x8xbf16>, vector<128x8xbf16>, vector<128x8xbf16>, vector<128x8xbf16>, vector<128x8xbf16>, vector<128x8xbf16> -> vector<128x72xbf16>
    %c0_113 = arith.constant 0 : index
    %c0_114 = arith.constant 0 : index
    %100 = vector.load %arg10[%c0_113, %c0_114] : memref<72x8xbf16, #tpu.memory_space<vmem>>, vector<72x8xbf16>
    %cst_115 = arith.constant dense<0.000000e+00> : vector<128x8xf32>
    %101 = tpu.matmul %99, %100, %cst_115 {dimension_numbers = #tpu.dot_dimension_numbers<[1], [0], [0], [1], [0, 0, 1, 1], [], []>} : vector<128x72xbf16>, vector<72x8xbf16>, vector<128x8xf32> -> vector<128x8xf32>
    %102 = vector.shape_cast %41 : vector<2x8x8x4xbf16> to vector<128x4xbf16>
    %c0_116 = arith.constant 0 : index
    %c0_117 = arith.constant 0 : index
    %103 = vector.load %arg11[%c0_116, %c0_117] : memref<4x8xbf16, #tpu.memory_space<vmem>>, vector<4x8xbf16>
    %cst_118 = arith.constant dense<0.000000e+00> : vector<128x8xf32>
    %104 = tpu.matmul %102, %103, %cst_118 {dimension_numbers = #tpu.dot_dimension_numbers<[1], [0], [0], [1], [0, 0, 1, 1], [], []>} : vector<128x4xbf16>, vector<4x8xbf16>, vector<128x8xf32> -> vector<128x8xf32>
    %105 = arith.addf %101, %104 : vector<128x8xf32>
    %106 = vector.shape_cast %105 : vector<128x8xf32> to vector<2x64x8xf32>
    %c0_119 = arith.constant 0 : index
    %c0_120 = arith.constant 0 : index
    %c0_121 = arith.constant 0 : index
    %107 = vector.load %arg12[%c0_119, %c0_120, %c0_121] : memref<2x64x8xf32, #tpu.memory_space<vmem>>, vector<2x64x8xf32>
    tpu.vector_store %arg12[%c0_119, %c0_120, %c0_121], %106 {strides = array<i32>} : memref<2x64x8xf32, #tpu.memory_space<vmem>>, vector<2x64x8xf32>,
    return
  }
  func.func @transform_0(%arg0: i32) -> (i32, i32, i32, i32) {
    %c0_i32 = arith.constant 0 : i32
    %c0_i32_0 = arith.constant 0 : i32
    %c0_i32_1 = arith.constant 0 : i32
    %c0_i32_2 = arith.constant 0 : i32
    return %arg0, %c0_i32, %c0_i32_0, %c0_i32_1 : i32, i32, i32, i32
  }
  func.func @transform_1(%arg0: i32) -> (i32, i32, i32, i32) {
    %c0_i32 = arith.constant 0 : i32
    %c0_i32_0 = arith.constant 0 : i32
    %c0_i32_1 = arith.constant 0 : i32
    %c0_i32_2 = arith.constant 0 : i32
    return %arg0, %c0_i32, %c0_i32_0, %c0_i32_1 : i32, i32, i32, i32
  }
  func.func @transform_2(%arg0: i32) -> (i32, i32, i32, i32) {
    %c0_i32 = arith.constant 0 : i32
    %c0_i32_0 = arith.constant 0 : i32
    %c0_i32_1 = arith.constant 0 : i32
    %c0_i32_2 = arith.constant 0 : i32
    return %arg0, %c0_i32, %c0_i32_0, %c0_i32_1 : i32, i32, i32, i32
  }
  func.func @transform_3(%arg0: i32) -> (i32, i32, i32, i32) {
    %c0_i32 = arith.constant 0 : i32
    %c0_i32_0 = arith.constant 0 : i32
    %c0_i32_1 = arith.constant 0 : i32
    %c0_i32_2 = arith.constant 0 : i32
    return %arg0, %c0_i32, %c0_i32_0, %c0_i32_1 : i32, i32, i32, i32
  }
  func.func @transform_4(%arg0: i32) -> (i32, i32) {
    %c0_i32 = arith.constant 0 : i32
    %c0_i32_0 = arith.constant 0 : i32
    %c0_i32_1 = arith.constant 0 : i32
    return %c0_i32, %c0_i32_0 : i32, i32
  }
  func.func @transform_5(%arg0: i32) -> (i32, i32) {
    %c0_i32 = arith.constant 0 : i32
    %c0_i32_0 = arith.constant 0 : i32
    %c0_i32_1 = arith.constant 0 : i32
    return %c0_i32, %c0_i32_0 : i32, i32
  }
  func.func @transform_6(%arg0: i32) -> (i32, i32) {
    %c0_i32 = arith.constant 0 : i32
    %c0_i32_0 = arith.constant 0 : i32
    %c0_i32_1 = arith.constant 0 : i32
    return %c0_i32, %c0_i32_0 : i32, i32
  }
  func.func @transform_7(%arg0: i32) -> (i32, i32) {
    %c0_i32 = arith.constant 0 : i32
    %c0_i32_0 = arith.constant 0 : i32
    %c0_i32_1 = arith.constant 0 : i32
    return %c0_i32, %c0_i32_0 : i32, i32
  }
  func.func @transform_8(%arg0: i32) -> (i32, i32) {
    %c0_i32 = arith.constant 0 : i32
    %c0_i32_0 = arith.constant 0 : i32
    %c0_i32_1 = arith.constant 0 : i32
    return %c0_i32, %c0_i32_0 : i32, i32
  }
  func.func @transform_9(%arg0: i32) -> (i32, i32) {
    %c0_i32 = arith.constant 0 : i32
    %c0_i32_0 = arith.constant 0 : i32
    %c0_i32_1 = arith.constant 0 : i32
    return %c0_i32, %c0_i32_0 : i32, i32
  }
  func.func @transform_10(%arg0: i32) -> (i32, i32) {
    %c0_i32 = arith.constant 0 : i32
    %c0_i32_0 = arith.constant 0 : i32
    %c0_i32_1 = arith.constant 0 : i32
    return %c0_i32, %c0_i32_0 : i32, i32
  }
  func.func @transform_11(%arg0: i32) -> (i32, i32, i32) {
    %c0_i32 = arith.constant 0 : i32
    %c0_i32_0 = arith.constant 0 : i32
    %c0_i32_1 = arith.constant 0 : i32
    return %arg0, %c0_i32, %c0_i32_0 : i32, i32, i32
  }
}

module attributes {stable_mosaic.version = 11 : i64} {
  func.func @kernel(%arg0: i32, %arg1: memref<2x8x8x8xf32, #tpu.memory_space<vmem>>, %arg2: memref<1x8xf32, #tpu.memory_space<vmem>>, %arg3: memref<1x8xf32, #tpu.memory_space<vmem>>, %arg4: memref<72x8xbf16, #tpu.memory_space<vmem>>, %arg5: memref<1x8xf32, #tpu.memory_space<vmem>>, %arg6: memref<1x8xf32, #tpu.memory_space<vmem>>, %arg7: memref<72x8xbf16, #tpu.memory_space<vmem>>, %arg8: memref<2x64x8xf32, #tpu.memory_space<vmem>>, %arg9: memref<2x10x10x8xbf16, #tpu.memory_space<vmem>>, %arg10: memref<2x10x10x8xbf16, #tpu.memory_space<vmem>>) attributes {dimension_semantics = [#tpu.dimension_semantics<arbitrary>], iteration_bounds = array<i64: 1>, scalar_prefetch = 0 : i64, scratch_operands = 2 : i64, tpu.core_type = #tpu.core_type<tc>, window_params = [{transform_indices = @transform_0, window_bounds = array<i64: 2, 8, 8, 8>}, {pipeline_mode = #tpu.pipeline_mode<synchronous>, transform_indices = @transform_1, window_bounds = array<i64: 1, 8>}, {pipeline_mode = #tpu.pipeline_mode<synchronous>, transform_indices = @transform_2, window_bounds = array<i64: 1, 8>}, {pipeline_mode = #tpu.pipeline_mode<synchronous>, transform_indices = @transform_3, window_bounds = array<i64: 72, 8>}, {pipeline_mode = #tpu.pipeline_mode<synchronous>, transform_indices = @transform_4, window_bounds = array<i64: 1, 8>}, {pipeline_mode = #tpu.pipeline_mode<synchronous>, transform_indices = @transform_5, window_bounds = array<i64: 1, 8>}, {pipeline_mode = #tpu.pipeline_mode<synchronous>, transform_indices = @transform_6, window_bounds = array<i64: 72, 8>}, {transform_indices = @transform_7, window_bounds = array<i64: 2, 64, 8>}]} {
    %c0_i32 = arith.constant 0 : i32
    %0 = arith.cmpi eq, %arg0, %c0_i32 : i32
    %1 = arith.extui %0 : i1 to i32
    %c0_i32_0 = arith.constant 0 : i32
    %2 = arith.cmpi ne, %1, %c0_i32_0 : i32
    scf.if %2 {
      %cst_104 = arith.constant 0.000000e+00 : bf16
      %76 = vector.broadcast %cst_104 : bf16 to vector<2x1x10x8xbf16>
      %cst_105 = arith.constant 0.000000e+00 : bf16
      %77 = vector.broadcast %cst_105 : bf16 to vector<2x10x1x8xbf16>
      %c0_106 = arith.constant 0 : index
      %c0_107 = arith.constant 0 : index
      %c0_108 = arith.constant 0 : index
      %c0_109 = arith.constant 0 : index
      %78 = vector.load %arg9[%c0_106, %c0_107, %c0_108, %c0_109] : memref<2x10x10x8xbf16, #tpu.memory_space<vmem>>, vector<2x1x10x8xbf16>
      tpu.vector_store %arg9[%c0_106, %c0_107, %c0_108, %c0_109], %76 {strides = array<i32>} : memref<2x10x10x8xbf16, #tpu.memory_space<vmem>>, vector<2x1x10x8xbf16>,
      %c0_110 = arith.constant 0 : index
      %c9 = arith.constant 9 : index
      %c0_111 = arith.constant 0 : index
      %c0_112 = arith.constant 0 : index
      %79 = vector.load %arg9[%c0_110, %c9, %c0_111, %c0_112] : memref<2x10x10x8xbf16, #tpu.memory_space<vmem>>, vector<2x1x10x8xbf16>
      tpu.vector_store %arg9[%c0_110, %c9, %c0_111, %c0_112], %76 {strides = array<i32>} : memref<2x10x10x8xbf16, #tpu.memory_space<vmem>>, vector<2x1x10x8xbf16>,
      %c0_113 = arith.constant 0 : index
      %c0_114 = arith.constant 0 : index
      %c0_115 = arith.constant 0 : index
      %c0_116 = arith.constant 0 : index
      %80 = vector.load %arg9[%c0_113, %c0_114, %c0_115, %c0_116] : memref<2x10x10x8xbf16, #tpu.memory_space<vmem>>, vector<2x10x1x8xbf16>
      tpu.vector_store %arg9[%c0_113, %c0_114, %c0_115, %c0_116], %77 {strides = array<i32>} : memref<2x10x10x8xbf16, #tpu.memory_space<vmem>>, vector<2x10x1x8xbf16>,
      %c0_117 = arith.constant 0 : index
      %c0_118 = arith.constant 0 : index
      %c9_119 = arith.constant 9 : index
      %c0_120 = arith.constant 0 : index
      %81 = vector.load %arg9[%c0_117, %c0_118, %c9_119, %c0_120] : memref<2x10x10x8xbf16, #tpu.memory_space<vmem>>, vector<2x10x1x8xbf16>
      tpu.vector_store %arg9[%c0_117, %c0_118, %c9_119, %c0_120], %77 {strides = array<i32>} : memref<2x10x10x8xbf16, #tpu.memory_space<vmem>>, vector<2x10x1x8xbf16>,
      %cst_121 = arith.constant 0.000000e+00 : bf16
      %82 = vector.broadcast %cst_121 : bf16 to vector<2x1x10x8xbf16>
      %cst_122 = arith.constant 0.000000e+00 : bf16
      %83 = vector.broadcast %cst_122 : bf16 to vector<2x10x1x8xbf16>
      %c0_123 = arith.constant 0 : index
      %c0_124 = arith.constant 0 : index
      %c0_125 = arith.constant 0 : index
      %c0_126 = arith.constant 0 : index
      %84 = vector.load %arg10[%c0_123, %c0_124, %c0_125, %c0_126] : memref<2x10x10x8xbf16, #tpu.memory_space<vmem>>, vector<2x1x10x8xbf16>
      tpu.vector_store %arg10[%c0_123, %c0_124, %c0_125, %c0_126], %82 {strides = array<i32>} : memref<2x10x10x8xbf16, #tpu.memory_space<vmem>>, vector<2x1x10x8xbf16>,
      %c0_127 = arith.constant 0 : index
      %c9_128 = arith.constant 9 : index
      %c0_129 = arith.constant 0 : index
      %c0_130 = arith.constant 0 : index
      %85 = vector.load %arg10[%c0_127, %c9_128, %c0_129, %c0_130] : memref<2x10x10x8xbf16, #tpu.memory_space<vmem>>, vector<2x1x10x8xbf16>
      tpu.vector_store %arg10[%c0_127, %c9_128, %c0_129, %c0_130], %82 {strides = array<i32>} : memref<2x10x10x8xbf16, #tpu.memory_space<vmem>>, vector<2x1x10x8xbf16>,
      %c0_131 = arith.constant 0 : index
      %c0_132 = arith.constant 0 : index
      %c0_133 = arith.constant 0 : index
      %c0_134 = arith.constant 0 : index
      %86 = vector.load %arg10[%c0_131, %c0_132, %c0_133, %c0_134] : memref<2x10x10x8xbf16, #tpu.memory_space<vmem>>, vector<2x10x1x8xbf16>
      tpu.vector_store %arg10[%c0_131, %c0_132, %c0_133, %c0_134], %83 {strides = array<i32>} : memref<2x10x10x8xbf16, #tpu.memory_space<vmem>>, vector<2x10x1x8xbf16>,
      %c0_135 = arith.constant 0 : index
      %c0_136 = arith.constant 0 : index
      %c9_137 = arith.constant 9 : index
      %c0_138 = arith.constant 0 : index
      %87 = vector.load %arg10[%c0_135, %c0_136, %c9_137, %c0_138] : memref<2x10x10x8xbf16, #tpu.memory_space<vmem>>, vector<2x10x1x8xbf16>
      tpu.vector_store %arg10[%c0_135, %c0_136, %c9_137, %c0_138], %83 {strides = array<i32>} : memref<2x10x10x8xbf16, #tpu.memory_space<vmem>>, vector<2x10x1x8xbf16>,
    } else {
    }
    %c0 = arith.constant 0 : index
    %c0_1 = arith.constant 0 : index
    %c0_2 = arith.constant 0 : index
    %c0_3 = arith.constant 0 : index
    %3 = vector.load %arg1[%c0, %c0_1, %c0_2, %c0_3] : memref<2x8x8x8xf32, #tpu.memory_space<vmem>>, vector<2x8x8x8xf32>
    %c0_4 = arith.constant 0 : index
    %c0_5 = arith.constant 0 : index
    %4 = vector.load %arg2[%c0_4, %c0_5] : memref<1x8xf32, #tpu.memory_space<vmem>>, vector<1x8xf32>
    %5 = vector.shape_cast %4 : vector<1x8xf32> to vector<1x1x1x8xf32>
    %6 = vector.broadcast %5 : vector<1x1x1x8xf32> to vector<2x8x8x8xf32>
    %7 = arith.mulf %3, %6 : vector<2x8x8x8xf32>
    %c0_6 = arith.constant 0 : index
    %c0_7 = arith.constant 0 : index
    %8 = vector.load %arg3[%c0_6, %c0_7] : memref<1x8xf32, #tpu.memory_space<vmem>>, vector<1x8xf32>
    %9 = vector.shape_cast %8 : vector<1x8xf32> to vector<1x1x1x8xf32>
    %10 = vector.broadcast %9 : vector<1x1x1x8xf32> to vector<2x8x8x8xf32>
    %11 = arith.addf %7, %10 : vector<2x8x8x8xf32>
    %cst = arith.constant 0.000000e+00 : f32
    %12 = vector.broadcast %cst : f32 to vector<2x8x8x8xf32>
    %13 = arith.maximumf %11, %12 : vector<2x8x8x8xf32>
    %14 = arith.truncf %13 : vector<2x8x8x8xf32> to vector<2x8x8x8xbf16>
    %c0_8 = arith.constant 0 : index
    %c1 = arith.constant 1 : index
    %c1_9 = arith.constant 1 : index
    %c0_10 = arith.constant 0 : index
    %15 = vector.load %arg9[%c0_8, %c1, %c1_9, %c0_10] : memref<2x10x10x8xbf16, #tpu.memory_space<vmem>>, vector<2x8x8x8xbf16>
    tpu.vector_store %arg9[%c0_8, %c1, %c1_9, %c0_10], %14 {strides = array<i32>} : memref<2x10x10x8xbf16, #tpu.memory_space<vmem>>, vector<2x8x8x8xbf16>,
    %c0_11 = arith.constant 0 : index
    %c0_12 = arith.constant 0 : index
    %c0_13 = arith.constant 0 : index
    %c0_14 = arith.constant 0 : index
    %16 = vector.load %arg9[%c0_11, %c0_12, %c0_13, %c0_14] : memref<2x10x10x8xbf16, #tpu.memory_space<vmem>>, vector<2x8x8x8xbf16>
    %c0_15 = arith.constant 0 : index
    %c0_16 = arith.constant 0 : index
    %c1_17 = arith.constant 1 : index
    %c0_18 = arith.constant 0 : index
    %17 = vector.load %arg9[%c0_15, %c0_16, %c1_17, %c0_18] : memref<2x10x10x8xbf16, #tpu.memory_space<vmem>>, vector<2x8x8x8xbf16>
    %c0_19 = arith.constant 0 : index
    %c0_20 = arith.constant 0 : index
    %c2 = arith.constant 2 : index
    %c0_21 = arith.constant 0 : index
    %18 = vector.load %arg9[%c0_19, %c0_20, %c2, %c0_21] : memref<2x10x10x8xbf16, #tpu.memory_space<vmem>>, vector<2x8x8x8xbf16>
    %c0_22 = arith.constant 0 : index
    %c1_23 = arith.constant 1 : index
    %c0_24 = arith.constant 0 : index
    %c0_25 = arith.constant 0 : index
    %19 = vector.load %arg9[%c0_22, %c1_23, %c0_24, %c0_25] : memref<2x10x10x8xbf16, #tpu.memory_space<vmem>>, vector<2x8x8x8xbf16>
    %c0_26 = arith.constant 0 : index
    %c1_27 = arith.constant 1 : index
    %c1_28 = arith.constant 1 : index
    %c0_29 = arith.constant 0 : index
    %20 = vector.load %arg9[%c0_26, %c1_27, %c1_28, %c0_29] : memref<2x10x10x8xbf16, #tpu.memory_space<vmem>>, vector<2x8x8x8xbf16>
    %c0_30 = arith.constant 0 : index
    %c1_31 = arith.constant 1 : index
    %c2_32 = arith.constant 2 : index
    %c0_33 = arith.constant 0 : index
    %21 = vector.load %arg9[%c0_30, %c1_31, %c2_32, %c0_33] : memref<2x10x10x8xbf16, #tpu.memory_space<vmem>>, vector<2x8x8x8xbf16>
    %c0_34 = arith.constant 0 : index
    %c2_35 = arith.constant 2 : index
    %c0_36 = arith.constant 0 : index
    %c0_37 = arith.constant 0 : index
    %22 = vector.load %arg9[%c0_34, %c2_35, %c0_36, %c0_37] : memref<2x10x10x8xbf16, #tpu.memory_space<vmem>>, vector<2x8x8x8xbf16>
    %c0_38 = arith.constant 0 : index
    %c2_39 = arith.constant 2 : index
    %c1_40 = arith.constant 1 : index
    %c0_41 = arith.constant 0 : index
    %23 = vector.load %arg9[%c0_38, %c2_39, %c1_40, %c0_41] : memref<2x10x10x8xbf16, #tpu.memory_space<vmem>>, vector<2x8x8x8xbf16>
    %c0_42 = arith.constant 0 : index
    %c2_43 = arith.constant 2 : index
    %c2_44 = arith.constant 2 : index
    %c0_45 = arith.constant 0 : index
    %24 = vector.load %arg9[%c0_42, %c2_43, %c2_44, %c0_45] : memref<2x10x10x8xbf16, #tpu.memory_space<vmem>>, vector<2x8x8x8xbf16>
    %25 = vector.shape_cast %16 : vector<2x8x8x8xbf16> to vector<128x8xbf16>
    %26 = vector.shape_cast %17 : vector<2x8x8x8xbf16> to vector<128x8xbf16>
    %27 = vector.shape_cast %18 : vector<2x8x8x8xbf16> to vector<128x8xbf16>
    %28 = vector.shape_cast %19 : vector<2x8x8x8xbf16> to vector<128x8xbf16>
    %29 = vector.shape_cast %20 : vector<2x8x8x8xbf16> to vector<128x8xbf16>
    %30 = vector.shape_cast %21 : vector<2x8x8x8xbf16> to vector<128x8xbf16>
    %31 = vector.shape_cast %22 : vector<2x8x8x8xbf16> to vector<128x8xbf16>
    %32 = vector.shape_cast %23 : vector<2x8x8x8xbf16> to vector<128x8xbf16>
    %33 = vector.shape_cast %24 : vector<2x8x8x8xbf16> to vector<128x8xbf16>
    %34 = tpu.concatenate %25, %26, %27, %28, %29, %30, %31, %32, %33 in 1 : vector<128x8xbf16>, vector<128x8xbf16>, vector<128x8xbf16>, vector<128x8xbf16>, vector<128x8xbf16>, vector<128x8xbf16>, vector<128x8xbf16>, vector<128x8xbf16>, vector<128x8xbf16> -> vector<128x72xbf16>
    %c0_46 = arith.constant 0 : index
    %c0_47 = arith.constant 0 : index
    %35 = vector.load %arg4[%c0_46, %c0_47] : memref<72x8xbf16, #tpu.memory_space<vmem>>, vector<72x8xbf16>
    %cst_48 = arith.constant dense<0.000000e+00> : vector<128x8xf32>
    %36 = tpu.matmul %34, %35, %cst_48 {dimension_numbers = #tpu.dot_dimension_numbers<[1], [0], [0], [1], [0, 0, 1, 1], [], []>} : vector<128x72xbf16>, vector<72x8xbf16>, vector<128x8xf32> -> vector<128x8xf32>
    %37 = vector.shape_cast %36 : vector<128x8xf32> to vector<2x8x8x8xf32>
    %c0_49 = arith.constant 0 : index
    %c0_50 = arith.constant 0 : index
    %38 = vector.load %arg5[%c0_49, %c0_50] : memref<1x8xf32, #tpu.memory_space<vmem>>, vector<1x8xf32>
    %39 = vector.shape_cast %38 : vector<1x8xf32> to vector<1x1x1x8xf32>
    %40 = vector.broadcast %39 : vector<1x1x1x8xf32> to vector<2x8x8x8xf32>
    %41 = arith.mulf %37, %40 : vector<2x8x8x8xf32>
    %c0_51 = arith.constant 0 : index
    %c0_52 = arith.constant 0 : index
    %42 = vector.load %arg6[%c0_51, %c0_52] : memref<1x8xf32, #tpu.memory_space<vmem>>, vector<1x8xf32>
    %43 = vector.shape_cast %42 : vector<1x8xf32> to vector<1x1x1x8xf32>
    %44 = vector.broadcast %43 : vector<1x1x1x8xf32> to vector<2x8x8x8xf32>
    %45 = arith.addf %41, %44 : vector<2x8x8x8xf32>
    %cst_53 = arith.constant 0.000000e+00 : f32
    %46 = vector.broadcast %cst_53 : f32 to vector<2x8x8x8xf32>
    %47 = arith.maximumf %45, %46 : vector<2x8x8x8xf32>
    %48 = arith.truncf %47 : vector<2x8x8x8xf32> to vector<2x8x8x8xbf16>
    %c0_54 = arith.constant 0 : index
    %c1_55 = arith.constant 1 : index
    %c1_56 = arith.constant 1 : index
    %c0_57 = arith.constant 0 : index
    %49 = vector.load %arg10[%c0_54, %c1_55, %c1_56, %c0_57] : memref<2x10x10x8xbf16, #tpu.memory_space<vmem>>, vector<2x8x8x8xbf16>
    tpu.vector_store %arg10[%c0_54, %c1_55, %c1_56, %c0_57], %48 {strides = array<i32>} : memref<2x10x10x8xbf16, #tpu.memory_space<vmem>>, vector<2x8x8x8xbf16>,
    %c0_58 = arith.constant 0 : index
    %c0_59 = arith.constant 0 : index
    %c0_60 = arith.constant 0 : index
    %c0_61 = arith.constant 0 : index
    %50 = vector.load %arg10[%c0_58, %c0_59, %c0_60, %c0_61] : memref<2x10x10x8xbf16, #tpu.memory_space<vmem>>, vector<2x8x8x8xbf16>
    %c0_62 = arith.constant 0 : index
    %c0_63 = arith.constant 0 : index
    %c1_64 = arith.constant 1 : index
    %c0_65 = arith.constant 0 : index
    %51 = vector.load %arg10[%c0_62, %c0_63, %c1_64, %c0_65] : memref<2x10x10x8xbf16, #tpu.memory_space<vmem>>, vector<2x8x8x8xbf16>
    %c0_66 = arith.constant 0 : index
    %c0_67 = arith.constant 0 : index
    %c2_68 = arith.constant 2 : index
    %c0_69 = arith.constant 0 : index
    %52 = vector.load %arg10[%c0_66, %c0_67, %c2_68, %c0_69] : memref<2x10x10x8xbf16, #tpu.memory_space<vmem>>, vector<2x8x8x8xbf16>
    %c0_70 = arith.constant 0 : index
    %c1_71 = arith.constant 1 : index
    %c0_72 = arith.constant 0 : index
    %c0_73 = arith.constant 0 : index
    %53 = vector.load %arg10[%c0_70, %c1_71, %c0_72, %c0_73] : memref<2x10x10x8xbf16, #tpu.memory_space<vmem>>, vector<2x8x8x8xbf16>
    %c0_74 = arith.constant 0 : index
    %c1_75 = arith.constant 1 : index
    %c1_76 = arith.constant 1 : index
    %c0_77 = arith.constant 0 : index
    %54 = vector.load %arg10[%c0_74, %c1_75, %c1_76, %c0_77] : memref<2x10x10x8xbf16, #tpu.memory_space<vmem>>, vector<2x8x8x8xbf16>
    %c0_78 = arith.constant 0 : index
    %c1_79 = arith.constant 1 : index
    %c2_80 = arith.constant 2 : index
    %c0_81 = arith.constant 0 : index
    %55 = vector.load %arg10[%c0_78, %c1_79, %c2_80, %c0_81] : memref<2x10x10x8xbf16, #tpu.memory_space<vmem>>, vector<2x8x8x8xbf16>
    %c0_82 = arith.constant 0 : index
    %c2_83 = arith.constant 2 : index
    %c0_84 = arith.constant 0 : index
    %c0_85 = arith.constant 0 : index
    %56 = vector.load %arg10[%c0_82, %c2_83, %c0_84, %c0_85] : memref<2x10x10x8xbf16, #tpu.memory_space<vmem>>, vector<2x8x8x8xbf16>
    %c0_86 = arith.constant 0 : index
    %c2_87 = arith.constant 2 : index
    %c1_88 = arith.constant 1 : index
    %c0_89 = arith.constant 0 : index
    %57 = vector.load %arg10[%c0_86, %c2_87, %c1_88, %c0_89] : memref<2x10x10x8xbf16, #tpu.memory_space<vmem>>, vector<2x8x8x8xbf16>
    %c0_90 = arith.constant 0 : index
    %c2_91 = arith.constant 2 : index
    %c2_92 = arith.constant 2 : index
    %c0_93 = arith.constant 0 : index
    %58 = vector.load %arg10[%c0_90, %c2_91, %c2_92, %c0_93] : memref<2x10x10x8xbf16, #tpu.memory_space<vmem>>, vector<2x8x8x8xbf16>
    %59 = vector.shape_cast %50 : vector<2x8x8x8xbf16> to vector<128x8xbf16>
    %60 = vector.shape_cast %51 : vector<2x8x8x8xbf16> to vector<128x8xbf16>
    %61 = vector.shape_cast %52 : vector<2x8x8x8xbf16> to vector<128x8xbf16>
    %62 = vector.shape_cast %53 : vector<2x8x8x8xbf16> to vector<128x8xbf16>
    %63 = vector.shape_cast %54 : vector<2x8x8x8xbf16> to vector<128x8xbf16>
    %64 = vector.shape_cast %55 : vector<2x8x8x8xbf16> to vector<128x8xbf16>
    %65 = vector.shape_cast %56 : vector<2x8x8x8xbf16> to vector<128x8xbf16>
    %66 = vector.shape_cast %57 : vector<2x8x8x8xbf16> to vector<128x8xbf16>
    %67 = vector.shape_cast %58 : vector<2x8x8x8xbf16> to vector<128x8xbf16>
    %68 = tpu.concatenate %59, %60, %61, %62, %63, %64, %65, %66, %67 in 1 : vector<128x8xbf16>, vector<128x8xbf16>, vector<128x8xbf16>, vector<128x8xbf16>, vector<128x8xbf16>, vector<128x8xbf16>, vector<128x8xbf16>, vector<128x8xbf16>, vector<128x8xbf16> -> vector<128x72xbf16>
    %c0_94 = arith.constant 0 : index
    %c0_95 = arith.constant 0 : index
    %69 = vector.load %arg7[%c0_94, %c0_95] : memref<72x8xbf16, #tpu.memory_space<vmem>>, vector<72x8xbf16>
    %cst_96 = arith.constant dense<0.000000e+00> : vector<128x8xf32>
    %70 = tpu.matmul %68, %69, %cst_96 {dimension_numbers = #tpu.dot_dimension_numbers<[1], [0], [0], [1], [0, 0, 1, 1], [], []>} : vector<128x72xbf16>, vector<72x8xbf16>, vector<128x8xf32> -> vector<128x8xf32>
    %c0_97 = arith.constant 0 : index
    %c0_98 = arith.constant 0 : index
    %c0_99 = arith.constant 0 : index
    %c0_100 = arith.constant 0 : index
    %71 = vector.load %arg1[%c0_97, %c0_98, %c0_99, %c0_100] : memref<2x8x8x8xf32, #tpu.memory_space<vmem>>, vector<2x8x8x8xf32>
    %72 = vector.shape_cast %71 : vector<2x8x8x8xf32> to vector<128x8xf32>
    %73 = arith.addf %70, %72 : vector<128x8xf32>
    %74 = vector.shape_cast %73 : vector<128x8xf32> to vector<2x64x8xf32>
    %c0_101 = arith.constant 0 : index
    %c0_102 = arith.constant 0 : index
    %c0_103 = arith.constant 0 : index
    %75 = vector.load %arg8[%c0_101, %c0_102, %c0_103] : memref<2x64x8xf32, #tpu.memory_space<vmem>>, vector<2x64x8xf32>
    tpu.vector_store %arg8[%c0_101, %c0_102, %c0_103], %74 {strides = array<i32>} : memref<2x64x8xf32, #tpu.memory_space<vmem>>, vector<2x64x8xf32>,
    return
  }
  func.func @transform_0(%arg0: i32) -> (i32, i32, i32, i32) {
    %c0_i32 = arith.constant 0 : i32
    %c0_i32_0 = arith.constant 0 : i32
    %c0_i32_1 = arith.constant 0 : i32
    %c0_i32_2 = arith.constant 0 : i32
    return %arg0, %c0_i32, %c0_i32_0, %c0_i32_1 : i32, i32, i32, i32
  }
  func.func @transform_1(%arg0: i32) -> (i32, i32) {
    %c0_i32 = arith.constant 0 : i32
    %c0_i32_0 = arith.constant 0 : i32
    %c0_i32_1 = arith.constant 0 : i32
    return %c0_i32, %c0_i32_0 : i32, i32
  }
  func.func @transform_2(%arg0: i32) -> (i32, i32) {
    %c0_i32 = arith.constant 0 : i32
    %c0_i32_0 = arith.constant 0 : i32
    %c0_i32_1 = arith.constant 0 : i32
    return %c0_i32, %c0_i32_0 : i32, i32
  }
  func.func @transform_3(%arg0: i32) -> (i32, i32) {
    %c0_i32 = arith.constant 0 : i32
    %c0_i32_0 = arith.constant 0 : i32
    %c0_i32_1 = arith.constant 0 : i32
    return %c0_i32, %c0_i32_0 : i32, i32
  }
  func.func @transform_4(%arg0: i32) -> (i32, i32) {
    %c0_i32 = arith.constant 0 : i32
    %c0_i32_0 = arith.constant 0 : i32
    %c0_i32_1 = arith.constant 0 : i32
    return %c0_i32, %c0_i32_0 : i32, i32
  }
  func.func @transform_5(%arg0: i32) -> (i32, i32) {
    %c0_i32 = arith.constant 0 : i32
    %c0_i32_0 = arith.constant 0 : i32
    %c0_i32_1 = arith.constant 0 : i32
    return %c0_i32, %c0_i32_0 : i32, i32
  }
  func.func @transform_6(%arg0: i32) -> (i32, i32) {
    %c0_i32 = arith.constant 0 : i32
    %c0_i32_0 = arith.constant 0 : i32
    %c0_i32_1 = arith.constant 0 : i32
    return %c0_i32, %c0_i32_0 : i32, i32
  }
  func.func @transform_7(%arg0: i32) -> (i32, i32, i32) {
    %c0_i32 = arith.constant 0 : i32
    %c0_i32_0 = arith.constant 0 : i32
    %c0_i32_1 = arith.constant 0 : i32
    return %arg0, %c0_i32, %c0_i32_0 : i32, i32, i32
  }
}

</mosaic_0001>

<llo_original>
// kernel: network_block_forward.3
$region0: #{network_block_forward.3}
  #allocation0 [shape = 'u32[]', space=smem, size = 0x4, offset = 0x4, fixed_abs, tag = 'smem constant byte address 0x4 - core index']
  #allocation1 [shape = 'u32[144,128]{1,0:T(1,128)}', space=vmem, size = 0x12000, scoped, tag = 'internal scratch']
  #allocation2 [shape = 'bf16[2,10,10,8]{3,2,1,0:T(8,128)(2,1)}', space=vmem, size = 0x14000, scoped, tag = 'scratch operand']
  #allocation3 [shape = 'bf16[2,10,10,8]{3,2,1,0:T(8,128)(2,1)}', space=vmem, size = 0x14000, scoped, tag = 'scratch operand']
  %s0 = inlined_call_operand.vmem [shape: f32[2,8,8,8], index: 0, kind: input, shape index: {}]
  %s1 = inlined_call_operand.vmem [shape: f32[1,8], index: 1, kind: input, shape index: {}]
  %s2 = inlined_call_operand.vmem [shape: f32[1,8], index: 2, kind: input, shape index: {}]
  %s3 = inlined_call_operand.vmem [shape: bf16[72,8], index: 3, kind: input, shape index: {}]
  %s4 = inlined_call_operand.vmem [shape: f32[1,8], index: 4, kind: input, shape index: {}]
  %s5 = inlined_call_operand.vmem [shape: f32[1,8], index: 5, kind: input, shape index: {}]
  %s6 = inlined_call_operand.vmem [shape: bf16[72,8], index: 6, kind: input, shape index: {}]
  %s7 = inlined_call_operand.vmem [shape: f32[2,64,8], index: 7, kind: output, shape index: {}]
  %s8 = sld [smem:[#allocation0]]
  $region42: #{network_block_forward.3} parent=0
    _
  %s10 = ssub.s32 1, %s8
  %s11 = scalar_select 0, %s10, %s8
  // Predicated region
  $region2: #{network_block_forward.3} parent=0 // pred_check
    _
  $region3: #{network_block_forward.3} parent=0 // pred_check_branch
    %13 = sbr.rel (0) target = $region5
  $region4: #{network_block_forward.3} parent=0 // pred_region
    _
  $region5: #{network_block_forward.3} parent=0 // pred_fallthru
    _
  // Predicated region
  $region6: #{network_block_forward.3} parent=0 // pred_check
    _
  $region7: #{network_block_forward.3} parent=0 // pred_check_branch
    %15 = sbr.rel (0) target = $region9
  $region8: #{network_block_forward.3} parent=0 // pred_region
    _
  $region9: #{network_block_forward.3} parent=0 // pred_fallthru
    _
  // Predicated region
  $region10: #{network_block_forward.3} parent=0 // pred_check
    _
  $region11: #{network_block_forward.3} parent=0 // pred_check_branch
    %17 = sbr.rel (0) target = $region13
  $region12: #{network_block_forward.3} parent=0 // pred_region
    _
  $region13: #{network_block_forward.3} parent=0 // pred_fallthru
    _
  // Predicated region
  $region14: #{network_block_forward.3} parent=0 // pred_check
    _
  $region15: #{network_block_forward.3} parent=0 // pred_check_branch
    %19 = sbr.rel (0) target = $region17
  $region16: #{network_block_forward.3} parent=0 // pred_region
    _
  $region17: #{network_block_forward.3} parent=0 // pred_fallthru
    _
  // Predicated region
  $region18: #{network_block_forward.3} parent=0 // pred_check
    _
  $region19: #{network_block_forward.3} parent=0 // pred_check_branch
    %21 = sbr.rel (0) target = $region21
  $region20: #{network_block_forward.3} parent=0 // pred_region
    _
  $region21: #{network_block_forward.3} parent=0 // pred_fallthru
    _
  // Predicated region
  $region22: #{network_block_forward.3} parent=0 // pred_check
    _
  $region23: #{network_block_forward.3} parent=0 // pred_check_branch
    %23 = sbr.rel (0) target = $region25
  $region24: #{network_block_forward.3} parent=0 // pred_region
    _
  $region25: #{network_block_forward.3} parent=0 // pred_fallthru
    _
  // Predicated region
  $region26: #{network_block_forward.3} parent=0 // pred_check
    _
  $region27: #{network_block_forward.3} parent=0 // pred_check_branch
    %25 = sbr.rel (0) target = $region29
  $region28: #{network_block_forward.3} parent=0 // pred_region
    _
  $region29: #{network_block_forward.3} parent=0 // pred_fallthru
    _
  %p27 = scmp.eq.s32.totalorder 0, 0
  // Predicated region
  $region30: #{network_block_forward.3} parent=0 // pred_check
    %p28 = pneg %p27
  $region31: #{network_block_forward.3} parent=0 // pred_check_branch
    %30 = sbr.rel (%p28) target = $region33
  $region32: #{network_block_forward.3} parent=0 // pred_region
    %vm31 = vcmask 60416
    %32 = vst.msk [vmem:[#allocation2] sm:$0xf] %vm31, 0
    %vm33 = vcmask 57344
    %34 = vst.msk [vmem:[#allocation2 + $0x4] sm:$0x1] %vm33, 0
    %35 = vst.msk [vmem:[#allocation2 + $0x50] sm:$0xf] %vm31, 0
    %36 = vst.msk [vmem:[#allocation2 + $0x54] sm:$0x1] %vm33, 0
    %s37 = scalar_lea.vmem [#allocation2], 72
    %38 = vst.msk [vmem:[%s37] sm:$0xf] %vm31, 0
    %39 = vst.msk [vmem:[%s37 + $0x4] sm:$0x1] %vm33, 0
    %40 = vst.msk [vmem:[%s37 + $0x50] sm:$0xf] %vm31, 0
    %41 = vst.msk [vmem:[%s37 + $0x54] sm:$0x1] %vm33, 0
    %vm42 = vcmask 57344
    %vm43 = vsmask.f32 256
    %vm44 = vmand %vm42, %vm43
    %v45 = vld [vmem:[#allocation2] sm:$0x1]
    %v46 = vsel %vm44, 0, %v45
    %47 = vst [vmem:[#allocation2] sm:$0x1] %v46
    %v48 = vld [vmem:[#allocation2 + $0x8] sm:$0x1]
    %v49 = vsel %vm44, 0, %v48
    %50 = vst [vmem:[#allocation2 + $0x8] sm:$0x1] %v49
    %v51 = vld [vmem:[#allocation2 + $0x10] sm:$0x1]
    %v52 = vsel %vm44, 0, %v51
    %53 = vst [vmem:[#allocation2 + $0x10] sm:$0x1] %v52
    %v54 = vld [vmem:[#allocation2 + $0x18] sm:$0x1]
    %v55 = vsel %vm44, 0, %v54
    %56 = vst [vmem:[#allocation2 + $0x18] sm:$0x1] %v55
    %v57 = vld [vmem:[#allocation2 + $0x20] sm:$0x1]
    %v58 = vsel %vm44, 0, %v57
    %59 = vst [vmem:[#allocation2 + $0x20] sm:$0x1] %v58
    %v60 = vld [vmem:[#allocation2 + $0x28] sm:$0x1]
    %v61 = vsel %vm44, 0, %v60
    %62 = vst [vmem:[#allocation2 + $0x28] sm:$0x1] %v61
    %v63 = vld [vmem:[#allocation2 + $0x30] sm:$0x1]
    %v64 = vsel %vm44, 0, %v63
    %65 = vst [vmem:[#allocation2 + $0x30] sm:$0x1] %v64
    %v66 = vld [vmem:[#allocation2 + $0x38] sm:$0x1]
    %v67 = vsel %vm44, 0, %v66
    %68 = vst [vmem:[#allocation2 + $0x38] sm:$0x1] %v67
    %v69 = vld [vmem:[#allocation2 + $0x40] sm:$0x1]
    %v70 = vsel %vm44, 0, %v69
    %71 = vst [vmem:[#allocation2 + $0x40] sm:$0x1] %v70
    %v72 = vld [vmem:[#allocation2 + $0x48] sm:$0x1]
    %v73 = vsel %vm44, 0, %v72
    %74 = vst [vmem:[#allocation2 + $0x48] sm:$0x1] %v73
    %v75 = vld [vmem:[#allocation2 + $0x50] sm:$0x1]
    %v76 = vsel %vm44, 0, %v75
    %77 = vst [vmem:[#allocation2 + $0x50] sm:$0x1] %v76
    %v78 = vld [vmem:[#allocation2 + $0x58] sm:$0x1]
    %v79 = vsel %vm44, 0, %v78
    %80 = vst [vmem:[#allocation2 + $0x58] sm:$0x1] %v79
    %v81 = vld [vmem:[#allocation2 + $0x60] sm:$0x1]
    %v82 = vsel %vm44, 0, %v81
    %83 = vst [vmem:[#allocation2 + $0x60] sm:$0x1] %v82
    %v84 = vld [vmem:[#allocation2 + $0x68] sm:$0x1]
    %v85 = vsel %vm44, 0, %v84
    %86 = vst [vmem:[#allocation2 + $0x68] sm:$0x1] %v85
    %v87 = vld [vmem:[#allocation2 + $0x70] sm:$0x1]
    %v88 = vsel %vm44, 0, %v87
    %89 = vst [vmem:[#allocation2 + $0x70] sm:$0x1] %v88
    %v90 = vld [vmem:[#allocation2 + $0x78] sm:$0x1]
    %v91 = vsel %vm44, 0, %v90
    %92 = vst [vmem:[#allocation2 + $0x78] sm:$0x1] %v91
    %v93 = vld [vmem:[#allocation2 + $0x80] sm:$0x1]
    %v94 = vsel %vm44, 0, %v93
    %95 = vst [vmem:[#allocation2 + $0x80] sm:$0x1] %v94
    %v96 = vld [vmem:[#allocation2 + $0x88] sm:$0x1]
    %v97 = vsel %vm44, 0, %v96
    %98 = vst [vmem:[#allocation2 + $0x88] sm:$0x1] %v97
    %v99 = vld [vmem:[#allocation2 + $0x90] sm:$0x1]
    %v100 = vsel %vm44, 0, %v99
    %101 = vst [vmem:[#allocation2 + $0x90] sm:$0x1] %v100
    %v102 = vld [vmem:[#allocation2 + $0x98] sm:$0x1]
    %v103 = vsel %vm44, 0, %v102
    %104 = vst [vmem:[#allocation2 + $0x98] sm:$0x1] %v103
    %vm105 = vsmask.f32 7938
    %vm106 = vmand %vm42, %vm105
    %v107 = vld [vmem:[#allocation2 + $0x4] sm:$0x1]
    %v108 = vsel %vm106, 0, %v107
    %109 = vst [vmem:[#allocation2 + $0x4] sm:$0x1] %v108
    %v110 = vld [vmem:[#allocation2 + $0xc] sm:$0x1]
    %v111 = vsel %vm106, 0, %v110
    %112 = vst [vmem:[#allocation2 + $0xc] sm:$0x1] %v111
    %v113 = vld [vmem:[#allocation2 + $0x14] sm:$0x1]
    %v114 = vsel %vm106, 0, %v113
    %115 = vst [vmem:[#allocation2 + $0x14] sm:$0x1] %v114
    %v116 = vld [vmem:[#allocation2 + $0x1c] sm:$0x1]
    %v117 = vsel %vm106, 0, %v116
    %118 = vst [vmem:[#allocation2 + $0x1c] sm:$0x1] %v117
    %v119 = vld [vmem:[#allocation2 + $0x24] sm:$0x1]
    %v120 = vsel %vm106, 0, %v119
    %121 = vst [vmem:[#allocation2 + $0x24] sm:$0x1] %v120
    %v122 = vld [vmem:[#allocation2 + $0x2c] sm:$0x1]
    %v123 = vsel %vm106, 0, %v122
    %124 = vst [vmem:[#allocation2 + $0x2c] sm:$0x1] %v123
    %v125 = vld [vmem:[#allocation2 + $0x34] sm:$0x1]
    %v126 = vsel %vm106, 0, %v125
    %127 = vst [vmem:[#allocation2 + $0x34] sm:$0x1] %v126
    %v128 = vld [vmem:[#allocation2 + $0x3c] sm:$0x1]
    %v129 = vsel %vm106, 0, %v128
    %130 = vst [vmem:[#allocation2 + $0x3c] sm:$0x1] %v129
    %v131 = vld [vmem:[#allocation2 + $0x44] sm:$0x1]
    %v132 = vsel %vm106, 0, %v131
    %133 = vst [vmem:[#allocation2 + $0x44] sm:$0x1] %v132
    %v134 = vld [vmem:[#allocation2 + $0x4c] sm:$0x1]
    %v135 = vsel %vm106, 0, %v134
    %136 = vst [vmem:[#allocation2 + $0x4c] sm:$0x1] %v135
    %v137 = vld [vmem:[#allocation2 + $0x54] sm:$0x1]
    %v138 = vsel %vm106, 0, %v137
    %139 = vst [vmem:[#allocation2 + $0x54] sm:$0x1] %v138
    %v140 = vld [vmem:[#allocation2 + $0x5c] sm:$0x1]
    %v141 = vsel %vm106, 0, %v140
    %142 = vst [vmem:[#allocation2 + $0x5c] sm:$0x1] %v141
    %v143 = vld [vmem:[#allocation2 + $0x64] sm:$0x1]
    %v144 = vsel %vm106, 0, %v143
    %145 = vst [vmem:[#allocation2 + $0x64] sm:$0x1] %v144
    %v146 = vld [vmem:[#allocation2 + $0x6c] sm:$0x1]
    %v147 = vsel %vm106, 0, %v146
    %148 = vst [vmem:[#allocation2 + $0x6c] sm:$0x1] %v147
    %v149 = vld [vmem:[#allocation2 + $0x74] sm:$0x1]
    %v150 = vsel %vm106, 0, %v149
    %151 = vst [vmem:[#allocation2 + $0x74] sm:$0x1] %v150
    %v152 = vld [vmem:[#allocation2 + $0x7c] sm:$0x1]
    %v153 = vsel %vm106, 0, %v152
    %154 = vst [vmem:[#allocation2 + $0x7c] sm:$0x1] %v153
    %v155 = vld [vmem:[#allocation2 + $0x84] sm:$0x1]
    %v156 = vsel %vm106, 0, %v155
    %157 = vst [vmem:[#allocation2 + $0x84] sm:$0x1] %v156
    %v158 = vld [vmem:[#allocation2 + $0x8c] sm:$0x1]
    %v159 = vsel %vm106, 0, %v158
    %160 = vst [vmem:[#allocation2 + $0x8c] sm:$0x1] %v159
    %v161 = vld [vmem:[#allocation2 + $0x94] sm:$0x1]
    %v162 = vsel %vm106, 0, %v161
    %163 = vst [vmem:[#allocation2 + $0x94] sm:$0x1] %v162
    %v164 = vld [vmem:[#allocation2 + $0x9c] sm:$0x1]
    %v165 = vsel %vm106, 0, %v164
    %166 = vst [vmem:[#allocation2 + $0x9c] sm:$0x1] %v165
    %167 = vst.msk [vmem:[#allocation3] sm:$0xf] %vm31, 0
    %168 = vst.msk [vmem:[#allocation3 + $0x4] sm:$0x1] %vm33, 0
    %169 = vst.msk [vmem:[#allocation3 + $0x50] sm:$0xf] %vm31, 0
    %170 = vst.msk [vmem:[#allocation3 + $0x54] sm:$0x1] %vm33, 0
    %s171 = scalar_lea.vmem [#allocation3], 72
    %172 = vst.msk [vmem:[%s171] sm:$0xf] %vm31, 0
    %173 = vst.msk [vmem:[%s171 + $0x4] sm:$0x1] %vm33, 0
    %174 = vst.msk [vmem:[%s171 + $0x50] sm:$0xf] %vm31, 0
    %175 = vst.msk [vmem:[%s171 + $0x54] sm:$0x1] %vm33, 0
    %v176 = vld [vmem:[#allocation3] sm:$0x1]
    %v177 = vsel %vm44, 0, %v176
    %178 = vst [vmem:[#allocation3] sm:$0x1] %v177
    %v179 = vld [vmem:[#allocation3 + $0x8] sm:$0x1]
    %v180 = vsel %vm44, 0, %v179
    %181 = vst [vmem:[#allocation3 + $0x8] sm:$0x1] %v180
    %v182 = vld [vmem:[#allocation3 + $0x10] sm:$0x1]
    %v183 = vsel %vm44, 0, %v182
    %184 = vst [vmem:[#allocation3 + $0x10] sm:$0x1] %v183
    %v185 = vld [vmem:[#allocation3 + $0x18] sm:$0x1]
    %v186 = vsel %vm44, 0, %v185
    %187 = vst [vmem:[#allocation3 + $0x18] sm:$0x1] %v186
    %v188 = vld [vmem:[#allocation3 + $0x20] sm:$0x1]
    %v189 = vsel %vm44, 0, %v188
    %190 = vst [vmem:[#allocation3 + $0x20] sm:$0x1] %v189
    %v191 = vld [vmem:[#allocation3 + $0x28] sm:$0x1]
    %v192 = vsel %vm44, 0, %v191
    %193 = vst [vmem:[#allocation3 + $0x28] sm:$0x1] %v192
    %v194 = vld [vmem:[#allocation3 + $0x30] sm:$0x1]
    %v195 = vsel %vm44, 0, %v194
    %196 = vst [vmem:[#allocation3 + $0x30] sm:$0x1] %v195
    %v197 = vld [vmem:[#allocation3 + $0x38] sm:$0x1]
    %v198 = vsel %vm44, 0, %v197
    %199 = vst [vmem:[#allocation3 + $0x38] sm:$0x1] %v198
    %v200 = vld [vmem:[#allocation3 + $0x40] sm:$0x1]
    %v201 = vsel %vm44, 0, %v200
    %202 = vst [vmem:[#allocation3 + $0x40] sm:$0x1] %v201
    %v203 = vld [vmem:[#allocation3 + $0x48] sm:$0x1]
    %v204 = vsel %vm44, 0, %v203
    %205 = vst [vmem:[#allocation3 + $0x48] sm:$0x1] %v204
    %v206 = vld [vmem:[#allocation3 + $0x50] sm:$0x1]
    %v207 = vsel %vm44, 0, %v206
    %208 = vst [vmem:[#allocation3 + $0x50] sm:$0x1] %v207
    %v209 = vld [vmem:[#allocation3 + $0x58] sm:$0x1]
    %v210 = vsel %vm44, 0, %v209
    %211 = vst [vmem:[#allocation3 + $0x58] sm:$0x1] %v210
    %v212 = vld [vmem:[#allocation3 + $0x60] sm:$0x1]
    %v213 = vsel %vm44, 0, %v212
    %214 = vst [vmem:[#allocation3 + $0x60] sm:$0x1] %v213
    %v215 = vld [vmem:[#allocation3 + $0x68] sm:$0x1]
    %v216 = vsel %vm44, 0, %v215
    %217 = vst [vmem:[#allocation3 + $0x68] sm:$0x1] %v216
    %v218 = vld [vmem:[#allocation3 + $0x70] sm:$0x1]
    %v219 = vsel %vm44, 0, %v218
    %220 = vst [vmem:[#allocation3 + $0x70] sm:$0x1] %v219
    %v221 = vld [vmem:[#allocation3 + $0x78] sm:$0x1]
    %v222 = vsel %vm44, 0, %v221
    %223 = vst [vmem:[#allocation3 + $0x78] sm:$0x1] %v222
    %v224 = vld [vmem:[#allocation3 + $0x80] sm:$0x1]
    %v225 = vsel %vm44, 0, %v224
    %226 = vst [vmem:[#allocation3 + $0x80] sm:$0x1] %v225
    %v227 = vld [vmem:[#allocation3 + $0x88] sm:$0x1]
    %v228 = vsel %vm44, 0, %v227
    %229 = vst [vmem:[#allocation3 + $0x88] sm:$0x1] %v228
    %v230 = vld [vmem:[#allocation3 + $0x90] sm:$0x1]
    %v231 = vsel %vm44, 0, %v230
    %232 = vst [vmem:[#allocation3 + $0x90] sm:$0x1] %v231
    %v233 = vld [vmem:[#allocation3 + $0x98] sm:$0x1]
    %v234 = vsel %vm44, 0, %v233
    %235 = vst [vmem:[#allocation3 + $0x98] sm:$0x1] %v234
    %v236 = vld [vmem:[#allocation3 + $0x4] sm:$0x1]
    %v237 = vsel %vm106, 0, %v236
    %238 = vst [vmem:[#allocation3 + $0x4] sm:$0x1] %v237
    %v239 = vld [vmem:[#allocation3 + $0xc] sm:$0x1]
    %v240 = vsel %vm106, 0, %v239
    %241 = vst [vmem:[#allocation3 + $0xc] sm:$0x1] %v240
    %v242 = vld [vmem:[#allocation3 + $0x14] sm:$0x1]
    %v243 = vsel %vm106, 0, %v242
    %244 = vst [vmem:[#allocation3 + $0x14] sm:$0x1] %v243
    %v245 = vld [vmem:[#allocation3 + $0x1c] sm:$0x1]
    %v246 = vsel %vm106, 0, %v245
    %247 = vst [vmem:[#allocation3 + $0x1c] sm:$0x1] %v246
    %v248 = vld [vmem:[#allocation3 + $0x24] sm:$0x1]
    %v249 = vsel %vm106, 0, %v248
    %250 = vst [vmem:[#allocation3 + $0x24] sm:$0x1] %v249
    %v251 = vld [vmem:[#allocation3 + $0x2c] sm:$0x1]
    %v252 = vsel %vm106, 0, %v251
    %253 = vst [vmem:[#allocation3 + $0x2c] sm:$0x1] %v252
    %v254 = vld [vmem:[#allocation3 + $0x34] sm:$0x1]
    %v255 = vsel %vm106, 0, %v254
    %256 = vst [vmem:[#allocation3 + $0x34] sm:$0x1] %v255
    %v257 = vld [vmem:[#allocation3 + $0x3c] sm:$0x1]
    %v258 = vsel %vm106, 0, %v257
    %259 = vst [vmem:[#allocation3 + $0x3c] sm:$0x1] %v258
    %v260 = vld [vmem:[#allocation3 + $0x44] sm:$0x1]
    %v261 = vsel %vm106, 0, %v260
    %262 = vst [vmem:[#allocation3 + $0x44] sm:$0x1] %v261
    %v263 = vld [vmem:[#allocation3 + $0x4c] sm:$0x1]
    %v264 = vsel %vm106, 0, %v263
    %265 = vst [vmem:[#allocation3 + $0x4c] sm:$0x1] %v264
    %v266 = vld [vmem:[#allocation3 + $0x54] sm:$0x1]
    %v267 = vsel %vm106, 0, %v266
    %268 = vst [vmem:[#allocation3 + $0x54] sm:$0x1] %v267
    %v269 = vld [vmem:[#allocation3 + $0x5c] sm:$0x1]
    %v270 = vsel %vm106, 0, %v269
    %271 = vst [vmem:[#allocation3 + $0x5c] sm:$0x1] %v270
    %v272 = vld [vmem:[#allocation3 + $0x64] sm:$0x1]
    %v273 = vsel %vm106, 0, %v272
    %274 = vst [vmem:[#allocation3 + $0x64] sm:$0x1] %v273
    %v275 = vld [vmem:[#allocation3 + $0x6c] sm:$0x1]
    %v276 = vsel %vm106, 0, %v275
    %277 = vst [vmem:[#allocation3 + $0x6c] sm:$0x1] %v276
    %v278 = vld [vmem:[#allocation3 + $0x74] sm:$0x1]
    %v279 = vsel %vm106, 0, %v278
    %280 = vst [vmem:[#allocation3 + $0x74] sm:$0x1] %v279
    %v281 = vld [vmem:[#allocation3 + $0x7c] sm:$0x1]
    %v282 = vsel %vm106, 0, %v281
    %283 = vst [vmem:[#allocation3 + $0x7c] sm:$0x1] %v282
    %v284 = vld [vmem:[#allocation3 + $0x84] sm:$0x1]
    %v285 = vsel %vm106, 0, %v284
    %286 = vst [vmem:[#allocation3 + $0x84] sm:$0x1] %v285
    %v287 = vld [vmem:[#allocation3 + $0x8c] sm:$0x1]
    %v288 = vsel %vm106, 0, %v287
    %289 = vst [vmem:[#allocation3 + $0x8c] sm:$0x1] %v288
    %v290 = vld [vmem:[#allocation3 + $0x94] sm:$0x1]
    %v291 = vsel %vm106, 0, %v290
    %292 = vst [vmem:[#allocation3 + $0x94] sm:$0x1] %v291
    %v293 = vld [vmem:[#allocation3 + $0x9c] sm:$0x1]
    %v294 = vsel %vm106, 0, %v293
    %295 = vst [vmem:[#allocation3 + $0x9c] sm:$0x1] %v294
  $region33: #{network_block_forward.3} parent=0 // pred_fallthru
    _
  %v296 = vld [vmem:[%s0] sm:$0xff]
  %v297 = vld [vmem:[%s0 + $0x8] sm:$0xff]
  %v298 = vld [vmem:[%s0 + $0x10] sm:$0xff]
  %v299 = vld [vmem:[%s0 + $0x18] sm:$0xff]
  %v300 = vld [vmem:[%s0 + $0x20] sm:$0xff]
  %v301 = vld [vmem:[%s0 + $0x28] sm:$0xff]
  %v302 = vld [vmem:[%s0 + $0x30] sm:$0xff]
  %v303 = vld [vmem:[%s0 + $0x38] sm:$0xff]
  %v304 = vld [vmem:[%s0 + $0x40] sm:$0xff]
  %v305 = vld [vmem:[%s0 + $0x48] sm:$0xff]
  %v306 = vld [vmem:[%s0 + $0x50] sm:$0xff]
  %v307 = vld [vmem:[%s0 + $0x58] sm:$0xff]
  %v308 = vld [vmem:[%s0 + $0x60] sm:$0xff]
  %v309 = vld [vmem:[%s0 + $0x68] sm:$0xff]
  %v310 = vld [vmem:[%s0 + $0x70] sm:$0xff]
  %v311 = vld [vmem:[%s0 + $0x78] sm:$0xff]
  %v312 = vld [vmem:[%s1] sm:$0x1]
  %v314 = vlaneseq
  %v315 = vshrl.u32 %v314, 7
  %v316 = vsub.s32 0, %v315
  %v317 = vrot.slane %v312, %v316
  %v319 = vmul.f32 %v296, %v317
  %v320 = vmul.f32 %v297, %v317
  %v321 = vmul.f32 %v298, %v317
  %v322 = vmul.f32 %v299, %v317
  %v323 = vmul.f32 %v300, %v317
  %v324 = vmul.f32 %v301, %v317
  %v325 = vmul.f32 %v302, %v317
  %v326 = vmul.f32 %v303, %v317
  %v327 = vmul.f32 %v304, %v317
  %v328 = vmul.f32 %v305, %v317
  %v329 = vmul.f32 %v306, %v317
  %v330 = vmul.f32 %v307, %v317
  %v331 = vmul.f32 %v308, %v317
  %v332 = vmul.f32 %v309, %v317
  %v333 = vmul.f32 %v310, %v317
  %v334 = vmul.f32 %v311, %v317
  %v335 = vld [vmem:[%s2] sm:$0x1]
  %v337 = vlaneseq
  %v338 = vshrl.u32 %v337, 7
  %v339 = vsub.s32 0, %v338
  %v340 = vrot.slane %v335, %v339
  %v342 = vadd.f32 %v319, %v340
  %v343 = vadd.f32 %v320, %v340
  %v344 = vadd.f32 %v321, %v340
  %v345 = vadd.f32 %v322, %v340
  %v346 = vadd.f32 %v323, %v340
  %v347 = vadd.f32 %v324, %v340
  %v348 = vadd.f32 %v325, %v340
  %v349 = vadd.f32 %v326, %v340
  %v350 = vadd.f32 %v327, %v340
  %v351 = vadd.f32 %v328, %v340
  %v352 = vadd.f32 %v329, %v340
  %v353 = vadd.f32 %v330, %v340
  %v354 = vadd.f32 %v331, %v340
  %v355 = vadd.f32 %v332, %v340
  %v356 = vadd.f32 %v333, %v340
  %v357 = vadd.f32 %v334, %v340
  %v358 = vmax.f32 %v342, 0.0
  %v359 = vmax.f32 %v343, 0.0
  %v360 = vmax.f32 %v344, 0.0
  %v361 = vmax.f32 %v345, 0.0
  %v362 = vmax.f32 %v346, 0.0
  %v363 = vmax.f32 %v347, 0.0
  %v364 = vmax.f32 %v348, 0.0
  %v365 = vmax.f32 %v349, 0.0
  %v366 = vmax.f32 %v350, 0.0
  %v367 = vmax.f32 %v351, 0.0
  %v368 = vmax.f32 %v352, 0.0
  %v369 = vmax.f32 %v353, 0.0
  %v370 = vmax.f32 %v354, 0.0
  %v371 = vmax.f32 %v355, 0.0
  %v372 = vmax.f32 %v356, 0.0
  %v373 = vmax.f32 %v357, 0.0
  %v374 = vpack.c.bf16 %v358, %v358
  %v375 = vpack.c.bf16 %v359, %v359
  %v376 = vpack.c.bf16 %v360, %v360
  %v377 = vpack.c.bf16 %v361, %v361
  %v378 = vpack.c.bf16 %v362, %v362
  %v379 = vpack.c.bf16 %v363, %v363
  %v380 = vpack.c.bf16 %v364, %v364
  %v381 = vpack.c.bf16 %v365, %v365
  %v382 = vpack.c.bf16 %v366, %v366
  %v383 = vpack.c.bf16 %v367, %v367
  %v384 = vpack.c.bf16 %v368, %v368
  %v385 = vpack.c.bf16 %v369, %v369
  %v386 = vpack.c.bf16 %v370, %v370
  %v387 = vpack.c.bf16 %v371, %v371
  %v388 = vpack.c.bf16 %v372, %v372
  %v389 = vpack.c.bf16 %v373, %v373
  %v406 = vunpack.c.l.b16 %v374
  %v407 = vunpack.c.l.b16 %v375
  %v408 = vunpack.c.l.b16 %v376
  %v409 = vunpack.c.l.b16 %v377
  %v410 = vunpack.c.l.b16 %v378
  %v411 = vunpack.c.l.b16 %v379
  %v412 = vunpack.c.l.b16 %v380
  %v413 = vunpack.c.l.b16 %v381
  %v414 = vunpack.c.l.b16 %v382
  %v415 = vunpack.c.l.b16 %v383
  %v416 = vunpack.c.l.b16 %v384
  %v417 = vunpack.c.l.b16 %v385
  %v418 = vunpack.c.l.b16 %v386
  %v419 = vunpack.c.l.b16 %v387
  %v420 = vunpack.c.l.b16 %v388
  %v421 = vunpack.c.l.b16 %v389
  %v422 = vpack.c.b16 %v406, %v406
  %v423 = vpack.c.b16 %v407, %v407
  %v424 = vpack.c.b16 %v408, %v408
  %v425 = vpack.c.b16 %v409, %v409
  %v426 = vpack.c.b16 %v410, %v410
  %v427 = vpack.c.b16 %v411, %v411
  %v428 = vpack.c.b16 %v412, %v412
  %v429 = vpack.c.b16 %v413, %v413
  %v430 = vpack.c.b16 %v414, %v414
  %v431 = vpack.c.b16 %v415, %v415
  %v432 = vpack.c.b16 %v416, %v416
  %v433 = vpack.c.b16 %v417, %v417
  %v434 = vpack.c.b16 %v418, %v418
  %v435 = vpack.c.b16 %v419, %v419
  %v436 = vpack.c.b16 %v420, %v420
  %v437 = vpack.c.b16 %v421, %v421
  %v439 = vshrl.u32 %v422, 16
  %v441 = vrot.slane %v439, 7
  %v442 = vshll.u32 %v422, 16
  %v444 = vor.u32 %v441, %v442
  %v445 = vrot.slane %v441, 4
  %v447 = vshrl.u32 %v423, 16
  %v449 = vrot.slane %v447, 7
  %v450 = vshll.u32 %v423, 16
  %v452 = vor.u32 %v449, %v450
  %v453 = vrot.slane %v449, 4
  %v455 = vshrl.u32 %v424, 16
  %v457 = vrot.slane %v455, 7
  %v458 = vshll.u32 %v424, 16
  %v460 = vor.u32 %v457, %v458
  %v461 = vrot.slane %v457, 4
  %v463 = vshrl.u32 %v425, 16
  %v465 = vrot.slane %v463, 7
  %v466 = vshll.u32 %v425, 16
  %v468 = vor.u32 %v465, %v466
  %v469 = vrot.slane %v465, 4
  %v471 = vshrl.u32 %v426, 16
  %v473 = vrot.slane %v471, 7
  %v474 = vshll.u32 %v426, 16
  %v476 = vor.u32 %v473, %v474
  %v477 = vrot.slane %v473, 4
  %v479 = vshrl.u32 %v427, 16
  %v481 = vrot.slane %v479, 7
  %v482 = vshll.u32 %v427, 16
  %v484 = vor.u32 %v481, %v482
  %v485 = vrot.slane %v481, 4
  %v487 = vshrl.u32 %v428, 16
  %v489 = vrot.slane %v487, 7
  %v490 = vshll.u32 %v428, 16
  %v492 = vor.u32 %v489, %v490
  %v493 = vrot.slane %v489, 4
  %v495 = vshrl.u32 %v429, 16
  %v497 = vrot.slane %v495, 7
  %v498 = vshll.u32 %v429, 16
  %v500 = vor.u32 %v497, %v498
  %v501 = vrot.slane %v497, 4
  %v503 = vshrl.u32 %v430, 16
  %v505 = vrot.slane %v503, 7
  %v506 = vshll.u32 %v430, 16
  %v508 = vor.u32 %v505, %v506
  %v509 = vrot.slane %v505, 4
  %v511 = vshrl.u32 %v431, 16
  %v513 = vrot.slane %v511, 7
  %v514 = vshll.u32 %v431, 16
  %v516 = vor.u32 %v513, %v514
  %v517 = vrot.slane %v513, 4
  %v519 = vshrl.u32 %v432, 16
  %v521 = vrot.slane %v519, 7
  %v522 = vshll.u32 %v432, 16
  %v524 = vor.u32 %v521, %v522
  %v525 = vrot.slane %v521, 4
  %v527 = vshrl.u32 %v433, 16
  %v529 = vrot.slane %v527, 7
  %v530 = vshll.u32 %v433, 16
  %v532 = vor.u32 %v529, %v530
  %v533 = vrot.slane %v529, 4
  %v535 = vshrl.u32 %v434, 16
  %v537 = vrot.slane %v535, 7
  %v538 = vshll.u32 %v434, 16
  %v540 = vor.u32 %v537, %v538
  %v541 = vrot.slane %v537, 4
  %v543 = vshrl.u32 %v435, 16
  %v545 = vrot.slane %v543, 7
  %v546 = vshll.u32 %v435, 16
  %v548 = vor.u32 %v545, %v546
  %v549 = vrot.slane %v545, 4
  %v551 = vshrl.u32 %v436, 16
  %v553 = vrot.slane %v551, 7
  %v554 = vshll.u32 %v436, 16
  %v556 = vor.u32 %v553, %v554
  %v557 = vrot.slane %v553, 4
  %v559 = vshrl.u32 %v437, 16
  %v561 = vrot.slane %v559, 7
  %v562 = vshll.u32 %v437, 16
  %v564 = vor.u32 %v561, %v562
  %v565 = vrot.slane %v561, 4
  %s598 = scalar_lea.vmem [#allocation2], 8
  %vm599 = vcmask 60416
  %vm600 = vsmask.f32 7938
  %vm601 = vmand %vm599, %vm600
  %v602 = vld [vmem:[%s598] sm:$0xf]
  %v603 = vsel %vm601, %v444, %v602
  %604 = vst [vmem:[%s598] sm:$0xf] %v603
  %vm605 = vcmask 57344
  %vm606 = vsmask.f32 256
  %vm607 = vmand %vm605, %vm606
  %v608 = vld [vmem:[%s598 + $0x4] sm:$0x1]
  %v609 = vsel %vm607, %v445, %v608
  %610 = vst [vmem:[%s598 + $0x4] sm:$0x1] %v609
  %v611 = vld [vmem:[%s598 + $0x8] sm:$0xf]
  %v612 = vsel %vm601, %v452, %v611
  %613 = vst [vmem:[%s598 + $0x8] sm:$0xf] %v612
  %v614 = vld [vmem:[%s598 + $0xc] sm:$0x1]
  %v615 = vsel %vm607, %v453, %v614
  %616 = vst [vmem:[%s598 + $0xc] sm:$0x1] %v615
  %v617 = vld [vmem:[%s598 + $0x10] sm:$0xf]
  %v618 = vsel %vm601, %v460, %v617
  %619 = vst [vmem:[%s598 + $0x10] sm:$0xf] %v618
  %v620 = vld [vmem:[%s598 + $0x14] sm:$0x1]
  %v621 = vsel %vm607, %v461, %v620
  %622 = vst [vmem:[%s598 + $0x14] sm:$0x1] %v621
  %v623 = vld [vmem:[%s598 + $0x18] sm:$0xf]
  %v624 = vsel %vm601, %v468, %v623
  %625 = vst [vmem:[%s598 + $0x18] sm:$0xf] %v624
  %v626 = vld [vmem:[%s598 + $0x1c] sm:$0x1]
  %v627 = vsel %vm607, %v469, %v626
  %628 = vst [vmem:[%s598 + $0x1c] sm:$0x1] %v627
  %v629 = vld [vmem:[%s598 + $0x20] sm:$0xf]
  %v630 = vsel %vm601, %v476, %v629
  %631 = vst [vmem:[%s598 + $0x20] sm:$0xf] %v630
  %v632 = vld [vmem:[%s598 + $0x24] sm:$0x1]
  %v633 = vsel %vm607, %v477, %v632
  %634 = vst [vmem:[%s598 + $0x24] sm:$0x1] %v633
  %v635 = vld [vmem:[%s598 + $0x28] sm:$0xf]
  %v636 = vsel %vm601, %v484, %v635
  %637 = vst [vmem:[%s598 + $0x28] sm:$0xf] %v636
  %v638 = vld [vmem:[%s598 + $0x2c] sm:$0x1]
  %v639 = vsel %vm607, %v485, %v638
  %640 = vst [vmem:[%s598 + $0x2c] sm:$0x1] %v639
  %v641 = vld [vmem:[%s598 + $0x30] sm:$0xf]
  %v642 = vsel %vm601, %v492, %v641
  %643 = vst [vmem:[%s598 + $0x30] sm:$0xf] %v642
  %v644 = vld [vmem:[%s598 + $0x34] sm:$0x1]
  %v645 = vsel %vm607, %v493, %v644
  %646 = vst [vmem:[%s598 + $0x34] sm:$0x1] %v645
  %v647 = vld [vmem:[%s598 + $0x38] sm:$0xf]
  %v648 = vsel %vm601, %v500, %v647
  %649 = vst [vmem:[%s598 + $0x38] sm:$0xf] %v648
  %v650 = vld [vmem:[%s598 + $0x3c] sm:$0x1]
  %v651 = vsel %vm607, %v501, %v650
  %652 = vst [vmem:[%s598 + $0x3c] sm:$0x1] %v651
  %v653 = vld [vmem:[%s598 + $0x50] sm:$0xf]
  %v654 = vsel %vm601, %v508, %v653
  %655 = vst [vmem:[%s598 + $0x50] sm:$0xf] %v654
  %v656 = vld [vmem:[%s598 + $0x54] sm:$0x1]
  %v657 = vsel %vm607, %v509, %v656
  %658 = vst [vmem:[%s598 + $0x54] sm:$0x1] %v657
  %v659 = vld [vmem:[%s598 + $0x58] sm:$0xf]
  %v660 = vsel %vm601, %v516, %v659
  %661 = vst [vmem:[%s598 + $0x58] sm:$0xf] %v660
  %v662 = vld [vmem:[%s598 + $0x5c] sm:$0x1]
  %v663 = vsel %vm607, %v517, %v662
  %664 = vst [vmem:[%s598 + $0x5c] sm:$0x1] %v663
  %v665 = vld [vmem:[%s598 + $0x60] sm:$0xf]
  %v666 = vsel %vm601, %v524, %v665
  %667 = vst [vmem:[%s598 + $0x60] sm:$0xf] %v666
  %v668 = vld [vmem:[%s598 + $0x64] sm:$0x1]
  %v669 = vsel %vm607, %v525, %v668
  %670 = vst [vmem:[%s598 + $0x64] sm:$0x1] %v669
  %v671 = vld [vmem:[%s598 + $0x68] sm:$0xf]
  %v672 = vsel %vm601, %v532, %v671
  %673 = vst [vmem:[%s598 + $0x68] sm:$0xf] %v672
  %v674 = vld [vmem:[%s598 + $0x6c] sm:$0x1]
  %v675 = vsel %vm607, %v533, %v674
  %676 = vst [vmem:[%s598 + $0x6c] sm:$0x1] %v675
  %v677 = vld [vmem:[%s598 + $0x70] sm:$0xf]
  %v678 = vsel %vm601, %v540, %v677
  %679 = vst [vmem:[%s598 + $0x70] sm:$0xf] %v678
  %v680 = vld [vmem:[%s598 + $0x74] sm:$0x1]
  %v681 = vsel %vm607, %v541, %v680
  %682 = vst [vmem:[%s598 + $0x74] sm:$0x1] %v681
  %v683 = vld [vmem:[%s598 + $0x78] sm:$0xf]
  %v684 = vsel %vm601, %v548, %v683
  %685 = vst [vmem:[%s598 + $0x78] sm:$0xf] %v684
  %v686 = vld [vmem:[%s598 + $0x7c] sm:$0x1]
  %v687 = vsel %vm607, %v549, %v686
  %688 = vst [vmem:[%s598 + $0x7c] sm:$0x1] %v687
  %v689 = vld [vmem:[%s598 + $0x80] sm:$0xf]
  %v690 = vsel %vm601, %v556, %v689
  %691 = vst [vmem:[%s598 + $0x80] sm:$0xf] %v690
  %v692 = vld [vmem:[%s598 + $0x84] sm:$0x1]
  %v693 = vsel %vm607, %v557, %v692
  %694 = vst [vmem:[%s598 + $0x84] sm:$0x1] %v693
  %v695 = vld [vmem:[%s598 + $0x88] sm:$0xf]
  %v696 = vsel %vm601, %v564, %v695
  %697 = vst [vmem:[%s598 + $0x88] sm:$0xf] %v696
  %v698 = vld [vmem:[%s598 + $0x8c] sm:$0x1]
  %v699 = vsel %vm607, %v565, %v698
  %700 = vst [vmem:[%s598 + $0x8c] sm:$0x1] %v699
  %v701 = vld [vmem:[#allocation2] sm:$0xf]
  %v702 = vld [vmem:[#allocation2 + $0x8] sm:$0xf]
  %v703 = vld [vmem:[#allocation2 + $0x10] sm:$0xf]
  %v704 = vld [vmem:[#allocation2 + $0x18] sm:$0xf]
  %v705 = vld [vmem:[#allocation2 + $0x20] sm:$0xf]
  %v706 = vld [vmem:[#allocation2 + $0x28] sm:$0xf]
  %v707 = vld [vmem:[#allocation2 + $0x30] sm:$0xf]
  %v708 = vld [vmem:[#allocation2 + $0x38] sm:$0xf]
  %v709 = vld [vmem:[#allocation2 + $0x50] sm:$0xf]
  %v710 = vld [vmem:[#allocation2 + $0x58] sm:$0xf]
  %v711 = vld [vmem:[#allocation2 + $0x60] sm:$0xf]
  %v712 = vld [vmem:[#allocation2 + $0x68] sm:$0xf]
  %v713 = vld [vmem:[#allocation2 + $0x70] sm:$0xf]
  %v714 = vld [vmem:[#allocation2 + $0x78] sm:$0xf]
  %v715 = vld [vmem:[#allocation2 + $0x80] sm:$0xf]
  %v716 = vld [vmem:[#allocation2 + $0x88] sm:$0xf]
  %v717 = vld [vmem:[#allocation2 + $0x4] sm:$0x1]
  %v718 = vld [vmem:[#allocation2 + $0xc] sm:$0x1]
  %v719 = vld [vmem:[#allocation2 + $0x14] sm:$0x1]
  %v720 = vld [vmem:[#allocation2 + $0x1c] sm:$0x1]
  %v721 = vld [vmem:[#allocation2 + $0x24] sm:$0x1]
  %v722 = vld [vmem:[#allocation2 + $0x2c] sm:$0x1]
  %v723 = vld [vmem:[#allocation2 + $0x34] sm:$0x1]
  %v724 = vld [vmem:[#allocation2 + $0x3c] sm:$0x1]
  %v725 = vld [vmem:[#allocation2 + $0x54] sm:$0x1]
  %v726 = vld [vmem:[#allocation2 + $0x5c] sm:$0x1]
  %v727 = vld [vmem:[#allocation2 + $0x64] sm:$0x1]
  %v728 = vld [vmem:[#allocation2 + $0x6c] sm:$0x1]
  %v729 = vld [vmem:[#allocation2 + $0x74] sm:$0x1]
  %v730 = vld [vmem:[#allocation2 + $0x7c] sm:$0x1]
  %v731 = vld [vmem:[#allocation2 + $0x84] sm:$0x1]
  %v732 = vld [vmem:[#allocation2 + $0x8c] sm:$0x1]
  %v733 = vld [vmem:[#allocation2] sm:$0xe]
  %v734 = vld [vmem:[#allocation2 + $0x8] sm:$0xe]
  %v735 = vld [vmem:[#allocation2 + $0x10] sm:$0xe]
  %v736 = vld [vmem:[#allocation2 + $0x18] sm:$0xe]
  %v737 = vld [vmem:[#allocation2 + $0x20] sm:$0xe]
  %v738 = vld [vmem:[#allocation2 + $0x28] sm:$0xe]
  %v739 = vld [vmem:[#allocation2 + $0x30] sm:$0xe]
  %v740 = vld [vmem:[#allocation2 + $0x38] sm:$0xe]
  %v741 = vld [vmem:[#allocation2 + $0x50] sm:$0xe]
  %v742 = vld [vmem:[#allocation2 + $0x58] sm:$0xe]
  %v743 = vld [vmem:[#allocation2 + $0x60] sm:$0xe]
  %v744 = vld [vmem:[#allocation2 + $0x68] sm:$0xe]
  %v745 = vld [vmem:[#allocation2 + $0x70] sm:$0xe]
  %v746 = vld [vmem:[#allocation2 + $0x78] sm:$0xe]
  %v747 = vld [vmem:[#allocation2 + $0x80] sm:$0xe]
  %v748 = vld [vmem:[#allocation2 + $0x88] sm:$0xe]
  %v749 = vld [vmem:[%s598] sm:$0xf]
  %v750 = vld [vmem:[%s598 + $0x8] sm:$0xf]
  %v751 = vld [vmem:[%s598 + $0x10] sm:$0xf]
  %v752 = vld [vmem:[%s598 + $0x18] sm:$0xf]
  %v753 = vld [vmem:[%s598 + $0x20] sm:$0xf]
  %v754 = vld [vmem:[%s598 + $0x28] sm:$0xf]
  %v755 = vld [vmem:[%s598 + $0x30] sm:$0xf]
  %v756 = vld [vmem:[%s598 + $0x38] sm:$0xf]
  %v757 = vld [vmem:[%s598 + $0x50] sm:$0xf]
  %v758 = vld [vmem:[%s598 + $0x58] sm:$0xf]
  %v759 = vld [vmem:[%s598 + $0x60] sm:$0xf]
  %v760 = vld [vmem:[%s598 + $0x68] sm:$0xf]
  %v761 = vld [vmem:[%s598 + $0x70] sm:$0xf]
  %v762 = vld [vmem:[%s598 + $0x78] sm:$0xf]
  %v763 = vld [vmem:[%s598 + $0x80] sm:$0xf]
  %v764 = vld [vmem:[%s598 + $0x88] sm:$0xf]
  %v765 = vld [vmem:[%s598 + $0x4] sm:$0x1]
  %v766 = vld [vmem:[%s598 + $0xc] sm:$0x1]
  %v767 = vld [vmem:[%s598 + $0x14] sm:$0x1]
  %v768 = vld [vmem:[%s598 + $0x1c] sm:$0x1]
  %v769 = vld [vmem:[%s598 + $0x24] sm:$0x1]
  %v770 = vld [vmem:[%s598 + $0x2c] sm:$0x1]
  %v771 = vld [vmem:[%s598 + $0x34] sm:$0x1]
  %v772 = vld [vmem:[%s598 + $0x3c] sm:$0x1]
  %v773 = vld [vmem:[%s598 + $0x54] sm:$0x1]
  %v774 = vld [vmem:[%s598 + $0x5c] sm:$0x1]
  %v775 = vld [vmem:[%s598 + $0x64] sm:$0x1]
  %v776 = vld [vmem:[%s598 + $0x6c] sm:$0x1]
  %v777 = vld [vmem:[%s598 + $0x74] sm:$0x1]
  %v778 = vld [vmem:[%s598 + $0x7c] sm:$0x1]
  %v779 = vld [vmem:[%s598 + $0x84] sm:$0x1]
  %v780 = vld [vmem:[%s598 + $0x8c] sm:$0x1]
  %v781 = vld [vmem:[%s598] sm:$0xe]
  %v782 = vld [vmem:[%s598 + $0x8] sm:$0xe]
  %v783 = vld [vmem:[%s598 + $0x10] sm:$0xe]
  %v784 = vld [vmem:[%s598 + $0x18] sm:$0xe]
  %v785 = vld [vmem:[%s598 + $0x20] sm:$0xe]
  %v786 = vld [vmem:[%s598 + $0x28] sm:$0xe]
  %v787 = vld [vmem:[%s598 + $0x30] sm:$0xe]
  %v788 = vld [vmem:[%s598 + $0x38] sm:$0xe]
  %v789 = vld [vmem:[%s598 + $0x50] sm:$0xe]
  %v790 = vld [vmem:[%s598 + $0x58] sm:$0xe]
  %v791 = vld [vmem:[%s598 + $0x60] sm:$0xe]
  %v792 = vld [vmem:[%s598 + $0x68] sm:$0xe]
  %v793 = vld [vmem:[%s598 + $0x70] sm:$0xe]
  %v794 = vld [vmem:[%s598 + $0x78] sm:$0xe]
  %v795 = vld [vmem:[%s598 + $0x80] sm:$0xe]
  %v796 = vld [vmem:[%s598 + $0x88] sm:$0xe]
  %s797 = scalar_lea.vmem [#allocation2], 16
  %v798 = vld [vmem:[%s797] sm:$0xf]
  %v799 = vld [vmem:[%s797 + $0x8] sm:$0xf]
  %v800 = vld [vmem:[%s797 + $0x10] sm:$0xf]
  %v801 = vld [vmem:[%s797 + $0x18] sm:$0xf]
  %v802 = vld [vmem:[%s797 + $0x20] sm:$0xf]
  %v803 = vld [vmem:[%s797 + $0x28] sm:$0xf]
  %v804 = vld [vmem:[%s797 + $0x30] sm:$0xf]
  %v805 = vld [vmem:[%s797 + $0x38] sm:$0xf]
  %v806 = vld [vmem:[%s797 + $0x50] sm:$0xf]
  %v807 = vld [vmem:[%s797 + $0x58] sm:$0xf]
  %v808 = vld [vmem:[%s797 + $0x60] sm:$0xf]
  %v809 = vld [vmem:[%s797 + $0x68] sm:$0xf]
  %v810 = vld [vmem:[%s797 + $0x70] sm:$0xf]
  %v811 = vld [vmem:[%s797 + $0x78] sm:$0xf]
  %v812 = vld [vmem:[%s797 + $0x80] sm:$0xf]
  %v813 = vld [vmem:[%s797 + $0x88] sm:$0xf]
  %v814 = vld [vmem:[%s797 + $0x4] sm:$0x1]
  %v815 = vld [vmem:[%s797 + $0xc] sm:$0x1]
  %v816 = vld [vmem:[%s797 + $0x14] sm:$0x1]
  %v817 = vld [vmem:[%s797 + $0x1c] sm:$0x1]
  %v818 = vld [vmem:[%s797 + $0x24] sm:$0x1]
  %v819 = vld [vmem:[%s797 + $0x2c] sm:$0x1]
  %v820 = vld [vmem:[%s797 + $0x34] sm:$0x1]
  %v821 = vld [vmem:[%s797 + $0x3c] sm:$0x1]
  %v822 = vld [vmem:[%s797 + $0x54] sm:$0x1]
  %v823 = vld [vmem:[%s797 + $0x5c] sm:$0x1]
  %v824 = vld [vmem:[%s797 + $0x64] sm:$0x1]
  %v825 = vld [vmem:[%s797 + $0x6c] sm:$0x1]
  %v826 = vld [vmem:[%s797 + $0x74] sm:$0x1]
  %v827 = vld [vmem:[%s797 + $0x7c] sm:$0x1]
  %v828 = vld [vmem:[%s797 + $0x84] sm:$0x1]
  %v829 = vld [vmem:[%s797 + $0x8c] sm:$0x1]
  %v830 = vld [vmem:[%s797] sm:$0xe]
  %v831 = vld [vmem:[%s797 + $0x8] sm:$0xe]
  %v832 = vld [vmem:[%s797 + $0x10] sm:$0xe]
  %v833 = vld [vmem:[%s797 + $0x18] sm:$0xe]
  %v834 = vld [vmem:[%s797 + $0x20] sm:$0xe]
  %v835 = vld [vmem:[%s797 + $0x28] sm:$0xe]
  %v836 = vld [vmem:[%s797 + $0x30] sm:$0xe]
  %v837 = vld [vmem:[%s797 + $0x38] sm:$0xe]
  %v838 = vld [vmem:[%s797 + $0x50] sm:$0xe]
  %v839 = vld [vmem:[%s797 + $0x58] sm:$0xe]
  %v840 = vld [vmem:[%s797 + $0x60] sm:$0xe]
  %v841 = vld [vmem:[%s797 + $0x68] sm:$0xe]
  %v842 = vld [vmem:[%s797 + $0x70] sm:$0xe]
  %v843 = vld [vmem:[%s797 + $0x78] sm:$0xe]
  %v844 = vld [vmem:[%s797 + $0x80] sm:$0xe]
  %v845 = vld [vmem:[%s797 + $0x88] sm:$0xe]
  %vm846 = vsmask.f32 3328
  %vm847 = vsmask.f32 7440
  %vm848 = vmor %vm846, %vm847
  %v850 = vshrl.u32 %v701, 16
  %v852 = vrot.slane %v850, 4
  %v853 = vshll.u32 %v701, 16
  %v855 = vrot.slane %v853, 5
  %v856 = vor.u32 %v852, %v855
  %v857 = vrot.slane %v856, 4
  %v859 = vshll.u32 %v717, 16
  %v861 = vrot.slane %v859, 5
  %v862 = vsel %vm848, %v857, %v861
  %v864 = vshrl.u32 %v702, 16
  %v866 = vrot.slane %v864, 4
  %v867 = vshll.u32 %v702, 16
  %v869 = vrot.slane %v867, 5
  %v870 = vor.u32 %v866, %v869
  %v871 = vrot.slane %v870, 4
  %v873 = vshll.u32 %v718, 16
  %v875 = vrot.slane %v873, 5
  %v876 = vsel %vm848, %v871, %v875
  %v878 = vshrl.u32 %v703, 16
  %v880 = vrot.slane %v878, 4
  %v881 = vshll.u32 %v703, 16
  %v883 = vrot.slane %v881, 5
  %v884 = vor.u32 %v880, %v883
  %v885 = vrot.slane %v884, 4
  %v887 = vshll.u32 %v719, 16
  %v889 = vrot.slane %v887, 5
  %v890 = vsel %vm848, %v885, %v889
  %v892 = vshrl.u32 %v704, 16
  %v894 = vrot.slane %v892, 4
  %v895 = vshll.u32 %v704, 16
  %v897 = vrot.slane %v895, 5
  %v898 = vor.u32 %v894, %v897
  %v899 = vrot.slane %v898, 4
  %v901 = vshll.u32 %v720, 16
  %v903 = vrot.slane %v901, 5
  %v904 = vsel %vm848, %v899, %v903
  %v906 = vshrl.u32 %v705, 16
  %v908 = vrot.slane %v906, 4
  %v909 = vshll.u32 %v705, 16
  %v911 = vrot.slane %v909, 5
  %v912 = vor.u32 %v908, %v911
  %v913 = vrot.slane %v912, 4
  %v915 = vshll.u32 %v721, 16
  %v917 = vrot.slane %v915, 5
  %v918 = vsel %vm848, %v913, %v917
  %v920 = vshrl.u32 %v706, 16
  %v922 = vrot.slane %v920, 4
  %v923 = vshll.u32 %v706, 16
  %v925 = vrot.slane %v923, 5
  %v926 = vor.u32 %v922, %v925
  %v927 = vrot.slane %v926, 4
  %v929 = vshll.u32 %v722, 16
  %v931 = vrot.slane %v929, 5
  %v932 = vsel %vm848, %v927, %v931
  %v934 = vshrl.u32 %v707, 16
  %v936 = vrot.slane %v934, 4
  %v937 = vshll.u32 %v707, 16
  %v939 = vrot.slane %v937, 5
  %v940 = vor.u32 %v936, %v939
  %v941 = vrot.slane %v940, 4
  %v943 = vshll.u32 %v723, 16
  %v945 = vrot.slane %v943, 5
  %v946 = vsel %vm848, %v941, %v945
  %v948 = vshrl.u32 %v708, 16
  %v950 = vrot.slane %v948, 4
  %v951 = vshll.u32 %v708, 16
  %v953 = vrot.slane %v951, 5
  %v954 = vor.u32 %v950, %v953
  %v955 = vrot.slane %v954, 4
  %v957 = vshll.u32 %v724, 16
  %v959 = vrot.slane %v957, 5
  %v960 = vsel %vm848, %v955, %v959
  %v962 = vshrl.u32 %v709, 16
  %v964 = vrot.slane %v962, 4
  %v965 = vshll.u32 %v709, 16
  %v967 = vrot.slane %v965, 5
  %v968 = vor.u32 %v964, %v967
  %v969 = vrot.slane %v968, 4
  %v971 = vshll.u32 %v725, 16
  %v973 = vrot.slane %v971, 5
  %v974 = vsel %vm848, %v969, %v973
  %v976 = vshrl.u32 %v710, 16
  %v978 = vrot.slane %v976, 4
  %v979 = vshll.u32 %v710, 16
  %v981 = vrot.slane %v979, 5
  %v982 = vor.u32 %v978, %v981
  %v983 = vrot.slane %v982, 4
  %v985 = vshll.u32 %v726, 16
  %v987 = vrot.slane %v985, 5
  %v988 = vsel %vm848, %v983, %v987
  %v990 = vshrl.u32 %v711, 16
  %v992 = vrot.slane %v990, 4
  %v993 = vshll.u32 %v711, 16
  %v995 = vrot.slane %v993, 5
  %v996 = vor.u32 %v992, %v995
  %v997 = vrot.slane %v996, 4
  %v999 = vshll.u32 %v727, 16
  %v1001 = vrot.slane %v999, 5
  %v1002 = vsel %vm848, %v997, %v1001
  %v1004 = vshrl.u32 %v712, 16
  %v1006 = vrot.slane %v1004, 4
  %v1007 = vshll.u32 %v712, 16
  %v1009 = vrot.slane %v1007, 5
  %v1010 = vor.u32 %v1006, %v1009
  %v1011 = vrot.slane %v1010, 4
  %v1013 = vshll.u32 %v728, 16
  %v1015 = vrot.slane %v1013, 5
  %v1016 = vsel %vm848, %v1011, %v1015
  %v1018 = vshrl.u32 %v713, 16
  %v1020 = vrot.slane %v1018, 4
  %v1021 = vshll.u32 %v713, 16
  %v1023 = vrot.slane %v1021, 5
  %v1024 = vor.u32 %v1020, %v1023
  %v1025 = vrot.slane %v1024, 4
  %v1027 = vshll.u32 %v729, 16
  %v1029 = vrot.slane %v1027, 5
  %v1030 = vsel %vm848, %v1025, %v1029
  %v1032 = vshrl.u32 %v714, 16
  %v1034 = vrot.slane %v1032, 4
  %v1035 = vshll.u32 %v714, 16
  %v1037 = vrot.slane %v1035, 5
  %v1038 = vor.u32 %v1034, %v1037
  %v1039 = vrot.slane %v1038, 4
  %v1041 = vshll.u32 %v730, 16
  %v1043 = vrot.slane %v1041, 5
  %v1044 = vsel %vm848, %v1039, %v1043
  %v1046 = vshrl.u32 %v715, 16
  %v1048 = vrot.slane %v1046, 4
  %v1049 = vshll.u32 %v715, 16
  %v1051 = vrot.slane %v1049, 5
  %v1052 = vor.u32 %v1048, %v1051
  %v1053 = vrot.slane %v1052, 4
  %v1055 = vshll.u32 %v731, 16
  %v1057 = vrot.slane %v1055, 5
  %v1058 = vsel %vm848, %v1053, %v1057
  %v1060 = vshrl.u32 %v716, 16
  %v1062 = vrot.slane %v1060, 4
  %v1063 = vshll.u32 %v716, 16
  %v1065 = vrot.slane %v1063, 5
  %v1066 = vor.u32 %v1062, %v1065
  %v1067 = vrot.slane %v1066, 4
  %v1069 = vshll.u32 %v732, 16
  %v1071 = vrot.slane %v1069, 5
  %v1072 = vsel %vm848, %v1067, %v1071
  %vm1105 = vcmask 1042432
  %vm1106 = vcmask 1046532
  %vm1107 = vmor %vm1105, %vm1106
  %v1108 = vrot.slane %v733, 5
  %v1109 = vrot.slane %v1108, 4
  %v1110 = vrot.slane %v717, 5
  %v1111 = vsel %vm1107, %v1109, %v1110
  %v1112 = vrot.slane %v734, 5
  %v1113 = vrot.slane %v1112, 4
  %v1114 = vrot.slane %v718, 5
  %v1115 = vsel %vm1107, %v1113, %v1114
  %v1116 = vrot.slane %v735, 5
  %v1117 = vrot.slane %v1116, 4
  %v1118 = vrot.slane %v719, 5
  %v1119 = vsel %vm1107, %v1117, %v1118
  %v1120 = vrot.slane %v736, 5
  %v1121 = vrot.slane %v1120, 4
  %v1122 = vrot.slane %v720, 5
  %v1123 = vsel %vm1107, %v1121, %v1122
  %v1124 = vrot.slane %v737, 5
  %v1125 = vrot.slane %v1124, 4
  %v1126 = vrot.slane %v721, 5
  %v1127 = vsel %vm1107, %v1125, %v1126
  %v1128 = vrot.slane %v738, 5
  %v1129 = vrot.slane %v1128, 4
  %v1130 = vrot.slane %v722, 5
  %v1131 = vsel %vm1107, %v1129, %v1130
  %v1132 = vrot.slane %v739, 5
  %v1133 = vrot.slane %v1132, 4
  %v1134 = vrot.slane %v723, 5
  %v1135 = vsel %vm1107, %v1133, %v1134
  %v1136 = vrot.slane %v740, 5
  %v1137 = vrot.slane %v1136, 4
  %v1138 = vrot.slane %v724, 5
  %v1139 = vsel %vm1107, %v1137, %v1138
  %v1140 = vrot.slane %v741, 5
  %v1141 = vrot.slane %v1140, 4
  %v1142 = vrot.slane %v725, 5
  %v1143 = vsel %vm1107, %v1141, %v1142
  %v1144 = vrot.slane %v742, 5
  %v1145 = vrot.slane %v1144, 4
  %v1146 = vrot.slane %v726, 5
  %v1147 = vsel %vm1107, %v1145, %v1146
  %v1148 = vrot.slane %v743, 5
  %v1149 = vrot.slane %v1148, 4
  %v1150 = vrot.slane %v727, 5
  %v1151 = vsel %vm1107, %v1149, %v1150
  %v1152 = vrot.slane %v744, 5
  %v1153 = vrot.slane %v1152, 4
  %v1154 = vrot.slane %v728, 5
  %v1155 = vsel %vm1107, %v1153, %v1154
  %v1156 = vrot.slane %v745, 5
  %v1157 = vrot.slane %v1156, 4
  %v1158 = vrot.slane %v729, 5
  %v1159 = vsel %vm1107, %v1157, %v1158
  %v1160 = vrot.slane %v746, 5
  %v1161 = vrot.slane %v1160, 4
  %v1162 = vrot.slane %v730, 5
  %v1163 = vsel %vm1107, %v1161, %v1162
  %v1164 = vrot.slane %v747, 5
  %v1165 = vrot.slane %v1164, 4
  %v1166 = vrot.slane %v731, 5
  %v1167 = vsel %vm1107, %v1165, %v1166
  %v1168 = vrot.slane %v748, 5
  %v1169 = vrot.slane %v1168, 4
  %v1170 = vrot.slane %v732, 5
  %v1171 = vsel %vm1107, %v1169, %v1170
  %v1173 = vshrl.u32 %v749, 16
  %v1175 = vrot.slane %v1173, 4
  %v1176 = vshll.u32 %v749, 16
  %v1178 = vrot.slane %v1176, 5
  %v1179 = vor.u32 %v1175, %v1178
  %v1180 = vrot.slane %v1179, 4
  %v1182 = vshll.u32 %v765, 16
  %v1184 = vrot.slane %v1182, 5
  %v1185 = vsel %vm848, %v1180, %v1184
  %v1187 = vshrl.u32 %v750, 16
  %v1189 = vrot.slane %v1187, 4
  %v1190 = vshll.u32 %v750, 16
  %v1192 = vrot.slane %v1190, 5
  %v1193 = vor.u32 %v1189, %v1192
  %v1194 = vrot.slane %v1193, 4
  %v1196 = vshll.u32 %v766, 16
  %v1198 = vrot.slane %v1196, 5
  %v1199 = vsel %vm848, %v1194, %v1198
  %v1201 = vshrl.u32 %v751, 16
  %v1203 = vrot.slane %v1201, 4
  %v1204 = vshll.u32 %v751, 16
  %v1206 = vrot.slane %v1204, 5
  %v1207 = vor.u32 %v1203, %v1206
  %v1208 = vrot.slane %v1207, 4
  %v1210 = vshll.u32 %v767, 16
  %v1212 = vrot.slane %v1210, 5
  %v1213 = vsel %vm848, %v1208, %v1212
  %v1215 = vshrl.u32 %v752, 16
  %v1217 = vrot.slane %v1215, 4
  %v1218 = vshll.u32 %v752, 16
  %v1220 = vrot.slane %v1218, 5
  %v1221 = vor.u32 %v1217, %v1220
  %v1222 = vrot.slane %v1221, 4
  %v1224 = vshll.u32 %v768, 16
  %v1226 = vrot.slane %v1224, 5
  %v1227 = vsel %vm848, %v1222, %v1226
  %v1229 = vshrl.u32 %v753, 16
  %v1231 = vrot.slane %v1229, 4
  %v1232 = vshll.u32 %v753, 16
  %v1234 = vrot.slane %v1232, 5
  %v1235 = vor.u32 %v1231, %v1234
  %v1236 = vrot.slane %v1235, 4
  %v1238 = vshll.u32 %v769, 16
  %v1240 = vrot.slane %v1238, 5
  %v1241 = vsel %vm848, %v1236, %v1240
  %v1243 = vshrl.u32 %v754, 16
  %v1245 = vrot.slane %v1243, 4
  %v1246 = vshll.u32 %v754, 16
  %v1248 = vrot.slane %v1246, 5
  %v1249 = vor.u32 %v1245, %v1248
  %v1250 = vrot.slane %v1249, 4
  %v1252 = vshll.u32 %v770, 16
  %v1254 = vrot.slane %v1252, 5
  %v1255 = vsel %vm848, %v1250, %v1254
  %v1257 = vshrl.u32 %v755, 16
  %v1259 = vrot.slane %v1257, 4
  %v1260 = vshll.u32 %v755, 16
  %v1262 = vrot.slane %v1260, 5
  %v1263 = vor.u32 %v1259, %v1262
  %v1264 = vrot.slane %v1263, 4
  %v1266 = vshll.u32 %v771, 16
  %v1268 = vrot.slane %v1266, 5
  %v1269 = vsel %vm848, %v1264, %v1268
  %v1271 = vshrl.u32 %v756, 16
  %v1273 = vrot.slane %v1271, 4
  %v1274 = vshll.u32 %v756, 16
  %v1276 = vrot.slane %v1274, 5
  %v1277 = vor.u32 %v1273, %v1276
  %v1278 = vrot.slane %v1277, 4
  %v1280 = vshll.u32 %v772, 16
  %v1282 = vrot.slane %v1280, 5
  %v1283 = vsel %vm848, %v1278, %v1282
  %v1285 = vshrl.u32 %v757, 16
  %v1287 = vrot.slane %v1285, 4
  %v1288 = vshll.u32 %v757, 16
  %v1290 = vrot.slane %v1288, 5
  %v1291 = vor.u32 %v1287, %v1290
  %v1292 = vrot.slane %v1291, 4
  %v1294 = vshll.u32 %v773, 16
  %v1296 = vrot.slane %v1294, 5
  %v1297 = vsel %vm848, %v1292, %v1296
  %v1299 = vshrl.u32 %v758, 16
  %v1301 = vrot.slane %v1299, 4
  %v1302 = vshll.u32 %v758, 16
  %v1304 = vrot.slane %v1302, 5
  %v1305 = vor.u32 %v1301, %v1304
  %v1306 = vrot.slane %v1305, 4
  %v1308 = vshll.u32 %v774, 16
  %v1310 = vrot.slane %v1308, 5
  %v1311 = vsel %vm848, %v1306, %v1310
  %v1313 = vshrl.u32 %v759, 16
  %v1315 = vrot.slane %v1313, 4
  %v1316 = vshll.u32 %v759, 16
  %v1318 = vrot.slane %v1316, 5
  %v1319 = vor.u32 %v1315, %v1318
  %v1320 = vrot.slane %v1319, 4
  %v1322 = vshll.u32 %v775, 16
  %v1324 = vrot.slane %v1322, 5
  %v1325 = vsel %vm848, %v1320, %v1324
  %v1327 = vshrl.u32 %v760, 16
  %v1329 = vrot.slane %v1327, 4
  %v1330 = vshll.u32 %v760, 16
  %v1332 = vrot.slane %v1330, 5
  %v1333 = vor.u32 %v1329, %v1332
  %v1334 = vrot.slane %v1333, 4
  %v1336 = vshll.u32 %v776, 16
  %v1338 = vrot.slane %v1336, 5
  %v1339 = vsel %vm848, %v1334, %v1338
  %v1341 = vshrl.u32 %v761, 16
  %v1343 = vrot.slane %v1341, 4
  %v1344 = vshll.u32 %v761, 16
  %v1346 = vrot.slane %v1344, 5
  %v1347 = vor.u32 %v1343, %v1346
  %v1348 = vrot.slane %v1347, 4
  %v1350 = vshll.u32 %v777, 16
  %v1352 = vrot.slane %v1350, 5
  %v1353 = vsel %vm848, %v1348, %v1352
  %v1355 = vshrl.u32 %v762, 16
  %v1357 = vrot.slane %v1355, 4
  %v1358 = vshll.u32 %v762, 16
  %v1360 = vrot.slane %v1358, 5
  %v1361 = vor.u32 %v1357, %v1360
  %v1362 = vrot.slane %v1361, 4
  %v1364 = vshll.u32 %v778, 16
  %v1366 = vrot.slane %v1364, 5
  %v1367 = vsel %vm848, %v1362, %v1366
  %v1369 = vshrl.u32 %v763, 16
  %v1371 = vrot.slane %v1369, 4
  %v1372 = vshll.u32 %v763, 16
  %v1374 = vrot.slane %v1372, 5
  %v1375 = vor.u32 %v1371, %v1374
  %v1376 = vrot.slane %v1375, 4
  %v1378 = vshll.u32 %v779, 16
  %v1380 = vrot.slane %v1378, 5
  %v1381 = vsel %vm848, %v1376, %v1380
  %v1383 = vshrl.u32 %v764, 16
  %v1385 = vrot.slane %v1383, 4
  %v1386 = vshll.u32 %v764, 16
  %v1388 = vrot.slane %v1386, 5
  %v1389 = vor.u32 %v1385, %v1388
  %v1390 = vrot.slane %v1389, 4
  %v1392 = vshll.u32 %v780, 16
  %v1394 = vrot.slane %v1392, 5
  %v1395 = vsel %vm848, %v1390, %v1394
  %v1428 = vrot.slane %v781, 5
  %v1429 = vrot.slane %v1428, 4
  %v1430 = vrot.slane %v765, 5
  %v1431 = vsel %vm1107, %v1429, %v1430
  %v1432 = vrot.slane %v782, 5
  %v1433 = vrot.slane %v1432, 4
  %v1434 = vrot.slane %v766, 5
  %v1435 = vsel %vm1107, %v1433, %v1434
  %v1436 = vrot.slane %v783, 5
  %v1437 = vrot.slane %v1436, 4
  %v1438 = vrot.slane %v767, 5
  %v1439 = vsel %vm1107, %v1437, %v1438
  %v1440 = vrot.slane %v784, 5
  %v1441 = vrot.slane %v1440, 4
  %v1442 = vrot.slane %v768, 5
  %v1443 = vsel %vm1107, %v1441, %v1442
  %v1444 = vrot.slane %v785, 5
  %v1445 = vrot.slane %v1444, 4
  %v1446 = vrot.slane %v769, 5
  %v1447 = vsel %vm1107, %v1445, %v1446
  %v1448 = vrot.slane %v786, 5
  %v1449 = vrot.slane %v1448, 4
  %v1450 = vrot.slane %v770, 5
  %v1451 = vsel %vm1107, %v1449, %v1450
  %v1452 = vrot.slane %v787, 5
  %v1453 = vrot.slane %v1452, 4
  %v1454 = vrot.slane %v771, 5
  %v1455 = vsel %vm1107, %v1453, %v1454
  %v1456 = vrot.slane %v788, 5
  %v1457 = vrot.slane %v1456, 4
  %v1458 = vrot.slane %v772, 5
  %v1459 = vsel %vm1107, %v1457, %v1458
  %v1460 = vrot.slane %v789, 5
  %v1461 = vrot.slane %v1460, 4
  %v1462 = vrot.slane %v773, 5
  %v1463 = vsel %vm1107, %v1461, %v1462
  %v1464 = vrot.slane %v790, 5
  %v1465 = vrot.slane %v1464, 4
  %v1466 = vrot.slane %v774, 5
  %v1467 = vsel %vm1107, %v1465, %v1466
  %v1468 = vrot.slane %v791, 5
  %v1469 = vrot.slane %v1468, 4
  %v1470 = vrot.slane %v775, 5
  %v1471 = vsel %vm1107, %v1469, %v1470
  %v1472 = vrot.slane %v792, 5
  %v1473 = vrot.slane %v1472, 4
  %v1474 = vrot.slane %v776, 5
  %v1475 = vsel %vm1107, %v1473, %v1474
  %v1476 = vrot.slane %v793, 5
  %v1477 = vrot.slane %v1476, 4
  %v1478 = vrot.slane %v777, 5
  %v1479 = vsel %vm1107, %v1477, %v1478
  %v1480 = vrot.slane %v794, 5
  %v1481 = vrot.slane %v1480, 4
  %v1482 = vrot.slane %v778, 5
  %v1483 = vsel %vm1107, %v1481, %v1482
  %v1484 = vrot.slane %v795, 5
  %v1485 = vrot.slane %v1484, 4
  %v1486 = vrot.slane %v779, 5
  %v1487 = vsel %vm1107, %v1485, %v1486
  %v1488 = vrot.slane %v796, 5
  %v1489 = vrot.slane %v1488, 4
  %v1490 = vrot.slane %v780, 5
  %v1491 = vsel %vm1107, %v1489, %v1490
  %v1493 = vshrl.u32 %v798, 16
  %v1495 = vrot.slane %v1493, 4
  %v1496 = vshll.u32 %v798, 16
  %v1498 = vrot.slane %v1496, 5
  %v1499 = vor.u32 %v1495, %v1498
  %v1500 = vrot.slane %v1499, 4
  %v1502 = vshll.u32 %v814, 16
  %v1504 = vrot.slane %v1502, 5
  %v1505 = vsel %vm848, %v1500, %v1504
  %v1507 = vshrl.u32 %v799, 16
  %v1509 = vrot.slane %v1507, 4
  %v1510 = vshll.u32 %v799, 16
  %v1512 = vrot.slane %v1510, 5
  %v1513 = vor.u32 %v1509, %v1512
  %v1514 = vrot.slane %v1513, 4
  %v1516 = vshll.u32 %v815, 16
  %v1518 = vrot.slane %v1516, 5
  %v1519 = vsel %vm848, %v1514, %v1518
  %v1521 = vshrl.u32 %v800, 16
  %v1523 = vrot.slane %v1521, 4
  %v1524 = vshll.u32 %v800, 16
  %v1526 = vrot.slane %v1524, 5
  %v1527 = vor.u32 %v1523, %v1526
  %v1528 = vrot.slane %v1527, 4
  %v1530 = vshll.u32 %v816, 16
  %v1532 = vrot.slane %v1530, 5
  %v1533 = vsel %vm848, %v1528, %v1532
  %v1535 = vshrl.u32 %v801, 16
  %v1537 = vrot.slane %v1535, 4
  %v1538 = vshll.u32 %v801, 16
  %v1540 = vrot.slane %v1538, 5
  %v1541 = vor.u32 %v1537, %v1540
  %v1542 = vrot.slane %v1541, 4
  %v1544 = vshll.u32 %v817, 16
  %v1546 = vrot.slane %v1544, 5
  %v1547 = vsel %vm848, %v1542, %v1546
  %v1549 = vshrl.u32 %v802, 16
  %v1551 = vrot.slane %v1549, 4
  %v1552 = vshll.u32 %v802, 16
  %v1554 = vrot.slane %v1552, 5
  %v1555 = vor.u32 %v1551, %v1554
  %v1556 = vrot.slane %v1555, 4
  %v1558 = vshll.u32 %v818, 16
  %v1560 = vrot.slane %v1558, 5
  %v1561 = vsel %vm848, %v1556, %v1560
  %v1563 = vshrl.u32 %v803, 16
  %v1565 = vrot.slane %v1563, 4
  %v1566 = vshll.u32 %v803, 16
  %v1568 = vrot.slane %v1566, 5
  %v1569 = vor.u32 %v1565, %v1568
  %v1570 = vrot.slane %v1569, 4
  %v1572 = vshll.u32 %v819, 16
  %v1574 = vrot.slane %v1572, 5
  %v1575 = vsel %vm848, %v1570, %v1574
  %v1577 = vshrl.u32 %v804, 16
  %v1579 = vrot.slane %v1577, 4
  %v1580 = vshll.u32 %v804, 16
  %v1582 = vrot.slane %v1580, 5
  %v1583 = vor.u32 %v1579, %v1582
  %v1584 = vrot.slane %v1583, 4
  %v1586 = vshll.u32 %v820, 16
  %v1588 = vrot.slane %v1586, 5
  %v1589 = vsel %vm848, %v1584, %v1588
  %v1591 = vshrl.u32 %v805, 16
  %v1593 = vrot.slane %v1591, 4
  %v1594 = vshll.u32 %v805, 16
  %v1596 = vrot.slane %v1594, 5
  %v1597 = vor.u32 %v1593, %v1596
  %v1598 = vrot.slane %v1597, 4
  %v1600 = vshll.u32 %v821, 16
  %v1602 = vrot.slane %v1600, 5
  %v1603 = vsel %vm848, %v1598, %v1602
  %v1605 = vshrl.u32 %v806, 16
  %v1607 = vrot.slane %v1605, 4
  %v1608 = vshll.u32 %v806, 16
  %v1610 = vrot.slane %v1608, 5
  %v1611 = vor.u32 %v1607, %v1610
  %v1612 = vrot.slane %v1611, 4
  %v1614 = vshll.u32 %v822, 16
  %v1616 = vrot.slane %v1614, 5
  %v1617 = vsel %vm848, %v1612, %v1616
  %v1619 = vshrl.u32 %v807, 16
  %v1621 = vrot.slane %v1619, 4
  %v1622 = vshll.u32 %v807, 16
  %v1624 = vrot.slane %v1622, 5
  %v1625 = vor.u32 %v1621, %v1624
  %v1626 = vrot.slane %v1625, 4
  %v1628 = vshll.u32 %v823, 16
  %v1630 = vrot.slane %v1628, 5
  %v1631 = vsel %vm848, %v1626, %v1630
  %v1633 = vshrl.u32 %v808, 16
  %v1635 = vrot.slane %v1633, 4
  %v1636 = vshll.u32 %v808, 16
  %v1638 = vrot.slane %v1636, 5
  %v1639 = vor.u32 %v1635, %v1638
  %v1640 = vrot.slane %v1639, 4
  %v1642 = vshll.u32 %v824, 16
  %v1644 = vrot.slane %v1642, 5
  %v1645 = vsel %vm848, %v1640, %v1644
  %v1647 = vshrl.u32 %v809, 16
  %v1649 = vrot.slane %v1647, 4
  %v1650 = vshll.u32 %v809, 16
  %v1652 = vrot.slane %v1650, 5
  %v1653 = vor.u32 %v1649, %v1652
  %v1654 = vrot.slane %v1653, 4
  %v1656 = vshll.u32 %v825, 16
  %v1658 = vrot.slane %v1656, 5
  %v1659 = vsel %vm848, %v1654, %v1658
  %v1661 = vshrl.u32 %v810, 16
  %v1663 = vrot.slane %v1661, 4
  %v1664 = vshll.u32 %v810, 16
  %v1666 = vrot.slane %v1664, 5
  %v1667 = vor.u32 %v1663, %v1666
  %v1668 = vrot.slane %v1667, 4
  %v1670 = vshll.u32 %v826, 16
  %v1672 = vrot.slane %v1670, 5
  %v1673 = vsel %vm848, %v1668, %v1672
  %v1675 = vshrl.u32 %v811, 16
  %v1677 = vrot.slane %v1675, 4
  %v1678 = vshll.u32 %v811, 16
  %v1680 = vrot.slane %v1678, 5
  %v1681 = vor.u32 %v1677, %v1680
  %v1682 = vrot.slane %v1681, 4
  %v1684 = vshll.u32 %v827, 16
  %v1686 = vrot.slane %v1684, 5
  %v1687 = vsel %vm848, %v1682, %v1686
  %v1689 = vshrl.u32 %v812, 16
  %v1691 = vrot.slane %v1689, 4
  %v1692 = vshll.u32 %v812, 16
  %v1694 = vrot.slane %v1692, 5
  %v1695 = vor.u32 %v1691, %v1694
  %v1696 = vrot.slane %v1695, 4
  %v1698 = vshll.u32 %v828, 16
  %v1700 = vrot.slane %v1698, 5
  %v1701 = vsel %vm848, %v1696, %v1700
  %v1703 = vshrl.u32 %v813, 16
  %v1705 = vrot.slane %v1703, 4
  %v1706 = vshll.u32 %v813, 16
  %v1708 = vrot.slane %v1706, 5
  %v1709 = vor.u32 %v1705, %v1708
  %v1710 = vrot.slane %v1709, 4
  %v1712 = vshll.u32 %v829, 16
  %v1714 = vrot.slane %v1712, 5
  %v1715 = vsel %vm848, %v1710, %v1714
  %v1748 = vrot.slane %v830, 5
  %v1749 = vrot.slane %v1748, 4
  %v1750 = vrot.slane %v814, 5
  %v1751 = vsel %vm1107, %v1749, %v1750
  %v1752 = vrot.slane %v831, 5
  %v1753 = vrot.slane %v1752, 4
  %v1754 = vrot.slane %v815, 5
  %v1755 = vsel %vm1107, %v1753, %v1754
  %v1756 = vrot.slane %v832, 5
  %v1757 = vrot.slane %v1756, 4
  %v1758 = vrot.slane %v816, 5
  %v1759 = vsel %vm1107, %v1757, %v1758
  %v1760 = vrot.slane %v833, 5
  %v1761 = vrot.slane %v1760, 4
  %v1762 = vrot.slane %v817, 5
  %v1763 = vsel %vm1107, %v1761, %v1762
  %v1764 = vrot.slane %v834, 5
  %v1765 = vrot.slane %v1764, 4
  %v1766 = vrot.slane %v818, 5
  %v1767 = vsel %vm1107, %v1765, %v1766
  %v1768 = vrot.slane %v835, 5
  %v1769 = vrot.slane %v1768, 4
  %v1770 = vrot.slane %v819, 5
  %v1771 = vsel %vm1107, %v1769, %v1770
  %v1772 = vrot.slane %v836, 5
  %v1773 = vrot.slane %v1772, 4
  %v1774 = vrot.slane %v820, 5
  %v1775 = vsel %vm1107, %v1773, %v1774
  %v1776 = vrot.slane %v837, 5
  %v1777 = vrot.slane %v1776, 4
  %v1778 = vrot.slane %v821, 5
  %v1779 = vsel %vm1107, %v1777, %v1778
  %v1780 = vrot.slane %v838, 5
  %v1781 = vrot.slane %v1780, 4
  %v1782 = vrot.slane %v822, 5
  %v1783 = vsel %vm1107, %v1781, %v1782
  %v1784 = vrot.slane %v839, 5
  %v1785 = vrot.slane %v1784, 4
  %v1786 = vrot.slane %v823, 5
  %v1787 = vsel %vm1107, %v1785, %v1786
  %v1788 = vrot.slane %v840, 5
  %v1789 = vrot.slane %v1788, 4
  %v1790 = vrot.slane %v824, 5
  %v1791 = vsel %vm1107, %v1789, %v1790
  %v1792 = vrot.slane %v841, 5
  %v1793 = vrot.slane %v1792, 4
  %v1794 = vrot.slane %v825, 5
  %v1795 = vsel %vm1107, %v1793, %v1794
  %v1796 = vrot.slane %v842, 5
  %v1797 = vrot.slane %v1796, 4
  %v1798 = vrot.slane %v826, 5
  %v1799 = vsel %vm1107, %v1797, %v1798
  %v1800 = vrot.slane %v843, 5
  %v1801 = vrot.slane %v1800, 4
  %v1802 = vrot.slane %v827, 5
  %v1803 = vsel %vm1107, %v1801, %v1802
  %v1804 = vrot.slane %v844, 5
  %v1805 = vrot.slane %v1804, 4
  %v1806 = vrot.slane %v828, 5
  %v1807 = vsel %vm1107, %v1805, %v1806
  %v1808 = vrot.slane %v845, 5
  %v1809 = vrot.slane %v1808, 4
  %v1810 = vrot.slane %v829, 5
  %v1811 = vsel %vm1107, %v1809, %v1810
  %v1828 = vunpack.c.l.b16 %v701
  %v1829 = vunpack.c.l.b16 %v702
  %v1830 = vunpack.c.l.b16 %v703
  %v1831 = vunpack.c.l.b16 %v704
  %v1832 = vunpack.c.l.b16 %v705
  %v1833 = vunpack.c.l.b16 %v706
  %v1834 = vunpack.c.l.b16 %v707
  %v1835 = vunpack.c.l.b16 %v708
  %v1836 = vunpack.c.l.b16 %v709
  %v1837 = vunpack.c.l.b16 %v710
  %v1838 = vunpack.c.l.b16 %v711
  %v1839 = vunpack.c.l.b16 %v712
  %v1840 = vunpack.c.l.b16 %v713
  %v1841 = vunpack.c.l.b16 %v714
  %v1842 = vunpack.c.l.b16 %v715
  %v1843 = vunpack.c.l.b16 %v716
  %v1844 = vpack.c.b16 %v1829, %v1828
  %v1845 = vpack.c.b16 %v1831, %v1830
  %v1846 = vpack.c.b16 %v1833, %v1832
  %v1847 = vpack.c.b16 %v1835, %v1834
  %v1848 = vpack.c.b16 %v1837, %v1836
  %v1849 = vpack.c.b16 %v1839, %v1838
  %v1850 = vpack.c.b16 %v1841, %v1840
  %v1851 = vpack.c.b16 %v1843, %v1842
  %v1852 = vunpack.c.l.b16 %v862
  %v1853 = vunpack.c.l.b16 %v876
  %v1854 = vunpack.c.l.b16 %v890
  %v1855 = vunpack.c.l.b16 %v904
  %v1856 = vunpack.c.l.b16 %v918
  %v1857 = vunpack.c.l.b16 %v932
  %v1858 = vunpack.c.l.b16 %v946
  %v1859 = vunpack.c.l.b16 %v960
  %v1860 = vunpack.c.l.b16 %v974
  %v1861 = vunpack.c.l.b16 %v988
  %v1862 = vunpack.c.l.b16 %v1002
  %v1863 = vunpack.c.l.b16 %v1016
  %v1864 = vunpack.c.l.b16 %v1030
  %v1865 = vunpack.c.l.b16 %v1044
  %v1866 = vunpack.c.l.b16 %v1058
  %v1867 = vunpack.c.l.b16 %v1072
  %v1868 = vpack.c.b16 %v1853, %v1852
  %v1869 = vpack.c.b16 %v1855, %v1854
  %v1870 = vpack.c.b16 %v1857, %v1856
  %v1871 = vpack.c.b16 %v1859, %v1858
  %v1872 = vpack.c.b16 %v1861, %v1860
  %v1873 = vpack.c.b16 %v1863, %v1862
  %v1874 = vpack.c.b16 %v1865, %v1864
  %v1875 = vpack.c.b16 %v1867, %v1866
  %1876 = vrot.lane.b32.xlu0 %v1868, 8
  %v1877 = vpop.permute.xlu0 %1876
  %1878 = vrot.lane.b32.xlu0 %v1869, 8
  %v1879 = vpop.permute.xlu0 %1878
  %1880 = vrot.lane.b32.xlu0 %v1870, 8
  %v1881 = vpop.permute.xlu0 %1880
  %1882 = vrot.lane.b32.xlu0 %v1871, 8
  %v1883 = vpop.permute.xlu0 %1882
  %1884 = vrot.lane.b32.xlu0 %v1872, 8
  %v1885 = vpop.permute.xlu0 %1884
  %1886 = vrot.lane.b32.xlu0 %v1873, 8
  %v1887 = vpop.permute.xlu0 %1886
  %1888 = vrot.lane.b32.xlu0 %v1874, 8
  %v1889 = vpop.permute.xlu0 %1888
  %1890 = vrot.lane.b32.xlu0 %v1875, 8
  %v1891 = vpop.permute.xlu0 %1890
  %v1892 = vunpack.c.l.b16 %v1111
  %v1893 = vunpack.c.l.b16 %v1115
  %v1894 = vunpack.c.l.b16 %v1119
  %v1895 = vunpack.c.l.b16 %v1123
  %v1896 = vunpack.c.l.b16 %v1127
  %v1897 = vunpack.c.l.b16 %v1131
  %v1898 = vunpack.c.l.b16 %v1135
  %v1899 = vunpack.c.l.b16 %v1139
  %v1900 = vunpack.c.l.b16 %v1143
  %v1901 = vunpack.c.l.b16 %v1147
  %v1902 = vunpack.c.l.b16 %v1151
  %v1903 = vunpack.c.l.b16 %v1155
  %v1904 = vunpack.c.l.b16 %v1159
  %v1905 = vunpack.c.l.b16 %v1163
  %v1906 = vunpack.c.l.b16 %v1167
  %v1907 = vunpack.c.l.b16 %v1171
  %v1908 = vpack.c.b16 %v1893, %v1892
  %v1909 = vpack.c.b16 %v1895, %v1894
  %v1910 = vpack.c.b16 %v1897, %v1896
  %v1911 = vpack.c.b16 %v1899, %v1898
  %v1912 = vpack.c.b16 %v1901, %v1900
  %v1913 = vpack.c.b16 %v1903, %v1902
  %v1914 = vpack.c.b16 %v1905, %v1904
  %v1915 = vpack.c.b16 %v1907, %v1906
  %1916 = vrot.lane.b32.xlu0 %v1908, 16
  %v1917 = vpop.permute.xlu0 %1916
  %1918 = vrot.lane.b32.xlu0 %v1909, 16
  %v1919 = vpop.permute.xlu0 %1918
  %1920 = vrot.lane.b32.xlu0 %v1910, 16
  %v1921 = vpop.permute.xlu0 %1920
  %1922 = vrot.lane.b32.xlu0 %v1911, 16
  %v1923 = vpop.permute.xlu0 %1922
  %1924 = vrot.lane.b32.xlu0 %v1912, 16
  %v1925 = vpop.permute.xlu0 %1924
  %1926 = vrot.lane.b32.xlu0 %v1913, 16
  %v1927 = vpop.permute.xlu0 %1926
  %1928 = vrot.lane.b32.xlu0 %v1914, 16
  %v1929 = vpop.permute.xlu0 %1928
  %1930 = vrot.lane.b32.xlu0 %v1915, 16
  %v1931 = vpop.permute.xlu0 %1930
  %v1948 = vunpack.c.l.b16 %v749
  %v1949 = vunpack.c.l.b16 %v750
  %v1950 = vunpack.c.l.b16 %v751
  %v1951 = vunpack.c.l.b16 %v752
  %v1952 = vunpack.c.l.b16 %v753
  %v1953 = vunpack.c.l.b16 %v754
  %v1954 = vunpack.c.l.b16 %v755
  %v1955 = vunpack.c.l.b16 %v756
  %v1956 = vunpack.c.l.b16 %v757
  %v1957 = vunpack.c.l.b16 %v758
  %v1958 = vunpack.c.l.b16 %v759
  %v1959 = vunpack.c.l.b16 %v760
  %v1960 = vunpack.c.l.b16 %v761
  %v1961 = vunpack.c.l.b16 %v762
  %v1962 = vunpack.c.l.b16 %v763
  %v1963 = vunpack.c.l.b16 %v764
  %v1964 = vpack.c.b16 %v1949, %v1948
  %v1965 = vpack.c.b16 %v1951, %v1950
  %v1966 = vpack.c.b16 %v1953, %v1952
  %v1967 = vpack.c.b16 %v1955, %v1954
  %v1968 = vpack.c.b16 %v1957, %v1956
  %v1969 = vpack.c.b16 %v1959, %v1958
  %v1970 = vpack.c.b16 %v1961, %v1960
  %v1971 = vpack.c.b16 %v1963, %v1962
  %1972 = vrot.lane.b32.xlu0 %v1964, 24
  %v1973 = vpop.permute.xlu0 %1972
  %1974 = vrot.lane.b32.xlu0 %v1965, 24
  %v1975 = vpop.permute.xlu0 %1974
  %1976 = vrot.lane.b32.xlu0 %v1966, 24
  %v1977 = vpop.permute.xlu0 %1976
  %1978 = vrot.lane.b32.xlu0 %v1967, 24
  %v1979 = vpop.permute.xlu0 %1978
  %1980 = vrot.lane.b32.xlu0 %v1968, 24
  %v1981 = vpop.permute.xlu0 %1980
  %1982 = vrot.lane.b32.xlu0 %v1969, 24
  %v1983 = vpop.permute.xlu0 %1982
  %1984 = vrot.lane.b32.xlu0 %v1970, 24
  %v1985 = vpop.permute.xlu0 %1984
  %1986 = vrot.lane.b32.xlu0 %v1971, 24
  %v1987 = vpop.permute.xlu0 %1986
  %v1988 = vunpack.c.l.b16 %v1185
  %v1989 = vunpack.c.l.b16 %v1199
  %v1990 = vunpack.c.l.b16 %v1213
  %v1991 = vunpack.c.l.b16 %v1227
  %v1992 = vunpack.c.l.b16 %v1241
  %v1993 = vunpack.c.l.b16 %v1255
  %v1994 = vunpack.c.l.b16 %v1269
  %v1995 = vunpack.c.l.b16 %v1283
  %v1996 = vunpack.c.l.b16 %v1297
  %v1997 = vunpack.c.l.b16 %v1311
  %v1998 = vunpack.c.l.b16 %v1325
  %v1999 = vunpack.c.l.b16 %v1339
  %v2000 = vunpack.c.l.b16 %v1353
  %v2001 = vunpack.c.l.b16 %v1367
  %v2002 = vunpack.c.l.b16 %v1381
  %v2003 = vunpack.c.l.b16 %v1395
  %v2004 = vpack.c.b16 %v1989, %v1988
  %v2005 = vpack.c.b16 %v1991, %v1990
  %v2006 = vpack.c.b16 %v1993, %v1992
  %v2007 = vpack.c.b16 %v1995, %v1994
  %v2008 = vpack.c.b16 %v1997, %v1996
  %v2009 = vpack.c.b16 %v1999, %v1998
  %v2010 = vpack.c.b16 %v2001, %v2000
  %v2011 = vpack.c.b16 %v2003, %v2002
  %2012 = vrot.lane.b32.xlu0 %v2004, 32
  %v2013 = vpop.permute.xlu0 %2012
  %2014 = vrot.lane.b32.xlu0 %v2005, 32
  %v2015 = vpop.permute.xlu0 %2014
  %2016 = vrot.lane.b32.xlu0 %v2006, 32
  %v2017 = vpop.permute.xlu0 %2016
  %2018 = vrot.lane.b32.xlu0 %v2007, 32
  %v2019 = vpop.permute.xlu0 %2018
  %2020 = vrot.lane.b32.xlu0 %v2008, 32
  %v2021 = vpop.permute.xlu0 %2020
  %2022 = vrot.lane.b32.xlu0 %v2009, 32
  %v2023 = vpop.permute.xlu0 %2022
  %2024 = vrot.lane.b32.xlu0 %v2010, 32
  %v2025 = vpop.permute.xlu0 %2024
  %2026 = vrot.lane.b32.xlu0 %v2011, 32
  %v2027 = vpop.permute.xlu0 %2026
  %v2028 = vunpack.c.l.b16 %v1431
  %v2029 = vunpack.c.l.b16 %v1435
  %v2030 = vunpack.c.l.b16 %v1439
  %v2031 = vunpack.c.l.b16 %v1443
  %v2032 = vunpack.c.l.b16 %v1447
  %v2033 = vunpack.c.l.b16 %v1451
  %v2034 = vunpack.c.l.b16 %v1455
  %v2035 = vunpack.c.l.b16 %v1459
  %v2036 = vunpack.c.l.b16 %v1463
  %v2037 = vunpack.c.l.b16 %v1467
  %v2038 = vunpack.c.l.b16 %v1471
  %v2039 = vunpack.c.l.b16 %v1475
  %v2040 = vunpack.c.l.b16 %v1479
  %v2041 = vunpack.c.l.b16 %v1483
  %v2042 = vunpack.c.l.b16 %v1487
  %v2043 = vunpack.c.l.b16 %v1491
  %v2044 = vpack.c.b16 %v2029, %v2028
  %v2045 = vpack.c.b16 %v2031, %v2030
  %v2046 = vpack.c.b16 %v2033, %v2032
  %v2047 = vpack.c.b16 %v2035, %v2034
  %v2048 = vpack.c.b16 %v2037, %v2036
  %v2049 = vpack.c.b16 %v2039, %v2038
  %v2050 = vpack.c.b16 %v2041, %v2040
  %v2051 = vpack.c.b16 %v2043, %v2042
  %2052 = vrot.lane.b32.xlu0 %v2044, 40
  %v2053 = vpop.permute.xlu0 %2052
  %2054 = vrot.lane.b32.xlu0 %v2045, 40
  %v2055 = vpop.permute.xlu0 %2054
  %2056 = vrot.lane.b32.xlu0 %v2046, 40
  %v2057 = vpop.permute.xlu0 %2056
  %2058 = vrot.lane.b32.xlu0 %v2047, 40
  %v2059 = vpop.permute.xlu0 %2058
  %2060 = vrot.lane.b32.xlu0 %v2048, 40
  %v2061 = vpop.permute.xlu0 %2060
  %2062 = vrot.lane.b32.xlu0 %v2049, 40
  %v2063 = vpop.permute.xlu0 %2062
  %2064 = vrot.lane.b32.xlu0 %v2050, 40
  %v2065 = vpop.permute.xlu0 %2064
  %2066 = vrot.lane.b32.xlu0 %v2051, 40
  %v2067 = vpop.permute.xlu0 %2066
  %v2084 = vunpack.c.l.b16 %v798
  %v2085 = vunpack.c.l.b16 %v799
  %v2086 = vunpack.c.l.b16 %v800
  %v2087 = vunpack.c.l.b16 %v801
  %v2088 = vunpack.c.l.b16 %v802
  %v2089 = vunpack.c.l.b16 %v803
  %v2090 = vunpack.c.l.b16 %v804
  %v2091 = vunpack.c.l.b16 %v805
  %v2092 = vunpack.c.l.b16 %v806
  %v2093 = vunpack.c.l.b16 %v807
  %v2094 = vunpack.c.l.b16 %v808
  %v2095 = vunpack.c.l.b16 %v809
  %v2096 = vunpack.c.l.b16 %v810
  %v2097 = vunpack.c.l.b16 %v811
  %v2098 = vunpack.c.l.b16 %v812
  %v2099 = vunpack.c.l.b16 %v813
  %v2100 = vpack.c.b16 %v2085, %v2084
  %v2101 = vpack.c.b16 %v2087, %v2086
  %v2102 = vpack.c.b16 %v2089, %v2088
  %v2103 = vpack.c.b16 %v2091, %v2090
  %v2104 = vpack.c.b16 %v2093, %v2092
  %v2105 = vpack.c.b16 %v2095, %v2094
  %v2106 = vpack.c.b16 %v2097, %v2096
  %v2107 = vpack.c.b16 %v2099, %v2098
  %2108 = vrot.lane.b32.xlu0 %v2100, 48
  %v2109 = vpop.permute.xlu0 %2108
  %2110 = vrot.lane.b32.xlu0 %v2101, 48
  %v2111 = vpop.permute.xlu0 %2110
  %2112 = vrot.lane.b32.xlu0 %v2102, 48
  %v2113 = vpop.permute.xlu0 %2112
  %2114 = vrot.lane.b32.xlu0 %v2103, 48
  %v2115 = vpop.permute.xlu0 %2114
  %2116 = vrot.lane.b32.xlu0 %v2104, 48
  %v2117 = vpop.permute.xlu0 %2116
  %2118 = vrot.lane.b32.xlu0 %v2105, 48
  %v2119 = vpop.permute.xlu0 %2118
  %2120 = vrot.lane.b32.xlu0 %v2106, 48
  %v2121 = vpop.permute.xlu0 %2120
  %2122 = vrot.lane.b32.xlu0 %v2107, 48
  %v2123 = vpop.permute.xlu0 %2122
  %v2124 = vunpack.c.l.b16 %v1505
  %v2125 = vunpack.c.l.b16 %v1519
  %v2126 = vunpack.c.l.b16 %v1533
  %v2127 = vunpack.c.l.b16 %v1547
  %v2128 = vunpack.c.l.b16 %v1561
  %v2129 = vunpack.c.l.b16 %v1575
  %v2130 = vunpack.c.l.b16 %v1589
  %v2131 = vunpack.c.l.b16 %v1603
  %v2132 = vunpack.c.l.b16 %v1617
  %v2133 = vunpack.c.l.b16 %v1631
  %v2134 = vunpack.c.l.b16 %v1645
  %v2135 = vunpack.c.l.b16 %v1659
  %v2136 = vunpack.c.l.b16 %v1673
  %v2137 = vunpack.c.l.b16 %v1687
  %v2138 = vunpack.c.l.b16 %v1701
  %v2139 = vunpack.c.l.b16 %v1715
  %v2140 = vpack.c.b16 %v2125, %v2124
  %v2141 = vpack.c.b16 %v2127, %v2126
  %v2142 = vpack.c.b16 %v2129, %v2128
  %v2143 = vpack.c.b16 %v2131, %v2130
  %v2144 = vpack.c.b16 %v2133, %v2132
  %v2145 = vpack.c.b16 %v2135, %v2134
  %v2146 = vpack.c.b16 %v2137, %v2136
  %v2147 = vpack.c.b16 %v2139, %v2138
  %2148 = vrot.lane.b32.xlu0 %v2140, 56
  %v2149 = vpop.permute.xlu0 %2148
  %2150 = vrot.lane.b32.xlu0 %v2141, 56
  %v2151 = vpop.permute.xlu0 %2150
  %2152 = vrot.lane.b32.xlu0 %v2142, 56
  %v2153 = vpop.permute.xlu0 %2152
  %2154 = vrot.lane.b32.xlu0 %v2143, 56
  %v2155 = vpop.permute.xlu0 %2154
  %2156 = vrot.lane.b32.xlu0 %v2144, 56
  %v2157 = vpop.permute.xlu0 %2156
  %2158 = vrot.lane.b32.xlu0 %v2145, 56
  %v2159 = vpop.permute.xlu0 %2158
  %2160 = vrot.lane.b32.xlu0 %v2146, 56
  %v2161 = vpop.permute.xlu0 %2160
  %2162 = vrot.lane.b32.xlu0 %v2147, 56
  %v2163 = vpop.permute.xlu0 %2162
  %v2164 = vunpack.c.l.b16 %v1751
  %v2165 = vunpack.c.l.b16 %v1755
  %v2166 = vunpack.c.l.b16 %v1759
  %v2167 = vunpack.c.l.b16 %v1763
  %v2168 = vunpack.c.l.b16 %v1767
  %v2169 = vunpack.c.l.b16 %v1771
  %v2170 = vunpack.c.l.b16 %v1775
  %v2171 = vunpack.c.l.b16 %v1779
  %v2172 = vunpack.c.l.b16 %v1783
  %v2173 = vunpack.c.l.b16 %v1787
  %v2174 = vunpack.c.l.b16 %v1791
  %v2175 = vunpack.c.l.b16 %v1795
  %v2176 = vunpack.c.l.b16 %v1799
  %v2177 = vunpack.c.l.b16 %v1803
  %v2178 = vunpack.c.l.b16 %v1807
  %v2179 = vunpack.c.l.b16 %v1811
  %v2180 = vpack.c.b16 %v2165, %v2164
  %v2181 = vpack.c.b16 %v2167, %v2166
  %v2182 = vpack.c.b16 %v2169, %v2168
  %v2183 = vpack.c.b16 %v2171, %v2170
  %v2184 = vpack.c.b16 %v2173, %v2172
  %v2185 = vpack.c.b16 %v2175, %v2174
  %v2186 = vpack.c.b16 %v2177, %v2176
  %v2187 = vpack.c.b16 %v2179, %v2178
  %2188 = vrot.lane.b32.xlu0 %v2180, 64
  %v2189 = vpop.permute.xlu0 %2188
  %2190 = vrot.lane.b32.xlu0 %v2181, 64
  %v2191 = vpop.permute.xlu0 %2190
  %2192 = vrot.lane.b32.xlu0 %v2182, 64
  %v2193 = vpop.permute.xlu0 %2192
  %2194 = vrot.lane.b32.xlu0 %v2183, 64
  %v2195 = vpop.permute.xlu0 %2194
  %2196 = vrot.lane.b32.xlu0 %v2184, 64
  %v2197 = vpop.permute.xlu0 %2196
  %2198 = vrot.lane.b32.xlu0 %v2185, 64
  %v2199 = vpop.permute.xlu0 %2198
  %2200 = vrot.lane.b32.xlu0 %v2186, 64
  %v2201 = vpop.permute.xlu0 %2200
  %2202 = vrot.lane.b32.xlu0 %v2187, 64
  %v2203 = vpop.permute.xlu0 %2202
  %vm2204 = vcmask 64512
  %v2207 = vsel %vm2204, %v1844, %v1877
  %v2210 = vsel %vm2204, %v1845, %v1879
  %v2213 = vsel %vm2204, %v1846, %v1881
  %v2216 = vsel %vm2204, %v1847, %v1883
  %v2219 = vsel %vm2204, %v1848, %v1885
  %v2222 = vsel %vm2204, %v1849, %v1887
  %v2225 = vsel %vm2204, %v1850, %v1889
  %v2228 = vsel %vm2204, %v1851, %v1891
  %vm2229 = vcmask 130048
  %v2231 = vsel %vm2229, %v2207, %v1917
  %v2233 = vsel %vm2229, %v2210, %v1919
  %v2235 = vsel %vm2229, %v2213, %v1921
  %v2237 = vsel %vm2229, %v2216, %v1923
  %v2239 = vsel %vm2229, %v2219, %v1925
  %v2241 = vsel %vm2229, %v2222, %v1927
  %v2243 = vsel %vm2229, %v2225, %v1929
  %v2245 = vsel %vm2229, %v2228, %v1931
  %vm2246 = vcmask 195584
  %v2248 = vsel %vm2246, %v2231, %v1973
  %v2250 = vsel %vm2246, %v2233, %v1975
  %v2252 = vsel %vm2246, %v2235, %v1977
  %v2254 = vsel %vm2246, %v2237, %v1979
  %v2256 = vsel %vm2246, %v2239, %v1981
  %v2258 = vsel %vm2246, %v2241, %v1983
  %v2260 = vsel %vm2246, %v2243, %v1985
  %v2262 = vsel %vm2246, %v2245, %v1987
  %vm2263 = vcmask 261120
  %v2265 = vsel %vm2263, %v2248, %v2013
  %v2267 = vsel %vm2263, %v2250, %v2015
  %v2269 = vsel %vm2263, %v2252, %v2017
  %v2271 = vsel %vm2263, %v2254, %v2019
  %v2273 = vsel %vm2263, %v2256, %v2021
  %v2275 = vsel %vm2263, %v2258, %v2023
  %v2277 = vsel %vm2263, %v2260, %v2025
  %v2279 = vsel %vm2263, %v2262, %v2027
  %vm2280 = vcmask 326656
  %v2282 = vsel %vm2280, %v2265, %v2053
  %v2284 = vsel %vm2280, %v2267, %v2055
  %v2286 = vsel %vm2280, %v2269, %v2057
  %v2288 = vsel %vm2280, %v2271, %v2059
  %v2290 = vsel %vm2280, %v2273, %v2061
  %v2292 = vsel %vm2280, %v2275, %v2063
  %v2294 = vsel %vm2280, %v2277, %v2065
  %v2296 = vsel %vm2280, %v2279, %v2067
  %vm2297 = vcmask 392192
  %v2299 = vsel %vm2297, %v2282, %v2109
  %v2301 = vsel %vm2297, %v2284, %v2111
  %v2303 = vsel %vm2297, %v2286, %v2113
  %v2305 = vsel %vm2297, %v2288, %v2115
  %v2307 = vsel %vm2297, %v2290, %v2117
  %v2309 = vsel %vm2297, %v2292, %v2119
  %v2311 = vsel %vm2297, %v2294, %v2121
  %v2313 = vsel %vm2297, %v2296, %v2123
  %vm2314 = vcmask 457728
  %v2316 = vsel %vm2314, %v2299, %v2149
  %v2318 = vsel %vm2314, %v2301, %v2151
  %v2320 = vsel %vm2314, %v2303, %v2153
  %v2322 = vsel %vm2314, %v2305, %v2155
  %v2324 = vsel %vm2314, %v2307, %v2157
  %v2326 = vsel %vm2314, %v2309, %v2159
  %v2328 = vsel %vm2314, %v2311, %v2161
  %v2330 = vsel %vm2314, %v2313, %v2163
  %vm2331 = vcmask 523264
  %v2333 = vsel %vm2331, %v2316, %v2189
  %v2335 = vsel %vm2331, %v2318, %v2191
  %v2337 = vsel %vm2331, %v2320, %v2193
  %v2339 = vsel %vm2331, %v2322, %v2195
  %v2341 = vsel %vm2331, %v2324, %v2197
  %v2343 = vsel %vm2331, %v2326, %v2199
  %v2345 = vsel %vm2331, %v2328, %v2201
  %v2347 = vsel %vm2331, %v2330, %v2203
  %v2348 = vld [vmem:[%s3] sm:$0xf]
  %v2349 = vld [vmem:[%s3 + $0x4] sm:$0xf]
  %v2350 = vld [vmem:[%s3 + $0x8] sm:$0xf]
  %v2351 = vld [vmem:[%s3 + $0xc] sm:$0xf]
  %v2352 = vld [vmem:[%s3 + $0x10] sm:$0xf]
  %v2353 = vld [vmem:[%s3 + $0x14] sm:$0xf]
  %v2354 = vld [vmem:[%s3 + $0x18] sm:$0xf]
  %v2355 = vld [vmem:[%s3 + $0x1c] sm:$0xf]
  %v2356 = vld [vmem:[%s3 + $0x20] sm:$0xf]
  %v2366 = vunpack.c.l.b16 %v2348
  %v2367 = vunpack.c.l.b16 %v2349
  %v2368 = vunpack.c.l.b16 %v2350
  %v2369 = vunpack.c.l.b16 %v2351
  %v2370 = vunpack.c.l.b16 %v2352
  %v2371 = vunpack.c.l.b16 %v2353
  %v2372 = vunpack.c.l.b16 %v2354
  %v2373 = vunpack.c.l.b16 %v2355
  %v2374 = vunpack.c.l.b16 %v2356
  %v2375 = vpack.c.b16 %v2367, %v2366
  %v2376 = vpack.c.b16 %v2369, %v2368
  %v2377 = vpack.c.b16 %v2371, %v2370
  %v2378 = vpack.c.b16 %v2373, %v2372
  %v2379 = vpack.c.b16 %v2374, %v2374
  %vm2384 = vcmask 588800
  %v2385 = vsel %vm2384, %v2333, 0
  %v2387 = vsel %vm2384, %v2335, 0
  %v2389 = vsel %vm2384, %v2337, 0
  %v2391 = vsel %vm2384, %v2339, 0
  %v2393 = vsel %vm2384, %v2341, 0
  %v2395 = vsel %vm2384, %v2343, 0
  %v2397 = vsel %vm2384, %v2345, 0
  %v2399 = vsel %vm2384, %v2347, 0
  %vm2401 = vcmask 1043456
  %v2403 = vsel %vm2401, %v2379, 0
  %2405 = vmatprep.subr.bf16.mxu0 0
  %2406 = vmatpush1.bf16.msra.mxu0 %v2375
  %2407 = vmatprep.subr.bf16.mxu0 0
  %2408 = vmatpush1.bf16.msra.mxu0 %v2376
  %2409 = vmatprep.subr.bf16.mxu0 0
  %2410 = vmatpush1.bf16.msra.mxu0 %v2377
  %2411 = vmatprep.subr.bf16.mxu0 0
  %2412 = vmatpush1.bf16.msra.mxu0 %v2378
  %2413 = vmatprep.subr.bf16.mxu0 0
  %2414 = vmatpush1.bf16.msra.mxu0 %v2403
  %2415 = vmatprep.subr.bf16.mxu0 0
  %2416 = vmatpush1.bf16.msra.mxu0 0
  %2417 = vmatprep.subr.bf16.mxu0 0
  %2418 = vmatpush1.bf16.msra.mxu0 0
  %2419 = vmatprep.subr.bf16.mxu0 0
  %2420 = vmatpush1.bf16.msra.mxu0 0
  %2421 = vmatprep.subr.bf16.mxu0 0
  %2422 = vmatpush1.bf16.msra.mxu0 0
  %2423 = vmatprep.subr.bf16.mxu0 0
  %2424 = vmatpush1.bf16.msra.mxu0 0
  %2425 = vmatprep.subr.bf16.mxu0 0
  %2426 = vmatpush1.bf16.msra.mxu0 0
  %2427 = vmatprep.subr.bf16.mxu0 0
  %2428 = vmatpush1.bf16.msra.mxu0 0
  %2429 = vmatprep.subr.bf16.mxu0 0
  %2430 = vmatpush1.bf16.msra.mxu0 0
  %2431 = vmatprep.subr.bf16.mxu0 0
  %2432 = vmatpush1.bf16.msra.mxu0 0
  %2433 = vmatprep.subr.bf16.mxu0 0
  %2434 = vmatpush1.bf16.msra.mxu0 0
  %2435 = vmatprep.subr.bf16.mxu0 0
  %2436 = vmatpush1.bf16.msra.mxu0 0
  %2437 = vmatprep.mubr.bf16.mxu0 0
  %2438 = vmatmul.mubr.bf16.gmra.mrb[0].mxu0 %v2385
  %v2439 = vpop.f32.mrb[0].mxu0
  %v2440 = vadd.f32 0.0, %v2439
  %v2441 = vpop.f32.mrb[0].mxu0
  %v2442 = vpop.f32.mrb[0].mxu0
  %v2443 = vadd.f32 0.0, %v2442
  %v2444 = vpop.f32.mrb[0].mxu0
  %2445 = vmatprep.mubr.bf16.mxu0 0
  %2446 = vmatmul.mubr.bf16.gmra.mrb[0].mxu0 %v2387
  %v2447 = vpop.f32.mrb[0].mxu0
  %v2448 = vadd.f32 0.0, %v2447
  %v2449 = vpop.f32.mrb[0].mxu0
  %v2450 = vpop.f32.mrb[0].mxu0
  %v2451 = vadd.f32 0.0, %v2450
  %v2452 = vpop.f32.mrb[0].mxu0
  %2453 = vmatprep.mubr.bf16.mxu0 0
  %2454 = vmatmul.mubr.bf16.gmra.mrb[0].mxu0 %v2389
  %v2455 = vpop.f32.mrb[0].mxu0
  %v2456 = vadd.f32 0.0, %v2455
  %v2457 = vpop.f32.mrb[0].mxu0
  %v2458 = vpop.f32.mrb[0].mxu0
  %v2459 = vadd.f32 0.0, %v2458
  %v2460 = vpop.f32.mrb[0].mxu0
  %2461 = vmatprep.mubr.bf16.mxu0 0
  %2462 = vmatmul.mubr.bf16.gmra.mrb[0].mxu0 %v2391
  %v2463 = vpop.f32.mrb[0].mxu0
  %v2464 = vadd.f32 0.0, %v2463
  %v2465 = vpop.f32.mrb[0].mxu0
  %v2466 = vpop.f32.mrb[0].mxu0
  %v2467 = vadd.f32 0.0, %v2466
  %v2468 = vpop.f32.mrb[0].mxu0
  %2469 = vmatprep.mubr.bf16.mxu0 0
  %2470 = vmatmul.mubr.bf16.gmra.mrb[0].mxu0 %v2393
  %v2471 = vpop.f32.mrb[0].mxu0
  %v2472 = vadd.f32 0.0, %v2471
  %v2473 = vpop.f32.mrb[0].mxu0
  %v2474 = vpop.f32.mrb[0].mxu0
  %v2475 = vadd.f32 0.0, %v2474
  %v2476 = vpop.f32.mrb[0].mxu0
  %2477 = vmatprep.mubr.bf16.mxu0 0
  %2478 = vmatmul.mubr.bf16.gmra.mrb[0].mxu0 %v2395
  %v2479 = vpop.f32.mrb[0].mxu0
  %v2480 = vadd.f32 0.0, %v2479
  %v2481 = vpop.f32.mrb[0].mxu0
  %v2482 = vpop.f32.mrb[0].mxu0
  %v2483 = vadd.f32 0.0, %v2482
  %v2484 = vpop.f32.mrb[0].mxu0
  %2485 = vmatprep.mubr.bf16.mxu0 0
  %2486 = vmatmul.mubr.bf16.gmra.mrb[0].mxu0 %v2397
  %v2487 = vpop.f32.mrb[0].mxu0
  %v2488 = vadd.f32 0.0, %v2487
  %v2489 = vpop.f32.mrb[0].mxu0
  %v2490 = vpop.f32.mrb[0].mxu0
  %v2491 = vadd.f32 0.0, %v2490
  %v2492 = vpop.f32.mrb[0].mxu0
  %2493 = vmatprep.mubr.bf16.mxu0 0
  %2494 = vmatmul.mubr.bf16.gmra.mrb[0].mxu0 %v2399
  %v2495 = vpop.f32.mrb[0].mxu0
  %v2496 = vadd.f32 0.0, %v2495
  %v2497 = vpop.f32.mrb[0].mxu0
  %v2498 = vpop.f32.mrb[0].mxu0
  %v2499 = vadd.f32 0.0, %v2498
  %v2500 = vpop.f32.mrb[0].mxu0
  %2501 = vdwg.mxu0
  %v2502 = vld [vmem:[%s4] sm:$0x1]
  %v2504 = vlaneseq
  %v2505 = vshrl.u32 %v2504, 7
  %v2506 = vsub.s32 0, %v2505
  %v2507 = vrot.slane %v2502, %v2506
  %v2509 = vmul.f32 %v2440, %v2507
  %v2510 = vmul.f32 %v2443, %v2507
  %v2511 = vmul.f32 %v2448, %v2507
  %v2512 = vmul.f32 %v2451, %v2507
  %v2513 = vmul.f32 %v2456, %v2507
  %v2514 = vmul.f32 %v2459, %v2507
  %v2515 = vmul.f32 %v2464, %v2507
  %v2516 = vmul.f32 %v2467, %v2507
  %v2517 = vmul.f32 %v2472, %v2507
  %v2518 = vmul.f32 %v2475, %v2507
  %v2519 = vmul.f32 %v2480, %v2507
  %v2520 = vmul.f32 %v2483, %v2507
  %v2521 = vmul.f32 %v2488, %v2507
  %v2522 = vmul.f32 %v2491, %v2507
  %v2523 = vmul.f32 %v2496, %v2507
  %v2524 = vmul.f32 %v2499, %v2507
  %v2525 = vld [vmem:[%s5] sm:$0x1]
  %v2527 = vlaneseq
  %v2528 = vshrl.u32 %v2527, 7
  %v2529 = vsub.s32 0, %v2528
  %v2530 = vrot.slane %v2525, %v2529
  %v2532 = vadd.f32 %v2509, %v2530
  %v2533 = vadd.f32 %v2510, %v2530
  %v2534 = vadd.f32 %v2511, %v2530
  %v2535 = vadd.f32 %v2512, %v2530
  %v2536 = vadd.f32 %v2513, %v2530
  %v2537 = vadd.f32 %v2514, %v2530
  %v2538 = vadd.f32 %v2515, %v2530
  %v2539 = vadd.f32 %v2516, %v2530
  %v2540 = vadd.f32 %v2517, %v2530
  %v2541 = vadd.f32 %v2518, %v2530
  %v2542 = vadd.f32 %v2519, %v2530
  %v2543 = vadd.f32 %v2520, %v2530
  %v2544 = vadd.f32 %v2521, %v2530
  %v2545 = vadd.f32 %v2522, %v2530
  %v2546 = vadd.f32 %v2523, %v2530
  %v2547 = vadd.f32 %v2524, %v2530
  %v2548 = vmax.f32 %v2532, 0.0
  %v2549 = vmax.f32 %v2533, 0.0
  %v2550 = vmax.f32 %v2534, 0.0
  %v2551 = vmax.f32 %v2535, 0.0
  %v2552 = vmax.f32 %v2536, 0.0
  %v2553 = vmax.f32 %v2537, 0.0
  %v2554 = vmax.f32 %v2538, 0.0
  %v2555 = vmax.f32 %v2539, 0.0
  %v2556 = vmax.f32 %v2540, 0.0
  %v2557 = vmax.f32 %v2541, 0.0
  %v2558 = vmax.f32 %v2542, 0.0
  %v2559 = vmax.f32 %v2543, 0.0
  %v2560 = vmax.f32 %v2544, 0.0
  %v2561 = vmax.f32 %v2545, 0.0
  %v2562 = vmax.f32 %v2546, 0.0
  %v2563 = vmax.f32 %v2547, 0.0
  %v2564 = vpack.c.bf16 %v2548, %v2548
  %v2565 = vpack.c.bf16 %v2549, %v2549
  %v2566 = vpack.c.bf16 %v2550, %v2550
  %v2567 = vpack.c.bf16 %v2551, %v2551
  %v2568 = vpack.c.bf16 %v2552, %v2552
  %v2569 = vpack.c.bf16 %v2553, %v2553
  %v2570 = vpack.c.bf16 %v2554, %v2554
  %v2571 = vpack.c.bf16 %v2555, %v2555
  %v2572 = vpack.c.bf16 %v2556, %v2556
  %v2573 = vpack.c.bf16 %v2557, %v2557
  %v2574 = vpack.c.bf16 %v2558, %v2558
  %v2575 = vpack.c.bf16 %v2559, %v2559
  %v2576 = vpack.c.bf16 %v2560, %v2560
  %v2577 = vpack.c.bf16 %v2561, %v2561
  %v2578 = vpack.c.bf16 %v2562, %v2562
  %v2579 = vpack.c.bf16 %v2563, %v2563
  %v2596 = vunpack.c.l.b16 %v2564
  %v2597 = vunpack.c.l.b16 %v2565
  %v2598 = vunpack.c.l.b16 %v2566
  %v2599 = vunpack.c.l.b16 %v2567
  %v2600 = vunpack.c.l.b16 %v2568
  %v2601 = vunpack.c.l.b16 %v2569
  %v2602 = vunpack.c.l.b16 %v2570
  %v2603 = vunpack.c.l.b16 %v2571
  %v2604 = vunpack.c.l.b16 %v2572
  %v2605 = vunpack.c.l.b16 %v2573
  %v2606 = vunpack.c.l.b16 %v2574
  %v2607 = vunpack.c.l.b16 %v2575
  %v2608 = vunpack.c.l.b16 %v2576
  %v2609 = vunpack.c.l.b16 %v2577
  %v2610 = vunpack.c.l.b16 %v2578
  %v2611 = vunpack.c.l.b16 %v2579
  %v2612 = vpack.c.b16 %v2596, %v2596
  %v2613 = vpack.c.b16 %v2597, %v2597
  %v2614 = vpack.c.b16 %v2598, %v2598
  %v2615 = vpack.c.b16 %v2599, %v2599
  %v2616 = vpack.c.b16 %v2600, %v2600
  %v2617 = vpack.c.b16 %v2601, %v2601
  %v2618 = vpack.c.b16 %v2602, %v2602
  %v2619 = vpack.c.b16 %v2603, %v2603
  %v2620 = vpack.c.b16 %v2604, %v2604
  %v2621 = vpack.c.b16 %v2605, %v2605
  %v2622 = vpack.c.b16 %v2606, %v2606
  %v2623 = vpack.c.b16 %v2607, %v2607
  %v2624 = vpack.c.b16 %v2608, %v2608
  %v2625 = vpack.c.b16 %v2609, %v2609
  %v2626 = vpack.c.b16 %v2610, %v2610
  %v2627 = vpack.c.b16 %v2611, %v2611
  %v2629 = vshrl.u32 %v2612, 16
  %v2631 = vrot.slane %v2629, 7
  %v2632 = vshll.u32 %v2612, 16
  %v2634 = vor.u32 %v2631, %v2632
  %v2635 = vrot.slane %v2631, 4
  %v2637 = vshrl.u32 %v2613, 16
  %v2639 = vrot.slane %v2637, 7
  %v2640 = vshll.u32 %v2613, 16
  %v2642 = vor.u32 %v2639, %v2640
  %v2643 = vrot.slane %v2639, 4
  %v2645 = vshrl.u32 %v2614, 16
  %v2647 = vrot.slane %v2645, 7
  %v2648 = vshll.u32 %v2614, 16
  %v2650 = vor.u32 %v2647, %v2648
  %v2651 = vrot.slane %v2647, 4
  %v2653 = vshrl.u32 %v2615, 16
  %v2655 = vrot.slane %v2653, 7
  %v2656 = vshll.u32 %v2615, 16
  %v2658 = vor.u32 %v2655, %v2656
  %v2659 = vrot.slane %v2655, 4
  %v2661 = vshrl.u32 %v2616, 16
  %v2663 = vrot.slane %v2661, 7
  %v2664 = vshll.u32 %v2616, 16
  %v2666 = vor.u32 %v2663, %v2664
  %v2667 = vrot.slane %v2663, 4
  %v2669 = vshrl.u32 %v2617, 16
  %v2671 = vrot.slane %v2669, 7
  %v2672 = vshll.u32 %v2617, 16
  %v2674 = vor.u32 %v2671, %v2672
  %v2675 = vrot.slane %v2671, 4
  %v2677 = vshrl.u32 %v2618, 16
  %v2679 = vrot.slane %v2677, 7
  %v2680 = vshll.u32 %v2618, 16
  %v2682 = vor.u32 %v2679, %v2680
  %v2683 = vrot.slane %v2679, 4
  %v2685 = vshrl.u32 %v2619, 16
  %v2687 = vrot.slane %v2685, 7
  %v2688 = vshll.u32 %v2619, 16
  %v2690 = vor.u32 %v2687, %v2688
  %v2691 = vrot.slane %v2687, 4
  %v2693 = vshrl.u32 %v2620, 16
  %v2695 = vrot.slane %v2693, 7
  %v2696 = vshll.u32 %v2620, 16
  %v2698 = vor.u32 %v2695, %v2696
  %v2699 = vrot.slane %v2695, 4
  %v2701 = vshrl.u32 %v2621, 16
  %v2703 = vrot.slane %v2701, 7
  %v2704 = vshll.u32 %v2621, 16
  %v2706 = vor.u32 %v2703, %v2704
  %v2707 = vrot.slane %v2703, 4
  %v2709 = vshrl.u32 %v2622, 16
  %v2711 = vrot.slane %v2709, 7
  %v2712 = vshll.u32 %v2622, 16
  %v2714 = vor.u32 %v2711, %v2712
  %v2715 = vrot.slane %v2711, 4
  %v2717 = vshrl.u32 %v2623, 16
  %v2719 = vrot.slane %v2717, 7
  %v2720 = vshll.u32 %v2623, 16
  %v2722 = vor.u32 %v2719, %v2720
  %v2723 = vrot.slane %v2719, 4
  %v2725 = vshrl.u32 %v2624, 16
  %v2727 = vrot.slane %v2725, 7
  %v2728 = vshll.u32 %v2624, 16
  %v2730 = vor.u32 %v2727, %v2728
  %v2731 = vrot.slane %v2727, 4
  %v2733 = vshrl.u32 %v2625, 16
  %v2735 = vrot.slane %v2733, 7
  %v2736 = vshll.u32 %v2625, 16
  %v2738 = vor.u32 %v2735, %v2736
  %v2739 = vrot.slane %v2735, 4
  %v2741 = vshrl.u32 %v2626, 16
  %v2743 = vrot.slane %v2741, 7
  %v2744 = vshll.u32 %v2626, 16
  %v2746 = vor.u32 %v2743, %v2744
  %v2747 = vrot.slane %v2743, 4
  %v2749 = vshrl.u32 %v2627, 16
  %v2751 = vrot.slane %v2749, 7
  %v2752 = vshll.u32 %v2627, 16
  %v2754 = vor.u32 %v2751, %v2752
  %v2755 = vrot.slane %v2751, 4
  %s2788 = scalar_lea.vmem [#allocation3], 8
  %v2789 = vld [vmem:[%s2788] sm:$0xf]
  %v2790 = vsel %vm601, %v2634, %v2789
  %2791 = vst [vmem:[%s2788] sm:$0xf] %v2790
  %v2792 = vld [vmem:[%s2788 + $0x4] sm:$0x1]
  %v2793 = vsel %vm607, %v2635, %v2792
  %2794 = vst [vmem:[%s2788 + $0x4] sm:$0x1] %v2793
  %v2795 = vld [vmem:[%s2788 + $0x8] sm:$0xf]
  %v2796 = vsel %vm601, %v2642, %v2795
  %2797 = vst [vmem:[%s2788 + $0x8] sm:$0xf] %v2796
  %v2798 = vld [vmem:[%s2788 + $0xc] sm:$0x1]
  %v2799 = vsel %vm607, %v2643, %v2798
  %2800 = vst [vmem:[%s2788 + $0xc] sm:$0x1] %v2799
  %v2801 = vld [vmem:[%s2788 + $0x10] sm:$0xf]
  %v2802 = vsel %vm601, %v2650, %v2801
  %2803 = vst [vmem:[%s2788 + $0x10] sm:$0xf] %v2802
  %v2804 = vld [vmem:[%s2788 + $0x14] sm:$0x1]
  %v2805 = vsel %vm607, %v2651, %v2804
  %2806 = vst [vmem:[%s2788 + $0x14] sm:$0x1] %v2805
  %v2807 = vld [vmem:[%s2788 + $0x18] sm:$0xf]
  %v2808 = vsel %vm601, %v2658, %v2807
  %2809 = vst [vmem:[%s2788 + $0x18] sm:$0xf] %v2808
  %v2810 = vld [vmem:[%s2788 + $0x1c] sm:$0x1]
  %v2811 = vsel %vm607, %v2659, %v2810
  %2812 = vst [vmem:[%s2788 + $0x1c] sm:$0x1] %v2811
  %v2813 = vld [vmem:[%s2788 + $0x20] sm:$0xf]
  %v2814 = vsel %vm601, %v2666, %v2813
  %2815 = vst [vmem:[%s2788 + $0x20] sm:$0xf] %v2814
  %v2816 = vld [vmem:[%s2788 + $0x24] sm:$0x1]
  %v2817 = vsel %vm607, %v2667, %v2816
  %2818 = vst [vmem:[%s2788 + $0x24] sm:$0x1] %v2817
  %v2819 = vld [vmem:[%s2788 + $0x28] sm:$0xf]
  %v2820 = vsel %vm601, %v2674, %v2819
  %2821 = vst [vmem:[%s2788 + $0x28] sm:$0xf] %v2820
  %v2822 = vld [vmem:[%s2788 + $0x2c] sm:$0x1]
  %v2823 = vsel %vm607, %v2675, %v2822
  %2824 = vst [vmem:[%s2788 + $0x2c] sm:$0x1] %v2823
  %v2825 = vld [vmem:[%s2788 + $0x30] sm:$0xf]
  %v2826 = vsel %vm601, %v2682, %v2825
  %2827 = vst [vmem:[%s2788 + $0x30] sm:$0xf] %v2826
  %v2828 = vld [vmem:[%s2788 + $0x34] sm:$0x1]
  %v2829 = vsel %vm607, %v2683, %v2828
  %2830 = vst [vmem:[%s2788 + $0x34] sm:$0x1] %v2829
  %v2831 = vld [vmem:[%s2788 + $0x38] sm:$0xf]
  %v2832 = vsel %vm601, %v2690, %v2831
  %2833 = vst [vmem:[%s2788 + $0x38] sm:$0xf] %v2832
  %v2834 = vld [vmem:[%s2788 + $0x3c] sm:$0x1]
  %v2835 = vsel %vm607, %v2691, %v2834
  %2836 = vst [vmem:[%s2788 + $0x3c] sm:$0x1] %v2835
  %v2837 = vld [vmem:[%s2788 + $0x50] sm:$0xf]
  %v2838 = vsel %vm601, %v2698, %v2837
  %2839 = vst [vmem:[%s2788 + $0x50] sm:$0xf] %v2838
  %v2840 = vld [vmem:[%s2788 + $0x54] sm:$0x1]
  %v2841 = vsel %vm607, %v2699, %v2840
  %2842 = vst [vmem:[%s2788 + $0x54] sm:$0x1] %v2841
  %v2843 = vld [vmem:[%s2788 + $0x58] sm:$0xf]
  %v2844 = vsel %vm601, %v2706, %v2843
  %2845 = vst [vmem:[%s2788 + $0x58] sm:$0xf] %v2844
  %v2846 = vld [vmem:[%s2788 + $0x5c] sm:$0x1]
  %v2847 = vsel %vm607, %v2707, %v2846
  %2848 = vst [vmem:[%s2788 + $0x5c] sm:$0x1] %v2847
  %v2849 = vld [vmem:[%s2788 + $0x60] sm:$0xf]
  %v2850 = vsel %vm601, %v2714, %v2849
  %2851 = vst [vmem:[%s2788 + $0x60] sm:$0xf] %v2850
  %v2852 = vld [vmem:[%s2788 + $0x64] sm:$0x1]
  %v2853 = vsel %vm607, %v2715, %v2852
  %2854 = vst [vmem:[%s2788 + $0x64] sm:$0x1] %v2853
  %v2855 = vld [vmem:[%s2788 + $0x68] sm:$0xf]
  %v2856 = vsel %vm601, %v2722, %v2855
  %2857 = vst [vmem:[%s2788 + $0x68] sm:$0xf] %v2856
  %v2858 = vld [vmem:[%s2788 + $0x6c] sm:$0x1]
  %v2859 = vsel %vm607, %v2723, %v2858
  %2860 = vst [vmem:[%s2788 + $0x6c] sm:$0x1] %v2859
  %v2861 = vld [vmem:[%s2788 + $0x70] sm:$0xf]
  %v2862 = vsel %vm601, %v2730, %v2861
  %2863 = vst [vmem:[%s2788 + $0x70] sm:$0xf] %v2862
  %v2864 = vld [vmem:[%s2788 + $0x74] sm:$0x1]
  %v2865 = vsel %vm607, %v2731, %v2864
  %2866 = vst [vmem:[%s2788 + $0x74] sm:$0x1] %v2865
  %v2867 = vld [vmem:[%s2788 + $0x78] sm:$0xf]
  %v2868 = vsel %vm601, %v2738, %v2867
  %2869 = vst [vmem:[%s2788 + $0x78] sm:$0xf] %v2868
  %v2870 = vld [vmem:[%s2788 + $0x7c] sm:$0x1]
  %v2871 = vsel %vm607, %v2739, %v2870
  %2872 = vst [vmem:[%s2788 + $0x7c] sm:$0x1] %v2871
  %v2873 = vld [vmem:[%s2788 + $0x80] sm:$0xf]
  %v2874 = vsel %vm601, %v2746, %v2873
  %2875 = vst [vmem:[%s2788 + $0x80] sm:$0xf] %v2874
  %v2876 = vld [vmem:[%s2788 + $0x84] sm:$0x1]
  %v2877 = vsel %vm607, %v2747, %v2876
  %2878 = vst [vmem:[%s2788 + $0x84] sm:$0x1] %v2877
  %v2879 = vld [vmem:[%s2788 + $0x88] sm:$0xf]
  %v2880 = vsel %vm601, %v2754, %v2879
  %2881 = vst [vmem:[%s2788 + $0x88] sm:$0xf] %v2880
  %v2882 = vld [vmem:[%s2788 + $0x8c] sm:$0x1]
  %v2883 = vsel %vm607, %v2755, %v2882
  %2884 = vst [vmem:[%s2788 + $0x8c] sm:$0x1] %v2883
  %v2885 = vld [vmem:[#allocation3] sm:$0xf]
  %v2886 = vld [vmem:[#allocation3 + $0x8] sm:$0xf]
  %v2887 = vld [vmem:[#allocation3 + $0x10] sm:$0xf]
  %v2888 = vld [vmem:[#allocation3 + $0x18] sm:$0xf]
  %v2889 = vld [vmem:[#allocation3 + $0x20] sm:$0xf]
  %v2890 = vld [vmem:[#allocation3 + $0x28] sm:$0xf]
  %v2891 = vld [vmem:[#allocation3 + $0x30] sm:$0xf]
  %v2892 = vld [vmem:[#allocation3 + $0x38] sm:$0xf]
  %v2893 = vld [vmem:[#allocation3 + $0x50] sm:$0xf]
  %v2894 = vld [vmem:[#allocation3 + $0x58] sm:$0xf]
  %v2895 = vld [vmem:[#allocation3 + $0x60] sm:$0xf]
  %v2896 = vld [vmem:[#allocation3 + $0x68] sm:$0xf]
  %v2897 = vld [vmem:[#allocation3 + $0x70] sm:$0xf]
  %v2898 = vld [vmem:[#allocation3 + $0x78] sm:$0xf]
  %v2899 = vld [vmem:[#allocation3 + $0x80] sm:$0xf]
  %v2900 = vld [vmem:[#allocation3 + $0x88] sm:$0xf]
  %v2901 = vld [vmem:[#allocation3 + $0x4] sm:$0x1]
  %v2902 = vld [vmem:[#allocation3 + $0xc] sm:$0x1]
  %v2903 = vld [vmem:[#allocation3 + $0x14] sm:$0x1]
  %v2904 = vld [vmem:[#allocation3 + $0x1c] sm:$0x1]
  %v2905 = vld [vmem:[#allocation3 + $0x24] sm:$0x1]
  %v2906 = vld [vmem:[#allocation3 + $0x2c] sm:$0x1]
  %v2907 = vld [vmem:[#allocation3 + $0x34] sm:$0x1]
  %v2908 = vld [vmem:[#allocation3 + $0x3c] sm:$0x1]
  %v2909 = vld [vmem:[#allocation3 + $0x54] sm:$0x1]
  %v2910 = vld [vmem:[#allocation3 + $0x5c] sm:$0x1]
  %v2911 = vld [vmem:[#allocation3 + $0x64] sm:$0x1]
  %v2912 = vld [vmem:[#allocation3 + $0x6c] sm:$0x1]
  %v2913 = vld [vmem:[#allocation3 + $0x74] sm:$0x1]
  %v2914 = vld [vmem:[#allocation3 + $0x7c] sm:$0x1]
  %v2915 = vld [vmem:[#allocation3 + $0x84] sm:$0x1]
  %v2916 = vld [vmem:[#allocation3 + $0x8c] sm:$0x1]
  %v2917 = vld [vmem:[#allocation3] sm:$0xe]
  %v2918 = vld [vmem:[#allocation3 + $0x8] sm:$0xe]
  %v2919 = vld [vmem:[#allocation3 + $0x10] sm:$0xe]
  %v2920 = vld [vmem:[#allocation3 + $0x18] sm:$0xe]
  %v2921 = vld [vmem:[#allocation3 + $0x20] sm:$0xe]
  %v2922 = vld [vmem:[#allocation3 + $0x28] sm:$0xe]
  %v2923 = vld [vmem:[#allocation3 + $0x30] sm:$0xe]
  %v2924 = vld [vmem:[#allocation3 + $0x38] sm:$0xe]
  %v2925 = vld [vmem:[#allocation3 + $0x50] sm:$0xe]
  %v2926 = vld [vmem:[#allocation3 + $0x58] sm:$0xe]
  %v2927 = vld [vmem:[#allocation3 + $0x60] sm:$0xe]
  %v2928 = vld [vmem:[#allocation3 + $0x68] sm:$0xe]
  %v2929 = vld [vmem:[#allocation3 + $0x70] sm:$0xe]
  %v2930 = vld [vmem:[#allocation3 + $0x78] sm:$0xe]
  %v2931 = vld [vmem:[#allocation3 + $0x80] sm:$0xe]
  %v2932 = vld [vmem:[#allocation3 + $0x88] sm:$0xe]
  %v2933 = vld [vmem:[%s2788] sm:$0xf]
  %v2934 = vld [vmem:[%s2788 + $0x8] sm:$0xf]
  %v2935 = vld [vmem:[%s2788 + $0x10] sm:$0xf]
  %v2936 = vld [vmem:[%s2788 + $0x18] sm:$0xf]
  %v2937 = vld [vmem:[%s2788 + $0x20] sm:$0xf]
  %v2938 = vld [vmem:[%s2788 + $0x28] sm:$0xf]
  %v2939 = vld [vmem:[%s2788 + $0x30] sm:$0xf]
  %v2940 = vld [vmem:[%s2788 + $0x38] sm:$0xf]
  %v2941 = vld [vmem:[%s2788 + $0x50] sm:$0xf]
  %v2942 = vld [vmem:[%s2788 + $0x58] sm:$0xf]
  %v2943 = vld [vmem:[%s2788 + $0x60] sm:$0xf]
  %v2944 = vld [vmem:[%s2788 + $0x68] sm:$0xf]
  %v2945 = vld [vmem:[%s2788 + $0x70] sm:$0xf]
  %v2946 = vld [vmem:[%s2788 + $0x78] sm:$0xf]
  %v2947 = vld [vmem:[%s2788 + $0x80] sm:$0xf]
  %v2948 = vld [vmem:[%s2788 + $0x88] sm:$0xf]
  %v2949 = vld [vmem:[%s2788 + $0x4] sm:$0x1]
  %v2950 = vld [vmem:[%s2788 + $0xc] sm:$0x1]
  %v2951 = vld [vmem:[%s2788 + $0x14] sm:$0x1]
  %v2952 = vld [vmem:[%s2788 + $0x1c] sm:$0x1]
  %v2953 = vld [vmem:[%s2788 + $0x24] sm:$0x1]
  %v2954 = vld [vmem:[%s2788 + $0x2c] sm:$0x1]
  %v2955 = vld [vmem:[%s2788 + $0x34] sm:$0x1]
  %v2956 = vld [vmem:[%s2788 + $0x3c] sm:$0x1]
  %v2957 = vld [vmem:[%s2788 + $0x54] sm:$0x1]
  %v2958 = vld [vmem:[%s2788 + $0x5c] sm:$0x1]
  %v2959 = vld [vmem:[%s2788 + $0x64] sm:$0x1]
  %v2960 = vld [vmem:[%s2788 + $0x6c] sm:$0x1]
  %v2961 = vld [vmem:[%s2788 + $0x74] sm:$0x1]
  %v2962 = vld [vmem:[%s2788 + $0x7c] sm:$0x1]
  %v2963 = vld [vmem:[%s2788 + $0x84] sm:$0x1]
  %v2964 = vld [vmem:[%s2788 + $0x8c] sm:$0x1]
  %v2965 = vld [vmem:[%s2788] sm:$0xe]
  %v2966 = vld [vmem:[%s2788 + $0x8] sm:$0xe]
  %v2967 = vld [vmem:[%s2788 + $0x10] sm:$0xe]
  %v2968 = vld [vmem:[%s2788 + $0x18] sm:$0xe]
  %v2969 = vld [vmem:[%s2788 + $0x20] sm:$0xe]
  %v2970 = vld [vmem:[%s2788 + $0x28] sm:$0xe]
  %v2971 = vld [vmem:[%s2788 + $0x30] sm:$0xe]
  %v2972 = vld [vmem:[%s2788 + $0x38] sm:$0xe]
  %v2973 = vld [vmem:[%s2788 + $0x50] sm:$0xe]
  %v2974 = vld [vmem:[%s2788 + $0x58] sm:$0xe]
  %v2975 = vld [vmem:[%s2788 + $0x60] sm:$0xe]
  %v2976 = vld [vmem:[%s2788 + $0x68] sm:$0xe]
  %v2977 = vld [vmem:[%s2788 + $0x70] sm:$0xe]
  %v2978 = vld [vmem:[%s2788 + $0x78] sm:$0xe]
  %v2979 = vld [vmem:[%s2788 + $0x80] sm:$0xe]
  %v2980 = vld [vmem:[%s2788 + $0x88] sm:$0xe]
  %s2981 = scalar_lea.vmem [#allocation3], 16
  %v2982 = vld [vmem:[%s2981] sm:$0xf]
  %v2983 = vld [vmem:[%s2981 + $0x8] sm:$0xf]
  %v2984 = vld [vmem:[%s2981 + $0x10] sm:$0xf]
  %v2985 = vld [vmem:[%s2981 + $0x18] sm:$0xf]
  %v2986 = vld [vmem:[%s2981 + $0x20] sm:$0xf]
  %v2987 = vld [vmem:[%s2981 + $0x28] sm:$0xf]
  %v2988 = vld [vmem:[%s2981 + $0x30] sm:$0xf]
  %v2989 = vld [vmem:[%s2981 + $0x38] sm:$0xf]
  %v2990 = vld [vmem:[%s2981 + $0x50] sm:$0xf]
  %v2991 = vld [vmem:[%s2981 + $0x58] sm:$0xf]
  %v2992 = vld [vmem:[%s2981 + $0x60] sm:$0xf]
  %v2993 = vld [vmem:[%s2981 + $0x68] sm:$0xf]
  %v2994 = vld [vmem:[%s2981 + $0x70] sm:$0xf]
  %v2995 = vld [vmem:[%s2981 + $0x78] sm:$0xf]
  %v2996 = vld [vmem:[%s2981 + $0x80] sm:$0xf]
  %v2997 = vld [vmem:[%s2981 + $0x88] sm:$0xf]
  %v2998 = vld [vmem:[%s2981 + $0x4] sm:$0x1]
  %v2999 = vld [vmem:[%s2981 + $0xc] sm:$0x1]
  %v3000 = vld [vmem:[%s2981 + $0x14] sm:$0x1]
  %v3001 = vld [vmem:[%s2981 + $0x1c] sm:$0x1]
  %v3002 = vld [vmem:[%s2981 + $0x24] sm:$0x1]
  %v3003 = vld [vmem:[%s2981 + $0x2c] sm:$0x1]
  %v3004 = vld [vmem:[%s2981 + $0x34] sm:$0x1]
  %v3005 = vld [vmem:[%s2981 + $0x3c] sm:$0x1]
  %v3006 = vld [vmem:[%s2981 + $0x54] sm:$0x1]
  %v3007 = vld [vmem:[%s2981 + $0x5c] sm:$0x1]
  %v3008 = vld [vmem:[%s2981 + $0x64] sm:$0x1]
  %v3009 = vld [vmem:[%s2981 + $0x6c] sm:$0x1]
  %v3010 = vld [vmem:[%s2981 + $0x74] sm:$0x1]
  %v3011 = vld [vmem:[%s2981 + $0x7c] sm:$0x1]
  %v3012 = vld [vmem:[%s2981 + $0x84] sm:$0x1]
  %v3013 = vld [vmem:[%s2981 + $0x8c] sm:$0x1]
  %v3014 = vld [vmem:[%s2981] sm:$0xe]
  %v3015 = vld [vmem:[%s2981 + $0x8] sm:$0xe]
  %v3016 = vld [vmem:[%s2981 + $0x10] sm:$0xe]
  %v3017 = vld [vmem:[%s2981 + $0x18] sm:$0xe]
  %v3018 = vld [vmem:[%s2981 + $0x20] sm:$0xe]
  %v3019 = vld [vmem:[%s2981 + $0x28] sm:$0xe]
  %v3020 = vld [vmem:[%s2981 + $0x30] sm:$0xe]
  %v3021 = vld [vmem:[%s2981 + $0x38] sm:$0xe]
  %v3022 = vld [vmem:[%s2981 + $0x50] sm:$0xe]
  %v3023 = vld [vmem:[%s2981 + $0x58] sm:$0xe]
  %v3024 = vld [vmem:[%s2981 + $0x60] sm:$0xe]
  %v3025 = vld [vmem:[%s2981 + $0x68] sm:$0xe]
  %v3026 = vld [vmem:[%s2981 + $0x70] sm:$0xe]
  %v3027 = vld [vmem:[%s2981 + $0x78] sm:$0xe]
  %v3028 = vld [vmem:[%s2981 + $0x80] sm:$0xe]
  %v3029 = vld [vmem:[%s2981 + $0x88] sm:$0xe]
  %v3031 = vshrl.u32 %v2885, 16
  %v3033 = vrot.slane %v3031, 4
  %v3034 = vshll.u32 %v2885, 16
  %v3036 = vrot.slane %v3034, 5
  %v3037 = vor.u32 %v3033, %v3036
  %v3038 = vrot.slane %v3037, 4
  %v3040 = vshll.u32 %v2901, 16
  %v3042 = vrot.slane %v3040, 5
  %v3043 = vsel %vm848, %v3038, %v3042
  %v3045 = vshrl.u32 %v2886, 16
  %v3047 = vrot.slane %v3045, 4
  %v3048 = vshll.u32 %v2886, 16
  %v3050 = vrot.slane %v3048, 5
  %v3051 = vor.u32 %v3047, %v3050
  %v3052 = vrot.slane %v3051, 4
  %v3054 = vshll.u32 %v2902, 16
  %v3056 = vrot.slane %v3054, 5
  %v3057 = vsel %vm848, %v3052, %v3056
  %v3059 = vshrl.u32 %v2887, 16
  %v3061 = vrot.slane %v3059, 4
  %v3062 = vshll.u32 %v2887, 16
  %v3064 = vrot.slane %v3062, 5
  %v3065 = vor.u32 %v3061, %v3064
  %v3066 = vrot.slane %v3065, 4
  %v3068 = vshll.u32 %v2903, 16
  %v3070 = vrot.slane %v3068, 5
  %v3071 = vsel %vm848, %v3066, %v3070
  %v3073 = vshrl.u32 %v2888, 16
  %v3075 = vrot.slane %v3073, 4
  %v3076 = vshll.u32 %v2888, 16
  %v3078 = vrot.slane %v3076, 5
  %v3079 = vor.u32 %v3075, %v3078
  %v3080 = vrot.slane %v3079, 4
  %v3082 = vshll.u32 %v2904, 16
  %v3084 = vrot.slane %v3082, 5
  %v3085 = vsel %vm848, %v3080, %v3084
  %v3087 = vshrl.u32 %v2889, 16
  %v3089 = vrot.slane %v3087, 4
  %v3090 = vshll.u32 %v2889, 16
  %v3092 = vrot.slane %v3090, 5
  %v3093 = vor.u32 %v3089, %v3092
  %v3094 = vrot.slane %v3093, 4
  %v3096 = vshll.u32 %v2905, 16
  %v3098 = vrot.slane %v3096, 5
  %v3099 = vsel %vm848, %v3094, %v3098
  %v3101 = vshrl.u32 %v2890, 16
  %v3103 = vrot.slane %v3101, 4
  %v3104 = vshll.u32 %v2890, 16
  %v3106 = vrot.slane %v3104, 5
  %v3107 = vor.u32 %v3103, %v3106
  %v3108 = vrot.slane %v3107, 4
  %v3110 = vshll.u32 %v2906, 16
  %v3112 = vrot.slane %v3110, 5
  %v3113 = vsel %vm848, %v3108, %v3112
  %v3115 = vshrl.u32 %v2891, 16
  %v3117 = vrot.slane %v3115, 4
  %v3118 = vshll.u32 %v2891, 16
  %v3120 = vrot.slane %v3118, 5
  %v3121 = vor.u32 %v3117, %v3120
  %v3122 = vrot.slane %v3121, 4
  %v3124 = vshll.u32 %v2907, 16
  %v3126 = vrot.slane %v3124, 5
  %v3127 = vsel %vm848, %v3122, %v3126
  %v3129 = vshrl.u32 %v2892, 16
  %v3131 = vrot.slane %v3129, 4
  %v3132 = vshll.u32 %v2892, 16
  %v3134 = vrot.slane %v3132, 5
  %v3135 = vor.u32 %v3131, %v3134
  %v3136 = vrot.slane %v3135, 4
  %v3138 = vshll.u32 %v2908, 16
  %v3140 = vrot.slane %v3138, 5
  %v3141 = vsel %vm848, %v3136, %v3140
  %v3143 = vshrl.u32 %v2893, 16
  %v3145 = vrot.slane %v3143, 4
  %v3146 = vshll.u32 %v2893, 16
  %v3148 = vrot.slane %v3146, 5
  %v3149 = vor.u32 %v3145, %v3148
  %v3150 = vrot.slane %v3149, 4
  %v3152 = vshll.u32 %v2909, 16
  %v3154 = vrot.slane %v3152, 5
  %v3155 = vsel %vm848, %v3150, %v3154
  %v3157 = vshrl.u32 %v2894, 16
  %v3159 = vrot.slane %v3157, 4
  %v3160 = vshll.u32 %v2894, 16
  %v3162 = vrot.slane %v3160, 5
  %v3163 = vor.u32 %v3159, %v3162
  %v3164 = vrot.slane %v3163, 4
  %v3166 = vshll.u32 %v2910, 16
  %v3168 = vrot.slane %v3166, 5
  %v3169 = vsel %vm848, %v3164, %v3168
  %v3171 = vshrl.u32 %v2895, 16
  %v3173 = vrot.slane %v3171, 4
  %v3174 = vshll.u32 %v2895, 16
  %v3176 = vrot.slane %v3174, 5
  %v3177 = vor.u32 %v3173, %v3176
  %v3178 = vrot.slane %v3177, 4
  %v3180 = vshll.u32 %v2911, 16
  %v3182 = vrot.slane %v3180, 5
  %v3183 = vsel %vm848, %v3178, %v3182
  %v3185 = vshrl.u32 %v2896, 16
  %v3187 = vrot.slane %v3185, 4
  %v3188 = vshll.u32 %v2896, 16
  %v3190 = vrot.slane %v3188, 5
  %v3191 = vor.u32 %v3187, %v3190
  %v3192 = vrot.slane %v3191, 4
  %v3194 = vshll.u32 %v2912, 16
  %v3196 = vrot.slane %v3194, 5
  %v3197 = vsel %vm848, %v3192, %v3196
  %v3199 = vshrl.u32 %v2897, 16
  %v3201 = vrot.slane %v3199, 4
  %v3202 = vshll.u32 %v2897, 16
  %v3204 = vrot.slane %v3202, 5
  %v3205 = vor.u32 %v3201, %v3204
  %v3206 = vrot.slane %v3205, 4
  %v3208 = vshll.u32 %v2913, 16
  %v3210 = vrot.slane %v3208, 5
  %v3211 = vsel %vm848, %v3206, %v3210
  %v3213 = vshrl.u32 %v2898, 16
  %v3215 = vrot.slane %v3213, 4
  %v3216 = vshll.u32 %v2898, 16
  %v3218 = vrot.slane %v3216, 5
  %v3219 = vor.u32 %v3215, %v3218
  %v3220 = vrot.slane %v3219, 4
  %v3222 = vshll.u32 %v2914, 16
  %v3224 = vrot.slane %v3222, 5
  %v3225 = vsel %vm848, %v3220, %v3224
  %v3227 = vshrl.u32 %v2899, 16
  %v3229 = vrot.slane %v3227, 4
  %v3230 = vshll.u32 %v2899, 16
  %v3232 = vrot.slane %v3230, 5
  %v3233 = vor.u32 %v3229, %v3232
  %v3234 = vrot.slane %v3233, 4
  %v3236 = vshll.u32 %v2915, 16
  %v3238 = vrot.slane %v3236, 5
  %v3239 = vsel %vm848, %v3234, %v3238
  %v3241 = vshrl.u32 %v2900, 16
  %v3243 = vrot.slane %v3241, 4
  %v3244 = vshll.u32 %v2900, 16
  %v3246 = vrot.slane %v3244, 5
  %v3247 = vor.u32 %v3243, %v3246
  %v3248 = vrot.slane %v3247, 4
  %v3250 = vshll.u32 %v2916, 16
  %v3252 = vrot.slane %v3250, 5
  %v3253 = vsel %vm848, %v3248, %v3252
  %v3286 = vrot.slane %v2917, 5
  %v3287 = vrot.slane %v3286, 4
  %v3288 = vrot.slane %v2901, 5
  %v3289 = vsel %vm1107, %v3287, %v3288
  %v3290 = vrot.slane %v2918, 5
  %v3291 = vrot.slane %v3290, 4
  %v3292 = vrot.slane %v2902, 5
  %v3293 = vsel %vm1107, %v3291, %v3292
  %v3294 = vrot.slane %v2919, 5
  %v3295 = vrot.slane %v3294, 4
  %v3296 = vrot.slane %v2903, 5
  %v3297 = vsel %vm1107, %v3295, %v3296
  %v3298 = vrot.slane %v2920, 5
  %v3299 = vrot.slane %v3298, 4
  %v3300 = vrot.slane %v2904, 5
  %v3301 = vsel %vm1107, %v3299, %v3300
  %v3302 = vrot.slane %v2921, 5
  %v3303 = vrot.slane %v3302, 4
  %v3304 = vrot.slane %v2905, 5
  %v3305 = vsel %vm1107, %v3303, %v3304
  %v3306 = vrot.slane %v2922, 5
  %v3307 = vrot.slane %v3306, 4
  %v3308 = vrot.slane %v2906, 5
  %v3309 = vsel %vm1107, %v3307, %v3308
  %v3310 = vrot.slane %v2923, 5
  %v3311 = vrot.slane %v3310, 4
  %v3312 = vrot.slane %v2907, 5
  %v3313 = vsel %vm1107, %v3311, %v3312
  %v3314 = vrot.slane %v2924, 5
  %v3315 = vrot.slane %v3314, 4
  %v3316 = vrot.slane %v2908, 5
  %v3317 = vsel %vm1107, %v3315, %v3316
  %v3318 = vrot.slane %v2925, 5
  %v3319 = vrot.slane %v3318, 4
  %v3320 = vrot.slane %v2909, 5
  %v3321 = vsel %vm1107, %v3319, %v3320
  %v3322 = vrot.slane %v2926, 5
  %v3323 = vrot.slane %v3322, 4
  %v3324 = vrot.slane %v2910, 5
  %v3325 = vsel %vm1107, %v3323, %v3324
  %v3326 = vrot.slane %v2927, 5
  %v3327 = vrot.slane %v3326, 4
  %v3328 = vrot.slane %v2911, 5
  %v3329 = vsel %vm1107, %v3327, %v3328
  %v3330 = vrot.slane %v2928, 5
  %v3331 = vrot.slane %v3330, 4
  %v3332 = vrot.slane %v2912, 5
  %v3333 = vsel %vm1107, %v3331, %v3332
  %v3334 = vrot.slane %v2929, 5
  %v3335 = vrot.slane %v3334, 4
  %v3336 = vrot.slane %v2913, 5
  %v3337 = vsel %vm1107, %v3335, %v3336
  %v3338 = vrot.slane %v2930, 5
  %v3339 = vrot.slane %v3338, 4
  %v3340 = vrot.slane %v2914, 5
  %v3341 = vsel %vm1107, %v3339, %v3340
  %v3342 = vrot.slane %v2931, 5
  %v3343 = vrot.slane %v3342, 4
  %v3344 = vrot.slane %v2915, 5
  %v3345 = vsel %vm1107, %v3343, %v3344
  %v3346 = vrot.slane %v2932, 5
  %v3347 = vrot.slane %v3346, 4
  %v3348 = vrot.slane %v2916, 5
  %v3349 = vsel %vm1107, %v3347, %v3348
  %v3351 = vshrl.u32 %v2933, 16
  %v3353 = vrot.slane %v3351, 4
  %v3354 = vshll.u32 %v2933, 16
  %v3356 = vrot.slane %v3354, 5
  %v3357 = vor.u32 %v3353, %v3356
  %v3358 = vrot.slane %v3357, 4
  %v3360 = vshll.u32 %v2949, 16
  %v3362 = vrot.slane %v3360, 5
  %v3363 = vsel %vm848, %v3358, %v3362
  %v3365 = vshrl.u32 %v2934, 16
  %v3367 = vrot.slane %v3365, 4
  %v3368 = vshll.u32 %v2934, 16
  %v3370 = vrot.slane %v3368, 5
  %v3371 = vor.u32 %v3367, %v3370
  %v3372 = vrot.slane %v3371, 4
  %v3374 = vshll.u32 %v2950, 16
  %v3376 = vrot.slane %v3374, 5
  %v3377 = vsel %vm848, %v3372, %v3376
  %v3379 = vshrl.u32 %v2935, 16
  %v3381 = vrot.slane %v3379, 4
  %v3382 = vshll.u32 %v2935, 16
  %v3384 = vrot.slane %v3382, 5
  %v3385 = vor.u32 %v3381, %v3384
  %v3386 = vrot.slane %v3385, 4
  %v3388 = vshll.u32 %v2951, 16
  %v3390 = vrot.slane %v3388, 5
  %v3391 = vsel %vm848, %v3386, %v3390
  %v3393 = vshrl.u32 %v2936, 16
  %v3395 = vrot.slane %v3393, 4
  %v3396 = vshll.u32 %v2936, 16
  %v3398 = vrot.slane %v3396, 5
  %v3399 = vor.u32 %v3395, %v3398
  %v3400 = vrot.slane %v3399, 4
  %v3402 = vshll.u32 %v2952, 16
  %v3404 = vrot.slane %v3402, 5
  %v3405 = vsel %vm848, %v3400, %v3404
  %v3407 = vshrl.u32 %v2937, 16
  %v3409 = vrot.slane %v3407, 4
  %v3410 = vshll.u32 %v2937, 16
  %v3412 = vrot.slane %v3410, 5
  %v3413 = vor.u32 %v3409, %v3412
  %v3414 = vrot.slane %v3413, 4
  %v3416 = vshll.u32 %v2953, 16
  %v3418 = vrot.slane %v3416, 5
  %v3419 = vsel %vm848, %v3414, %v3418
  %v3421 = vshrl.u32 %v2938, 16
  %v3423 = vrot.slane %v3421, 4
  %v3424 = vshll.u32 %v2938, 16
  %v3426 = vrot.slane %v3424, 5
  %v3427 = vor.u32 %v3423, %v3426
  %v3428 = vrot.slane %v3427, 4
  %v3430 = vshll.u32 %v2954, 16
  %v3432 = vrot.slane %v3430, 5
  %v3433 = vsel %vm848, %v3428, %v3432
  %v3435 = vshrl.u32 %v2939, 16
  %v3437 = vrot.slane %v3435, 4
  %v3438 = vshll.u32 %v2939, 16
  %v3440 = vrot.slane %v3438, 5
  %v3441 = vor.u32 %v3437, %v3440
  %v3442 = vrot.slane %v3441, 4
  %v3444 = vshll.u32 %v2955, 16
  %v3446 = vrot.slane %v3444, 5
  %v3447 = vsel %vm848, %v3442, %v3446
  %v3449 = vshrl.u32 %v2940, 16
  %v3451 = vrot.slane %v3449, 4
  %v3452 = vshll.u32 %v2940, 16
  %v3454 = vrot.slane %v3452, 5
  %v3455 = vor.u32 %v3451, %v3454
  %v3456 = vrot.slane %v3455, 4
  %v3458 = vshll.u32 %v2956, 16
  %v3460 = vrot.slane %v3458, 5
  %v3461 = vsel %vm848, %v3456, %v3460
  %v3463 = vshrl.u32 %v2941, 16
  %v3465 = vrot.slane %v3463, 4
  %v3466 = vshll.u32 %v2941, 16
  %v3468 = vrot.slane %v3466, 5
  %v3469 = vor.u32 %v3465, %v3468
  %v3470 = vrot.slane %v3469, 4
  %v3472 = vshll.u32 %v2957, 16
  %v3474 = vrot.slane %v3472, 5
  %v3475 = vsel %vm848, %v3470, %v3474
  %v3477 = vshrl.u32 %v2942, 16
  %v3479 = vrot.slane %v3477, 4
  %v3480 = vshll.u32 %v2942, 16
  %v3482 = vrot.slane %v3480, 5
  %v3483 = vor.u32 %v3479, %v3482
  %v3484 = vrot.slane %v3483, 4
  %v3486 = vshll.u32 %v2958, 16
  %v3488 = vrot.slane %v3486, 5
  %v3489 = vsel %vm848, %v3484, %v3488
  %v3491 = vshrl.u32 %v2943, 16
  %v3493 = vrot.slane %v3491, 4
  %v3494 = vshll.u32 %v2943, 16
  %v3496 = vrot.slane %v3494, 5
  %v3497 = vor.u32 %v3493, %v3496
  %v3498 = vrot.slane %v3497, 4
  %v3500 = vshll.u32 %v2959, 16
  %v3502 = vrot.slane %v3500, 5
  %v3503 = vsel %vm848, %v3498, %v3502
  %v3505 = vshrl.u32 %v2944, 16
  %v3507 = vrot.slane %v3505, 4
  %v3508 = vshll.u32 %v2944, 16
  %v3510 = vrot.slane %v3508, 5
  %v3511 = vor.u32 %v3507, %v3510
  %v3512 = vrot.slane %v3511, 4
  %v3514 = vshll.u32 %v2960, 16
  %v3516 = vrot.slane %v3514, 5
  %v3517 = vsel %vm848, %v3512, %v3516
  %v3519 = vshrl.u32 %v2945, 16
  %v3521 = vrot.slane %v3519, 4
  %v3522 = vshll.u32 %v2945, 16
  %v3524 = vrot.slane %v3522, 5
  %v3525 = vor.u32 %v3521, %v3524
  %v3526 = vrot.slane %v3525, 4
  %v3528 = vshll.u32 %v2961, 16
  %v3530 = vrot.slane %v3528, 5
  %v3531 = vsel %vm848, %v3526, %v3530
  %v3533 = vshrl.u32 %v2946, 16
  %v3535 = vrot.slane %v3533, 4
  %v3536 = vshll.u32 %v2946, 16
  %v3538 = vrot.slane %v3536, 5
  %v3539 = vor.u32 %v3535, %v3538
  %v3540 = vrot.slane %v3539, 4
  %v3542 = vshll.u32 %v2962, 16
  %v3544 = vrot.slane %v3542, 5
  %v3545 = vsel %vm848, %v3540, %v3544
  %v3547 = vshrl.u32 %v2947, 16
  %v3549 = vrot.slane %v3547, 4
  %v3550 = vshll.u32 %v2947, 16
  %v3552 = vrot.slane %v3550, 5
  %v3553 = vor.u32 %v3549, %v3552
  %v3554 = vrot.slane %v3553, 4
  %v3556 = vshll.u32 %v2963, 16
  %v3558 = vrot.slane %v3556, 5
  %v3559 = vsel %vm848, %v3554, %v3558
  %v3561 = vshrl.u32 %v2948, 16
  %v3563 = vrot.slane %v3561, 4
  %v3564 = vshll.u32 %v2948, 16
  %v3566 = vrot.slane %v3564, 5
  %v3567 = vor.u32 %v3563, %v3566
  %v3568 = vrot.slane %v3567, 4
  %v3570 = vshll.u32 %v2964, 16
  %v3572 = vrot.slane %v3570, 5
  %v3573 = vsel %vm848, %v3568, %v3572
  %v3606 = vrot.slane %v2965, 5
  %v3607 = vrot.slane %v3606, 4
  %v3608 = vrot.slane %v2949, 5
  %v3609 = vsel %vm1107, %v3607, %v3608
  %v3610 = vrot.slane %v2966, 5
  %v3611 = vrot.slane %v3610, 4
  %v3612 = vrot.slane %v2950, 5
  %v3613 = vsel %vm1107, %v3611, %v3612
  %v3614 = vrot.slane %v2967, 5
  %v3615 = vrot.slane %v3614, 4
  %v3616 = vrot.slane %v2951, 5
  %v3617 = vsel %vm1107, %v3615, %v3616
  %v3618 = vrot.slane %v2968, 5
  %v3619 = vrot.slane %v3618, 4
  %v3620 = vrot.slane %v2952, 5
  %v3621 = vsel %vm1107, %v3619, %v3620
  %v3622 = vrot.slane %v2969, 5
  %v3623 = vrot.slane %v3622, 4
  %v3624 = vrot.slane %v2953, 5
  %v3625 = vsel %vm1107, %v3623, %v3624
  %v3626 = vrot.slane %v2970, 5
  %v3627 = vrot.slane %v3626, 4
  %v3628 = vrot.slane %v2954, 5
  %v3629 = vsel %vm1107, %v3627, %v3628
  %v3630 = vrot.slane %v2971, 5
  %v3631 = vrot.slane %v3630, 4
  %v3632 = vrot.slane %v2955, 5
  %v3633 = vsel %vm1107, %v3631, %v3632
  %v3634 = vrot.slane %v2972, 5
  %v3635 = vrot.slane %v3634, 4
  %v3636 = vrot.slane %v2956, 5
  %v3637 = vsel %vm1107, %v3635, %v3636
  %v3638 = vrot.slane %v2973, 5
  %v3639 = vrot.slane %v3638, 4
  %v3640 = vrot.slane %v2957, 5
  %v3641 = vsel %vm1107, %v3639, %v3640
  %v3642 = vrot.slane %v2974, 5
  %v3643 = vrot.slane %v3642, 4
  %v3644 = vrot.slane %v2958, 5
  %v3645 = vsel %vm1107, %v3643, %v3644
  %v3646 = vrot.slane %v2975, 5
  %v3647 = vrot.slane %v3646, 4
  %v3648 = vrot.slane %v2959, 5
  %v3649 = vsel %vm1107, %v3647, %v3648
  %v3650 = vrot.slane %v2976, 5
  %v3651 = vrot.slane %v3650, 4
  %v3652 = vrot.slane %v2960, 5
  %v3653 = vsel %vm1107, %v3651, %v3652
  %v3654 = vrot.slane %v2977, 5
  %v3655 = vrot.slane %v3654, 4
  %v3656 = vrot.slane %v2961, 5
  %v3657 = vsel %vm1107, %v3655, %v3656
  %v3658 = vrot.slane %v2978, 5
  %v3659 = vrot.slane %v3658, 4
  %v3660 = vrot.slane %v2962, 5
  %v3661 = vsel %vm1107, %v3659, %v3660
  %v3662 = vrot.slane %v2979, 5
  %v3663 = vrot.slane %v3662, 4
  %v3664 = vrot.slane %v2963, 5
  %v3665 = vsel %vm1107, %v3663, %v3664
  %v3666 = vrot.slane %v2980, 5
  %v3667 = vrot.slane %v3666, 4
  %v3668 = vrot.slane %v2964, 5
  %v3669 = vsel %vm1107, %v3667, %v3668
  %v3671 = vshrl.u32 %v2982, 16
  %v3673 = vrot.slane %v3671, 4
  %v3674 = vshll.u32 %v2982, 16
  %v3676 = vrot.slane %v3674, 5
  %v3677 = vor.u32 %v3673, %v3676
  %v3678 = vrot.slane %v3677, 4
  %v3680 = vshll.u32 %v2998, 16
  %v3682 = vrot.slane %v3680, 5
  %v3683 = vsel %vm848, %v3678, %v3682
  %v3685 = vshrl.u32 %v2983, 16
  %v3687 = vrot.slane %v3685, 4
  %v3688 = vshll.u32 %v2983, 16
  %v3690 = vrot.slane %v3688, 5
  %v3691 = vor.u32 %v3687, %v3690
  %v3692 = vrot.slane %v3691, 4
  %v3694 = vshll.u32 %v2999, 16
  %v3696 = vrot.slane %v3694, 5
  %v3697 = vsel %vm848, %v3692, %v3696
  %v3699 = vshrl.u32 %v2984, 16
  %v3701 = vrot.slane %v3699, 4
  %v3702 = vshll.u32 %v2984, 16
  %v3704 = vrot.slane %v3702, 5
  %v3705 = vor.u32 %v3701, %v3704
  %v3706 = vrot.slane %v3705, 4
  %v3708 = vshll.u32 %v3000, 16
  %v3710 = vrot.slane %v3708, 5
  %v3711 = vsel %vm848, %v3706, %v3710
  %v3713 = vshrl.u32 %v2985, 16
  %v3715 = vrot.slane %v3713, 4
  %v3716 = vshll.u32 %v2985, 16
  %v3718 = vrot.slane %v3716, 5
  %v3719 = vor.u32 %v3715, %v3718
  %v3720 = vrot.slane %v3719, 4
  %v3722 = vshll.u32 %v3001, 16
  %v3724 = vrot.slane %v3722, 5
  %v3725 = vsel %vm848, %v3720, %v3724
  %v3727 = vshrl.u32 %v2986, 16
  %v3729 = vrot.slane %v3727, 4
  %v3730 = vshll.u32 %v2986, 16
  %v3732 = vrot.slane %v3730, 5
  %v3733 = vor.u32 %v3729, %v3732
  %v3734 = vrot.slane %v3733, 4
  %v3736 = vshll.u32 %v3002, 16
  %v3738 = vrot.slane %v3736, 5
  %v3739 = vsel %vm848, %v3734, %v3738
  %v3741 = vshrl.u32 %v2987, 16
  %v3743 = vrot.slane %v3741, 4
  %v3744 = vshll.u32 %v2987, 16
  %v3746 = vrot.slane %v3744, 5
  %v3747 = vor.u32 %v3743, %v3746
  %v3748 = vrot.slane %v3747, 4
  %v3750 = vshll.u32 %v3003, 16
  %v3752 = vrot.slane %v3750, 5
  %v3753 = vsel %vm848, %v3748, %v3752
  %v3755 = vshrl.u32 %v2988, 16
  %v3757 = vrot.slane %v3755, 4
  %v3758 = vshll.u32 %v2988, 16
  %v3760 = vrot.slane %v3758, 5
  %v3761 = vor.u32 %v3757, %v3760
  %v3762 = vrot.slane %v3761, 4
  %v3764 = vshll.u32 %v3004, 16
  %v3766 = vrot.slane %v3764, 5
  %v3767 = vsel %vm848, %v3762, %v3766
  %v3769 = vshrl.u32 %v2989, 16
  %v3771 = vrot.slane %v3769, 4
  %v3772 = vshll.u32 %v2989, 16
  %v3774 = vrot.slane %v3772, 5
  %v3775 = vor.u32 %v3771, %v3774
  %v3776 = vrot.slane %v3775, 4
  %v3778 = vshll.u32 %v3005, 16
  %v3780 = vrot.slane %v3778, 5
  %v3781 = vsel %vm848, %v3776, %v3780
  %v3783 = vshrl.u32 %v2990, 16
  %v3785 = vrot.slane %v3783, 4
  %v3786 = vshll.u32 %v2990, 16
  %v3788 = vrot.slane %v3786, 5
  %v3789 = vor.u32 %v3785, %v3788
  %v3790 = vrot.slane %v3789, 4
  %v3792 = vshll.u32 %v3006, 16
  %v3794 = vrot.slane %v3792, 5
  %v3795 = vsel %vm848, %v3790, %v3794
  %v3797 = vshrl.u32 %v2991, 16
  %v3799 = vrot.slane %v3797, 4
  %v3800 = vshll.u32 %v2991, 16
  %v3802 = vrot.slane %v3800, 5
  %v3803 = vor.u32 %v3799, %v3802
  %v3804 = vrot.slane %v3803, 4
  %v3806 = vshll.u32 %v3007, 16
  %v3808 = vrot.slane %v3806, 5
  %v3809 = vsel %vm848, %v3804, %v3808
  %v3811 = vshrl.u32 %v2992, 16
  %v3813 = vrot.slane %v3811, 4
  %v3814 = vshll.u32 %v2992, 16
  %v3816 = vrot.slane %v3814, 5
  %v3817 = vor.u32 %v3813, %v3816
  %v3818 = vrot.slane %v3817, 4
  %v3820 = vshll.u32 %v3008, 16
  %v3822 = vrot.slane %v3820, 5
  %v3823 = vsel %vm848, %v3818, %v3822
  %v3825 = vshrl.u32 %v2993, 16
  %v3827 = vrot.slane %v3825, 4
  %v3828 = vshll.u32 %v2993, 16
  %v3830 = vrot.slane %v3828, 5
  %v3831 = vor.u32 %v3827, %v3830
  %v3832 = vrot.slane %v3831, 4
  %v3834 = vshll.u32 %v3009, 16
  %v3836 = vrot.slane %v3834, 5
  %v3837 = vsel %vm848, %v3832, %v3836
  %v3839 = vshrl.u32 %v2994, 16
  %v3841 = vrot.slane %v3839, 4
  %v3842 = vshll.u32 %v2994, 16
  %v3844 = vrot.slane %v3842, 5
  %v3845 = vor.u32 %v3841, %v3844
  %v3846 = vrot.slane %v3845, 4
  %v3848 = vshll.u32 %v3010, 16
  %v3850 = vrot.slane %v3848, 5
  %v3851 = vsel %vm848, %v3846, %v3850
  %v3853 = vshrl.u32 %v2995, 16
  %v3855 = vrot.slane %v3853, 4
  %v3856 = vshll.u32 %v2995, 16
  %v3858 = vrot.slane %v3856, 5
  %v3859 = vor.u32 %v3855, %v3858
  %v3860 = vrot.slane %v3859, 4
  %v3862 = vshll.u32 %v3011, 16
  %v3864 = vrot.slane %v3862, 5
  %v3865 = vsel %vm848, %v3860, %v3864
  %v3867 = vshrl.u32 %v2996, 16
  %v3869 = vrot.slane %v3867, 4
  %v3870 = vshll.u32 %v2996, 16
  %v3872 = vrot.slane %v3870, 5
  %v3873 = vor.u32 %v3869, %v3872
  %v3874 = vrot.slane %v3873, 4
  %v3876 = vshll.u32 %v3012, 16
  %v3878 = vrot.slane %v3876, 5
  %v3879 = vsel %vm848, %v3874, %v3878
  %v3881 = vshrl.u32 %v2997, 16
  %v3883 = vrot.slane %v3881, 4
  %v3884 = vshll.u32 %v2997, 16
  %v3886 = vrot.slane %v3884, 5
  %v3887 = vor.u32 %v3883, %v3886
  %v3888 = vrot.slane %v3887, 4
  %v3890 = vshll.u32 %v3013, 16
  %v3892 = vrot.slane %v3890, 5
  %v3893 = vsel %vm848, %v3888, %v3892
  %v3926 = vrot.slane %v3014, 5
  %v3927 = vrot.slane %v3926, 4
  %v3928 = vrot.slane %v2998, 5
  %v3929 = vsel %vm1107, %v3927, %v3928
  %v3930 = vrot.slane %v3015, 5
  %v3931 = vrot.slane %v3930, 4
  %v3932 = vrot.slane %v2999, 5
  %v3933 = vsel %vm1107, %v3931, %v3932
  %v3934 = vrot.slane %v3016, 5
  %v3935 = vrot.slane %v3934, 4
  %v3936 = vrot.slane %v3000, 5
  %v3937 = vsel %vm1107, %v3935, %v3936
  %v3938 = vrot.slane %v3017, 5
  %v3939 = vrot.slane %v3938, 4
  %v3940 = vrot.slane %v3001, 5
  %v3941 = vsel %vm1107, %v3939, %v3940
  %v3942 = vrot.slane %v3018, 5
  %v3943 = vrot.slane %v3942, 4
  %v3944 = vrot.slane %v3002, 5
  %v3945 = vsel %vm1107, %v3943, %v3944
  %v3946 = vrot.slane %v3019, 5
  %v3947 = vrot.slane %v3946, 4
  %v3948 = vrot.slane %v3003, 5
  %v3949 = vsel %vm1107, %v3947, %v3948
  %v3950 = vrot.slane %v3020, 5
  %v3951 = vrot.slane %v3950, 4
  %v3952 = vrot.slane %v3004, 5
  %v3953 = vsel %vm1107, %v3951, %v3952
  %v3954 = vrot.slane %v3021, 5
  %v3955 = vrot.slane %v3954, 4
  %v3956 = vrot.slane %v3005, 5
  %v3957 = vsel %vm1107, %v3955, %v3956
  %v3958 = vrot.slane %v3022, 5
  %v3959 = vrot.slane %v3958, 4
  %v3960 = vrot.slane %v3006, 5
  %v3961 = vsel %vm1107, %v3959, %v3960
  %v3962 = vrot.slane %v3023, 5
  %v3963 = vrot.slane %v3962, 4
  %v3964 = vrot.slane %v3007, 5
  %v3965 = vsel %vm1107, %v3963, %v3964
  %v3966 = vrot.slane %v3024, 5
  %v3967 = vrot.slane %v3966, 4
  %v3968 = vrot.slane %v3008, 5
  %v3969 = vsel %vm1107, %v3967, %v3968
  %v3970 = vrot.slane %v3025, 5
  %v3971 = vrot.slane %v3970, 4
  %v3972 = vrot.slane %v3009, 5
  %v3973 = vsel %vm1107, %v3971, %v3972
  %v3974 = vrot.slane %v3026, 5
  %v3975 = vrot.slane %v3974, 4
  %v3976 = vrot.slane %v3010, 5
  %v3977 = vsel %vm1107, %v3975, %v3976
  %v3978 = vrot.slane %v3027, 5
  %v3979 = vrot.slane %v3978, 4
  %v3980 = vrot.slane %v3011, 5
  %v3981 = vsel %vm1107, %v3979, %v3980
  %v3982 = vrot.slane %v3028, 5
  %v3983 = vrot.slane %v3982, 4
  %v3984 = vrot.slane %v3012, 5
  %v3985 = vsel %vm1107, %v3983, %v3984
  %v3986 = vrot.slane %v3029, 5
  %v3987 = vrot.slane %v3986, 4
  %v3988 = vrot.slane %v3013, 5
  %v3989 = vsel %vm1107, %v3987, %v3988
  %v4006 = vunpack.c.l.b16 %v2885
  %v4007 = vunpack.c.l.b16 %v2886
  %v4008 = vunpack.c.l.b16 %v2887
  %v4009 = vunpack.c.l.b16 %v2888
  %v4010 = vunpack.c.l.b16 %v2889
  %v4011 = vunpack.c.l.b16 %v2890
  %v4012 = vunpack.c.l.b16 %v2891
  %v4013 = vunpack.c.l.b16 %v2892
  %v4014 = vunpack.c.l.b16 %v2893
  %v4015 = vunpack.c.l.b16 %v2894
  %v4016 = vunpack.c.l.b16 %v2895
  %v4017 = vunpack.c.l.b16 %v2896
  %v4018 = vunpack.c.l.b16 %v2897
  %v4019 = vunpack.c.l.b16 %v2898
  %v4020 = vunpack.c.l.b16 %v2899
  %v4021 = vunpack.c.l.b16 %v2900
  %v4022 = vpack.c.b16 %v4007, %v4006
  %v4023 = vpack.c.b16 %v4009, %v4008
  %v4024 = vpack.c.b16 %v4011, %v4010
  %v4025 = vpack.c.b16 %v4013, %v4012
  %v4026 = vpack.c.b16 %v4015, %v4014
  %v4027 = vpack.c.b16 %v4017, %v4016
  %v4028 = vpack.c.b16 %v4019, %v4018
  %v4029 = vpack.c.b16 %v4021, %v4020
  %v4030 = vunpack.c.l.b16 %v3043
  %v4031 = vunpack.c.l.b16 %v3057
  %v4032 = vunpack.c.l.b16 %v3071
  %v4033 = vunpack.c.l.b16 %v3085
  %v4034 = vunpack.c.l.b16 %v3099
  %v4035 = vunpack.c.l.b16 %v3113
  %v4036 = vunpack.c.l.b16 %v3127
  %v4037 = vunpack.c.l.b16 %v3141
  %v4038 = vunpack.c.l.b16 %v3155
  %v4039 = vunpack.c.l.b16 %v3169
  %v4040 = vunpack.c.l.b16 %v3183
  %v4041 = vunpack.c.l.b16 %v3197
  %v4042 = vunpack.c.l.b16 %v3211
  %v4043 = vunpack.c.l.b16 %v3225
  %v4044 = vunpack.c.l.b16 %v3239
  %v4045 = vunpack.c.l.b16 %v3253
  %v4046 = vpack.c.b16 %v4031, %v4030
  %v4047 = vpack.c.b16 %v4033, %v4032
  %v4048 = vpack.c.b16 %v4035, %v4034
  %v4049 = vpack.c.b16 %v4037, %v4036
  %v4050 = vpack.c.b16 %v4039, %v4038
  %v4051 = vpack.c.b16 %v4041, %v4040
  %v4052 = vpack.c.b16 %v4043, %v4042
  %v4053 = vpack.c.b16 %v4045, %v4044
  %4054 = vrot.lane.b32.xlu0 %v4046, 8
  %v4055 = vpop.permute.xlu0 %4054
  %4056 = vrot.lane.b32.xlu0 %v4047, 8
  %v4057 = vpop.permute.xlu0 %4056
  %4058 = vrot.lane.b32.xlu0 %v4048, 8
  %v4059 = vpop.permute.xlu0 %4058
  %4060 = vrot.lane.b32.xlu0 %v4049, 8
  %v4061 = vpop.permute.xlu0 %4060
  %4062 = vrot.lane.b32.xlu0 %v4050, 8
  %v4063 = vpop.permute.xlu0 %4062
  %4064 = vrot.lane.b32.xlu0 %v4051, 8
  %v4065 = vpop.permute.xlu0 %4064
  %4066 = vrot.lane.b32.xlu0 %v4052, 8
  %v4067 = vpop.permute.xlu0 %4066
  %4068 = vrot.lane.b32.xlu0 %v4053, 8
  %v4069 = vpop.permute.xlu0 %4068
  %v4070 = vunpack.c.l.b16 %v3289
  %v4071 = vunpack.c.l.b16 %v3293
  %v4072 = vunpack.c.l.b16 %v3297
  %v4073 = vunpack.c.l.b16 %v3301
  %v4074 = vunpack.c.l.b16 %v3305
  %v4075 = vunpack.c.l.b16 %v3309
  %v4076 = vunpack.c.l.b16 %v3313
  %v4077 = vunpack.c.l.b16 %v3317
  %v4078 = vunpack.c.l.b16 %v3321
  %v4079 = vunpack.c.l.b16 %v3325
  %v4080 = vunpack.c.l.b16 %v3329
  %v4081 = vunpack.c.l.b16 %v3333
  %v4082 = vunpack.c.l.b16 %v3337
  %v4083 = vunpack.c.l.b16 %v3341
  %v4084 = vunpack.c.l.b16 %v3345
  %v4085 = vunpack.c.l.b16 %v3349
  %v4086 = vpack.c.b16 %v4071, %v4070
  %v4087 = vpack.c.b16 %v4073, %v4072
  %v4088 = vpack.c.b16 %v4075, %v4074
  %v4089 = vpack.c.b16 %v4077, %v4076
  %v4090 = vpack.c.b16 %v4079, %v4078
  %v4091 = vpack.c.b16 %v4081, %v4080
  %v4092 = vpack.c.b16 %v4083, %v4082
  %v4093 = vpack.c.b16 %v4085, %v4084
  %4094 = vrot.lane.b32.xlu0 %v4086, 16
  %v4095 = vpop.permute.xlu0 %4094
  %4096 = vrot.lane.b32.xlu0 %v4087, 16
  %v4097 = vpop.permute.xlu0 %4096
  %4098 = vrot.lane.b32.xlu0 %v4088, 16
  %v4099 = vpop.permute.xlu0 %4098
  %4100 = vrot.lane.b32.xlu0 %v4089, 16
  %v4101 = vpop.permute.xlu0 %4100
  %4102 = vrot.lane.b32.xlu0 %v4090, 16
  %v4103 = vpop.permute.xlu0 %4102
  %4104 = vrot.lane.b32.xlu0 %v4091, 16
  %v4105 = vpop.permute.xlu0 %4104
  %4106 = vrot.lane.b32.xlu0 %v4092, 16
  %v4107 = vpop.permute.xlu0 %4106
  %4108 = vrot.lane.b32.xlu0 %v4093, 16
  %v4109 = vpop.permute.xlu0 %4108
  %v4126 = vunpack.c.l.b16 %v2933
  %v4127 = vunpack.c.l.b16 %v2934
  %v4128 = vunpack.c.l.b16 %v2935
  %v4129 = vunpack.c.l.b16 %v2936
  %v4130 = vunpack.c.l.b16 %v2937
  %v4131 = vunpack.c.l.b16 %v2938
  %v4132 = vunpack.c.l.b16 %v2939
  %v4133 = vunpack.c.l.b16 %v2940
  %v4134 = vunpack.c.l.b16 %v2941
  %v4135 = vunpack.c.l.b16 %v2942
  %v4136 = vunpack.c.l.b16 %v2943
  %v4137 = vunpack.c.l.b16 %v2944
  %v4138 = vunpack.c.l.b16 %v2945
  %v4139 = vunpack.c.l.b16 %v2946
  %v4140 = vunpack.c.l.b16 %v2947
  %v4141 = vunpack.c.l.b16 %v2948
  %v4142 = vpack.c.b16 %v4127, %v4126
  %v4143 = vpack.c.b16 %v4129, %v4128
  %v4144 = vpack.c.b16 %v4131, %v4130
  %v4145 = vpack.c.b16 %v4133, %v4132
  %v4146 = vpack.c.b16 %v4135, %v4134
  %v4147 = vpack.c.b16 %v4137, %v4136
  %v4148 = vpack.c.b16 %v4139, %v4138
  %v4149 = vpack.c.b16 %v4141, %v4140
  %4150 = vrot.lane.b32.xlu0 %v4142, 24
  %v4151 = vpop.permute.xlu0 %4150
  %4152 = vrot.lane.b32.xlu0 %v4143, 24
  %v4153 = vpop.permute.xlu0 %4152
  %4154 = vrot.lane.b32.xlu0 %v4144, 24
  %v4155 = vpop.permute.xlu0 %4154
  %4156 = vrot.lane.b32.xlu0 %v4145, 24
  %v4157 = vpop.permute.xlu0 %4156
  %4158 = vrot.lane.b32.xlu0 %v4146, 24
  %v4159 = vpop.permute.xlu0 %4158
  %4160 = vrot.lane.b32.xlu0 %v4147, 24
  %v4161 = vpop.permute.xlu0 %4160
  %4162 = vrot.lane.b32.xlu0 %v4148, 24
  %v4163 = vpop.permute.xlu0 %4162
  %4164 = vrot.lane.b32.xlu0 %v4149, 24
  %v4165 = vpop.permute.xlu0 %4164
  %v4166 = vunpack.c.l.b16 %v3363
  %v4167 = vunpack.c.l.b16 %v3377
  %v4168 = vunpack.c.l.b16 %v3391
  %v4169 = vunpack.c.l.b16 %v3405
  %v4170 = vunpack.c.l.b16 %v3419
  %v4171 = vunpack.c.l.b16 %v3433
  %v4172 = vunpack.c.l.b16 %v3447
  %v4173 = vunpack.c.l.b16 %v3461
  %v4174 = vunpack.c.l.b16 %v3475
  %v4175 = vunpack.c.l.b16 %v3489
  %v4176 = vunpack.c.l.b16 %v3503
  %v4177 = vunpack.c.l.b16 %v3517
  %v4178 = vunpack.c.l.b16 %v3531
  %v4179 = vunpack.c.l.b16 %v3545
  %v4180 = vunpack.c.l.b16 %v3559
  %v4181 = vunpack.c.l.b16 %v3573
  %v4182 = vpack.c.b16 %v4167, %v4166
  %v4183 = vpack.c.b16 %v4169, %v4168
  %v4184 = vpack.c.b16 %v4171, %v4170
  %v4185 = vpack.c.b16 %v4173, %v4172
  %v4186 = vpack.c.b16 %v4175, %v4174
  %v4187 = vpack.c.b16 %v4177, %v4176
  %v4188 = vpack.c.b16 %v4179, %v4178
  %v4189 = vpack.c.b16 %v4181, %v4180
  %4190 = vrot.lane.b32.xlu0 %v4182, 32
  %v4191 = vpop.permute.xlu0 %4190
  %4192 = vrot.lane.b32.xlu0 %v4183, 32
  %v4193 = vpop.permute.xlu0 %4192
  %4194 = vrot.lane.b32.xlu0 %v4184, 32
  %v4195 = vpop.permute.xlu0 %4194
  %4196 = vrot.lane.b32.xlu0 %v4185, 32
  %v4197 = vpop.permute.xlu0 %4196
  %4198 = vrot.lane.b32.xlu0 %v4186, 32
  %v4199 = vpop.permute.xlu0 %4198
  %4200 = vrot.lane.b32.xlu0 %v4187, 32
  %v4201 = vpop.permute.xlu0 %4200
  %4202 = vrot.lane.b32.xlu0 %v4188, 32
  %v4203 = vpop.permute.xlu0 %4202
  %4204 = vrot.lane.b32.xlu0 %v4189, 32
  %v4205 = vpop.permute.xlu0 %4204
  %v4206 = vunpack.c.l.b16 %v3609
  %v4207 = vunpack.c.l.b16 %v3613
  %v4208 = vunpack.c.l.b16 %v3617
  %v4209 = vunpack.c.l.b16 %v3621
  %v4210 = vunpack.c.l.b16 %v3625
  %v4211 = vunpack.c.l.b16 %v3629
  %v4212 = vunpack.c.l.b16 %v3633
  %v4213 = vunpack.c.l.b16 %v3637
  %v4214 = vunpack.c.l.b16 %v3641
  %v4215 = vunpack.c.l.b16 %v3645
  %v4216 = vunpack.c.l.b16 %v3649
  %v4217 = vunpack.c.l.b16 %v3653
  %v4218 = vunpack.c.l.b16 %v3657
  %v4219 = vunpack.c.l.b16 %v3661
  %v4220 = vunpack.c.l.b16 %v3665
  %v4221 = vunpack.c.l.b16 %v3669
  %v4222 = vpack.c.b16 %v4207, %v4206
  %v4223 = vpack.c.b16 %v4209, %v4208
  %v4224 = vpack.c.b16 %v4211, %v4210
  %v4225 = vpack.c.b16 %v4213, %v4212
  %v4226 = vpack.c.b16 %v4215, %v4214
  %v4227 = vpack.c.b16 %v4217, %v4216
  %v4228 = vpack.c.b16 %v4219, %v4218
  %v4229 = vpack.c.b16 %v4221, %v4220
  %4230 = vrot.lane.b32.xlu0 %v4222, 40
  %v4231 = vpop.permute.xlu0 %4230
  %4232 = vrot.lane.b32.xlu0 %v4223, 40
  %v4233 = vpop.permute.xlu0 %4232
  %4234 = vrot.lane.b32.xlu0 %v4224, 40
  %v4235 = vpop.permute.xlu0 %4234
  %4236 = vrot.lane.b32.xlu0 %v4225, 40
  %v4237 = vpop.permute.xlu0 %4236
  %4238 = vrot.lane.b32.xlu0 %v4226, 40
  %v4239 = vpop.permute.xlu0 %4238
  %4240 = vrot.lane.b32.xlu0 %v4227, 40
  %v4241 = vpop.permute.xlu0 %4240
  %4242 = vrot.lane.b32.xlu0 %v4228, 40
  %v4243 = vpop.permute.xlu0 %4242
  %4244 = vrot.lane.b32.xlu0 %v4229, 40
  %v4245 = vpop.permute.xlu0 %4244
  %v4262 = vunpack.c.l.b16 %v2982
  %v4263 = vunpack.c.l.b16 %v2983
  %v4264 = vunpack.c.l.b16 %v2984
  %v4265 = vunpack.c.l.b16 %v2985
  %v4266 = vunpack.c.l.b16 %v2986
  %v4267 = vunpack.c.l.b16 %v2987
  %v4268 = vunpack.c.l.b16 %v2988
  %v4269 = vunpack.c.l.b16 %v2989
  %v4270 = vunpack.c.l.b16 %v2990
  %v4271 = vunpack.c.l.b16 %v2991
  %v4272 = vunpack.c.l.b16 %v2992
  %v4273 = vunpack.c.l.b16 %v2993
  %v4274 = vunpack.c.l.b16 %v2994
  %v4275 = vunpack.c.l.b16 %v2995
  %v4276 = vunpack.c.l.b16 %v2996
  %v4277 = vunpack.c.l.b16 %v2997
  %v4278 = vpack.c.b16 %v4263, %v4262
  %v4279 = vpack.c.b16 %v4265, %v4264
  %v4280 = vpack.c.b16 %v4267, %v4266
  %v4281 = vpack.c.b16 %v4269, %v4268
  %v4282 = vpack.c.b16 %v4271, %v4270
  %v4283 = vpack.c.b16 %v4273, %v4272
  %v4284 = vpack.c.b16 %v4275, %v4274
  %v4285 = vpack.c.b16 %v4277, %v4276
  %4286 = vrot.lane.b32.xlu0 %v4278, 48
  %v4287 = vpop.permute.xlu0 %4286
  %4288 = vrot.lane.b32.xlu0 %v4279, 48
  %v4289 = vpop.permute.xlu0 %4288
  %4290 = vrot.lane.b32.xlu0 %v4280, 48
  %v4291 = vpop.permute.xlu0 %4290
  %4292 = vrot.lane.b32.xlu0 %v4281, 48
  %v4293 = vpop.permute.xlu0 %4292
  %4294 = vrot.lane.b32.xlu0 %v4282, 48
  %v4295 = vpop.permute.xlu0 %4294
  %4296 = vrot.lane.b32.xlu0 %v4283, 48
  %v4297 = vpop.permute.xlu0 %4296
  %4298 = vrot.lane.b32.xlu0 %v4284, 48
  %v4299 = vpop.permute.xlu0 %4298
  %4300 = vrot.lane.b32.xlu0 %v4285, 48
  %v4301 = vpop.permute.xlu0 %4300
  %v4302 = vunpack.c.l.b16 %v3683
  %v4303 = vunpack.c.l.b16 %v3697
  %v4304 = vunpack.c.l.b16 %v3711
  %v4305 = vunpack.c.l.b16 %v3725
  %v4306 = vunpack.c.l.b16 %v3739
  %v4307 = vunpack.c.l.b16 %v3753
  %v4308 = vunpack.c.l.b16 %v3767
  %v4309 = vunpack.c.l.b16 %v3781
  %v4310 = vunpack.c.l.b16 %v3795
  %v4311 = vunpack.c.l.b16 %v3809
  %v4312 = vunpack.c.l.b16 %v3823
  %v4313 = vunpack.c.l.b16 %v3837
  %v4314 = vunpack.c.l.b16 %v3851
  %v4315 = vunpack.c.l.b16 %v3865
  %v4316 = vunpack.c.l.b16 %v3879
  %v4317 = vunpack.c.l.b16 %v3893
  %v4318 = vpack.c.b16 %v4303, %v4302
  %v4319 = vpack.c.b16 %v4305, %v4304
  %v4320 = vpack.c.b16 %v4307, %v4306
  %v4321 = vpack.c.b16 %v4309, %v4308
  %v4322 = vpack.c.b16 %v4311, %v4310
  %v4323 = vpack.c.b16 %v4313, %v4312
  %v4324 = vpack.c.b16 %v4315, %v4314
  %v4325 = vpack.c.b16 %v4317, %v4316
  %4326 = vrot.lane.b32.xlu0 %v4318, 56
  %v4327 = vpop.permute.xlu0 %4326
  %4328 = vrot.lane.b32.xlu0 %v4319, 56
  %v4329 = vpop.permute.xlu0 %4328
  %4330 = vrot.lane.b32.xlu0 %v4320, 56
  %v4331 = vpop.permute.xlu0 %4330
  %4332 = vrot.lane.b32.xlu0 %v4321, 56
  %v4333 = vpop.permute.xlu0 %4332
  %4334 = vrot.lane.b32.xlu0 %v4322, 56
  %v4335 = vpop.permute.xlu0 %4334
  %4336 = vrot.lane.b32.xlu0 %v4323, 56
  %v4337 = vpop.permute.xlu0 %4336
  %4338 = vrot.lane.b32.xlu0 %v4324, 56
  %v4339 = vpop.permute.xlu0 %4338
  %4340 = vrot.lane.b32.xlu0 %v4325, 56
  %v4341 = vpop.permute.xlu0 %4340
  %v4342 = vunpack.c.l.b16 %v3929
  %v4343 = vunpack.c.l.b16 %v3933
  %v4344 = vunpack.c.l.b16 %v3937
  %v4345 = vunpack.c.l.b16 %v3941
  %v4346 = vunpack.c.l.b16 %v3945
  %v4347 = vunpack.c.l.b16 %v3949
  %v4348 = vunpack.c.l.b16 %v3953
  %v4349 = vunpack.c.l.b16 %v3957
  %v4350 = vunpack.c.l.b16 %v3961
  %v4351 = vunpack.c.l.b16 %v3965
  %v4352 = vunpack.c.l.b16 %v3969
  %v4353 = vunpack.c.l.b16 %v3973
  %v4354 = vunpack.c.l.b16 %v3977
  %v4355 = vunpack.c.l.b16 %v3981
  %v4356 = vunpack.c.l.b16 %v3985
  %v4357 = vunpack.c.l.b16 %v3989
  %v4358 = vpack.c.b16 %v4343, %v4342
  %v4359 = vpack.c.b16 %v4345, %v4344
  %v4360 = vpack.c.b16 %v4347, %v4346
  %v4361 = vpack.c.b16 %v4349, %v4348
  %v4362 = vpack.c.b16 %v4351, %v4350
  %v4363 = vpack.c.b16 %v4353, %v4352
  %v4364 = vpack.c.b16 %v4355, %v4354
  %v4365 = vpack.c.b16 %v4357, %v4356
  %4366 = vrot.lane.b32.xlu0 %v4358, 64
  %v4367 = vpop.permute.xlu0 %4366
  %4368 = vrot.lane.b32.xlu0 %v4359, 64
  %v4369 = vpop.permute.xlu0 %4368
  %4370 = vrot.lane.b32.xlu0 %v4360, 64
  %v4371 = vpop.permute.xlu0 %4370
  %4372 = vrot.lane.b32.xlu0 %v4361, 64
  %v4373 = vpop.permute.xlu0 %4372
  %4374 = vrot.lane.b32.xlu0 %v4362, 64
  %v4375 = vpop.permute.xlu0 %4374
  %4376 = vrot.lane.b32.xlu0 %v4363, 64
  %v4377 = vpop.permute.xlu0 %4376
  %4378 = vrot.lane.b32.xlu0 %v4364, 64
  %v4379 = vpop.permute.xlu0 %4378
  %4380 = vrot.lane.b32.xlu0 %v4365, 64
  %v4381 = vpop.permute.xlu0 %4380
  %v4384 = vsel %vm2204, %v4022, %v4055
  %v4387 = vsel %vm2204, %v4023, %v4057
  %v4390 = vsel %vm2204, %v4024, %v4059
  %v4393 = vsel %vm2204, %v4025, %v4061
  %v4396 = vsel %vm2204, %v4026, %v4063
  %v4399 = vsel %vm2204, %v4027, %v4065
  %v4402 = vsel %vm2204, %v4028, %v4067
  %v4405 = vsel %vm2204, %v4029, %v4069
  %v4407 = vsel %vm2229, %v4384, %v4095
  %v4409 = vsel %vm2229, %v4387, %v4097
  %v4411 = vsel %vm2229, %v4390, %v4099
  %v4413 = vsel %vm2229, %v4393, %v4101
  %v4415 = vsel %vm2229, %v4396, %v4103
  %v4417 = vsel %vm2229, %v4399, %v4105
  %v4419 = vsel %vm2229, %v4402, %v4107
  %v4421 = vsel %vm2229, %v4405, %v4109
  %v4423 = vsel %vm2246, %v4407, %v4151
  %v4425 = vsel %vm2246, %v4409, %v4153
  %v4427 = vsel %vm2246, %v4411, %v4155
  %v4429 = vsel %vm2246, %v4413, %v4157
  %v4431 = vsel %vm2246, %v4415, %v4159
  %v4433 = vsel %vm2246, %v4417, %v4161
  %v4435 = vsel %vm2246, %v4419, %v4163
  %v4437 = vsel %vm2246, %v4421, %v4165
  %v4439 = vsel %vm2263, %v4423, %v4191
  %v4441 = vsel %vm2263, %v4425, %v4193
  %v4443 = vsel %vm2263, %v4427, %v4195
  %v4445 = vsel %vm2263, %v4429, %v4197
  %v4447 = vsel %vm2263, %v4431, %v4199
  %v4449 = vsel %vm2263, %v4433, %v4201
  %v4451 = vsel %vm2263, %v4435, %v4203
  %v4453 = vsel %vm2263, %v4437, %v4205
  %v4455 = vsel %vm2280, %v4439, %v4231
  %v4457 = vsel %vm2280, %v4441, %v4233
  %v4459 = vsel %vm2280, %v4443, %v4235
  %v4461 = vsel %vm2280, %v4445, %v4237
  %v4463 = vsel %vm2280, %v4447, %v4239
  %v4465 = vsel %vm2280, %v4449, %v4241
  %v4467 = vsel %vm2280, %v4451, %v4243
  %v4469 = vsel %vm2280, %v4453, %v4245
  %v4471 = vsel %vm2297, %v4455, %v4287
  %v4473 = vsel %vm2297, %v4457, %v4289
  %v4475 = vsel %vm2297, %v4459, %v4291
  %v4477 = vsel %vm2297, %v4461, %v4293
  %v4479 = vsel %vm2297, %v4463, %v4295
  %v4481 = vsel %vm2297, %v4465, %v4297
  %v4483 = vsel %vm2297, %v4467, %v4299
  %v4485 = vsel %vm2297, %v4469, %v4301
  %v4487 = vsel %vm2314, %v4471, %v4327
  %v4489 = vsel %vm2314, %v4473, %v4329
  %v4491 = vsel %vm2314, %v4475, %v4331
  %v4493 = vsel %vm2314, %v4477, %v4333
  %v4495 = vsel %vm2314, %v4479, %v4335
  %v4497 = vsel %vm2314, %v4481, %v4337
  %v4499 = vsel %vm2314, %v4483, %v4339
  %v4501 = vsel %vm2314, %v4485, %v4341
  %v4503 = vsel %vm2331, %v4487, %v4367
  %v4505 = vsel %vm2331, %v4489, %v4369
  %v4507 = vsel %vm2331, %v4491, %v4371
  %v4509 = vsel %vm2331, %v4493, %v4373
  %v4511 = vsel %vm2331, %v4495, %v4375
  %v4513 = vsel %vm2331, %v4497, %v4377
  %v4515 = vsel %vm2331, %v4499, %v4379
  %v4517 = vsel %vm2331, %v4501, %v4381
  %v4518 = vld [vmem:[%s6] sm:$0xf]
  %v4519 = vld [vmem:[%s6 + $0x4] sm:$0xf]
  %v4520 = vld [vmem:[%s6 + $0x8] sm:$0xf]
  %v4521 = vld [vmem:[%s6 + $0xc] sm:$0xf]
  %v4522 = vld [vmem:[%s6 + $0x10] sm:$0xf]
  %v4523 = vld [vmem:[%s6 + $0x14] sm:$0xf]
  %v4524 = vld [vmem:[%s6 + $0x18] sm:$0xf]
  %v4525 = vld [vmem:[%s6 + $0x1c] sm:$0xf]
  %v4526 = vld [vmem:[%s6 + $0x20] sm:$0xf]
  %v4527 = vld [vmem:[%s0] sm:$0xff]
  %v4528 = vld [vmem:[%s0 + $0x8] sm:$0xff]
  %v4529 = vld [vmem:[%s0 + $0x10] sm:$0xff]
  %v4530 = vld [vmem:[%s0 + $0x18] sm:$0xff]
  %v4531 = vld [vmem:[%s0 + $0x20] sm:$0xff]
  %v4532 = vld [vmem:[%s0 + $0x28] sm:$0xff]
  %v4533 = vld [vmem:[%s0 + $0x30] sm:$0xff]
  %v4534 = vld [vmem:[%s0 + $0x38] sm:$0xff]
  %v4535 = vld [vmem:[%s0 + $0x40] sm:$0xff]
  %v4536 = vld [vmem:[%s0 + $0x48] sm:$0xff]
  %v4537 = vld [vmem:[%s0 + $0x50] sm:$0xff]
  %v4538 = vld [vmem:[%s0 + $0x58] sm:$0xff]
  %v4539 = vld [vmem:[%s0 + $0x60] sm:$0xff]
  %v4540 = vld [vmem:[%s0 + $0x68] sm:$0xff]
  %v4541 = vld [vmem:[%s0 + $0x70] sm:$0xff]
  %v4542 = vld [vmem:[%s0 + $0x78] sm:$0xff]
  %v4552 = vunpack.c.l.b16 %v4518
  %v4553 = vunpack.c.l.b16 %v4519
  %v4554 = vunpack.c.l.b16 %v4520
  %v4555 = vunpack.c.l.b16 %v4521
  %v4556 = vunpack.c.l.b16 %v4522
  %v4557 = vunpack.c.l.b16 %v4523
  %v4558 = vunpack.c.l.b16 %v4524
  %v4559 = vunpack.c.l.b16 %v4525
  %v4560 = vunpack.c.l.b16 %v4526
  %v4561 = vpack.c.b16 %v4553, %v4552
  %v4562 = vpack.c.b16 %v4555, %v4554
  %v4563 = vpack.c.b16 %v4557, %v4556
  %v4564 = vpack.c.b16 %v4559, %v4558
  %v4565 = vpack.c.b16 %v4560, %v4560
  %v4570 = vsel %vm2384, %v4503, 0
  %v4572 = vsel %vm2384, %v4505, 0
  %v4574 = vsel %vm2384, %v4507, 0
  %v4576 = vsel %vm2384, %v4509, 0
  %v4578 = vsel %vm2384, %v4511, 0
  %v4580 = vsel %vm2384, %v4513, 0
  %v4582 = vsel %vm2384, %v4515, 0
  %v4584 = vsel %vm2384, %v4517, 0
  %v4587 = vsel %vm2401, %v4565, 0
  %4589 = vmatprep.subr.bf16.mxu0 0
  %4590 = vmatpush1.bf16.msra.mxu0 %v4561
  %4591 = vmatprep.subr.bf16.mxu0 0
  %4592 = vmatpush1.bf16.msra.mxu0 %v4562
  %4593 = vmatprep.subr.bf16.mxu0 0
  %4594 = vmatpush1.bf16.msra.mxu0 %v4563
  %4595 = vmatprep.subr.bf16.mxu0 0
  %4596 = vmatpush1.bf16.msra.mxu0 %v4564
  %4597 = vmatprep.subr.bf16.mxu0 0
  %4598 = vmatpush1.bf16.msra.mxu0 %v4587
  %4599 = vmatprep.subr.bf16.mxu0 0
  %4600 = vmatpush1.bf16.msra.mxu0 0
  %4601 = vmatprep.subr.bf16.mxu0 0
  %4602 = vmatpush1.bf16.msra.mxu0 0
  %4603 = vmatprep.subr.bf16.mxu0 0
  %4604 = vmatpush1.bf16.msra.mxu0 0
  %4605 = vmatprep.subr.bf16.mxu0 0
  %4606 = vmatpush1.bf16.msra.mxu0 0
  %4607 = vmatprep.subr.bf16.mxu0 0
  %4608 = vmatpush1.bf16.msra.mxu0 0
  %4609 = vmatprep.subr.bf16.mxu0 0
  %4610 = vmatpush1.bf16.msra.mxu0 0
  %4611 = vmatprep.subr.bf16.mxu0 0
  %4612 = vmatpush1.bf16.msra.mxu0 0
  %4613 = vmatprep.subr.bf16.mxu0 0
  %4614 = vmatpush1.bf16.msra.mxu0 0
  %4615 = vmatprep.subr.bf16.mxu0 0
  %4616 = vmatpush1.bf16.msra.mxu0 0
  %4617 = vmatprep.subr.bf16.mxu0 0
  %4618 = vmatpush1.bf16.msra.mxu0 0
  %4619 = vmatprep.subr.bf16.mxu0 0
  %4620 = vmatpush1.bf16.msra.mxu0 0
  %4621 = vmatprep.mubr.bf16.mxu0 0
  %4622 = vmatmul.mubr.bf16.gmra.mrb[0].mxu0 %v4570
  %v4623 = vpop.f32.mrb[0].mxu0
  %v4624 = vadd.f32 %v4527, %v4623
  %v4625 = vpop.f32.mrb[0].mxu0
  %v4626 = vpop.f32.mrb[0].mxu0
  %v4627 = vadd.f32 %v4528, %v4626
  %v4628 = vpop.f32.mrb[0].mxu0
  %4629 = vmatprep.mubr.bf16.mxu0 0
  %4630 = vmatmul.mubr.bf16.gmra.mrb[0].mxu0 %v4572
  %v4631 = vpop.f32.mrb[0].mxu0
  %v4632 = vadd.f32 %v4529, %v4631
  %v4633 = vpop.f32.mrb[0].mxu0
  %v4634 = vpop.f32.mrb[0].mxu0
  %v4635 = vadd.f32 %v4530, %v4634
  %v4636 = vpop.f32.mrb[0].mxu0
  %4637 = vmatprep.mubr.bf16.mxu0 0
  %4638 = vmatmul.mubr.bf16.gmra.mrb[0].mxu0 %v4574
  %v4639 = vpop.f32.mrb[0].mxu0
  %v4640 = vadd.f32 %v4531, %v4639
  %v4641 = vpop.f32.mrb[0].mxu0
  %v4642 = vpop.f32.mrb[0].mxu0
  %v4643 = vadd.f32 %v4532, %v4642
  %v4644 = vpop.f32.mrb[0].mxu0
  %4645 = vmatprep.mubr.bf16.mxu0 0
  %4646 = vmatmul.mubr.bf16.gmra.mrb[0].mxu0 %v4576
  %v4647 = vpop.f32.mrb[0].mxu0
  %v4648 = vadd.f32 %v4533, %v4647
  %v4649 = vpop.f32.mrb[0].mxu0
  %v4650 = vpop.f32.mrb[0].mxu0
  %v4651 = vadd.f32 %v4534, %v4650
  %v4652 = vpop.f32.mrb[0].mxu0
  %4653 = vmatprep.mubr.bf16.mxu0 0
  %4654 = vmatmul.mubr.bf16.gmra.mrb[0].mxu0 %v4578
  %v4655 = vpop.f32.mrb[0].mxu0
  %v4656 = vadd.f32 %v4535, %v4655
  %v4657 = vpop.f32.mrb[0].mxu0
  %v4658 = vpop.f32.mrb[0].mxu0
  %v4659 = vadd.f32 %v4536, %v4658
  %v4660 = vpop.f32.mrb[0].mxu0
  %4661 = vmatprep.mubr.bf16.mxu0 0
  %4662 = vmatmul.mubr.bf16.gmra.mrb[0].mxu0 %v4580
  %v4663 = vpop.f32.mrb[0].mxu0
  %v4664 = vadd.f32 %v4537, %v4663
  %v4665 = vpop.f32.mrb[0].mxu0
  %v4666 = vpop.f32.mrb[0].mxu0
  %v4667 = vadd.f32 %v4538, %v4666
  %v4668 = vpop.f32.mrb[0].mxu0
  %4669 = vmatprep.mubr.bf16.mxu0 0
  %4670 = vmatmul.mubr.bf16.gmra.mrb[0].mxu0 %v4582
  %v4671 = vpop.f32.mrb[0].mxu0
  %v4672 = vadd.f32 %v4539, %v4671
  %v4673 = vpop.f32.mrb[0].mxu0
  %v4674 = vpop.f32.mrb[0].mxu0
  %v4675 = vadd.f32 %v4540, %v4674
  %v4676 = vpop.f32.mrb[0].mxu0
  %4677 = vmatprep.mubr.bf16.mxu0 0
  %4678 = vmatmul.mubr.bf16.gmra.mrb[0].mxu0 %v4584
  %v4679 = vpop.f32.mrb[0].mxu0
  %v4680 = vadd.f32 %v4541, %v4679
  %v4681 = vpop.f32.mrb[0].mxu0
  %v4682 = vpop.f32.mrb[0].mxu0
  %v4683 = vadd.f32 %v4542, %v4682
  %v4684 = vpop.f32.mrb[0].mxu0
  %4685 = vdwg.mxu0
  %4686 = vst.msk [vmem:[%s7] sm:$0xff] %vm2204, %v4624
  %4687 = vst.msk [vmem:[%s7 + $0x8] sm:$0xff] %vm2204, %v4627
  %4688 = vst.msk [vmem:[%s7 + $0x10] sm:$0xff] %vm2204, %v4632
  %4689 = vst.msk [vmem:[%s7 + $0x18] sm:$0xff] %vm2204, %v4635
  %4690 = vst.msk [vmem:[%s7 + $0x20] sm:$0xff] %vm2204, %v4640
  %4691 = vst.msk [vmem:[%s7 + $0x28] sm:$0xff] %vm2204, %v4643
  %4692 = vst.msk [vmem:[%s7 + $0x30] sm:$0xff] %vm2204, %v4648
  %4693 = vst.msk [vmem:[%s7 + $0x38] sm:$0xff] %vm2204, %v4651
  %4694 = vst.msk [vmem:[%s7 + $0x40] sm:$0xff] %vm2204, %v4656
  %4695 = vst.msk [vmem:[%s7 + $0x48] sm:$0xff] %vm2204, %v4659
  %4696 = vst.msk [vmem:[%s7 + $0x50] sm:$0xff] %vm2204, %v4664
  %4697 = vst.msk [vmem:[%s7 + $0x58] sm:$0xff] %vm2204, %v4667
  %4698 = vst.msk [vmem:[%s7 + $0x60] sm:$0xff] %vm2204, %v4672
  %4699 = vst.msk [vmem:[%s7 + $0x68] sm:$0xff] %vm2204, %v4675
  %4700 = vst.msk [vmem:[%s7 + $0x70] sm:$0xff] %vm2204, %v4680
  %4701 = vst.msk [vmem:[%s7 + $0x78] sm:$0xff] %vm2204, %v4683
  // Predicated region
  $region34: #{network_block_forward.3} parent=0 // pred_check
    _
  $region35: #{network_block_forward.3} parent=0 // pred_check_branch
    %4703 = sbr.rel (0) target = $region37
  $region36: #{network_block_forward.3} parent=0 // pred_region
    _
  $region37: #{network_block_forward.3} parent=0 // pred_fallthru
    _
  // Predicated region
  $region38: #{network_block_forward.3} parent=0 // pred_check
    _
  $region39: #{network_block_forward.3} parent=0 // pred_check_branch
    %4705 = sbr.rel (0) target = $region41
  $region40: #{network_block_forward.3} parent=0 // pred_region
    _
  $region41: #{network_block_forward.3} parent=0 // pred_fallthru
    _

// kernel: network_block_forward.2
$region0: #{network_block_forward.2}
  #allocation0 [shape = 'u32[]', space=smem, size = 0x4, offset = 0x4, fixed_abs, tag = 'smem constant byte address 0x4 - core index']
  #allocation1 [shape = 'u32[144,128]{1,0:T(1,128)}', space=vmem, size = 0x12000, scoped, tag = 'internal scratch']
  #allocation2 [shape = 'bf16[2,9,9,4]{3,2,1,0:T(8,128)(2,1)}', space=vmem, size = 0x12000, scoped, tag = 'scratch operand']
  #allocation3 [shape = 'bf16[2,9,8,4]{3,2,1,0:T(8,128)(2,1)}', space=vmem, size = 0x9000, scoped, tag = 'scratch operand']
  #allocation4 [shape = 'bf16[2,8,9,4]{3,2,1,0:T(8,128)(2,1)}', space=vmem, size = 0x10000, scoped, tag = 'scratch operand']
  #allocation5 [shape = 'bf16[2,10,10,8]{3,2,1,0:T(8,128)(2,1)}', space=vmem, size = 0x14000, scoped, tag = 'scratch operand']
  %s0 = inlined_call_operand.vmem [shape: f32[2,8,8,4], index: 0, kind: input, shape index: {}]
  %s1 = inlined_call_operand.vmem [shape: f32[2,8,8,4], index: 1, kind: input, shape index: {}]
  %s2 = inlined_call_operand.vmem [shape: f32[2,8,8,4], index: 2, kind: input, shape index: {}]
  %s3 = inlined_call_operand.vmem [shape: f32[2,8,8,4], index: 3, kind: input, shape index: {}]
  %s4 = inlined_call_operand.vmem [shape: f32[1,4], index: 4, kind: input, shape index: {}]
  %s5 = inlined_call_operand.vmem [shape: f32[1,4], index: 5, kind: input, shape index: {}]
  %s6 = inlined_call_operand.vmem [shape: bf16[36,8], index: 6, kind: input, shape index: {}]
  %s7 = inlined_call_operand.vmem [shape: f32[1,8], index: 7, kind: input, shape index: {}]
  %s8 = inlined_call_operand.vmem [shape: f32[1,8], index: 8, kind: input, shape index: {}]
  %s9 = inlined_call_operand.vmem [shape: bf16[72,8], index: 9, kind: input, shape index: {}]
  %s10 = inlined_call_operand.vmem [shape: bf16[4,8], index: 10, kind: input, shape index: {}]
  %s11 = inlined_call_operand.vmem [shape: f32[2,64,8], index: 11, kind: output, shape index: {}]
  %s12 = sld [smem:[#allocation0]]
  $region58: #{network_block_forward.2} parent=0
    _
  %s14 = ssub.s32 1, %s12
  %s15 = scalar_select 0, %s14, %s12
  // Predicated region
  $region2: #{network_block_forward.2} parent=0 // pred_check
    _
  $region3: #{network_block_forward.2} parent=0 // pred_check_branch
    %17 = sbr.rel (0) target = $region5
  $region4: #{network_block_forward.2} parent=0 // pred_region
    _
  $region5: #{network_block_forward.2} parent=0 // pred_fallthru
    _
  // Predicated region
  $region6: #{network_block_forward.2} parent=0 // pred_check
    _
  $region7: #{network_block_forward.2} parent=0 // pred_check_branch
    %19 = sbr.rel (0) target = $region9
  $region8: #{network_block_forward.2} parent=0 // pred_region
    _
  $region9: #{network_block_forward.2} parent=0 // pred_fallthru
    _
  // Predicated region
  $region10: #{network_block_forward.2} parent=0 // pred_check
    _
  $region11: #{network_block_forward.2} parent=0 // pred_check_branch
    %21 = sbr.rel (0) target = $region13
  $region12: #{network_block_forward.2} parent=0 // pred_region
    _
  $region13: #{network_block_forward.2} parent=0 // pred_fallthru
    _
  // Predicated region
  $region14: #{network_block_forward.2} parent=0 // pred_check
    _
  $region15: #{network_block_forward.2} parent=0 // pred_check_branch
    %23 = sbr.rel (0) target = $region17
  $region16: #{network_block_forward.2} parent=0 // pred_region
    _
  $region17: #{network_block_forward.2} parent=0 // pred_fallthru
    _
  // Predicated region
  $region18: #{network_block_forward.2} parent=0 // pred_check
    _
  $region19: #{network_block_forward.2} parent=0 // pred_check_branch
    %25 = sbr.rel (0) target = $region21
  $region20: #{network_block_forward.2} parent=0 // pred_region
    _
  $region21: #{network_block_forward.2} parent=0 // pred_fallthru
    _
  // Predicated region
  $region22: #{network_block_forward.2} parent=0 // pred_check
    _
  $region23: #{network_block_forward.2} parent=0 // pred_check_branch
    %27 = sbr.rel (0) target = $region25
  $region24: #{network_block_forward.2} parent=0 // pred_region
    _
  $region25: #{network_block_forward.2} parent=0 // pred_fallthru
    _
  // Predicated region
  $region26: #{network_block_forward.2} parent=0 // pred_check
    _
  $region27: #{network_block_forward.2} parent=0 // pred_check_branch
    %29 = sbr.rel (0) target = $region29
  $region28: #{network_block_forward.2} parent=0 // pred_region
    _
  $region29: #{network_block_forward.2} parent=0 // pred_fallthru
    _
  // Predicated region
  $region30: #{network_block_forward.2} parent=0 // pred_check
    _
  $region31: #{network_block_forward.2} parent=0 // pred_check_branch
    %31 = sbr.rel (0) target = $region33
  $region32: #{network_block_forward.2} parent=0 // pred_region
    _
  $region33: #{network_block_forward.2} parent=0 // pred_fallthru
    _
  // Predicated region
  $region34: #{network_block_forward.2} parent=0 // pred_check
    _
  $region35: #{network_block_forward.2} parent=0 // pred_check_branch
    %33 = sbr.rel (0) target = $region37
  $region36: #{network_block_forward.2} parent=0 // pred_region
    _
  $region37: #{network_block_forward.2} parent=0 // pred_fallthru
    _
  // Predicated region
  $region38: #{network_block_forward.2} parent=0 // pred_check
    _
  $region39: #{network_block_forward.2} parent=0 // pred_check_branch
    %35 = sbr.rel (0) target = $region41
  $region40: #{network_block_forward.2} parent=0 // pred_region
    _
  $region41: #{network_block_forward.2} parent=0 // pred_fallthru
    _
  // Predicated region
  $region42: #{network_block_forward.2} parent=0 // pred_check
    _
  $region43: #{network_block_forward.2} parent=0 // pred_check_branch
    %37 = sbr.rel (0) target = $region45
  $region44: #{network_block_forward.2} parent=0 // pred_region
    _
  $region45: #{network_block_forward.2} parent=0 // pred_fallthru
    _
  %p39 = scmp.eq.s32.totalorder 0, 0
  // Predicated region
  $region46: #{network_block_forward.2} parent=0 // pred_check
    %p40 = pneg %p39
  $region47: #{network_block_forward.2} parent=0 // pred_check_branch
    %42 = sbr.rel (%p40) target = $region49
  $region48: #{network_block_forward.2} parent=0 // pred_region
    %vm43 = vcmask 27648
    %44 = vst.msk [vmem:[#allocation2] sm:$0xf] %vm43, 0
    %vm45 = vcmask 24576
    %vm46 = vsmask.f32 256
    %vm47 = vmand %vm45, %vm46
    %v48 = vld [vmem:[#allocation2 + $0x4] sm:$0x1]
    %v49 = vsel %vm47, 0, %v48
    %50 = vst [vmem:[#allocation2 + $0x4] sm:$0x1] %v49
    %51 = vst.msk [vmem:[#allocation2 + $0x48] sm:$0xf] %vm43, 0
    %v52 = vld [vmem:[#allocation2 + $0x4c] sm:$0x1]
    %v53 = vsel %vm47, 0, %v52
    %54 = vst [vmem:[#allocation2 + $0x4c] sm:$0x1] %v53
    %v55 = vld [vmem:[#allocation2] sm:$0x1]
    %v56 = vsel %vm47, 0, %v55
    %57 = vst [vmem:[#allocation2] sm:$0x1] %v56
    %v58 = vld [vmem:[#allocation2 + $0x8] sm:$0x1]
    %v59 = vsel %vm47, 0, %v58
    %60 = vst [vmem:[#allocation2 + $0x8] sm:$0x1] %v59
    %v61 = vld [vmem:[#allocation2 + $0x10] sm:$0x1]
    %v62 = vsel %vm47, 0, %v61
    %63 = vst [vmem:[#allocation2 + $0x10] sm:$0x1] %v62
    %v64 = vld [vmem:[#allocation2 + $0x18] sm:$0x1]
    %v65 = vsel %vm47, 0, %v64
    %66 = vst [vmem:[#allocation2 + $0x18] sm:$0x1] %v65
    %v67 = vld [vmem:[#allocation2 + $0x20] sm:$0x1]
    %v68 = vsel %vm47, 0, %v67
    %69 = vst [vmem:[#allocation2 + $0x20] sm:$0x1] %v68
    %v70 = vld [vmem:[#allocation2 + $0x28] sm:$0x1]
    %v71 = vsel %vm47, 0, %v70
    %72 = vst [vmem:[#allocation2 + $0x28] sm:$0x1] %v71
    %v73 = vld [vmem:[#allocation2 + $0x30] sm:$0x1]
    %v74 = vsel %vm47, 0, %v73
    %75 = vst [vmem:[#allocation2 + $0x30] sm:$0x1] %v74
    %v76 = vld [vmem:[#allocation2 + $0x38] sm:$0x1]
    %v77 = vsel %vm47, 0, %v76
    %78 = vst [vmem:[#allocation2 + $0x38] sm:$0x1] %v77
    %v79 = vld [vmem:[#allocation2 + $0x40] sm:$0x1]
    %v80 = vsel %vm47, 0, %v79
    %81 = vst [vmem:[#allocation2 + $0x40] sm:$0x1] %v80
    %v82 = vld [vmem:[#allocation2 + $0x48] sm:$0x1]
    %v83 = vsel %vm47, 0, %v82
    %84 = vst [vmem:[#allocation2 + $0x48] sm:$0x1] %v83
    %v85 = vld [vmem:[#allocation2 + $0x50] sm:$0x1]
    %v86 = vsel %vm47, 0, %v85
    %87 = vst [vmem:[#allocation2 + $0x50] sm:$0x1] %v86
    %v88 = vld [vmem:[#allocation2 + $0x58] sm:$0x1]
    %v89 = vsel %vm47, 0, %v88
    %90 = vst [vmem:[#allocation2 + $0x58] sm:$0x1] %v89
    %v91 = vld [vmem:[#allocation2 + $0x60] sm:$0x1]
    %v92 = vsel %vm47, 0, %v91
    %93 = vst [vmem:[#allocation2 + $0x60] sm:$0x1] %v92
    %v94 = vld [vmem:[#allocation2 + $0x68] sm:$0x1]
    %v95 = vsel %vm47, 0, %v94
    %96 = vst [vmem:[#allocation2 + $0x68] sm:$0x1] %v95
    %v97 = vld [vmem:[#allocation2 + $0x70] sm:$0x1]
    %v98 = vsel %vm47, 0, %v97
    %99 = vst [vmem:[#allocation2 + $0x70] sm:$0x1] %v98
    %v100 = vld [vmem:[#allocation2 + $0x78] sm:$0x1]
    %v101 = vsel %vm47, 0, %v100
    %102 = vst [vmem:[#allocation2 + $0x78] sm:$0x1] %v101
    %v103 = vld [vmem:[#allocation2 + $0x80] sm:$0x1]
    %v104 = vsel %vm47, 0, %v103
    %105 = vst [vmem:[#allocation2 + $0x80] sm:$0x1] %v104
    %v106 = vld [vmem:[#allocation2 + $0x88] sm:$0x1]
    %v107 = vsel %vm47, 0, %v106
    %108 = vst [vmem:[#allocation2 + $0x88] sm:$0x1] %v107
    %109 = vst.msk [vmem:[#allocation3] sm:$0xf] %vm43, 0
    %110 = vst.msk [vmem:[#allocation3 + $0x24] sm:$0xf] %vm43, 0
    %v111 = vld [vmem:[#allocation4] sm:$0x1]
    %v112 = vsel %vm47, 0, %v111
    %113 = vst [vmem:[#allocation4] sm:$0x1] %v112
    %v114 = vld [vmem:[#allocation4 + $0x8] sm:$0x1]
    %v115 = vsel %vm47, 0, %v114
    %116 = vst [vmem:[#allocation4 + $0x8] sm:$0x1] %v115
    %v117 = vld [vmem:[#allocation4 + $0x10] sm:$0x1]
    %v118 = vsel %vm47, 0, %v117
    %119 = vst [vmem:[#allocation4 + $0x10] sm:$0x1] %v118
    %v120 = vld [vmem:[#allocation4 + $0x18] sm:$0x1]
    %v121 = vsel %vm47, 0, %v120
    %122 = vst [vmem:[#allocation4 + $0x18] sm:$0x1] %v121
    %v123 = vld [vmem:[#allocation4 + $0x20] sm:$0x1]
    %v124 = vsel %vm47, 0, %v123
    %125 = vst [vmem:[#allocation4 + $0x20] sm:$0x1] %v124
    %v126 = vld [vmem:[#allocation4 + $0x28] sm:$0x1]
    %v127 = vsel %vm47, 0, %v126
    %128 = vst [vmem:[#allocation4 + $0x28] sm:$0x1] %v127
    %v129 = vld [vmem:[#allocation4 + $0x30] sm:$0x1]
    %v130 = vsel %vm47, 0, %v129
    %131 = vst [vmem:[#allocation4 + $0x30] sm:$0x1] %v130
    %v132 = vld [vmem:[#allocation4 + $0x38] sm:$0x1]
    %v133 = vsel %vm47, 0, %v132
    %134 = vst [vmem:[#allocation4 + $0x38] sm:$0x1] %v133
    %v135 = vld [vmem:[#allocation4 + $0x40] sm:$0x1]
    %v136 = vsel %vm47, 0, %v135
    %137 = vst [vmem:[#allocation4 + $0x40] sm:$0x1] %v136
    %v138 = vld [vmem:[#allocation4 + $0x48] sm:$0x1]
    %v139 = vsel %vm47, 0, %v138
    %140 = vst [vmem:[#allocation4 + $0x48] sm:$0x1] %v139
    %v141 = vld [vmem:[#allocation4 + $0x50] sm:$0x1]
    %v142 = vsel %vm47, 0, %v141
    %143 = vst [vmem:[#allocation4 + $0x50] sm:$0x1] %v142
    %v144 = vld [vmem:[#allocation4 + $0x58] sm:$0x1]
    %v145 = vsel %vm47, 0, %v144
    %146 = vst [vmem:[#allocation4 + $0x58] sm:$0x1] %v145
    %v147 = vld [vmem:[#allocation4 + $0x60] sm:$0x1]
    %v148 = vsel %vm47, 0, %v147
    %149 = vst [vmem:[#allocation4 + $0x60] sm:$0x1] %v148
    %v150 = vld [vmem:[#allocation4 + $0x68] sm:$0x1]
    %v151 = vsel %vm47, 0, %v150
    %152 = vst [vmem:[#allocation4 + $0x68] sm:$0x1] %v151
    %v153 = vld [vmem:[#allocation4 + $0x70] sm:$0x1]
    %v154 = vsel %vm47, 0, %v153
    %155 = vst [vmem:[#allocation4 + $0x70] sm:$0x1] %v154
    %v156 = vld [vmem:[#allocation4 + $0x78] sm:$0x1]
    %v157 = vsel %vm47, 0, %v156
    %158 = vst [vmem:[#allocation4 + $0x78] sm:$0x1] %v157
    %vm159 = vcmask 60416
    %160 = vst.msk [vmem:[#allocation5] sm:$0xf] %vm159, 0
    %vm161 = vcmask 57344
    %162 = vst.msk [vmem:[#allocation5 + $0x4] sm:$0x1] %vm161, 0
    %163 = vst.msk [vmem:[#allocation5 + $0x50] sm:$0xf] %vm159, 0
    %164 = vst.msk [vmem:[#allocation5 + $0x54] sm:$0x1] %vm161, 0
    %s165 = scalar_lea.vmem [#allocation5], 72
    %166 = vst.msk [vmem:[%s165] sm:$0xf] %vm159, 0
    %167 = vst.msk [vmem:[%s165 + $0x4] sm:$0x1] %vm161, 0
    %168 = vst.msk [vmem:[%s165 + $0x50] sm:$0xf] %vm159, 0
    %169 = vst.msk [vmem:[%s165 + $0x54] sm:$0x1] %vm161, 0
    %vm170 = vcmask 57344
    %vm171 = vmand %vm170, %vm46
    %v172 = vld [vmem:[#allocation5] sm:$0x1]
    %v173 = vsel %vm171, 0, %v172
    %174 = vst [vmem:[#allocation5] sm:$0x1] %v173
    %v175 = vld [vmem:[#allocation5 + $0x8] sm:$0x1]
    %v176 = vsel %vm171, 0, %v175
    %177 = vst [vmem:[#allocation5 + $0x8] sm:$0x1] %v176
    %v178 = vld [vmem:[#allocation5 + $0x10] sm:$0x1]
    %v179 = vsel %vm171, 0, %v178
    %180 = vst [vmem:[#allocation5 + $0x10] sm:$0x1] %v179
    %v181 = vld [vmem:[#allocation5 + $0x18] sm:$0x1]
    %v182 = vsel %vm171, 0, %v181
    %183 = vst [vmem:[#allocation5 + $0x18] sm:$0x1] %v182
    %v184 = vld [vmem:[#allocation5 + $0x20] sm:$0x1]
    %v185 = vsel %vm171, 0, %v184
    %186 = vst [vmem:[#allocation5 + $0x20] sm:$0x1] %v185
    %v187 = vld [vmem:[#allocation5 + $0x28] sm:$0x1]
    %v188 = vsel %vm171, 0, %v187
    %189 = vst [vmem:[#allocation5 + $0x28] sm:$0x1] %v188
    %v190 = vld [vmem:[#allocation5 + $0x30] sm:$0x1]
    %v191 = vsel %vm171, 0, %v190
    %192 = vst [vmem:[#allocation5 + $0x30] sm:$0x1] %v191
    %v193 = vld [vmem:[#allocation5 + $0x38] sm:$0x1]
    %v194 = vsel %vm171, 0, %v193
    %195 = vst [vmem:[#allocation5 + $0x38] sm:$0x1] %v194
    %v196 = vld [vmem:[#allocation5 + $0x40] sm:$0x1]
    %v197 = vsel %vm171, 0, %v196
    %198 = vst [vmem:[#allocation5 + $0x40] sm:$0x1] %v197
    %v199 = vld [vmem:[#allocation5 + $0x48] sm:$0x1]
    %v200 = vsel %vm171, 0, %v199
    %201 = vst [vmem:[#allocation5 + $0x48] sm:$0x1] %v200
    %v202 = vld [vmem:[#allocation5 + $0x50] sm:$0x1]
    %v203 = vsel %vm171, 0, %v202
    %204 = vst [vmem:[#allocation5 + $0x50] sm:$0x1] %v203
    %v205 = vld [vmem:[#allocation5 + $0x58] sm:$0x1]
    %v206 = vsel %vm171, 0, %v205
    %207 = vst [vmem:[#allocation5 + $0x58] sm:$0x1] %v206
    %v208 = vld [vmem:[#allocation5 + $0x60] sm:$0x1]
    %v209 = vsel %vm171, 0, %v208
    %210 = vst [vmem:[#allocation5 + $0x60] sm:$0x1] %v209
    %v211 = vld [vmem:[#allocation5 + $0x68] sm:$0x1]
    %v212 = vsel %vm171, 0, %v211
    %213 = vst [vmem:[#allocation5 + $0x68] sm:$0x1] %v212
    %v214 = vld [vmem:[#allocation5 + $0x70] sm:$0x1]
    %v215 = vsel %vm171, 0, %v214
    %216 = vst [vmem:[#allocation5 + $0x70] sm:$0x1] %v215
    %v217 = vld [vmem:[#allocation5 + $0x78] sm:$0x1]
    %v218 = vsel %vm171, 0, %v217
    %219 = vst [vmem:[#allocation5 + $0x78] sm:$0x1] %v218
    %v220 = vld [vmem:[#allocation5 + $0x80] sm:$0x1]
    %v221 = vsel %vm171, 0, %v220
    %222 = vst [vmem:[#allocation5 + $0x80] sm:$0x1] %v221
    %v223 = vld [vmem:[#allocation5 + $0x88] sm:$0x1]
    %v224 = vsel %vm171, 0, %v223
    %225 = vst [vmem:[#allocation5 + $0x88] sm:$0x1] %v224
    %v226 = vld [vmem:[#allocation5 + $0x90] sm:$0x1]
    %v227 = vsel %vm171, 0, %v226
    %228 = vst [vmem:[#allocation5 + $0x90] sm:$0x1] %v227
    %v229 = vld [vmem:[#allocation5 + $0x98] sm:$0x1]
    %v230 = vsel %vm171, 0, %v229
    %231 = vst [vmem:[#allocation5 + $0x98] sm:$0x1] %v230
    %vm232 = vsmask.f32 7938
    %vm233 = vmand %vm170, %vm232
    %v234 = vld [vmem:[#allocation5 + $0x4] sm:$0x1]
    %v235 = vsel %vm233, 0, %v234
    %236 = vst [vmem:[#allocation5 + $0x4] sm:$0x1] %v235
    %v237 = vld [vmem:[#allocation5 + $0xc] sm:$0x1]
    %v238 = vsel %vm233, 0, %v237
    %239 = vst [vmem:[#allocation5 + $0xc] sm:$0x1] %v238
    %v240 = vld [vmem:[#allocation5 + $0x14] sm:$0x1]
    %v241 = vsel %vm233, 0, %v240
    %242 = vst [vmem:[#allocation5 + $0x14] sm:$0x1] %v241
    %v243 = vld [vmem:[#allocation5 + $0x1c] sm:$0x1]
    %v244 = vsel %vm233, 0, %v243
    %245 = vst [vmem:[#allocation5 + $0x1c] sm:$0x1] %v244
    %v246 = vld [vmem:[#allocation5 + $0x24] sm:$0x1]
    %v247 = vsel %vm233, 0, %v246
    %248 = vst [vmem:[#allocation5 + $0x24] sm:$0x1] %v247
    %v249 = vld [vmem:[#allocation5 + $0x2c] sm:$0x1]
    %v250 = vsel %vm233, 0, %v249
    %251 = vst [vmem:[#allocation5 + $0x2c] sm:$0x1] %v250
    %v252 = vld [vmem:[#allocation5 + $0x34] sm:$0x1]
    %v253 = vsel %vm233, 0, %v252
    %254 = vst [vmem:[#allocation5 + $0x34] sm:$0x1] %v253
    %v255 = vld [vmem:[#allocation5 + $0x3c] sm:$0x1]
    %v256 = vsel %vm233, 0, %v255
    %257 = vst [vmem:[#allocation5 + $0x3c] sm:$0x1] %v256
    %v258 = vld [vmem:[#allocation5 + $0x44] sm:$0x1]
    %v259 = vsel %vm233, 0, %v258
    %260 = vst [vmem:[#allocation5 + $0x44] sm:$0x1] %v259
    %v261 = vld [vmem:[#allocation5 + $0x4c] sm:$0x1]
    %v262 = vsel %vm233, 0, %v261
    %263 = vst [vmem:[#allocation5 + $0x4c] sm:$0x1] %v262
    %v264 = vld [vmem:[#allocation5 + $0x54] sm:$0x1]
    %v265 = vsel %vm233, 0, %v264
    %266 = vst [vmem:[#allocation5 + $0x54] sm:$0x1] %v265
    %v267 = vld [vmem:[#allocation5 + $0x5c] sm:$0x1]
    %v268 = vsel %vm233, 0, %v267
    %269 = vst [vmem:[#allocation5 + $0x5c] sm:$0x1] %v268
    %v270 = vld [vmem:[#allocation5 + $0x64] sm:$0x1]
    %v271 = vsel %vm233, 0, %v270
    %272 = vst [vmem:[#allocation5 + $0x64] sm:$0x1] %v271
    %v273 = vld [vmem:[#allocation5 + $0x6c] sm:$0x1]
    %v274 = vsel %vm233, 0, %v273
    %275 = vst [vmem:[#allocation5 + $0x6c] sm:$0x1] %v274
    %v276 = vld [vmem:[#allocation5 + $0x74] sm:$0x1]
    %v277 = vsel %vm233, 0, %v276
    %278 = vst [vmem:[#allocation5 + $0x74] sm:$0x1] %v277
    %v279 = vld [vmem:[#allocation5 + $0x7c] sm:$0x1]
    %v280 = vsel %vm233, 0, %v279
    %281 = vst [vmem:[#allocation5 + $0x7c] sm:$0x1] %v280
    %v282 = vld [vmem:[#allocation5 + $0x84] sm:$0x1]
    %v283 = vsel %vm233, 0, %v282
    %284 = vst [vmem:[#allocation5 + $0x84] sm:$0x1] %v283
    %v285 = vld [vmem:[#allocation5 + $0x8c] sm:$0x1]
    %v286 = vsel %vm233, 0, %v285
    %287 = vst [vmem:[#allocation5 + $0x8c] sm:$0x1] %v286
    %v288 = vld [vmem:[#allocation5 + $0x94] sm:$0x1]
    %v289 = vsel %vm233, 0, %v288
    %290 = vst [vmem:[#allocation5 + $0x94] sm:$0x1] %v289
    %v291 = vld [vmem:[#allocation5 + $0x9c] sm:$0x1]
    %v292 = vsel %vm233, 0, %v291
    %293 = vst [vmem:[#allocation5 + $0x9c] sm:$0x1] %v292
  $region49: #{network_block_forward.2} parent=0 // pred_fallthru
    _
  %v294 = vld [vmem:[%s4] sm:$0x1]
  %v295 = vld [vmem:[%s5] sm:$0x1]
  %v296 = vld [vmem:[%s0] sm:$0xff]
  %v297 = vld [vmem:[%s0 + $0x8] sm:$0xff]
  %v298 = vld [vmem:[%s0 + $0x10] sm:$0xff]
  %v299 = vld [vmem:[%s0 + $0x18] sm:$0xff]
  %v300 = vld [vmem:[%s0 + $0x20] sm:$0xff]
  %v301 = vld [vmem:[%s0 + $0x28] sm:$0xff]
  %v302 = vld [vmem:[%s0 + $0x30] sm:$0xff]
  %v303 = vld [vmem:[%s0 + $0x38] sm:$0xff]
  %v304 = vld [vmem:[%s0 + $0x40] sm:$0xff]
  %v305 = vld [vmem:[%s0 + $0x48] sm:$0xff]
  %v306 = vld [vmem:[%s0 + $0x50] sm:$0xff]
  %v307 = vld [vmem:[%s0 + $0x58] sm:$0xff]
  %v308 = vld [vmem:[%s0 + $0x60] sm:$0xff]
  %v309 = vld [vmem:[%s0 + $0x68] sm:$0xff]
  %v310 = vld [vmem:[%s0 + $0x70] sm:$0xff]
  %v311 = vld [vmem:[%s0 + $0x78] sm:$0xff]
  %v313 = vlaneseq
  %v314 = vshrl.u32 %v313, 7
  %v315 = vsub.s32 0, %v314
  %v316 = vrot.slane %v294, %v315
  %v318 = vmul.f32 %v296, %v316
  %v319 = vmul.f32 %v297, %v316
  %v320 = vmul.f32 %v298, %v316
  %v321 = vmul.f32 %v299, %v316
  %v322 = vmul.f32 %v300, %v316
  %v323 = vmul.f32 %v301, %v316
  %v324 = vmul.f32 %v302, %v316
  %v325 = vmul.f32 %v303, %v316
  %v326 = vmul.f32 %v304, %v316
  %v327 = vmul.f32 %v305, %v316
  %v328 = vmul.f32 %v306, %v316
  %v329 = vmul.f32 %v307, %v316
  %v330 = vmul.f32 %v308, %v316
  %v331 = vmul.f32 %v309, %v316
  %v332 = vmul.f32 %v310, %v316
  %v333 = vmul.f32 %v311, %v316
  %v335 = vlaneseq
  %v336 = vshrl.u32 %v335, 7
  %v337 = vsub.s32 0, %v336
  %v338 = vrot.slane %v295, %v337
  %v340 = vadd.f32 %v318, %v338
  %v341 = vadd.f32 %v319, %v338
  %v342 = vadd.f32 %v320, %v338
  %v343 = vadd.f32 %v321, %v338
  %v344 = vadd.f32 %v322, %v338
  %v345 = vadd.f32 %v323, %v338
  %v346 = vadd.f32 %v324, %v338
  %v347 = vadd.f32 %v325, %v338
  %v348 = vadd.f32 %v326, %v338
  %v349 = vadd.f32 %v327, %v338
  %v350 = vadd.f32 %v328, %v338
  %v351 = vadd.f32 %v329, %v338
  %v352 = vadd.f32 %v330, %v338
  %v353 = vadd.f32 %v331, %v338
  %v354 = vadd.f32 %v332, %v338
  %v355 = vadd.f32 %v333, %v338
  %v356 = vmax.f32 %v340, 0.0
  %v357 = vmax.f32 %v341, 0.0
  %v358 = vmax.f32 %v342, 0.0
  %v359 = vmax.f32 %v343, 0.0
  %v360 = vmax.f32 %v344, 0.0
  %v361 = vmax.f32 %v345, 0.0
  %v362 = vmax.f32 %v346, 0.0
  %v363 = vmax.f32 %v347, 0.0
  %v364 = vmax.f32 %v348, 0.0
  %v365 = vmax.f32 %v349, 0.0
  %v366 = vmax.f32 %v350, 0.0
  %v367 = vmax.f32 %v351, 0.0
  %v368 = vmax.f32 %v352, 0.0
  %v369 = vmax.f32 %v353, 0.0
  %v370 = vmax.f32 %v354, 0.0
  %v371 = vmax.f32 %v355, 0.0
  %v372 = vld [vmem:[%s1] sm:$0xff]
  %v373 = vld [vmem:[%s1 + $0x8] sm:$0xff]
  %v374 = vld [vmem:[%s1 + $0x10] sm:$0xff]
  %v375 = vld [vmem:[%s1 + $0x18] sm:$0xff]
  %v376 = vld [vmem:[%s1 + $0x20] sm:$0xff]
  %v377 = vld [vmem:[%s1 + $0x28] sm:$0xff]
  %v378 = vld [vmem:[%s1 + $0x30] sm:$0xff]
  %v379 = vld [vmem:[%s1 + $0x38] sm:$0xff]
  %v380 = vld [vmem:[%s1 + $0x40] sm:$0xff]
  %v381 = vld [vmem:[%s1 + $0x48] sm:$0xff]
  %v382 = vld [vmem:[%s1 + $0x50] sm:$0xff]
  %v383 = vld [vmem:[%s1 + $0x58] sm:$0xff]
  %v384 = vld [vmem:[%s1 + $0x60] sm:$0xff]
  %v385 = vld [vmem:[%s1 + $0x68] sm:$0xff]
  %v386 = vld [vmem:[%s1 + $0x70] sm:$0xff]
  %v387 = vld [vmem:[%s1 + $0x78] sm:$0xff]
  %v388 = vmul.f32 %v372, %v316
  %v389 = vmul.f32 %v373, %v316
  %v390 = vmul.f32 %v374, %v316
  %v391 = vmul.f32 %v375, %v316
  %v392 = vmul.f32 %v376, %v316
  %v393 = vmul.f32 %v377, %v316
  %v394 = vmul.f32 %v378, %v316
  %v395 = vmul.f32 %v379, %v316
  %v396 = vmul.f32 %v380, %v316
  %v397 = vmul.f32 %v381, %v316
  %v398 = vmul.f32 %v382, %v316
  %v399 = vmul.f32 %v383, %v316
  %v400 = vmul.f32 %v384, %v316
  %v401 = vmul.f32 %v385, %v316
  %v402 = vmul.f32 %v386, %v316
  %v403 = vmul.f32 %v387, %v316
  %v404 = vadd.f32 %v388, %v338
  %v405 = vadd.f32 %v389, %v338
  %v406 = vadd.f32 %v390, %v338
  %v407 = vadd.f32 %v391, %v338
  %v408 = vadd.f32 %v392, %v338
  %v409 = vadd.f32 %v393, %v338
  %v410 = vadd.f32 %v394, %v338
  %v411 = vadd.f32 %v395, %v338
  %v412 = vadd.f32 %v396, %v338
  %v413 = vadd.f32 %v397, %v338
  %v414 = vadd.f32 %v398, %v338
  %v415 = vadd.f32 %v399, %v338
  %v416 = vadd.f32 %v400, %v338
  %v417 = vadd.f32 %v401, %v338
  %v418 = vadd.f32 %v402, %v338
  %v419 = vadd.f32 %v403, %v338
  %v420 = vmax.f32 %v404, 0.0
  %v421 = vmax.f32 %v405, 0.0
  %v422 = vmax.f32 %v406, 0.0
  %v423 = vmax.f32 %v407, 0.0
  %v424 = vmax.f32 %v408, 0.0
  %v425 = vmax.f32 %v409, 0.0
  %v426 = vmax.f32 %v410, 0.0
  %v427 = vmax.f32 %v411, 0.0
  %v428 = vmax.f32 %v412, 0.0
  %v429 = vmax.f32 %v413, 0.0
  %v430 = vmax.f32 %v414, 0.0
  %v431 = vmax.f32 %v415, 0.0
  %v432 = vmax.f32 %v416, 0.0
  %v433 = vmax.f32 %v417, 0.0
  %v434 = vmax.f32 %v418, 0.0
  %v435 = vmax.f32 %v419, 0.0
  %v436 = vld [vmem:[%s2] sm:$0xff]
  %v437 = vld [vmem:[%s2 + $0x8] sm:$0xff]
  %v438 = vld [vmem:[%s2 + $0x10] sm:$0xff]
  %v439 = vld [vmem:[%s2 + $0x18] sm:$0xff]
  %v440 = vld [vmem:[%s2 + $0x20] sm:$0xff]
  %v441 = vld [vmem:[%s2 + $0x28] sm:$0xff]
  %v442 = vld [vmem:[%s2 + $0x30] sm:$0xff]
  %v443 = vld [vmem:[%s2 + $0x38] sm:$0xff]
  %v444 = vld [vmem:[%s2 + $0x40] sm:$0xff]
  %v445 = vld [vmem:[%s2 + $0x48] sm:$0xff]
  %v446 = vld [vmem:[%s2 + $0x50] sm:$0xff]
  %v447 = vld [vmem:[%s2 + $0x58] sm:$0xff]
  %v448 = vld [vmem:[%s2 + $0x60] sm:$0xff]
  %v449 = vld [vmem:[%s2 + $0x68] sm:$0xff]
  %v450 = vld [vmem:[%s2 + $0x70] sm:$0xff]
  %v451 = vld [vmem:[%s2 + $0x78] sm:$0xff]
  %v452 = vmul.f32 %v436, %v316
  %v453 = vmul.f32 %v437, %v316
  %v454 = vmul.f32 %v438, %v316
  %v455 = vmul.f32 %v439, %v316
  %v456 = vmul.f32 %v440, %v316
  %v457 = vmul.f32 %v441, %v316
  %v458 = vmul.f32 %v442, %v316
  %v459 = vmul.f32 %v443, %v316
  %v460 = vmul.f32 %v444, %v316
  %v461 = vmul.f32 %v445, %v316
  %v462 = vmul.f32 %v446, %v316
  %v463 = vmul.f32 %v447, %v316
  %v464 = vmul.f32 %v448, %v316
  %v465 = vmul.f32 %v449, %v316
  %v466 = vmul.f32 %v450, %v316
  %v467 = vmul.f32 %v451, %v316
  %v468 = vadd.f32 %v452, %v338
  %v469 = vadd.f32 %v453, %v338
  %v470 = vadd.f32 %v454, %v338
  %v471 = vadd.f32 %v455, %v338
  %v472 = vadd.f32 %v456, %v338
  %v473 = vadd.f32 %v457, %v338
  %v474 = vadd.f32 %v458, %v338
  %v475 = vadd.f32 %v459, %v338
  %v476 = vadd.f32 %v460, %v338
  %v477 = vadd.f32 %v461, %v338
  %v478 = vadd.f32 %v462, %v338
  %v479 = vadd.f32 %v463, %v338
  %v480 = vadd.f32 %v464, %v338
  %v481 = vadd.f32 %v465, %v338
  %v482 = vadd.f32 %v466, %v338
  %v483 = vadd.f32 %v467, %v338
  %v484 = vmax.f32 %v468, 0.0
  %v485 = vmax.f32 %v469, 0.0
  %v486 = vmax.f32 %v470, 0.0
  %v487 = vmax.f32 %v471, 0.0
  %v488 = vmax.f32 %v472, 0.0
  %v489 = vmax.f32 %v473, 0.0
  %v490 = vmax.f32 %v474, 0.0
  %v491 = vmax.f32 %v475, 0.0
  %v492 = vmax.f32 %v476, 0.0
  %v493 = vmax.f32 %v477, 0.0
  %v494 = vmax.f32 %v478, 0.0
  %v495 = vmax.f32 %v479, 0.0
  %v496 = vmax.f32 %v480, 0.0
  %v497 = vmax.f32 %v481, 0.0
  %v498 = vmax.f32 %v482, 0.0
  %v499 = vmax.f32 %v483, 0.0
  %v500 = vld [vmem:[%s3] sm:$0xff]
  %v501 = vld [vmem:[%s3 + $0x8] sm:$0xff]
  %v502 = vld [vmem:[%s3 + $0x10] sm:$0xff]
  %v503 = vld [vmem:[%s3 + $0x18] sm:$0xff]
  %v504 = vld [vmem:[%s3 + $0x20] sm:$0xff]
  %v505 = vld [vmem:[%s3 + $0x28] sm:$0xff]
  %v506 = vld [vmem:[%s3 + $0x30] sm:$0xff]
  %v507 = vld [vmem:[%s3 + $0x38] sm:$0xff]
  %v508 = vld [vmem:[%s3 + $0x40] sm:$0xff]
  %v509 = vld [vmem:[%s3 + $0x48] sm:$0xff]
  %v510 = vld [vmem:[%s3 + $0x50] sm:$0xff]
  %v511 = vld [vmem:[%s3 + $0x58] sm:$0xff]
  %v512 = vld [vmem:[%s3 + $0x60] sm:$0xff]
  %v513 = vld [vmem:[%s3 + $0x68] sm:$0xff]
  %v514 = vld [vmem:[%s3 + $0x70] sm:$0xff]
  %v515 = vld [vmem:[%s3 + $0x78] sm:$0xff]
  %v516 = vmul.f32 %v500, %v316
  %v517 = vmul.f32 %v501, %v316
  %v518 = vmul.f32 %v502, %v316
  %v519 = vmul.f32 %v503, %v316
  %v520 = vmul.f32 %v504, %v316
  %v521 = vmul.f32 %v505, %v316
  %v522 = vmul.f32 %v506, %v316
  %v523 = vmul.f32 %v507, %v316
  %v524 = vmul.f32 %v508, %v316
  %v525 = vmul.f32 %v509, %v316
  %v526 = vmul.f32 %v510, %v316
  %v527 = vmul.f32 %v511, %v316
  %v528 = vmul.f32 %v512, %v316
  %v529 = vmul.f32 %v513, %v316
  %v530 = vmul.f32 %v514, %v316
  %v531 = vmul.f32 %v515, %v316
  %v532 = vadd.f32 %v516, %v338
  %v533 = vadd.f32 %v517, %v338
  %v534 = vadd.f32 %v518, %v338
  %v535 = vadd.f32 %v519, %v338
  %v536 = vadd.f32 %v520, %v338
  %v537 = vadd.f32 %v521, %v338
  %v538 = vadd.f32 %v522, %v338
  %v539 = vadd.f32 %v523, %v338
  %v540 = vadd.f32 %v524, %v338
  %v541 = vadd.f32 %v525, %v338
  %v542 = vadd.f32 %v526, %v338
  %v543 = vadd.f32 %v527, %v338
  %v544 = vadd.f32 %v528, %v338
  %v545 = vadd.f32 %v529, %v338
  %v546 = vadd.f32 %v530, %v338
  %v547 = vadd.f32 %v531, %v338
  %v548 = vmax.f32 %v532, 0.0
  %v549 = vmax.f32 %v533, 0.0
  %v550 = vmax.f32 %v534, 0.0
  %v551 = vmax.f32 %v535, 0.0
  %v552 = vmax.f32 %v536, 0.0
  %v553 = vmax.f32 %v537, 0.0
  %v554 = vmax.f32 %v538, 0.0
  %v555 = vmax.f32 %v539, 0.0
  %v556 = vmax.f32 %v540, 0.0
  %v557 = vmax.f32 %v541, 0.0
  %v558 = vmax.f32 %v542, 0.0
  %v559 = vmax.f32 %v543, 0.0
  %v560 = vmax.f32 %v544, 0.0
  %v561 = vmax.f32 %v545, 0.0
  %v562 = vmax.f32 %v546, 0.0
  %v563 = vmax.f32 %v547, 0.0
  %v564 = vpack.c.bf16 %v356, %v356
  %v565 = vpack.c.bf16 %v357, %v357
  %v566 = vpack.c.bf16 %v358, %v358
  %v567 = vpack.c.bf16 %v359, %v359
  %v568 = vpack.c.bf16 %v360, %v360
  %v569 = vpack.c.bf16 %v361, %v361
  %v570 = vpack.c.bf16 %v362, %v362
  %v571 = vpack.c.bf16 %v363, %v363
  %v572 = vpack.c.bf16 %v364, %v364
  %v573 = vpack.c.bf16 %v365, %v365
  %v574 = vpack.c.bf16 %v366, %v366
  %v575 = vpack.c.bf16 %v367, %v367
  %v576 = vpack.c.bf16 %v368, %v368
  %v577 = vpack.c.bf16 %v369, %v369
  %v578 = vpack.c.bf16 %v370, %v370
  %v579 = vpack.c.bf16 %v371, %v371
  %v580 = vpack.c.bf16 %v548, %v548
  %v581 = vpack.c.bf16 %v549, %v549
  %v582 = vpack.c.bf16 %v550, %v550
  %v583 = vpack.c.bf16 %v551, %v551
  %v584 = vpack.c.bf16 %v552, %v552
  %v585 = vpack.c.bf16 %v553, %v553
  %v586 = vpack.c.bf16 %v554, %v554
  %v587 = vpack.c.bf16 %v555, %v555
  %v588 = vpack.c.bf16 %v556, %v556
  %v589 = vpack.c.bf16 %v557, %v557
  %v590 = vpack.c.bf16 %v558, %v558
  %v591 = vpack.c.bf16 %v559, %v559
  %v592 = vpack.c.bf16 %v560, %v560
  %v593 = vpack.c.bf16 %v561, %v561
  %v594 = vpack.c.bf16 %v562, %v562
  %v595 = vpack.c.bf16 %v563, %v563
  %v612 = vunpack.c.l.b16 %v580
  %v613 = vunpack.c.l.b16 %v581
  %v614 = vunpack.c.l.b16 %v582
  %v615 = vunpack.c.l.b16 %v583
  %v616 = vunpack.c.l.b16 %v584
  %v617 = vunpack.c.l.b16 %v585
  %v618 = vunpack.c.l.b16 %v586
  %v619 = vunpack.c.l.b16 %v587
  %v620 = vunpack.c.l.b16 %v588
  %v621 = vunpack.c.l.b16 %v589
  %v622 = vunpack.c.l.b16 %v590
  %v623 = vunpack.c.l.b16 %v591
  %v624 = vunpack.c.l.b16 %v592
  %v625 = vunpack.c.l.b16 %v593
  %v626 = vunpack.c.l.b16 %v594
  %v627 = vunpack.c.l.b16 %v595
  %v628 = vpack.c.b16 %v612, %v612
  %v629 = vpack.c.b16 %v613, %v613
  %v630 = vpack.c.b16 %v614, %v614
  %v631 = vpack.c.b16 %v615, %v615
  %v632 = vpack.c.b16 %v616, %v616
  %v633 = vpack.c.b16 %v617, %v617
  %v634 = vpack.c.b16 %v618, %v618
  %v635 = vpack.c.b16 %v619, %v619
  %v636 = vpack.c.b16 %v620, %v620
  %v637 = vpack.c.b16 %v621, %v621
  %v638 = vpack.c.b16 %v622, %v622
  %v639 = vpack.c.b16 %v623, %v623
  %v640 = vpack.c.b16 %v624, %v624
  %v641 = vpack.c.b16 %v625, %v625
  %v642 = vpack.c.b16 %v626, %v626
  %v643 = vpack.c.b16 %v627, %v627
  %v645 = vshrl.u32 %v628, 16
  %v647 = vrot.slane %v645, 7
  %v648 = vshll.u32 %v628, 16
  %v650 = vor.u32 %v647, %v648
  %v651 = vrot.slane %v647, 4
  %v653 = vshrl.u32 %v629, 16
  %v655 = vrot.slane %v653, 7
  %v656 = vshll.u32 %v629, 16
  %v658 = vor.u32 %v655, %v656
  %v659 = vrot.slane %v655, 4
  %v661 = vshrl.u32 %v630, 16
  %v663 = vrot.slane %v661, 7
  %v664 = vshll.u32 %v630, 16
  %v666 = vor.u32 %v663, %v664
  %v667 = vrot.slane %v663, 4
  %v669 = vshrl.u32 %v631, 16
  %v671 = vrot.slane %v669, 7
  %v672 = vshll.u32 %v631, 16
  %v674 = vor.u32 %v671, %v672
  %v675 = vrot.slane %v671, 4
  %v677 = vshrl.u32 %v632, 16
  %v679 = vrot.slane %v677, 7
  %v680 = vshll.u32 %v632, 16
  %v682 = vor.u32 %v679, %v680
  %v683 = vrot.slane %v679, 4
  %v685 = vshrl.u32 %v633, 16
  %v687 = vrot.slane %v685, 7
  %v688 = vshll.u32 %v633, 16
  %v690 = vor.u32 %v687, %v688
  %v691 = vrot.slane %v687, 4
  %v693 = vshrl.u32 %v634, 16
  %v695 = vrot.slane %v693, 7
  %v696 = vshll.u32 %v634, 16
  %v698 = vor.u32 %v695, %v696
  %v699 = vrot.slane %v695, 4
  %v701 = vshrl.u32 %v635, 16
  %v703 = vrot.slane %v701, 7
  %v704 = vshll.u32 %v635, 16
  %v706 = vor.u32 %v703, %v704
  %v707 = vrot.slane %v703, 4
  %v709 = vshrl.u32 %v636, 16
  %v711 = vrot.slane %v709, 7
  %v712 = vshll.u32 %v636, 16
  %v714 = vor.u32 %v711, %v712
  %v715 = vrot.slane %v711, 4
  %v717 = vshrl.u32 %v637, 16
  %v719 = vrot.slane %v717, 7
  %v720 = vshll.u32 %v637, 16
  %v722 = vor.u32 %v719, %v720
  %v723 = vrot.slane %v719, 4
  %v725 = vshrl.u32 %v638, 16
  %v727 = vrot.slane %v725, 7
  %v728 = vshll.u32 %v638, 16
  %v730 = vor.u32 %v727, %v728
  %v731 = vrot.slane %v727, 4
  %v733 = vshrl.u32 %v639, 16
  %v735 = vrot.slane %v733, 7
  %v736 = vshll.u32 %v639, 16
  %v738 = vor.u32 %v735, %v736
  %v739 = vrot.slane %v735, 4
  %v741 = vshrl.u32 %v640, 16
  %v743 = vrot.slane %v741, 7
  %v744 = vshll.u32 %v640, 16
  %v746 = vor.u32 %v743, %v744
  %v747 = vrot.slane %v743, 4
  %v749 = vshrl.u32 %v641, 16
  %v751 = vrot.slane %v749, 7
  %v752 = vshll.u32 %v641, 16
  %v754 = vor.u32 %v751, %v752
  %v755 = vrot.slane %v751, 4
  %v757 = vshrl.u32 %v642, 16
  %v759 = vrot.slane %v757, 7
  %v760 = vshll.u32 %v642, 16
  %v762 = vor.u32 %v759, %v760
  %v763 = vrot.slane %v759, 4
  %v765 = vshrl.u32 %v643, 16
  %v767 = vrot.slane %v765, 7
  %v768 = vshll.u32 %v643, 16
  %v770 = vor.u32 %v767, %v768
  %v771 = vrot.slane %v767, 4
  %s804 = scalar_lea.vmem [#allocation2], 8
  %vm805 = vcmask 27648
  %vm806 = vsmask.f32 7938
  %vm807 = vmand %vm805, %vm806
  %v808 = vld [vmem:[%s804] sm:$0xf]
  %v809 = vsel %vm807, %v650, %v808
  %810 = vst [vmem:[%s804] sm:$0xf] %v809
  %vm811 = vcmask 24576
  %vm812 = vsmask.f32 256
  %vm813 = vmand %vm811, %vm812
  %v814 = vld [vmem:[%s804 + $0x4] sm:$0x1]
  %v815 = vsel %vm813, %v651, %v814
  %816 = vst [vmem:[%s804 + $0x4] sm:$0x1] %v815
  %v817 = vld [vmem:[%s804 + $0x8] sm:$0xf]
  %v818 = vsel %vm807, %v658, %v817
  %819 = vst [vmem:[%s804 + $0x8] sm:$0xf] %v818
  %v820 = vld [vmem:[%s804 + $0xc] sm:$0x1]
  %v821 = vsel %vm813, %v659, %v820
  %822 = vst [vmem:[%s804 + $0xc] sm:$0x1] %v821
  %v823 = vld [vmem:[%s804 + $0x10] sm:$0xf]
  %v824 = vsel %vm807, %v666, %v823
  %825 = vst [vmem:[%s804 + $0x10] sm:$0xf] %v824
  %v826 = vld [vmem:[%s804 + $0x14] sm:$0x1]
  %v827 = vsel %vm813, %v667, %v826
  %828 = vst [vmem:[%s804 + $0x14] sm:$0x1] %v827
  %v829 = vld [vmem:[%s804 + $0x18] sm:$0xf]
  %v830 = vsel %vm807, %v674, %v829
  %831 = vst [vmem:[%s804 + $0x18] sm:$0xf] %v830
  %v832 = vld [vmem:[%s804 + $0x1c] sm:$0x1]
  %v833 = vsel %vm813, %v675, %v832
  %834 = vst [vmem:[%s804 + $0x1c] sm:$0x1] %v833
  %v835 = vld [vmem:[%s804 + $0x20] sm:$0xf]
  %v836 = vsel %vm807, %v682, %v835
  %837 = vst [vmem:[%s804 + $0x20] sm:$0xf] %v836
  %v838 = vld [vmem:[%s804 + $0x24] sm:$0x1]
  %v839 = vsel %vm813, %v683, %v838
  %840 = vst [vmem:[%s804 + $0x24] sm:$0x1] %v839
  %v841 = vld [vmem:[%s804 + $0x28] sm:$0xf]
  %v842 = vsel %vm807, %v690, %v841
  %843 = vst [vmem:[%s804 + $0x28] sm:$0xf] %v842
  %v844 = vld [vmem:[%s804 + $0x2c] sm:$0x1]
  %v845 = vsel %vm813, %v691, %v844
  %846 = vst [vmem:[%s804 + $0x2c] sm:$0x1] %v845
  %v847 = vld [vmem:[%s804 + $0x30] sm:$0xf]
  %v848 = vsel %vm807, %v698, %v847
  %849 = vst [vmem:[%s804 + $0x30] sm:$0xf] %v848
  %v850 = vld [vmem:[%s804 + $0x34] sm:$0x1]
  %v851 = vsel %vm813, %v699, %v850
  %852 = vst [vmem:[%s804 + $0x34] sm:$0x1] %v851
  %v853 = vld [vmem:[%s804 + $0x38] sm:$0xf]
  %v854 = vsel %vm807, %v706, %v853
  %855 = vst [vmem:[%s804 + $0x38] sm:$0xf] %v854
  %v856 = vld [vmem:[%s804 + $0x3c] sm:$0x1]
  %v857 = vsel %vm813, %v707, %v856
  %858 = vst [vmem:[%s804 + $0x3c] sm:$0x1] %v857
  %v859 = vld [vmem:[%s804 + $0x48] sm:$0xf]
  %v860 = vsel %vm807, %v714, %v859
  %861 = vst [vmem:[%s804 + $0x48] sm:$0xf] %v860
  %v862 = vld [vmem:[%s804 + $0x4c] sm:$0x1]
  %v863 = vsel %vm813, %v715, %v862
  %864 = vst [vmem:[%s804 + $0x4c] sm:$0x1] %v863
  %v865 = vld [vmem:[%s804 + $0x50] sm:$0xf]
  %v866 = vsel %vm807, %v722, %v865
  %867 = vst [vmem:[%s804 + $0x50] sm:$0xf] %v866
  %v868 = vld [vmem:[%s804 + $0x54] sm:$0x1]
  %v869 = vsel %vm813, %v723, %v868
  %870 = vst [vmem:[%s804 + $0x54] sm:$0x1] %v869
  %v871 = vld [vmem:[%s804 + $0x58] sm:$0xf]
  %v872 = vsel %vm807, %v730, %v871
  %873 = vst [vmem:[%s804 + $0x58] sm:$0xf] %v872
  %v874 = vld [vmem:[%s804 + $0x5c] sm:$0x1]
  %v875 = vsel %vm813, %v731, %v874
  %876 = vst [vmem:[%s804 + $0x5c] sm:$0x1] %v875
  %v877 = vld [vmem:[%s804 + $0x60] sm:$0xf]
  %v878 = vsel %vm807, %v738, %v877
  %879 = vst [vmem:[%s804 + $0x60] sm:$0xf] %v878
  %v880 = vld [vmem:[%s804 + $0x64] sm:$0x1]
  %v881 = vsel %vm813, %v739, %v880
  %882 = vst [vmem:[%s804 + $0x64] sm:$0x1] %v881
  %v883 = vld [vmem:[%s804 + $0x68] sm:$0xf]
  %v884 = vsel %vm807, %v746, %v883
  %885 = vst [vmem:[%s804 + $0x68] sm:$0xf] %v884
  %v886 = vld [vmem:[%s804 + $0x6c] sm:$0x1]
  %v887 = vsel %vm813, %v747, %v886
  %888 = vst [vmem:[%s804 + $0x6c] sm:$0x1] %v887
  %v889 = vld [vmem:[%s804 + $0x70] sm:$0xf]
  %v890 = vsel %vm807, %v754, %v889
  %891 = vst [vmem:[%s804 + $0x70] sm:$0xf] %v890
  %v892 = vld [vmem:[%s804 + $0x74] sm:$0x1]
  %v893 = vsel %vm813, %v755, %v892
  %894 = vst [vmem:[%s804 + $0x74] sm:$0x1] %v893
  %v895 = vld [vmem:[%s804 + $0x78] sm:$0xf]
  %v896 = vsel %vm807, %v762, %v895
  %897 = vst [vmem:[%s804 + $0x78] sm:$0xf] %v896
  %v898 = vld [vmem:[%s804 + $0x7c] sm:$0x1]
  %v899 = vsel %vm813, %v763, %v898
  %900 = vst [vmem:[%s804 + $0x7c] sm:$0x1] %v899
  %v901 = vld [vmem:[%s804 + $0x80] sm:$0xf]
  %v902 = vsel %vm807, %v770, %v901
  %903 = vst [vmem:[%s804 + $0x80] sm:$0xf] %v902
  %v904 = vld [vmem:[%s804 + $0x84] sm:$0x1]
  %v905 = vsel %vm813, %v771, %v904
  %906 = vst [vmem:[%s804 + $0x84] sm:$0x1] %v905
  %v907 = vpack.c.bf16 %v484, %v484
  %v908 = vpack.c.bf16 %v485, %v485
  %v909 = vpack.c.bf16 %v486, %v486
  %v910 = vpack.c.bf16 %v487, %v487
  %v911 = vpack.c.bf16 %v488, %v488
  %v912 = vpack.c.bf16 %v489, %v489
  %v913 = vpack.c.bf16 %v490, %v490
  %v914 = vpack.c.bf16 %v491, %v491
  %v915 = vpack.c.bf16 %v492, %v492
  %v916 = vpack.c.bf16 %v493, %v493
  %v917 = vpack.c.bf16 %v494, %v494
  %v918 = vpack.c.bf16 %v495, %v495
  %v919 = vpack.c.bf16 %v496, %v496
  %v920 = vpack.c.bf16 %v497, %v497
  %v921 = vpack.c.bf16 %v498, %v498
  %v922 = vpack.c.bf16 %v499, %v499
  %s923 = scalar_lea.vmem [#allocation3], 4
  %vm924 = vcmask 27648
  %925 = vst.msk [vmem:[%s923] sm:$0xf] %vm924, %v907
  %926 = vst.msk [vmem:[%s923 + $0x4] sm:$0xf] %vm924, %v908
  %927 = vst.msk [vmem:[%s923 + $0x8] sm:$0xf] %vm924, %v909
  %928 = vst.msk [vmem:[%s923 + $0xc] sm:$0xf] %vm924, %v910
  %929 = vst.msk [vmem:[%s923 + $0x10] sm:$0xf] %vm924, %v911
  %930 = vst.msk [vmem:[%s923 + $0x14] sm:$0xf] %vm924, %v912
  %931 = vst.msk [vmem:[%s923 + $0x18] sm:$0xf] %vm924, %v913
  %932 = vst.msk [vmem:[%s923 + $0x1c] sm:$0xf] %vm924, %v914
  %933 = vst.msk [vmem:[%s923 + $0x24] sm:$0xf] %vm924, %v915
  %934 = vst.msk [vmem:[%s923 + $0x28] sm:$0xf] %vm924, %v916
  %935 = vst.msk [vmem:[%s923 + $0x2c] sm:$0xf] %vm924, %v917
  %936 = vst.msk [vmem:[%s923 + $0x30] sm:$0xf] %vm924, %v918
  %937 = vst.msk [vmem:[%s923 + $0x34] sm:$0xf] %vm924, %v919
  %938 = vst.msk [vmem:[%s923 + $0x38] sm:$0xf] %vm924, %v920
  %939 = vst.msk [vmem:[%s923 + $0x3c] sm:$0xf] %vm924, %v921
  %940 = vst.msk [vmem:[%s923 + $0x40] sm:$0xf] %vm924, %v922
  %v941 = vpack.c.bf16 %v420, %v420
  %v942 = vpack.c.bf16 %v421, %v421
  %v943 = vpack.c.bf16 %v422, %v422
  %v944 = vpack.c.bf16 %v423, %v423
  %v945 = vpack.c.bf16 %v424, %v424
  %v946 = vpack.c.bf16 %v425, %v425
  %v947 = vpack.c.bf16 %v426, %v426
  %v948 = vpack.c.bf16 %v427, %v427
  %v949 = vpack.c.bf16 %v428, %v428
  %v950 = vpack.c.bf16 %v429, %v429
  %v951 = vpack.c.bf16 %v430, %v430
  %v952 = vpack.c.bf16 %v431, %v431
  %v953 = vpack.c.bf16 %v432, %v432
  %v954 = vpack.c.bf16 %v433, %v433
  %v955 = vpack.c.bf16 %v434, %v434
  %v956 = vpack.c.bf16 %v435, %v435
  %v973 = vunpack.c.l.b16 %v941
  %v974 = vunpack.c.l.b16 %v942
  %v975 = vunpack.c.l.b16 %v943
  %v976 = vunpack.c.l.b16 %v944
  %v977 = vunpack.c.l.b16 %v945
  %v978 = vunpack.c.l.b16 %v946
  %v979 = vunpack.c.l.b16 %v947
  %v980 = vunpack.c.l.b16 %v948
  %v981 = vunpack.c.l.b16 %v949
  %v982 = vunpack.c.l.b16 %v950
  %v983 = vunpack.c.l.b16 %v951
  %v984 = vunpack.c.l.b16 %v952
  %v985 = vunpack.c.l.b16 %v953
  %v986 = vunpack.c.l.b16 %v954
  %v987 = vunpack.c.l.b16 %v955
  %v988 = vunpack.c.l.b16 %v956
  %v989 = vpack.c.b16 %v973, %v973
  %v990 = vpack.c.b16 %v974, %v974
  %v991 = vpack.c.b16 %v975, %v975
  %v992 = vpack.c.b16 %v976, %v976
  %v993 = vpack.c.b16 %v977, %v977
  %v994 = vpack.c.b16 %v978, %v978
  %v995 = vpack.c.b16 %v979, %v979
  %v996 = vpack.c.b16 %v980, %v980
  %v997 = vpack.c.b16 %v981, %v981
  %v998 = vpack.c.b16 %v982, %v982
  %v999 = vpack.c.b16 %v983, %v983
  %v1000 = vpack.c.b16 %v984, %v984
  %v1001 = vpack.c.b16 %v985, %v985
  %v1002 = vpack.c.b16 %v986, %v986
  %v1003 = vpack.c.b16 %v987, %v987
  %v1004 = vpack.c.b16 %v988, %v988
  %v1006 = vshrl.u32 %v989, 16
  %v1008 = vrot.slane %v1006, 7
  %v1009 = vshll.u32 %v989, 16
  %v1011 = vor.u32 %v1008, %v1009
  %v1012 = vrot.slane %v1008, 4
  %v1014 = vshrl.u32 %v990, 16
  %v1016 = vrot.slane %v1014, 7
  %v1017 = vshll.u32 %v990, 16
  %v1019 = vor.u32 %v1016, %v1017
  %v1020 = vrot.slane %v1016, 4
  %v1022 = vshrl.u32 %v991, 16
  %v1024 = vrot.slane %v1022, 7
  %v1025 = vshll.u32 %v991, 16
  %v1027 = vor.u32 %v1024, %v1025
  %v1028 = vrot.slane %v1024, 4
  %v1030 = vshrl.u32 %v992, 16
  %v1032 = vrot.slane %v1030, 7
  %v1033 = vshll.u32 %v992, 16
  %v1035 = vor.u32 %v1032, %v1033
  %v1036 = vrot.slane %v1032, 4
  %v1038 = vshrl.u32 %v993, 16
  %v1040 = vrot.slane %v1038, 7
  %v1041 = vshll.u32 %v993, 16
  %v1043 = vor.u32 %v1040, %v1041
  %v1044 = vrot.slane %v1040, 4
  %v1046 = vshrl.u32 %v994, 16
  %v1048 = vrot.slane %v1046, 7
  %v1049 = vshll.u32 %v994, 16
  %v1051 = vor.u32 %v1048, %v1049
  %v1052 = vrot.slane %v1048, 4
  %v1054 = vshrl.u32 %v995, 16
  %v1056 = vrot.slane %v1054, 7
  %v1057 = vshll.u32 %v995, 16
  %v1059 = vor.u32 %v1056, %v1057
  %v1060 = vrot.slane %v1056, 4
  %v1062 = vshrl.u32 %v996, 16
  %v1064 = vrot.slane %v1062, 7
  %v1065 = vshll.u32 %v996, 16
  %v1067 = vor.u32 %v1064, %v1065
  %v1068 = vrot.slane %v1064, 4
  %v1070 = vshrl.u32 %v997, 16
  %v1072 = vrot.slane %v1070, 7
  %v1073 = vshll.u32 %v997, 16
  %v1075 = vor.u32 %v1072, %v1073
  %v1076 = vrot.slane %v1072, 4
  %v1078 = vshrl.u32 %v998, 16
  %v1080 = vrot.slane %v1078, 7
  %v1081 = vshll.u32 %v998, 16
  %v1083 = vor.u32 %v1080, %v1081
  %v1084 = vrot.slane %v1080, 4
  %v1086 = vshrl.u32 %v999, 16
  %v1088 = vrot.slane %v1086, 7
  %v1089 = vshll.u32 %v999, 16
  %v1091 = vor.u32 %v1088, %v1089
  %v1092 = vrot.slane %v1088, 4
  %v1094 = vshrl.u32 %v1000, 16
  %v1096 = vrot.slane %v1094, 7
  %v1097 = vshll.u32 %v1000, 16
  %v1099 = vor.u32 %v1096, %v1097
  %v1100 = vrot.slane %v1096, 4
  %v1102 = vshrl.u32 %v1001, 16
  %v1104 = vrot.slane %v1102, 7
  %v1105 = vshll.u32 %v1001, 16
  %v1107 = vor.u32 %v1104, %v1105
  %v1108 = vrot.slane %v1104, 4
  %v1110 = vshrl.u32 %v1002, 16
  %v1112 = vrot.slane %v1110, 7
  %v1113 = vshll.u32 %v1002, 16
  %v1115 = vor.u32 %v1112, %v1113
  %v1116 = vrot.slane %v1112, 4
  %v1118 = vshrl.u32 %v1003, 16
  %v1120 = vrot.slane %v1118, 7
  %v1121 = vshll.u32 %v1003, 16
  %v1123 = vor.u32 %v1120, %v1121
  %v1124 = vrot.slane %v1120, 4
  %v1126 = vshrl.u32 %v1004, 16
  %v1128 = vrot.slane %v1126, 7
  %v1129 = vshll.u32 %v1004, 16
  %v1131 = vor.u32 %v1128, %v1129
  %v1132 = vrot.slane %v1128, 4
  %v1165 = vld [vmem:[#allocation4] sm:$0xf]
  %v1166 = vsel %vm807, %v1011, %v1165
  %1167 = vst [vmem:[#allocation4] sm:$0xf] %v1166
  %v1168 = vld [vmem:[#allocation4 + $0x4] sm:$0x1]
  %v1169 = vsel %vm813, %v1012, %v1168
  %1170 = vst [vmem:[#allocation4 + $0x4] sm:$0x1] %v1169
  %v1171 = vld [vmem:[#allocation4 + $0x8] sm:$0xf]
  %v1172 = vsel %vm807, %v1019, %v1171
  %1173 = vst [vmem:[#allocation4 + $0x8] sm:$0xf] %v1172
  %v1174 = vld [vmem:[#allocation4 + $0xc] sm:$0x1]
  %v1175 = vsel %vm813, %v1020, %v1174
  %1176 = vst [vmem:[#allocation4 + $0xc] sm:$0x1] %v1175
  %v1177 = vld [vmem:[#allocation4 + $0x10] sm:$0xf]
  %v1178 = vsel %vm807, %v1027, %v1177
  %1179 = vst [vmem:[#allocation4 + $0x10] sm:$0xf] %v1178
  %v1180 = vld [vmem:[#allocation4 + $0x14] sm:$0x1]
  %v1181 = vsel %vm813, %v1028, %v1180
  %1182 = vst [vmem:[#allocation4 + $0x14] sm:$0x1] %v1181
  %v1183 = vld [vmem:[#allocation4 + $0x18] sm:$0xf]
  %v1184 = vsel %vm807, %v1035, %v1183
  %1185 = vst [vmem:[#allocation4 + $0x18] sm:$0xf] %v1184
  %v1186 = vld [vmem:[#allocation4 + $0x1c] sm:$0x1]
  %v1187 = vsel %vm813, %v1036, %v1186
  %1188 = vst [vmem:[#allocation4 + $0x1c] sm:$0x1] %v1187
  %v1189 = vld [vmem:[#allocation4 + $0x20] sm:$0xf]
  %v1190 = vsel %vm807, %v1043, %v1189
  %1191 = vst [vmem:[#allocation4 + $0x20] sm:$0xf] %v1190
  %v1192 = vld [vmem:[#allocation4 + $0x24] sm:$0x1]
  %v1193 = vsel %vm813, %v1044, %v1192
  %1194 = vst [vmem:[#allocation4 + $0x24] sm:$0x1] %v1193
  %v1195 = vld [vmem:[#allocation4 + $0x28] sm:$0xf]
  %v1196 = vsel %vm807, %v1051, %v1195
  %1197 = vst [vmem:[#allocation4 + $0x28] sm:$0xf] %v1196
  %v1198 = vld [vmem:[#allocation4 + $0x2c] sm:$0x1]
  %v1199 = vsel %vm813, %v1052, %v1198
  %1200 = vst [vmem:[#allocation4 + $0x2c] sm:$0x1] %v1199
  %v1201 = vld [vmem:[#allocation4 + $0x30] sm:$0xf]
  %v1202 = vsel %vm807, %v1059, %v1201
  %1203 = vst [vmem:[#allocation4 + $0x30] sm:$0xf] %v1202
  %v1204 = vld [vmem:[#allocation4 + $0x34] sm:$0x1]
  %v1205 = vsel %vm813, %v1060, %v1204
  %1206 = vst [vmem:[#allocation4 + $0x34] sm:$0x1] %v1205
  %v1207 = vld [vmem:[#allocation4 + $0x38] sm:$0xf]
  %v1208 = vsel %vm807, %v1067, %v1207
  %1209 = vst [vmem:[#allocation4 + $0x38] sm:$0xf] %v1208
  %v1210 = vld [vmem:[#allocation4 + $0x3c] sm:$0x1]
  %v1211 = vsel %vm813, %v1068, %v1210
  %1212 = vst [vmem:[#allocation4 + $0x3c] sm:$0x1] %v1211
  %v1213 = vld [vmem:[#allocation4 + $0x40] sm:$0xf]
  %v1214 = vsel %vm807, %v1075, %v1213
  %1215 = vst [vmem:[#allocation4 + $0x40] sm:$0xf] %v1214
  %v1216 = vld [vmem:[#allocation4 + $0x44] sm:$0x1]
  %v1217 = vsel %vm813, %v1076, %v1216
  %1218 = vst [vmem:[#allocation4 + $0x44] sm:$0x1] %v1217
  %v1219 = vld [vmem:[#allocation4 + $0x48] sm:$0xf]
  %v1220 = vsel %vm807, %v1083, %v1219
  %1221 = vst [vmem:[#allocation4 + $0x48] sm:$0xf] %v1220
  %v1222 = vld [vmem:[#allocation4 + $0x4c] sm:$0x1]
  %v1223 = vsel %vm813, %v1084, %v1222
  %1224 = vst [vmem:[#allocation4 + $0x4c] sm:$0x1] %v1223
  %v1225 = vld [vmem:[#allocation4 + $0x50] sm:$0xf]
  %v1226 = vsel %vm807, %v1091, %v1225
  %1227 = vst [vmem:[#allocation4 + $0x50] sm:$0xf] %v1226
  %v1228 = vld [vmem:[#allocation4 + $0x54] sm:$0x1]
  %v1229 = vsel %vm813, %v1092, %v1228
  %1230 = vst [vmem:[#allocation4 + $0x54] sm:$0x1] %v1229
  %v1231 = vld [vmem:[#allocation4 + $0x58] sm:$0xf]
  %v1232 = vsel %vm807, %v1099, %v1231
  %1233 = vst [vmem:[#allocation4 + $0x58] sm:$0xf] %v1232
  %v1234 = vld [vmem:[#allocation4 + $0x5c] sm:$0x1]
  %v1235 = vsel %vm813, %v1100, %v1234
  %1236 = vst [vmem:[#allocation4 + $0x5c] sm:$0x1] %v1235
  %v1237 = vld [vmem:[#allocation4 + $0x60] sm:$0xf]
  %v1238 = vsel %vm807, %v1107, %v1237
  %1239 = vst [vmem:[#allocation4 + $0x60] sm:$0xf] %v1238
  %v1240 = vld [vmem:[#allocation4 + $0x64] sm:$0x1]
  %v1241 = vsel %vm813, %v1108, %v1240
  %1242 = vst [vmem:[#allocation4 + $0x64] sm:$0x1] %v1241
  %v1243 = vld [vmem:[#allocation4 + $0x68] sm:$0xf]
  %v1244 = vsel %vm807, %v1115, %v1243
  %1245 = vst [vmem:[#allocation4 + $0x68] sm:$0xf] %v1244
  %v1246 = vld [vmem:[#allocation4 + $0x6c] sm:$0x1]
  %v1247 = vsel %vm813, %v1116, %v1246
  %1248 = vst [vmem:[#allocation4 + $0x6c] sm:$0x1] %v1247
  %v1249 = vld [vmem:[#allocation4 + $0x70] sm:$0xf]
  %v1250 = vsel %vm807, %v1123, %v1249
  %1251 = vst [vmem:[#allocation4 + $0x70] sm:$0xf] %v1250
  %v1252 = vld [vmem:[#allocation4 + $0x74] sm:$0x1]
  %v1253 = vsel %vm813, %v1124, %v1252
  %1254 = vst [vmem:[#allocation4 + $0x74] sm:$0x1] %v1253
  %v1255 = vld [vmem:[#allocation4 + $0x78] sm:$0xf]
  %v1256 = vsel %vm807, %v1131, %v1255
  %1257 = vst [vmem:[#allocation4 + $0x78] sm:$0xf] %v1256
  %v1258 = vld [vmem:[#allocation4 + $0x7c] sm:$0x1]
  %v1259 = vsel %vm813, %v1132, %v1258
  %1260 = vst [vmem:[#allocation4 + $0x7c] sm:$0x1] %v1259
  %v1261 = vld [vmem:[#allocation2] sm:$0xf]
  %v1262 = vld [vmem:[#allocation2 + $0x8] sm:$0xf]
  %v1263 = vld [vmem:[#allocation2 + $0x10] sm:$0xf]
  %v1264 = vld [vmem:[#allocation2 + $0x18] sm:$0xf]
  %v1265 = vld [vmem:[#allocation2 + $0x20] sm:$0xf]
  %v1266 = vld [vmem:[#allocation2 + $0x28] sm:$0xf]
  %v1267 = vld [vmem:[#allocation2 + $0x30] sm:$0xf]
  %v1268 = vld [vmem:[#allocation2 + $0x38] sm:$0xf]
  %v1269 = vld [vmem:[#allocation2 + $0x48] sm:$0xf]
  %v1270 = vld [vmem:[#allocation2 + $0x50] sm:$0xf]
  %v1271 = vld [vmem:[#allocation2 + $0x58] sm:$0xf]
  %v1272 = vld [vmem:[#allocation2 + $0x60] sm:$0xf]
  %v1273 = vld [vmem:[#allocation2 + $0x68] sm:$0xf]
  %v1274 = vld [vmem:[#allocation2 + $0x70] sm:$0xf]
  %v1275 = vld [vmem:[#allocation2 + $0x78] sm:$0xf]
  %v1276 = vld [vmem:[#allocation2 + $0x80] sm:$0xf]
  %v1277 = vld [vmem:[#allocation3] sm:$0xf]
  %v1278 = vld [vmem:[#allocation3 + $0x4] sm:$0xf]
  %v1279 = vld [vmem:[#allocation3 + $0x8] sm:$0xf]
  %v1280 = vld [vmem:[#allocation3 + $0xc] sm:$0xf]
  %v1281 = vld [vmem:[#allocation3 + $0x10] sm:$0xf]
  %v1282 = vld [vmem:[#allocation3 + $0x14] sm:$0xf]
  %v1283 = vld [vmem:[#allocation3 + $0x18] sm:$0xf]
  %v1284 = vld [vmem:[#allocation3 + $0x1c] sm:$0xf]
  %v1285 = vld [vmem:[#allocation3 + $0x24] sm:$0xf]
  %v1286 = vld [vmem:[#allocation3 + $0x28] sm:$0xf]
  %v1287 = vld [vmem:[#allocation3 + $0x2c] sm:$0xf]
  %v1288 = vld [vmem:[#allocation3 + $0x30] sm:$0xf]
  %v1289 = vld [vmem:[#allocation3 + $0x34] sm:$0xf]
  %v1290 = vld [vmem:[#allocation3 + $0x38] sm:$0xf]
  %v1291 = vld [vmem:[#allocation3 + $0x3c] sm:$0xf]
  %v1292 = vld [vmem:[#allocation3 + $0x40] sm:$0xf]
  %v1293 = vld [vmem:[#allocation2 + $0x4] sm:$0x1]
  %v1294 = vld [vmem:[#allocation2 + $0xc] sm:$0x1]
  %v1295 = vld [vmem:[#allocation2 + $0x14] sm:$0x1]
  %v1296 = vld [vmem:[#allocation2 + $0x1c] sm:$0x1]
  %v1297 = vld [vmem:[#allocation2 + $0x24] sm:$0x1]
  %v1298 = vld [vmem:[#allocation2 + $0x2c] sm:$0x1]
  %v1299 = vld [vmem:[#allocation2 + $0x34] sm:$0x1]
  %v1300 = vld [vmem:[#allocation2 + $0x3c] sm:$0x1]
  %v1301 = vld [vmem:[#allocation2 + $0x4c] sm:$0x1]
  %v1302 = vld [vmem:[#allocation2 + $0x54] sm:$0x1]
  %v1303 = vld [vmem:[#allocation2 + $0x5c] sm:$0x1]
  %v1304 = vld [vmem:[#allocation2 + $0x64] sm:$0x1]
  %v1305 = vld [vmem:[#allocation2 + $0x6c] sm:$0x1]
  %v1306 = vld [vmem:[#allocation2 + $0x74] sm:$0x1]
  %v1307 = vld [vmem:[#allocation2 + $0x7c] sm:$0x1]
  %v1308 = vld [vmem:[#allocation2 + $0x84] sm:$0x1]
  %v1309 = vld [vmem:[#allocation4] sm:$0xf]
  %v1310 = vld [vmem:[#allocation4 + $0x8] sm:$0xf]
  %v1311 = vld [vmem:[#allocation4 + $0x10] sm:$0xf]
  %v1312 = vld [vmem:[#allocation4 + $0x18] sm:$0xf]
  %v1313 = vld [vmem:[#allocation4 + $0x20] sm:$0xf]
  %v1314 = vld [vmem:[#allocation4 + $0x28] sm:$0xf]
  %v1315 = vld [vmem:[#allocation4 + $0x30] sm:$0xf]
  %v1316 = vld [vmem:[#allocation4 + $0x38] sm:$0xf]
  %v1317 = vld [vmem:[#allocation4 + $0x40] sm:$0xf]
  %v1318 = vld [vmem:[#allocation4 + $0x48] sm:$0xf]
  %v1319 = vld [vmem:[#allocation4 + $0x50] sm:$0xf]
  %v1320 = vld [vmem:[#allocation4 + $0x58] sm:$0xf]
  %v1321 = vld [vmem:[#allocation4 + $0x60] sm:$0xf]
  %v1322 = vld [vmem:[#allocation4 + $0x68] sm:$0xf]
  %v1323 = vld [vmem:[#allocation4 + $0x70] sm:$0xf]
  %v1324 = vld [vmem:[#allocation4 + $0x78] sm:$0xf]
  %v1325 = vld [vmem:[#allocation4 + $0x4] sm:$0x1]
  %v1326 = vld [vmem:[#allocation4 + $0xc] sm:$0x1]
  %v1327 = vld [vmem:[#allocation4 + $0x14] sm:$0x1]
  %v1328 = vld [vmem:[#allocation4 + $0x1c] sm:$0x1]
  %v1329 = vld [vmem:[#allocation4 + $0x24] sm:$0x1]
  %v1330 = vld [vmem:[#allocation4 + $0x2c] sm:$0x1]
  %v1331 = vld [vmem:[#allocation4 + $0x34] sm:$0x1]
  %v1332 = vld [vmem:[#allocation4 + $0x3c] sm:$0x1]
  %v1333 = vld [vmem:[#allocation4 + $0x44] sm:$0x1]
  %v1334 = vld [vmem:[#allocation4 + $0x4c] sm:$0x1]
  %v1335 = vld [vmem:[#allocation4 + $0x54] sm:$0x1]
  %v1336 = vld [vmem:[#allocation4 + $0x5c] sm:$0x1]
  %v1337 = vld [vmem:[#allocation4 + $0x64] sm:$0x1]
  %v1338 = vld [vmem:[#allocation4 + $0x6c] sm:$0x1]
  %v1339 = vld [vmem:[#allocation4 + $0x74] sm:$0x1]
  %v1340 = vld [vmem:[#allocation4 + $0x7c] sm:$0x1]
  %v1341 = vld [vmem:[%s804] sm:$0xf]
  %v1342 = vld [vmem:[%s804 + $0x8] sm:$0xf]
  %v1343 = vld [vmem:[%s804 + $0x10] sm:$0xf]
  %v1344 = vld [vmem:[%s804 + $0x18] sm:$0xf]
  %v1345 = vld [vmem:[%s804 + $0x20] sm:$0xf]
  %v1346 = vld [vmem:[%s804 + $0x28] sm:$0xf]
  %v1347 = vld [vmem:[%s804 + $0x30] sm:$0xf]
  %v1348 = vld [vmem:[%s804 + $0x38] sm:$0xf]
  %v1349 = vld [vmem:[%s804 + $0x48] sm:$0xf]
  %v1350 = vld [vmem:[%s804 + $0x50] sm:$0xf]
  %v1351 = vld [vmem:[%s804 + $0x58] sm:$0xf]
  %v1352 = vld [vmem:[%s804 + $0x60] sm:$0xf]
  %v1353 = vld [vmem:[%s804 + $0x68] sm:$0xf]
  %v1354 = vld [vmem:[%s804 + $0x70] sm:$0xf]
  %v1355 = vld [vmem:[%s804 + $0x78] sm:$0xf]
  %v1356 = vld [vmem:[%s804 + $0x80] sm:$0xf]
  %v1357 = vld [vmem:[%s923] sm:$0xf]
  %v1358 = vld [vmem:[%s923 + $0x4] sm:$0xf]
  %v1359 = vld [vmem:[%s923 + $0x8] sm:$0xf]
  %v1360 = vld [vmem:[%s923 + $0xc] sm:$0xf]
  %v1361 = vld [vmem:[%s923 + $0x10] sm:$0xf]
  %v1362 = vld [vmem:[%s923 + $0x14] sm:$0xf]
  %v1363 = vld [vmem:[%s923 + $0x18] sm:$0xf]
  %v1364 = vld [vmem:[%s923 + $0x1c] sm:$0xf]
  %v1365 = vld [vmem:[%s923 + $0x24] sm:$0xf]
  %v1366 = vld [vmem:[%s923 + $0x28] sm:$0xf]
  %v1367 = vld [vmem:[%s923 + $0x2c] sm:$0xf]
  %v1368 = vld [vmem:[%s923 + $0x30] sm:$0xf]
  %v1369 = vld [vmem:[%s923 + $0x34] sm:$0xf]
  %v1370 = vld [vmem:[%s923 + $0x38] sm:$0xf]
  %v1371 = vld [vmem:[%s923 + $0x3c] sm:$0xf]
  %v1372 = vld [vmem:[%s923 + $0x40] sm:$0xf]
  %v1373 = vld [vmem:[%s804 + $0x4] sm:$0x1]
  %v1374 = vld [vmem:[%s804 + $0xc] sm:$0x1]
  %v1375 = vld [vmem:[%s804 + $0x14] sm:$0x1]
  %v1376 = vld [vmem:[%s804 + $0x1c] sm:$0x1]
  %v1377 = vld [vmem:[%s804 + $0x24] sm:$0x1]
  %v1378 = vld [vmem:[%s804 + $0x2c] sm:$0x1]
  %v1379 = vld [vmem:[%s804 + $0x34] sm:$0x1]
  %v1380 = vld [vmem:[%s804 + $0x3c] sm:$0x1]
  %v1381 = vld [vmem:[%s804 + $0x4c] sm:$0x1]
  %v1382 = vld [vmem:[%s804 + $0x54] sm:$0x1]
  %v1383 = vld [vmem:[%s804 + $0x5c] sm:$0x1]
  %v1384 = vld [vmem:[%s804 + $0x64] sm:$0x1]
  %v1385 = vld [vmem:[%s804 + $0x6c] sm:$0x1]
  %v1386 = vld [vmem:[%s804 + $0x74] sm:$0x1]
  %v1387 = vld [vmem:[%s804 + $0x7c] sm:$0x1]
  %v1388 = vld [vmem:[%s804 + $0x84] sm:$0x1]
  %vm1389 = vsmask.f32 3328
  %vm1390 = vsmask.f32 7440
  %vm1391 = vmor %vm1389, %vm1390
  %v1393 = vshrl.u32 %v1261, 16
  %v1395 = vrot.slane %v1393, 4
  %v1396 = vshll.u32 %v1261, 16
  %v1398 = vrot.slane %v1396, 5
  %v1399 = vor.u32 %v1395, %v1398
  %v1400 = vrot.slane %v1399, 4
  %v1402 = vshll.u32 %v1293, 16
  %v1404 = vrot.slane %v1402, 5
  %v1405 = vsel %vm1391, %v1400, %v1404
  %v1407 = vshrl.u32 %v1262, 16
  %v1409 = vrot.slane %v1407, 4
  %v1410 = vshll.u32 %v1262, 16
  %v1412 = vrot.slane %v1410, 5
  %v1413 = vor.u32 %v1409, %v1412
  %v1414 = vrot.slane %v1413, 4
  %v1416 = vshll.u32 %v1294, 16
  %v1418 = vrot.slane %v1416, 5
  %v1419 = vsel %vm1391, %v1414, %v1418
  %v1421 = vshrl.u32 %v1263, 16
  %v1423 = vrot.slane %v1421, 4
  %v1424 = vshll.u32 %v1263, 16
  %v1426 = vrot.slane %v1424, 5
  %v1427 = vor.u32 %v1423, %v1426
  %v1428 = vrot.slane %v1427, 4
  %v1430 = vshll.u32 %v1295, 16
  %v1432 = vrot.slane %v1430, 5
  %v1433 = vsel %vm1391, %v1428, %v1432
  %v1435 = vshrl.u32 %v1264, 16
  %v1437 = vrot.slane %v1435, 4
  %v1438 = vshll.u32 %v1264, 16
  %v1440 = vrot.slane %v1438, 5
  %v1441 = vor.u32 %v1437, %v1440
  %v1442 = vrot.slane %v1441, 4
  %v1444 = vshll.u32 %v1296, 16
  %v1446 = vrot.slane %v1444, 5
  %v1447 = vsel %vm1391, %v1442, %v1446
  %v1449 = vshrl.u32 %v1265, 16
  %v1451 = vrot.slane %v1449, 4
  %v1452 = vshll.u32 %v1265, 16
  %v1454 = vrot.slane %v1452, 5
  %v1455 = vor.u32 %v1451, %v1454
  %v1456 = vrot.slane %v1455, 4
  %v1458 = vshll.u32 %v1297, 16
  %v1460 = vrot.slane %v1458, 5
  %v1461 = vsel %vm1391, %v1456, %v1460
  %v1463 = vshrl.u32 %v1266, 16
  %v1465 = vrot.slane %v1463, 4
  %v1466 = vshll.u32 %v1266, 16
  %v1468 = vrot.slane %v1466, 5
  %v1469 = vor.u32 %v1465, %v1468
  %v1470 = vrot.slane %v1469, 4
  %v1472 = vshll.u32 %v1298, 16
  %v1474 = vrot.slane %v1472, 5
  %v1475 = vsel %vm1391, %v1470, %v1474
  %v1477 = vshrl.u32 %v1267, 16
  %v1479 = vrot.slane %v1477, 4
  %v1480 = vshll.u32 %v1267, 16
  %v1482 = vrot.slane %v1480, 5
  %v1483 = vor.u32 %v1479, %v1482
  %v1484 = vrot.slane %v1483, 4
  %v1486 = vshll.u32 %v1299, 16
  %v1488 = vrot.slane %v1486, 5
  %v1489 = vsel %vm1391, %v1484, %v1488
  %v1491 = vshrl.u32 %v1268, 16
  %v1493 = vrot.slane %v1491, 4
  %v1494 = vshll.u32 %v1268, 16
  %v1496 = vrot.slane %v1494, 5
  %v1497 = vor.u32 %v1493, %v1496
  %v1498 = vrot.slane %v1497, 4
  %v1500 = vshll.u32 %v1300, 16
  %v1502 = vrot.slane %v1500, 5
  %v1503 = vsel %vm1391, %v1498, %v1502
  %v1505 = vshrl.u32 %v1269, 16
  %v1507 = vrot.slane %v1505, 4
  %v1508 = vshll.u32 %v1269, 16
  %v1510 = vrot.slane %v1508, 5
  %v1511 = vor.u32 %v1507, %v1510
  %v1512 = vrot.slane %v1511, 4
  %v1514 = vshll.u32 %v1301, 16
  %v1516 = vrot.slane %v1514, 5
  %v1517 = vsel %vm1391, %v1512, %v1516
  %v1519 = vshrl.u32 %v1270, 16
  %v1521 = vrot.slane %v1519, 4
  %v1522 = vshll.u32 %v1270, 16
  %v1524 = vrot.slane %v1522, 5
  %v1525 = vor.u32 %v1521, %v1524
  %v1526 = vrot.slane %v1525, 4
  %v1528 = vshll.u32 %v1302, 16
  %v1530 = vrot.slane %v1528, 5
  %v1531 = vsel %vm1391, %v1526, %v1530
  %v1533 = vshrl.u32 %v1271, 16
  %v1535 = vrot.slane %v1533, 4
  %v1536 = vshll.u32 %v1271, 16
  %v1538 = vrot.slane %v1536, 5
  %v1539 = vor.u32 %v1535, %v1538
  %v1540 = vrot.slane %v1539, 4
  %v1542 = vshll.u32 %v1303, 16
  %v1544 = vrot.slane %v1542, 5
  %v1545 = vsel %vm1391, %v1540, %v1544
  %v1547 = vshrl.u32 %v1272, 16
  %v1549 = vrot.slane %v1547, 4
  %v1550 = vshll.u32 %v1272, 16
  %v1552 = vrot.slane %v1550, 5
  %v1553 = vor.u32 %v1549, %v1552
  %v1554 = vrot.slane %v1553, 4
  %v1556 = vshll.u32 %v1304, 16
  %v1558 = vrot.slane %v1556, 5
  %v1559 = vsel %vm1391, %v1554, %v1558
  %v1561 = vshrl.u32 %v1273, 16
  %v1563 = vrot.slane %v1561, 4
  %v1564 = vshll.u32 %v1273, 16
  %v1566 = vrot.slane %v1564, 5
  %v1567 = vor.u32 %v1563, %v1566
  %v1568 = vrot.slane %v1567, 4
  %v1570 = vshll.u32 %v1305, 16
  %v1572 = vrot.slane %v1570, 5
  %v1573 = vsel %vm1391, %v1568, %v1572
  %v1575 = vshrl.u32 %v1274, 16
  %v1577 = vrot.slane %v1575, 4
  %v1578 = vshll.u32 %v1274, 16
  %v1580 = vrot.slane %v1578, 5
  %v1581 = vor.u32 %v1577, %v1580
  %v1582 = vrot.slane %v1581, 4
  %v1584 = vshll.u32 %v1306, 16
  %v1586 = vrot.slane %v1584, 5
  %v1587 = vsel %vm1391, %v1582, %v1586
  %v1589 = vshrl.u32 %v1275, 16
  %v1591 = vrot.slane %v1589, 4
  %v1592 = vshll.u32 %v1275, 16
  %v1594 = vrot.slane %v1592, 5
  %v1595 = vor.u32 %v1591, %v1594
  %v1596 = vrot.slane %v1595, 4
  %v1598 = vshll.u32 %v1307, 16
  %v1600 = vrot.slane %v1598, 5
  %v1601 = vsel %vm1391, %v1596, %v1600
  %v1603 = vshrl.u32 %v1276, 16
  %v1605 = vrot.slane %v1603, 4
  %v1606 = vshll.u32 %v1276, 16
  %v1608 = vrot.slane %v1606, 5
  %v1609 = vor.u32 %v1605, %v1608
  %v1610 = vrot.slane %v1609, 4
  %v1612 = vshll.u32 %v1308, 16
  %v1614 = vrot.slane %v1612, 5
  %v1615 = vsel %vm1391, %v1610, %v1614
  %v1617 = vshrl.u32 %v1309, 16
  %v1619 = vrot.slane %v1617, 4
  %v1620 = vshll.u32 %v1309, 16
  %v1622 = vrot.slane %v1620, 5
  %v1623 = vor.u32 %v1619, %v1622
  %v1624 = vrot.slane %v1623, 4
  %v1626 = vshll.u32 %v1325, 16
  %v1628 = vrot.slane %v1626, 5
  %v1629 = vsel %vm1391, %v1624, %v1628
  %v1631 = vshrl.u32 %v1310, 16
  %v1633 = vrot.slane %v1631, 4
  %v1634 = vshll.u32 %v1310, 16
  %v1636 = vrot.slane %v1634, 5
  %v1637 = vor.u32 %v1633, %v1636
  %v1638 = vrot.slane %v1637, 4
  %v1640 = vshll.u32 %v1326, 16
  %v1642 = vrot.slane %v1640, 5
  %v1643 = vsel %vm1391, %v1638, %v1642
  %v1645 = vshrl.u32 %v1311, 16
  %v1647 = vrot.slane %v1645, 4
  %v1648 = vshll.u32 %v1311, 16
  %v1650 = vrot.slane %v1648, 5
  %v1651 = vor.u32 %v1647, %v1650
  %v1652 = vrot.slane %v1651, 4
  %v1654 = vshll.u32 %v1327, 16
  %v1656 = vrot.slane %v1654, 5
  %v1657 = vsel %vm1391, %v1652, %v1656
  %v1659 = vshrl.u32 %v1312, 16
  %v1661 = vrot.slane %v1659, 4
  %v1662 = vshll.u32 %v1312, 16
  %v1664 = vrot.slane %v1662, 5
  %v1665 = vor.u32 %v1661, %v1664
  %v1666 = vrot.slane %v1665, 4
  %v1668 = vshll.u32 %v1328, 16
  %v1670 = vrot.slane %v1668, 5
  %v1671 = vsel %vm1391, %v1666, %v1670
  %v1673 = vshrl.u32 %v1313, 16
  %v1675 = vrot.slane %v1673, 4
  %v1676 = vshll.u32 %v1313, 16
  %v1678 = vrot.slane %v1676, 5
  %v1679 = vor.u32 %v1675, %v1678
  %v1680 = vrot.slane %v1679, 4
  %v1682 = vshll.u32 %v1329, 16
  %v1684 = vrot.slane %v1682, 5
  %v1685 = vsel %vm1391, %v1680, %v1684
  %v1687 = vshrl.u32 %v1314, 16
  %v1689 = vrot.slane %v1687, 4
  %v1690 = vshll.u32 %v1314, 16
  %v1692 = vrot.slane %v1690, 5
  %v1693 = vor.u32 %v1689, %v1692
  %v1694 = vrot.slane %v1693, 4
  %v1696 = vshll.u32 %v1330, 16
  %v1698 = vrot.slane %v1696, 5
  %v1699 = vsel %vm1391, %v1694, %v1698
  %v1701 = vshrl.u32 %v1315, 16
  %v1703 = vrot.slane %v1701, 4
  %v1704 = vshll.u32 %v1315, 16
  %v1706 = vrot.slane %v1704, 5
  %v1707 = vor.u32 %v1703, %v1706
  %v1708 = vrot.slane %v1707, 4
  %v1710 = vshll.u32 %v1331, 16
  %v1712 = vrot.slane %v1710, 5
  %v1713 = vsel %vm1391, %v1708, %v1712
  %v1715 = vshrl.u32 %v1316, 16
  %v1717 = vrot.slane %v1715, 4
  %v1718 = vshll.u32 %v1316, 16
  %v1720 = vrot.slane %v1718, 5
  %v1721 = vor.u32 %v1717, %v1720
  %v1722 = vrot.slane %v1721, 4
  %v1724 = vshll.u32 %v1332, 16
  %v1726 = vrot.slane %v1724, 5
  %v1727 = vsel %vm1391, %v1722, %v1726
  %v1729 = vshrl.u32 %v1317, 16
  %v1731 = vrot.slane %v1729, 4
  %v1732 = vshll.u32 %v1317, 16
  %v1734 = vrot.slane %v1732, 5
  %v1735 = vor.u32 %v1731, %v1734
  %v1736 = vrot.slane %v1735, 4
  %v1738 = vshll.u32 %v1333, 16
  %v1740 = vrot.slane %v1738, 5
  %v1741 = vsel %vm1391, %v1736, %v1740
  %v1743 = vshrl.u32 %v1318, 16
  %v1745 = vrot.slane %v1743, 4
  %v1746 = vshll.u32 %v1318, 16
  %v1748 = vrot.slane %v1746, 5
  %v1749 = vor.u32 %v1745, %v1748
  %v1750 = vrot.slane %v1749, 4
  %v1752 = vshll.u32 %v1334, 16
  %v1754 = vrot.slane %v1752, 5
  %v1755 = vsel %vm1391, %v1750, %v1754
  %v1757 = vshrl.u32 %v1319, 16
  %v1759 = vrot.slane %v1757, 4
  %v1760 = vshll.u32 %v1319, 16
  %v1762 = vrot.slane %v1760, 5
  %v1763 = vor.u32 %v1759, %v1762
  %v1764 = vrot.slane %v1763, 4
  %v1766 = vshll.u32 %v1335, 16
  %v1768 = vrot.slane %v1766, 5
  %v1769 = vsel %vm1391, %v1764, %v1768
  %v1771 = vshrl.u32 %v1320, 16
  %v1773 = vrot.slane %v1771, 4
  %v1774 = vshll.u32 %v1320, 16
  %v1776 = vrot.slane %v1774, 5
  %v1777 = vor.u32 %v1773, %v1776
  %v1778 = vrot.slane %v1777, 4
  %v1780 = vshll.u32 %v1336, 16
  %v1782 = vrot.slane %v1780, 5
  %v1783 = vsel %vm1391, %v1778, %v1782
  %v1785 = vshrl.u32 %v1321, 16
  %v1787 = vrot.slane %v1785, 4
  %v1788 = vshll.u32 %v1321, 16
  %v1790 = vrot.slane %v1788, 5
  %v1791 = vor.u32 %v1787, %v1790
  %v1792 = vrot.slane %v1791, 4
  %v1794 = vshll.u32 %v1337, 16
  %v1796 = vrot.slane %v1794, 5
  %v1797 = vsel %vm1391, %v1792, %v1796
  %v1799 = vshrl.u32 %v1322, 16
  %v1801 = vrot.slane %v1799, 4
  %v1802 = vshll.u32 %v1322, 16
  %v1804 = vrot.slane %v1802, 5
  %v1805 = vor.u32 %v1801, %v1804
  %v1806 = vrot.slane %v1805, 4
  %v1808 = vshll.u32 %v1338, 16
  %v1810 = vrot.slane %v1808, 5
  %v1811 = vsel %vm1391, %v1806, %v1810
  %v1813 = vshrl.u32 %v1323, 16
  %v1815 = vrot.slane %v1813, 4
  %v1816 = vshll.u32 %v1323, 16
  %v1818 = vrot.slane %v1816, 5
  %v1819 = vor.u32 %v1815, %v1818
  %v1820 = vrot.slane %v1819, 4
  %v1822 = vshll.u32 %v1339, 16
  %v1824 = vrot.slane %v1822, 5
  %v1825 = vsel %vm1391, %v1820, %v1824
  %v1827 = vshrl.u32 %v1324, 16
  %v1829 = vrot.slane %v1827, 4
  %v1830 = vshll.u32 %v1324, 16
  %v1832 = vrot.slane %v1830, 5
  %v1833 = vor.u32 %v1829, %v1832
  %v1834 = vrot.slane %v1833, 4
  %v1836 = vshll.u32 %v1340, 16
  %v1838 = vrot.slane %v1836, 5
  %v1839 = vsel %vm1391, %v1834, %v1838
  %v1841 = vshrl.u32 %v1341, 16
  %v1843 = vrot.slane %v1841, 4
  %v1844 = vshll.u32 %v1341, 16
  %v1846 = vrot.slane %v1844, 5
  %v1847 = vor.u32 %v1843, %v1846
  %v1848 = vrot.slane %v1847, 4
  %v1850 = vshll.u32 %v1373, 16
  %v1852 = vrot.slane %v1850, 5
  %v1853 = vsel %vm1391, %v1848, %v1852
  %v1855 = vshrl.u32 %v1342, 16
  %v1857 = vrot.slane %v1855, 4
  %v1858 = vshll.u32 %v1342, 16
  %v1860 = vrot.slane %v1858, 5
  %v1861 = vor.u32 %v1857, %v1860
  %v1862 = vrot.slane %v1861, 4
  %v1864 = vshll.u32 %v1374, 16
  %v1866 = vrot.slane %v1864, 5
  %v1867 = vsel %vm1391, %v1862, %v1866
  %v1869 = vshrl.u32 %v1343, 16
  %v1871 = vrot.slane %v1869, 4
  %v1872 = vshll.u32 %v1343, 16
  %v1874 = vrot.slane %v1872, 5
  %v1875 = vor.u32 %v1871, %v1874
  %v1876 = vrot.slane %v1875, 4
  %v1878 = vshll.u32 %v1375, 16
  %v1880 = vrot.slane %v1878, 5
  %v1881 = vsel %vm1391, %v1876, %v1880
  %v1883 = vshrl.u32 %v1344, 16
  %v1885 = vrot.slane %v1883, 4
  %v1886 = vshll.u32 %v1344, 16
  %v1888 = vrot.slane %v1886, 5
  %v1889 = vor.u32 %v1885, %v1888
  %v1890 = vrot.slane %v1889, 4
  %v1892 = vshll.u32 %v1376, 16
  %v1894 = vrot.slane %v1892, 5
  %v1895 = vsel %vm1391, %v1890, %v1894
  %v1897 = vshrl.u32 %v1345, 16
  %v1899 = vrot.slane %v1897, 4
  %v1900 = vshll.u32 %v1345, 16
  %v1902 = vrot.slane %v1900, 5
  %v1903 = vor.u32 %v1899, %v1902
  %v1904 = vrot.slane %v1903, 4
  %v1906 = vshll.u32 %v1377, 16
  %v1908 = vrot.slane %v1906, 5
  %v1909 = vsel %vm1391, %v1904, %v1908
  %v1911 = vshrl.u32 %v1346, 16
  %v1913 = vrot.slane %v1911, 4
  %v1914 = vshll.u32 %v1346, 16
  %v1916 = vrot.slane %v1914, 5
  %v1917 = vor.u32 %v1913, %v1916
  %v1918 = vrot.slane %v1917, 4
  %v1920 = vshll.u32 %v1378, 16
  %v1922 = vrot.slane %v1920, 5
  %v1923 = vsel %vm1391, %v1918, %v1922
  %v1925 = vshrl.u32 %v1347, 16
  %v1927 = vrot.slane %v1925, 4
  %v1928 = vshll.u32 %v1347, 16
  %v1930 = vrot.slane %v1928, 5
  %v1931 = vor.u32 %v1927, %v1930
  %v1932 = vrot.slane %v1931, 4
  %v1934 = vshll.u32 %v1379, 16
  %v1936 = vrot.slane %v1934, 5
  %v1937 = vsel %vm1391, %v1932, %v1936
  %v1939 = vshrl.u32 %v1348, 16
  %v1941 = vrot.slane %v1939, 4
  %v1942 = vshll.u32 %v1348, 16
  %v1944 = vrot.slane %v1942, 5
  %v1945 = vor.u32 %v1941, %v1944
  %v1946 = vrot.slane %v1945, 4
  %v1948 = vshll.u32 %v1380, 16
  %v1950 = vrot.slane %v1948, 5
  %v1951 = vsel %vm1391, %v1946, %v1950
  %v1953 = vshrl.u32 %v1349, 16
  %v1955 = vrot.slane %v1953, 4
  %v1956 = vshll.u32 %v1349, 16
  %v1958 = vrot.slane %v1956, 5
  %v1959 = vor.u32 %v1955, %v1958
  %v1960 = vrot.slane %v1959, 4
  %v1962 = vshll.u32 %v1381, 16
  %v1964 = vrot.slane %v1962, 5
  %v1965 = vsel %vm1391, %v1960, %v1964
  %v1967 = vshrl.u32 %v1350, 16
  %v1969 = vrot.slane %v1967, 4
  %v1970 = vshll.u32 %v1350, 16
  %v1972 = vrot.slane %v1970, 5
  %v1973 = vor.u32 %v1969, %v1972
  %v1974 = vrot.slane %v1973, 4
  %v1976 = vshll.u32 %v1382, 16
  %v1978 = vrot.slane %v1976, 5
  %v1979 = vsel %vm1391, %v1974, %v1978
  %v1981 = vshrl.u32 %v1351, 16
  %v1983 = vrot.slane %v1981, 4
  %v1984 = vshll.u32 %v1351, 16
  %v1986 = vrot.slane %v1984, 5
  %v1987 = vor.u32 %v1983, %v1986
  %v1988 = vrot.slane %v1987, 4
  %v1990 = vshll.u32 %v1383, 16
  %v1992 = vrot.slane %v1990, 5
  %v1993 = vsel %vm1391, %v1988, %v1992
  %v1995 = vshrl.u32 %v1352, 16
  %v1997 = vrot.slane %v1995, 4
  %v1998 = vshll.u32 %v1352, 16
  %v2000 = vrot.slane %v1998, 5
  %v2001 = vor.u32 %v1997, %v2000
  %v2002 = vrot.slane %v2001, 4
  %v2004 = vshll.u32 %v1384, 16
  %v2006 = vrot.slane %v2004, 5
  %v2007 = vsel %vm1391, %v2002, %v2006
  %v2009 = vshrl.u32 %v1353, 16
  %v2011 = vrot.slane %v2009, 4
  %v2012 = vshll.u32 %v1353, 16
  %v2014 = vrot.slane %v2012, 5
  %v2015 = vor.u32 %v2011, %v2014
  %v2016 = vrot.slane %v2015, 4
  %v2018 = vshll.u32 %v1385, 16
  %v2020 = vrot.slane %v2018, 5
  %v2021 = vsel %vm1391, %v2016, %v2020
  %v2023 = vshrl.u32 %v1354, 16
  %v2025 = vrot.slane %v2023, 4
  %v2026 = vshll.u32 %v1354, 16
  %v2028 = vrot.slane %v2026, 5
  %v2029 = vor.u32 %v2025, %v2028
  %v2030 = vrot.slane %v2029, 4
  %v2032 = vshll.u32 %v1386, 16
  %v2034 = vrot.slane %v2032, 5
  %v2035 = vsel %vm1391, %v2030, %v2034
  %v2037 = vshrl.u32 %v1355, 16
  %v2039 = vrot.slane %v2037, 4
  %v2040 = vshll.u32 %v1355, 16
  %v2042 = vrot.slane %v2040, 5
  %v2043 = vor.u32 %v2039, %v2042
  %v2044 = vrot.slane %v2043, 4
  %v2046 = vshll.u32 %v1387, 16
  %v2048 = vrot.slane %v2046, 5
  %v2049 = vsel %vm1391, %v2044, %v2048
  %v2051 = vshrl.u32 %v1356, 16
  %v2053 = vrot.slane %v2051, 4
  %v2054 = vshll.u32 %v1356, 16
  %v2056 = vrot.slane %v2054, 5
  %v2057 = vor.u32 %v2053, %v2056
  %v2058 = vrot.slane %v2057, 4
  %v2060 = vshll.u32 %v1388, 16
  %v2062 = vrot.slane %v2060, 5
  %v2063 = vsel %vm1391, %v2058, %v2062
  %v2080 = vunpack.c.l.b16 %v1261
  %v2081 = vunpack.c.l.b16 %v1262
  %v2082 = vunpack.c.l.b16 %v1263
  %v2083 = vunpack.c.l.b16 %v1264
  %v2084 = vunpack.c.l.b16 %v1265
  %v2085 = vunpack.c.l.b16 %v1266
  %v2086 = vunpack.c.l.b16 %v1267
  %v2087 = vunpack.c.l.b16 %v1268
  %v2088 = vunpack.c.l.b16 %v1269
  %v2089 = vunpack.c.l.b16 %v1270
  %v2090 = vunpack.c.l.b16 %v1271
  %v2091 = vunpack.c.l.b16 %v1272
  %v2092 = vunpack.c.l.b16 %v1273
  %v2093 = vunpack.c.l.b16 %v1274
  %v2094 = vunpack.c.l.b16 %v1275
  %v2095 = vunpack.c.l.b16 %v1276
  %v2096 = vpack.c.b16 %v2081, %v2080
  %v2097 = vpack.c.b16 %v2083, %v2082
  %v2098 = vpack.c.b16 %v2085, %v2084
  %v2099 = vpack.c.b16 %v2087, %v2086
  %v2100 = vpack.c.b16 %v2089, %v2088
  %v2101 = vpack.c.b16 %v2091, %v2090
  %v2102 = vpack.c.b16 %v2093, %v2092
  %v2103 = vpack.c.b16 %v2095, %v2094
  %v2120 = vunpack.c.l.b16 %v1277
  %v2121 = vunpack.c.l.b16 %v1278
  %v2122 = vunpack.c.l.b16 %v1279
  %v2123 = vunpack.c.l.b16 %v1280
  %v2124 = vunpack.c.l.b16 %v1281
  %v2125 = vunpack.c.l.b16 %v1282
  %v2126 = vunpack.c.l.b16 %v1283
  %v2127 = vunpack.c.l.b16 %v1284
  %v2128 = vunpack.c.l.b16 %v1285
  %v2129 = vunpack.c.l.b16 %v1286
  %v2130 = vunpack.c.l.b16 %v1287
  %v2131 = vunpack.c.l.b16 %v1288
  %v2132 = vunpack.c.l.b16 %v1289
  %v2133 = vunpack.c.l.b16 %v1290
  %v2134 = vunpack.c.l.b16 %v1291
  %v2135 = vunpack.c.l.b16 %v1292
  %v2136 = vpack.c.b16 %v2121, %v2120
  %v2137 = vpack.c.b16 %v2123, %v2122
  %v2138 = vpack.c.b16 %v2125, %v2124
  %v2139 = vpack.c.b16 %v2127, %v2126
  %v2140 = vpack.c.b16 %v2129, %v2128
  %v2141 = vpack.c.b16 %v2131, %v2130
  %v2142 = vpack.c.b16 %v2133, %v2132
  %v2143 = vpack.c.b16 %v2135, %v2134
  %2144 = vrot.lane.b32.xlu0 %v2136, 4
  %v2145 = vpop.permute.xlu0 %2144
  %2146 = vrot.lane.b32.xlu0 %v2137, 4
  %v2147 = vpop.permute.xlu0 %2146
  %2148 = vrot.lane.b32.xlu0 %v2138, 4
  %v2149 = vpop.permute.xlu0 %2148
  %2150 = vrot.lane.b32.xlu0 %v2139, 4
  %v2151 = vpop.permute.xlu0 %2150
  %2152 = vrot.lane.b32.xlu0 %v2140, 4
  %v2153 = vpop.permute.xlu0 %2152
  %2154 = vrot.lane.b32.xlu0 %v2141, 4
  %v2155 = vpop.permute.xlu0 %2154
  %2156 = vrot.lane.b32.xlu0 %v2142, 4
  %v2157 = vpop.permute.xlu0 %2156
  %2158 = vrot.lane.b32.xlu0 %v2143, 4
  %v2159 = vpop.permute.xlu0 %2158
  %v2160 = vunpack.c.l.b16 %v1405
  %v2161 = vunpack.c.l.b16 %v1419
  %v2162 = vunpack.c.l.b16 %v1433
  %v2163 = vunpack.c.l.b16 %v1447
  %v2164 = vunpack.c.l.b16 %v1461
  %v2165 = vunpack.c.l.b16 %v1475
  %v2166 = vunpack.c.l.b16 %v1489
  %v2167 = vunpack.c.l.b16 %v1503
  %v2168 = vunpack.c.l.b16 %v1517
  %v2169 = vunpack.c.l.b16 %v1531
  %v2170 = vunpack.c.l.b16 %v1545
  %v2171 = vunpack.c.l.b16 %v1559
  %v2172 = vunpack.c.l.b16 %v1573
  %v2173 = vunpack.c.l.b16 %v1587
  %v2174 = vunpack.c.l.b16 %v1601
  %v2175 = vunpack.c.l.b16 %v1615
  %v2176 = vpack.c.b16 %v2161, %v2160
  %v2177 = vpack.c.b16 %v2163, %v2162
  %v2178 = vpack.c.b16 %v2165, %v2164
  %v2179 = vpack.c.b16 %v2167, %v2166
  %v2180 = vpack.c.b16 %v2169, %v2168
  %v2181 = vpack.c.b16 %v2171, %v2170
  %v2182 = vpack.c.b16 %v2173, %v2172
  %v2183 = vpack.c.b16 %v2175, %v2174
  %2184 = vrot.lane.b32.xlu0 %v2176, 8
  %v2185 = vpop.permute.xlu0 %2184
  %2186 = vrot.lane.b32.xlu0 %v2177, 8
  %v2187 = vpop.permute.xlu0 %2186
  %2188 = vrot.lane.b32.xlu0 %v2178, 8
  %v2189 = vpop.permute.xlu0 %2188
  %2190 = vrot.lane.b32.xlu0 %v2179, 8
  %v2191 = vpop.permute.xlu0 %2190
  %2192 = vrot.lane.b32.xlu0 %v2180, 8
  %v2193 = vpop.permute.xlu0 %2192
  %2194 = vrot.lane.b32.xlu0 %v2181, 8
  %v2195 = vpop.permute.xlu0 %2194
  %2196 = vrot.lane.b32.xlu0 %v2182, 8
  %v2197 = vpop.permute.xlu0 %2196
  %2198 = vrot.lane.b32.xlu0 %v2183, 8
  %v2199 = vpop.permute.xlu0 %2198
  %v2216 = vunpack.c.l.b16 %v1309
  %v2217 = vunpack.c.l.b16 %v1310
  %v2218 = vunpack.c.l.b16 %v1311
  %v2219 = vunpack.c.l.b16 %v1312
  %v2220 = vunpack.c.l.b16 %v1313
  %v2221 = vunpack.c.l.b16 %v1314
  %v2222 = vunpack.c.l.b16 %v1315
  %v2223 = vunpack.c.l.b16 %v1316
  %v2224 = vunpack.c.l.b16 %v1317
  %v2225 = vunpack.c.l.b16 %v1318
  %v2226 = vunpack.c.l.b16 %v1319
  %v2227 = vunpack.c.l.b16 %v1320
  %v2228 = vunpack.c.l.b16 %v1321
  %v2229 = vunpack.c.l.b16 %v1322
  %v2230 = vunpack.c.l.b16 %v1323
  %v2231 = vunpack.c.l.b16 %v1324
  %v2232 = vpack.c.b16 %v2217, %v2216
  %v2233 = vpack.c.b16 %v2219, %v2218
  %v2234 = vpack.c.b16 %v2221, %v2220
  %v2235 = vpack.c.b16 %v2223, %v2222
  %v2236 = vpack.c.b16 %v2225, %v2224
  %v2237 = vpack.c.b16 %v2227, %v2226
  %v2238 = vpack.c.b16 %v2229, %v2228
  %v2239 = vpack.c.b16 %v2231, %v2230
  %2240 = vrot.lane.b32.xlu0 %v2232, 12
  %v2241 = vpop.permute.xlu0 %2240
  %2242 = vrot.lane.b32.xlu0 %v2233, 12
  %v2243 = vpop.permute.xlu0 %2242
  %2244 = vrot.lane.b32.xlu0 %v2234, 12
  %v2245 = vpop.permute.xlu0 %2244
  %2246 = vrot.lane.b32.xlu0 %v2235, 12
  %v2247 = vpop.permute.xlu0 %2246
  %2248 = vrot.lane.b32.xlu0 %v2236, 12
  %v2249 = vpop.permute.xlu0 %2248
  %2250 = vrot.lane.b32.xlu0 %v2237, 12
  %v2251 = vpop.permute.xlu0 %2250
  %2252 = vrot.lane.b32.xlu0 %v2238, 12
  %v2253 = vpop.permute.xlu0 %2252
  %2254 = vrot.lane.b32.xlu0 %v2239, 12
  %v2255 = vpop.permute.xlu0 %2254
  %v2272 = vunpack.c.l.b16 %v564
  %v2273 = vunpack.c.l.b16 %v565
  %v2274 = vunpack.c.l.b16 %v566
  %v2275 = vunpack.c.l.b16 %v567
  %v2276 = vunpack.c.l.b16 %v568
  %v2277 = vunpack.c.l.b16 %v569
  %v2278 = vunpack.c.l.b16 %v570
  %v2279 = vunpack.c.l.b16 %v571
  %v2280 = vunpack.c.l.b16 %v572
  %v2281 = vunpack.c.l.b16 %v573
  %v2282 = vunpack.c.l.b16 %v574
  %v2283 = vunpack.c.l.b16 %v575
  %v2284 = vunpack.c.l.b16 %v576
  %v2285 = vunpack.c.l.b16 %v577
  %v2286 = vunpack.c.l.b16 %v578
  %v2287 = vunpack.c.l.b16 %v579
  %v2288 = vpack.c.b16 %v2273, %v2272
  %v2289 = vpack.c.b16 %v2275, %v2274
  %v2290 = vpack.c.b16 %v2277, %v2276
  %v2291 = vpack.c.b16 %v2279, %v2278
  %v2292 = vpack.c.b16 %v2281, %v2280
  %v2293 = vpack.c.b16 %v2283, %v2282
  %v2294 = vpack.c.b16 %v2285, %v2284
  %v2295 = vpack.c.b16 %v2287, %v2286
  %2296 = vrot.lane.b32.xlu0 %v2288, 16
  %v2297 = vpop.permute.xlu0 %2296
  %2298 = vrot.lane.b32.xlu0 %v2289, 16
  %v2299 = vpop.permute.xlu0 %2298
  %2300 = vrot.lane.b32.xlu0 %v2290, 16
  %v2301 = vpop.permute.xlu0 %2300
  %2302 = vrot.lane.b32.xlu0 %v2291, 16
  %v2303 = vpop.permute.xlu0 %2302
  %2304 = vrot.lane.b32.xlu0 %v2292, 16
  %v2305 = vpop.permute.xlu0 %2304
  %2306 = vrot.lane.b32.xlu0 %v2293, 16
  %v2307 = vpop.permute.xlu0 %2306
  %2308 = vrot.lane.b32.xlu0 %v2294, 16
  %v2309 = vpop.permute.xlu0 %2308
  %2310 = vrot.lane.b32.xlu0 %v2295, 16
  %v2311 = vpop.permute.xlu0 %2310
  %v2312 = vunpack.c.l.b16 %v1629
  %v2313 = vunpack.c.l.b16 %v1643
  %v2314 = vunpack.c.l.b16 %v1657
  %v2315 = vunpack.c.l.b16 %v1671
  %v2316 = vunpack.c.l.b16 %v1685
  %v2317 = vunpack.c.l.b16 %v1699
  %v2318 = vunpack.c.l.b16 %v1713
  %v2319 = vunpack.c.l.b16 %v1727
  %v2320 = vunpack.c.l.b16 %v1741
  %v2321 = vunpack.c.l.b16 %v1755
  %v2322 = vunpack.c.l.b16 %v1769
  %v2323 = vunpack.c.l.b16 %v1783
  %v2324 = vunpack.c.l.b16 %v1797
  %v2325 = vunpack.c.l.b16 %v1811
  %v2326 = vunpack.c.l.b16 %v1825
  %v2327 = vunpack.c.l.b16 %v1839
  %v2328 = vpack.c.b16 %v2313, %v2312
  %v2329 = vpack.c.b16 %v2315, %v2314
  %v2330 = vpack.c.b16 %v2317, %v2316
  %v2331 = vpack.c.b16 %v2319, %v2318
  %v2332 = vpack.c.b16 %v2321, %v2320
  %v2333 = vpack.c.b16 %v2323, %v2322
  %v2334 = vpack.c.b16 %v2325, %v2324
  %v2335 = vpack.c.b16 %v2327, %v2326
  %2336 = vrot.lane.b32.xlu0 %v2328, 20
  %v2337 = vpop.permute.xlu0 %2336
  %2338 = vrot.lane.b32.xlu0 %v2329, 20
  %v2339 = vpop.permute.xlu0 %2338
  %2340 = vrot.lane.b32.xlu0 %v2330, 20
  %v2341 = vpop.permute.xlu0 %2340
  %2342 = vrot.lane.b32.xlu0 %v2331, 20
  %v2343 = vpop.permute.xlu0 %2342
  %2344 = vrot.lane.b32.xlu0 %v2332, 20
  %v2345 = vpop.permute.xlu0 %2344
  %2346 = vrot.lane.b32.xlu0 %v2333, 20
  %v2347 = vpop.permute.xlu0 %2346
  %2348 = vrot.lane.b32.xlu0 %v2334, 20
  %v2349 = vpop.permute.xlu0 %2348
  %2350 = vrot.lane.b32.xlu0 %v2335, 20
  %v2351 = vpop.permute.xlu0 %2350
  %v2368 = vunpack.c.l.b16 %v1341
  %v2369 = vunpack.c.l.b16 %v1342
  %v2370 = vunpack.c.l.b16 %v1343
  %v2371 = vunpack.c.l.b16 %v1344
  %v2372 = vunpack.c.l.b16 %v1345
  %v2373 = vunpack.c.l.b16 %v1346
  %v2374 = vunpack.c.l.b16 %v1347
  %v2375 = vunpack.c.l.b16 %v1348
  %v2376 = vunpack.c.l.b16 %v1349
  %v2377 = vunpack.c.l.b16 %v1350
  %v2378 = vunpack.c.l.b16 %v1351
  %v2379 = vunpack.c.l.b16 %v1352
  %v2380 = vunpack.c.l.b16 %v1353
  %v2381 = vunpack.c.l.b16 %v1354
  %v2382 = vunpack.c.l.b16 %v1355
  %v2383 = vunpack.c.l.b16 %v1356
  %v2384 = vpack.c.b16 %v2369, %v2368
  %v2385 = vpack.c.b16 %v2371, %v2370
  %v2386 = vpack.c.b16 %v2373, %v2372
  %v2387 = vpack.c.b16 %v2375, %v2374
  %v2388 = vpack.c.b16 %v2377, %v2376
  %v2389 = vpack.c.b16 %v2379, %v2378
  %v2390 = vpack.c.b16 %v2381, %v2380
  %v2391 = vpack.c.b16 %v2383, %v2382
  %2392 = vrot.lane.b32.xlu0 %v2384, 24
  %v2393 = vpop.permute.xlu0 %2392
  %2394 = vrot.lane.b32.xlu0 %v2385, 24
  %v2395 = vpop.permute.xlu0 %2394
  %2396 = vrot.lane.b32.xlu0 %v2386, 24
  %v2397 = vpop.permute.xlu0 %2396
  %2398 = vrot.lane.b32.xlu0 %v2387, 24
  %v2399 = vpop.permute.xlu0 %2398
  %2400 = vrot.lane.b32.xlu0 %v2388, 24
  %v2401 = vpop.permute.xlu0 %2400
  %2402 = vrot.lane.b32.xlu0 %v2389, 24
  %v2403 = vpop.permute.xlu0 %2402
  %2404 = vrot.lane.b32.xlu0 %v2390, 24
  %v2405 = vpop.permute.xlu0 %2404
  %2406 = vrot.lane.b32.xlu0 %v2391, 24
  %v2407 = vpop.permute.xlu0 %2406
  %v2424 = vunpack.c.l.b16 %v1357
  %v2425 = vunpack.c.l.b16 %v1358
  %v2426 = vunpack.c.l.b16 %v1359
  %v2427 = vunpack.c.l.b16 %v1360
  %v2428 = vunpack.c.l.b16 %v1361
  %v2429 = vunpack.c.l.b16 %v1362
  %v2430 = vunpack.c.l.b16 %v1363
  %v2431 = vunpack.c.l.b16 %v1364
  %v2432 = vunpack.c.l.b16 %v1365
  %v2433 = vunpack.c.l.b16 %v1366
  %v2434 = vunpack.c.l.b16 %v1367
  %v2435 = vunpack.c.l.b16 %v1368
  %v2436 = vunpack.c.l.b16 %v1369
  %v2437 = vunpack.c.l.b16 %v1370
  %v2438 = vunpack.c.l.b16 %v1371
  %v2439 = vunpack.c.l.b16 %v1372
  %v2440 = vpack.c.b16 %v2425, %v2424
  %v2441 = vpack.c.b16 %v2427, %v2426
  %v2442 = vpack.c.b16 %v2429, %v2428
  %v2443 = vpack.c.b16 %v2431, %v2430
  %v2444 = vpack.c.b16 %v2433, %v2432
  %v2445 = vpack.c.b16 %v2435, %v2434
  %v2446 = vpack.c.b16 %v2437, %v2436
  %v2447 = vpack.c.b16 %v2439, %v2438
  %2448 = vrot.lane.b32.xlu0 %v2440, 28
  %v2449 = vpop.permute.xlu0 %2448
  %2450 = vrot.lane.b32.xlu0 %v2441, 28
  %v2451 = vpop.permute.xlu0 %2450
  %2452 = vrot.lane.b32.xlu0 %v2442, 28
  %v2453 = vpop.permute.xlu0 %2452
  %2454 = vrot.lane.b32.xlu0 %v2443, 28
  %v2455 = vpop.permute.xlu0 %2454
  %2456 = vrot.lane.b32.xlu0 %v2444, 28
  %v2457 = vpop.permute.xlu0 %2456
  %2458 = vrot.lane.b32.xlu0 %v2445, 28
  %v2459 = vpop.permute.xlu0 %2458
  %2460 = vrot.lane.b32.xlu0 %v2446, 28
  %v2461 = vpop.permute.xlu0 %2460
  %2462 = vrot.lane.b32.xlu0 %v2447, 28
  %v2463 = vpop.permute.xlu0 %2462
  %v2464 = vunpack.c.l.b16 %v1853
  %v2465 = vunpack.c.l.b16 %v1867
  %v2466 = vunpack.c.l.b16 %v1881
  %v2467 = vunpack.c.l.b16 %v1895
  %v2468 = vunpack.c.l.b16 %v1909
  %v2469 = vunpack.c.l.b16 %v1923
  %v2470 = vunpack.c.l.b16 %v1937
  %v2471 = vunpack.c.l.b16 %v1951
  %v2472 = vunpack.c.l.b16 %v1965
  %v2473 = vunpack.c.l.b16 %v1979
  %v2474 = vunpack.c.l.b16 %v1993
  %v2475 = vunpack.c.l.b16 %v2007
  %v2476 = vunpack.c.l.b16 %v2021
  %v2477 = vunpack.c.l.b16 %v2035
  %v2478 = vunpack.c.l.b16 %v2049
  %v2479 = vunpack.c.l.b16 %v2063
  %v2480 = vpack.c.b16 %v2465, %v2464
  %v2481 = vpack.c.b16 %v2467, %v2466
  %v2482 = vpack.c.b16 %v2469, %v2468
  %v2483 = vpack.c.b16 %v2471, %v2470
  %v2484 = vpack.c.b16 %v2473, %v2472
  %v2485 = vpack.c.b16 %v2475, %v2474
  %v2486 = vpack.c.b16 %v2477, %v2476
  %v2487 = vpack.c.b16 %v2479, %v2478
  %2488 = vrot.lane.b32.xlu0 %v2480, 32
  %v2489 = vpop.permute.xlu0 %2488
  %2490 = vrot.lane.b32.xlu0 %v2481, 32
  %v2491 = vpop.permute.xlu0 %2490
  %2492 = vrot.lane.b32.xlu0 %v2482, 32
  %v2493 = vpop.permute.xlu0 %2492
  %2494 = vrot.lane.b32.xlu0 %v2483, 32
  %v2495 = vpop.permute.xlu0 %2494
  %2496 = vrot.lane.b32.xlu0 %v2484, 32
  %v2497 = vpop.permute.xlu0 %2496
  %2498 = vrot.lane.b32.xlu0 %v2485, 32
  %v2499 = vpop.permute.xlu0 %2498
  %2500 = vrot.lane.b32.xlu0 %v2486, 32
  %v2501 = vpop.permute.xlu0 %2500
  %2502 = vrot.lane.b32.xlu0 %v2487, 32
  %v2503 = vpop.permute.xlu0 %2502
  %vm2504 = vcmask 31744
  %v2507 = vsel %vm2504, %v2096, %v2145
  %v2510 = vsel %vm2504, %v2097, %v2147
  %v2513 = vsel %vm2504, %v2098, %v2149
  %v2516 = vsel %vm2504, %v2099, %v2151
  %v2519 = vsel %vm2504, %v2100, %v2153
  %v2522 = vsel %vm2504, %v2101, %v2155
  %v2525 = vsel %vm2504, %v2102, %v2157
  %v2528 = vsel %vm2504, %v2103, %v2159
  %vm2529 = vcmask 64512
  %v2531 = vsel %vm2529, %v2507, %v2185
  %v2533 = vsel %vm2529, %v2510, %v2187
  %v2535 = vsel %vm2529, %v2513, %v2189
  %v2537 = vsel %vm2529, %v2516, %v2191
  %v2539 = vsel %vm2529, %v2519, %v2193
  %v2541 = vsel %vm2529, %v2522, %v2195
  %v2543 = vsel %vm2529, %v2525, %v2197
  %v2545 = vsel %vm2529, %v2528, %v2199
  %vm2546 = vcmask 97280
  %v2548 = vsel %vm2546, %v2531, %v2241
  %v2550 = vsel %vm2546, %v2533, %v2243
  %v2552 = vsel %vm2546, %v2535, %v2245
  %v2554 = vsel %vm2546, %v2537, %v2247
  %v2556 = vsel %vm2546, %v2539, %v2249
  %v2558 = vsel %vm2546, %v2541, %v2251
  %v2560 = vsel %vm2546, %v2543, %v2253
  %v2562 = vsel %vm2546, %v2545, %v2255
  %vm2563 = vcmask 130048
  %v2565 = vsel %vm2563, %v2548, %v2297
  %v2567 = vsel %vm2563, %v2550, %v2299
  %v2569 = vsel %vm2563, %v2552, %v2301
  %v2571 = vsel %vm2563, %v2554, %v2303
  %v2573 = vsel %vm2563, %v2556, %v2305
  %v2575 = vsel %vm2563, %v2558, %v2307
  %v2577 = vsel %vm2563, %v2560, %v2309
  %v2579 = vsel %vm2563, %v2562, %v2311
  %vm2580 = vcmask 162816
  %v2582 = vsel %vm2580, %v2565, %v2337
  %v2584 = vsel %vm2580, %v2567, %v2339
  %v2586 = vsel %vm2580, %v2569, %v2341
  %v2588 = vsel %vm2580, %v2571, %v2343
  %v2590 = vsel %vm2580, %v2573, %v2345
  %v2592 = vsel %vm2580, %v2575, %v2347
  %v2594 = vsel %vm2580, %v2577, %v2349
  %v2596 = vsel %vm2580, %v2579, %v2351
  %vm2597 = vcmask 195584
  %v2599 = vsel %vm2597, %v2582, %v2393
  %v2601 = vsel %vm2597, %v2584, %v2395
  %v2603 = vsel %vm2597, %v2586, %v2397
  %v2605 = vsel %vm2597, %v2588, %v2399
  %v2607 = vsel %vm2597, %v2590, %v2401
  %v2609 = vsel %vm2597, %v2592, %v2403
  %v2611 = vsel %vm2597, %v2594, %v2405
  %v2613 = vsel %vm2597, %v2596, %v2407
  %vm2614 = vcmask 228352
  %v2616 = vsel %vm2614, %v2599, %v2449
  %v2618 = vsel %vm2614, %v2601, %v2451
  %v2620 = vsel %vm2614, %v2603, %v2453
  %v2622 = vsel %vm2614, %v2605, %v2455
  %v2624 = vsel %vm2614, %v2607, %v2457
  %v2626 = vsel %vm2614, %v2609, %v2459
  %v2628 = vsel %vm2614, %v2611, %v2461
  %v2630 = vsel %vm2614, %v2613, %v2463
  %vm2631 = vcmask 261120
  %v2633 = vsel %vm2631, %v2616, %v2489
  %v2635 = vsel %vm2631, %v2618, %v2491
  %v2637 = vsel %vm2631, %v2620, %v2493
  %v2639 = vsel %vm2631, %v2622, %v2495
  %v2641 = vsel %vm2631, %v2624, %v2497
  %v2643 = vsel %vm2631, %v2626, %v2499
  %v2645 = vsel %vm2631, %v2628, %v2501
  %v2647 = vsel %vm2631, %v2630, %v2503
  %v2648 = vld [vmem:[%s6] sm:$0xf]
  %v2649 = vld [vmem:[%s6 + $0x4] sm:$0xf]
  %v2650 = vld [vmem:[%s6 + $0x8] sm:$0xf]
  %v2651 = vld [vmem:[%s6 + $0xc] sm:$0xf]
  %v2652 = vld [vmem:[%s6 + $0x10] sm:$0x3]
  %v2658 = vunpack.c.l.b16 %v2648
  %v2659 = vunpack.c.l.b16 %v2649
  %v2660 = vunpack.c.l.b16 %v2650
  %v2661 = vunpack.c.l.b16 %v2651
  %v2662 = vunpack.c.l.b16 %v2652
  %v2663 = vpack.c.b16 %v2659, %v2658
  %v2664 = vpack.c.b16 %v2661, %v2660
  %v2665 = vpack.c.b16 %v2662, %v2662
  %vm2668 = vcmask 293888
  %v2669 = vsel %vm2668, %v2633, 0
  %v2671 = vsel %vm2668, %v2635, 0
  %v2673 = vsel %vm2668, %v2637, 0
  %v2675 = vsel %vm2668, %v2639, 0
  %v2677 = vsel %vm2668, %v2641, 0
  %v2679 = vsel %vm2668, %v2643, 0
  %v2681 = vsel %vm2668, %v2645, 0
  %v2683 = vsel %vm2668, %v2647, 0
  %vm2685 = vcmask 1041408
  %v2687 = vsel %vm2685, %v2665, 0
  %2689 = vmatprep.subr.bf16.mxu0 0
  %2690 = vmatpush1.bf16.msra.mxu0 %v2663
  %2691 = vmatprep.subr.bf16.mxu0 0
  %2692 = vmatpush1.bf16.msra.mxu0 %v2664
  %2693 = vmatprep.subr.bf16.mxu0 0
  %2694 = vmatpush1.bf16.msra.mxu0 %v2687
  %2695 = vmatprep.subr.bf16.mxu0 0
  %2696 = vmatpush1.bf16.msra.mxu0 0
  %2697 = vmatprep.subr.bf16.mxu0 0
  %2698 = vmatpush1.bf16.msra.mxu0 0
  %2699 = vmatprep.subr.bf16.mxu0 0
  %2700 = vmatpush1.bf16.msra.mxu0 0
  %2701 = vmatprep.subr.bf16.mxu0 0
  %2702 = vmatpush1.bf16.msra.mxu0 0
  %2703 = vmatprep.subr.bf16.mxu0 0
  %2704 = vmatpush1.bf16.msra.mxu0 0
  %2705 = vmatprep.subr.bf16.mxu0 0
  %2706 = vmatpush1.bf16.msra.mxu0 0
  %2707 = vmatprep.subr.bf16.mxu0 0
  %2708 = vmatpush1.bf16.msra.mxu0 0
  %2709 = vmatprep.subr.bf16.mxu0 0
  %2710 = vmatpush1.bf16.msra.mxu0 0
  %2711 = vmatprep.subr.bf16.mxu0 0
  %2712 = vmatpush1.bf16.msra.mxu0 0
  %2713 = vmatprep.subr.bf16.mxu0 0
  %2714 = vmatpush1.bf16.msra.mxu0 0
  %2715 = vmatprep.subr.bf16.mxu0 0
  %2716 = vmatpush1.bf16.msra.mxu0 0
  %2717 = vmatprep.subr.bf16.mxu0 0
  %2718 = vmatpush1.bf16.msra.mxu0 0
  %2719 = vmatprep.subr.bf16.mxu0 0
  %2720 = vmatpush1.bf16.msra.mxu0 0
  %2721 = vmatprep.mubr.bf16.mxu0 0
  %2722 = vmatmul.mubr.bf16.gmra.mrb[0].mxu0 %v2669
  %v2723 = vpop.f32.mrb[0].mxu0
  %v2724 = vadd.f32 0.0, %v2723
  %v2725 = vpop.f32.mrb[0].mxu0
  %v2726 = vpop.f32.mrb[0].mxu0
  %v2727 = vadd.f32 0.0, %v2726
  %v2728 = vpop.f32.mrb[0].mxu0
  %2729 = vmatprep.mubr.bf16.mxu0 0
  %2730 = vmatmul.mubr.bf16.gmra.mrb[0].mxu0 %v2671
  %v2731 = vpop.f32.mrb[0].mxu0
  %v2732 = vadd.f32 0.0, %v2731
  %v2733 = vpop.f32.mrb[0].mxu0
  %v2734 = vpop.f32.mrb[0].mxu0
  %v2735 = vadd.f32 0.0, %v2734
  %v2736 = vpop.f32.mrb[0].mxu0
  %2737 = vmatprep.mubr.bf16.mxu0 0
  %2738 = vmatmul.mubr.bf16.gmra.mrb[0].mxu0 %v2673
  %v2739 = vpop.f32.mrb[0].mxu0
  %v2740 = vadd.f32 0.0, %v2739
  %v2741 = vpop.f32.mrb[0].mxu0
  %v2742 = vpop.f32.mrb[0].mxu0
  %v2743 = vadd.f32 0.0, %v2742
  %v2744 = vpop.f32.mrb[0].mxu0
  %2745 = vmatprep.mubr.bf16.mxu0 0
  %2746 = vmatmul.mubr.bf16.gmra.mrb[0].mxu0 %v2675
  %v2747 = vpop.f32.mrb[0].mxu0
  %v2748 = vadd.f32 0.0, %v2747
  %v2749 = vpop.f32.mrb[0].mxu0
  %v2750 = vpop.f32.mrb[0].mxu0
  %v2751 = vadd.f32 0.0, %v2750
  %v2752 = vpop.f32.mrb[0].mxu0
  %2753 = vmatprep.mubr.bf16.mxu0 0
  %2754 = vmatmul.mubr.bf16.gmra.mrb[0].mxu0 %v2677
  %v2755 = vpop.f32.mrb[0].mxu0
  %v2756 = vadd.f32 0.0, %v2755
  %v2757 = vpop.f32.mrb[0].mxu0
  %v2758 = vpop.f32.mrb[0].mxu0
  %v2759 = vadd.f32 0.0, %v2758
  %v2760 = vpop.f32.mrb[0].mxu0
  %2761 = vmatprep.mubr.bf16.mxu0 0
  %2762 = vmatmul.mubr.bf16.gmra.mrb[0].mxu0 %v2679
  %v2763 = vpop.f32.mrb[0].mxu0
  %v2764 = vadd.f32 0.0, %v2763
  %v2765 = vpop.f32.mrb[0].mxu0
  %v2766 = vpop.f32.mrb[0].mxu0
  %v2767 = vadd.f32 0.0, %v2766
  %v2768 = vpop.f32.mrb[0].mxu0
  %2769 = vmatprep.mubr.bf16.mxu0 0
  %2770 = vmatmul.mubr.bf16.gmra.mrb[0].mxu0 %v2681
  %v2771 = vpop.f32.mrb[0].mxu0
  %v2772 = vadd.f32 0.0, %v2771
  %v2773 = vpop.f32.mrb[0].mxu0
  %v2774 = vpop.f32.mrb[0].mxu0
  %v2775 = vadd.f32 0.0, %v2774
  %v2776 = vpop.f32.mrb[0].mxu0
  %2777 = vmatprep.mubr.bf16.mxu0 0
  %2778 = vmatmul.mubr.bf16.gmra.mrb[0].mxu0 %v2683
  %v2779 = vpop.f32.mrb[0].mxu0
  %v2780 = vadd.f32 0.0, %v2779
  %v2781 = vpop.f32.mrb[0].mxu0
  %v2782 = vpop.f32.mrb[0].mxu0
  %v2783 = vadd.f32 0.0, %v2782
  %v2784 = vpop.f32.mrb[0].mxu0
  %2785 = vdwg.mxu0
  %v2786 = vld [vmem:[%s7] sm:$0x1]
  %v2788 = vlaneseq
  %v2789 = vshrl.u32 %v2788, 7
  %v2790 = vsub.s32 0, %v2789
  %v2791 = vrot.slane %v2786, %v2790
  %v2793 = vmul.f32 %v2724, %v2791
  %v2794 = vmul.f32 %v2727, %v2791
  %v2795 = vmul.f32 %v2732, %v2791
  %v2796 = vmul.f32 %v2735, %v2791
  %v2797 = vmul.f32 %v2740, %v2791
  %v2798 = vmul.f32 %v2743, %v2791
  %v2799 = vmul.f32 %v2748, %v2791
  %v2800 = vmul.f32 %v2751, %v2791
  %v2801 = vmul.f32 %v2756, %v2791
  %v2802 = vmul.f32 %v2759, %v2791
  %v2803 = vmul.f32 %v2764, %v2791
  %v2804 = vmul.f32 %v2767, %v2791
  %v2805 = vmul.f32 %v2772, %v2791
  %v2806 = vmul.f32 %v2775, %v2791
  %v2807 = vmul.f32 %v2780, %v2791
  %v2808 = vmul.f32 %v2783, %v2791
  %v2809 = vld [vmem:[%s8] sm:$0x1]
  %v2811 = vlaneseq
  %v2812 = vshrl.u32 %v2811, 7
  %v2813 = vsub.s32 0, %v2812
  %v2814 = vrot.slane %v2809, %v2813
  %v2816 = vadd.f32 %v2793, %v2814
  %v2817 = vadd.f32 %v2794, %v2814
  %v2818 = vadd.f32 %v2795, %v2814
  %v2819 = vadd.f32 %v2796, %v2814
  %v2820 = vadd.f32 %v2797, %v2814
  %v2821 = vadd.f32 %v2798, %v2814
  %v2822 = vadd.f32 %v2799, %v2814
  %v2823 = vadd.f32 %v2800, %v2814
  %v2824 = vadd.f32 %v2801, %v2814
  %v2825 = vadd.f32 %v2802, %v2814
  %v2826 = vadd.f32 %v2803, %v2814
  %v2827 = vadd.f32 %v2804, %v2814
  %v2828 = vadd.f32 %v2805, %v2814
  %v2829 = vadd.f32 %v2806, %v2814
  %v2830 = vadd.f32 %v2807, %v2814
  %v2831 = vadd.f32 %v2808, %v2814
  %v2832 = vmax.f32 %v2816, 0.0
  %v2833 = vmax.f32 %v2817, 0.0
  %v2834 = vmax.f32 %v2818, 0.0
  %v2835 = vmax.f32 %v2819, 0.0
  %v2836 = vmax.f32 %v2820, 0.0
  %v2837 = vmax.f32 %v2821, 0.0
  %v2838 = vmax.f32 %v2822, 0.0
  %v2839 = vmax.f32 %v2823, 0.0
  %v2840 = vmax.f32 %v2824, 0.0
  %v2841 = vmax.f32 %v2825, 0.0
  %v2842 = vmax.f32 %v2826, 0.0
  %v2843 = vmax.f32 %v2827, 0.0
  %v2844 = vmax.f32 %v2828, 0.0
  %v2845 = vmax.f32 %v2829, 0.0
  %v2846 = vmax.f32 %v2830, 0.0
  %v2847 = vmax.f32 %v2831, 0.0
  %v2848 = vpack.c.bf16 %v2832, %v2832
  %v2849 = vpack.c.bf16 %v2833, %v2833
  %v2850 = vpack.c.bf16 %v2834, %v2834
  %v2851 = vpack.c.bf16 %v2835, %v2835
  %v2852 = vpack.c.bf16 %v2836, %v2836
  %v2853 = vpack.c.bf16 %v2837, %v2837
  %v2854 = vpack.c.bf16 %v2838, %v2838
  %v2855 = vpack.c.bf16 %v2839, %v2839
  %v2856 = vpack.c.bf16 %v2840, %v2840
  %v2857 = vpack.c.bf16 %v2841, %v2841
  %v2858 = vpack.c.bf16 %v2842, %v2842
  %v2859 = vpack.c.bf16 %v2843, %v2843
  %v2860 = vpack.c.bf16 %v2844, %v2844
  %v2861 = vpack.c.bf16 %v2845, %v2845
  %v2862 = vpack.c.bf16 %v2846, %v2846
  %v2863 = vpack.c.bf16 %v2847, %v2847
  %v2880 = vunpack.c.l.b16 %v2848
  %v2881 = vunpack.c.l.b16 %v2849
  %v2882 = vunpack.c.l.b16 %v2850
  %v2883 = vunpack.c.l.b16 %v2851
  %v2884 = vunpack.c.l.b16 %v2852
  %v2885 = vunpack.c.l.b16 %v2853
  %v2886 = vunpack.c.l.b16 %v2854
  %v2887 = vunpack.c.l.b16 %v2855
  %v2888 = vunpack.c.l.b16 %v2856
  %v2889 = vunpack.c.l.b16 %v2857
  %v2890 = vunpack.c.l.b16 %v2858
  %v2891 = vunpack.c.l.b16 %v2859
  %v2892 = vunpack.c.l.b16 %v2860
  %v2893 = vunpack.c.l.b16 %v2861
  %v2894 = vunpack.c.l.b16 %v2862
  %v2895 = vunpack.c.l.b16 %v2863
  %v2896 = vpack.c.b16 %v2880, %v2880
  %v2897 = vpack.c.b16 %v2881, %v2881
  %v2898 = vpack.c.b16 %v2882, %v2882
  %v2899 = vpack.c.b16 %v2883, %v2883
  %v2900 = vpack.c.b16 %v2884, %v2884
  %v2901 = vpack.c.b16 %v2885, %v2885
  %v2902 = vpack.c.b16 %v2886, %v2886
  %v2903 = vpack.c.b16 %v2887, %v2887
  %v2904 = vpack.c.b16 %v2888, %v2888
  %v2905 = vpack.c.b16 %v2889, %v2889
  %v2906 = vpack.c.b16 %v2890, %v2890
  %v2907 = vpack.c.b16 %v2891, %v2891
  %v2908 = vpack.c.b16 %v2892, %v2892
  %v2909 = vpack.c.b16 %v2893, %v2893
  %v2910 = vpack.c.b16 %v2894, %v2894
  %v2911 = vpack.c.b16 %v2895, %v2895
  %v2913 = vshrl.u32 %v2896, 16
  %v2915 = vrot.slane %v2913, 7
  %v2916 = vshll.u32 %v2896, 16
  %v2918 = vor.u32 %v2915, %v2916
  %v2919 = vrot.slane %v2915, 4
  %v2921 = vshrl.u32 %v2897, 16
  %v2923 = vrot.slane %v2921, 7
  %v2924 = vshll.u32 %v2897, 16
  %v2926 = vor.u32 %v2923, %v2924
  %v2927 = vrot.slane %v2923, 4
  %v2929 = vshrl.u32 %v2898, 16
  %v2931 = vrot.slane %v2929, 7
  %v2932 = vshll.u32 %v2898, 16
  %v2934 = vor.u32 %v2931, %v2932
  %v2935 = vrot.slane %v2931, 4
  %v2937 = vshrl.u32 %v2899, 16
  %v2939 = vrot.slane %v2937, 7
  %v2940 = vshll.u32 %v2899, 16
  %v2942 = vor.u32 %v2939, %v2940
  %v2943 = vrot.slane %v2939, 4
  %v2945 = vshrl.u32 %v2900, 16
  %v2947 = vrot.slane %v2945, 7
  %v2948 = vshll.u32 %v2900, 16
  %v2950 = vor.u32 %v2947, %v2948
  %v2951 = vrot.slane %v2947, 4
  %v2953 = vshrl.u32 %v2901, 16
  %v2955 = vrot.slane %v2953, 7
  %v2956 = vshll.u32 %v2901, 16
  %v2958 = vor.u32 %v2955, %v2956
  %v2959 = vrot.slane %v2955, 4
  %v2961 = vshrl.u32 %v2902, 16
  %v2963 = vrot.slane %v2961, 7
  %v2964 = vshll.u32 %v2902, 16
  %v2966 = vor.u32 %v2963, %v2964
  %v2967 = vrot.slane %v2963, 4
  %v2969 = vshrl.u32 %v2903, 16
  %v2971 = vrot.slane %v2969, 7
  %v2972 = vshll.u32 %v2903, 16
  %v2974 = vor.u32 %v2971, %v2972
  %v2975 = vrot.slane %v2971, 4
  %v2977 = vshrl.u32 %v2904, 16
  %v2979 = vrot.slane %v2977, 7
  %v2980 = vshll.u32 %v2904, 16
  %v2982 = vor.u32 %v2979, %v2980
  %v2983 = vrot.slane %v2979, 4
  %v2985 = vshrl.u32 %v2905, 16
  %v2987 = vrot.slane %v2985, 7
  %v2988 = vshll.u32 %v2905, 16
  %v2990 = vor.u32 %v2987, %v2988
  %v2991 = vrot.slane %v2987, 4
  %v2993 = vshrl.u32 %v2906, 16
  %v2995 = vrot.slane %v2993, 7
  %v2996 = vshll.u32 %v2906, 16
  %v2998 = vor.u32 %v2995, %v2996
  %v2999 = vrot.slane %v2995, 4
  %v3001 = vshrl.u32 %v2907, 16
  %v3003 = vrot.slane %v3001, 7
  %v3004 = vshll.u32 %v2907, 16
  %v3006 = vor.u32 %v3003, %v3004
  %v3007 = vrot.slane %v3003, 4
  %v3009 = vshrl.u32 %v2908, 16
  %v3011 = vrot.slane %v3009, 7
  %v3012 = vshll.u32 %v2908, 16
  %v3014 = vor.u32 %v3011, %v3012
  %v3015 = vrot.slane %v3011, 4
  %v3017 = vshrl.u32 %v2909, 16
  %v3019 = vrot.slane %v3017, 7
  %v3020 = vshll.u32 %v2909, 16
  %v3022 = vor.u32 %v3019, %v3020
  %v3023 = vrot.slane %v3019, 4
  %v3025 = vshrl.u32 %v2910, 16
  %v3027 = vrot.slane %v3025, 7
  %v3028 = vshll.u32 %v2910, 16
  %v3030 = vor.u32 %v3027, %v3028
  %v3031 = vrot.slane %v3027, 4
  %v3033 = vshrl.u32 %v2911, 16
  %v3035 = vrot.slane %v3033, 7
  %v3036 = vshll.u32 %v2911, 16
  %v3038 = vor.u32 %v3035, %v3036
  %v3039 = vrot.slane %v3035, 4
  %s3072 = scalar_lea.vmem [#allocation5], 8
  %vm3073 = vcmask 60416
  %vm3074 = vmand %vm3073, %vm806
  %v3075 = vld [vmem:[%s3072] sm:$0xf]
  %v3076 = vsel %vm3074, %v2918, %v3075
  %3077 = vst [vmem:[%s3072] sm:$0xf] %v3076
  %vm3078 = vcmask 57344
  %vm3079 = vmand %vm3078, %vm812
  %v3080 = vld [vmem:[%s3072 + $0x4] sm:$0x1]
  %v3081 = vsel %vm3079, %v2919, %v3080
  %3082 = vst [vmem:[%s3072 + $0x4] sm:$0x1] %v3081
  %v3083 = vld [vmem:[%s3072 + $0x8] sm:$0xf]
  %v3084 = vsel %vm3074, %v2926, %v3083
  %3085 = vst [vmem:[%s3072 + $0x8] sm:$0xf] %v3084
  %v3086 = vld [vmem:[%s3072 + $0xc] sm:$0x1]
  %v3087 = vsel %vm3079, %v2927, %v3086
  %3088 = vst [vmem:[%s3072 + $0xc] sm:$0x1] %v3087
  %v3089 = vld [vmem:[%s3072 + $0x10] sm:$0xf]
  %v3090 = vsel %vm3074, %v2934, %v3089
  %3091 = vst [vmem:[%s3072 + $0x10] sm:$0xf] %v3090
  %v3092 = vld [vmem:[%s3072 + $0x14] sm:$0x1]
  %v3093 = vsel %vm3079, %v2935, %v3092
  %3094 = vst [vmem:[%s3072 + $0x14] sm:$0x1] %v3093
  %v3095 = vld [vmem:[%s3072 + $0x18] sm:$0xf]
  %v3096 = vsel %vm3074, %v2942, %v3095
  %3097 = vst [vmem:[%s3072 + $0x18] sm:$0xf] %v3096
  %v3098 = vld [vmem:[%s3072 + $0x1c] sm:$0x1]
  %v3099 = vsel %vm3079, %v2943, %v3098
  %3100 = vst [vmem:[%s3072 + $0x1c] sm:$0x1] %v3099
  %v3101 = vld [vmem:[%s3072 + $0x20] sm:$0xf]
  %v3102 = vsel %vm3074, %v2950, %v3101
  %3103 = vst [vmem:[%s3072 + $0x20] sm:$0xf] %v3102
  %v3104 = vld [vmem:[%s3072 + $0x24] sm:$0x1]
  %v3105 = vsel %vm3079, %v2951, %v3104
  %3106 = vst [vmem:[%s3072 + $0x24] sm:$0x1] %v3105
  %v3107 = vld [vmem:[%s3072 + $0x28] sm:$0xf]
  %v3108 = vsel %vm3074, %v2958, %v3107
  %3109 = vst [vmem:[%s3072 + $0x28] sm:$0xf] %v3108
  %v3110 = vld [vmem:[%s3072 + $0x2c] sm:$0x1]
  %v3111 = vsel %vm3079, %v2959, %v3110
  %3112 = vst [vmem:[%s3072 + $0x2c] sm:$0x1] %v3111
  %v3113 = vld [vmem:[%s3072 + $0x30] sm:$0xf]
  %v3114 = vsel %vm3074, %v2966, %v3113
  %3115 = vst [vmem:[%s3072 + $0x30] sm:$0xf] %v3114
  %v3116 = vld [vmem:[%s3072 + $0x34] sm:$0x1]
  %v3117 = vsel %vm3079, %v2967, %v3116
  %3118 = vst [vmem:[%s3072 + $0x34] sm:$0x1] %v3117
  %v3119 = vld [vmem:[%s3072 + $0x38] sm:$0xf]
  %v3120 = vsel %vm3074, %v2974, %v3119
  %3121 = vst [vmem:[%s3072 + $0x38] sm:$0xf] %v3120
  %v3122 = vld [vmem:[%s3072 + $0x3c] sm:$0x1]
  %v3123 = vsel %vm3079, %v2975, %v3122
  %3124 = vst [vmem:[%s3072 + $0x3c] sm:$0x1] %v3123
  %v3125 = vld [vmem:[%s3072 + $0x50] sm:$0xf]
  %v3126 = vsel %vm3074, %v2982, %v3125
  %3127 = vst [vmem:[%s3072 + $0x50] sm:$0xf] %v3126
  %v3128 = vld [vmem:[%s3072 + $0x54] sm:$0x1]
  %v3129 = vsel %vm3079, %v2983, %v3128
  %3130 = vst [vmem:[%s3072 + $0x54] sm:$0x1] %v3129
  %v3131 = vld [vmem:[%s3072 + $0x58] sm:$0xf]
  %v3132 = vsel %vm3074, %v2990, %v3131
  %3133 = vst [vmem:[%s3072 + $0x58] sm:$0xf] %v3132
  %v3134 = vld [vmem:[%s3072 + $0x5c] sm:$0x1]
  %v3135 = vsel %vm3079, %v2991, %v3134
  %3136 = vst [vmem:[%s3072 + $0x5c] sm:$0x1] %v3135
  %v3137 = vld [vmem:[%s3072 + $0x60] sm:$0xf]
  %v3138 = vsel %vm3074, %v2998, %v3137
  %3139 = vst [vmem:[%s3072 + $0x60] sm:$0xf] %v3138
  %v3140 = vld [vmem:[%s3072 + $0x64] sm:$0x1]
  %v3141 = vsel %vm3079, %v2999, %v3140
  %3142 = vst [vmem:[%s3072 + $0x64] sm:$0x1] %v3141
  %v3143 = vld [vmem:[%s3072 + $0x68] sm:$0xf]
  %v3144 = vsel %vm3074, %v3006, %v3143
  %3145 = vst [vmem:[%s3072 + $0x68] sm:$0xf] %v3144
  %v3146 = vld [vmem:[%s3072 + $0x6c] sm:$0x1]
  %v3147 = vsel %vm3079, %v3007, %v3146
  %3148 = vst [vmem:[%s3072 + $0x6c] sm:$0x1] %v3147
  %v3149 = vld [vmem:[%s3072 + $0x70] sm:$0xf]
  %v3150 = vsel %vm3074, %v3014, %v3149
  %3151 = vst [vmem:[%s3072 + $0x70] sm:$0xf] %v3150
  %v3152 = vld [vmem:[%s3072 + $0x74] sm:$0x1]
  %v3153 = vsel %vm3079, %v3015, %v3152
  %3154 = vst [vmem:[%s3072 + $0x74] sm:$0x1] %v3153
  %v3155 = vld [vmem:[%s3072 + $0x78] sm:$0xf]
  %v3156 = vsel %vm3074, %v3022, %v3155
  %3157 = vst [vmem:[%s3072 + $0x78] sm:$0xf] %v3156
  %v3158 = vld [vmem:[%s3072 + $0x7c] sm:$0x1]
  %v3159 = vsel %vm3079, %v3023, %v3158
  %3160 = vst [vmem:[%s3072 + $0x7c] sm:$0x1] %v3159
  %v3161 = vld [vmem:[%s3072 + $0x80] sm:$0xf]
  %v3162 = vsel %vm3074, %v3030, %v3161
  %3163 = vst [vmem:[%s3072 + $0x80] sm:$0xf] %v3162
  %v3164 = vld [vmem:[%s3072 + $0x84] sm:$0x1]
  %v3165 = vsel %vm3079, %v3031, %v3164
  %3166 = vst [vmem:[%s3072 + $0x84] sm:$0x1] %v3165
  %v3167 = vld [vmem:[%s3072 + $0x88] sm:$0xf]
  %v3168 = vsel %vm3074, %v3038, %v3167
  %3169 = vst [vmem:[%s3072 + $0x88] sm:$0xf] %v3168
  %v3170 = vld [vmem:[%s3072 + $0x8c] sm:$0x1]
  %v3171 = vsel %vm3079, %v3039, %v3170
  %3172 = vst [vmem:[%s3072 + $0x8c] sm:$0x1] %v3171
  %v3173 = vld [vmem:[#allocation5] sm:$0xf]
  %v3174 = vld [vmem:[#allocation5 + $0x8] sm:$0xf]
  %v3175 = vld [vmem:[#allocation5 + $0x10] sm:$0xf]
  %v3176 = vld [vmem:[#allocation5 + $0x18] sm:$0xf]
  %v3177 = vld [vmem:[#allocation5 + $0x20] sm:$0xf]
  %v3178 = vld [vmem:[#allocation5 + $0x28] sm:$0xf]
  %v3179 = vld [vmem:[#allocation5 + $0x30] sm:$0xf]
  %v3180 = vld [vmem:[#allocation5 + $0x38] sm:$0xf]
  %v3181 = vld [vmem:[#allocation5 + $0x50] sm:$0xf]
  %v3182 = vld [vmem:[#allocation5 + $0x58] sm:$0xf]
  %v3183 = vld [vmem:[#allocation5 + $0x60] sm:$0xf]
  %v3184 = vld [vmem:[#allocation5 + $0x68] sm:$0xf]
  %v3185 = vld [vmem:[#allocation5 + $0x70] sm:$0xf]
  %v3186 = vld [vmem:[#allocation5 + $0x78] sm:$0xf]
  %v3187 = vld [vmem:[#allocation5 + $0x80] sm:$0xf]
  %v3188 = vld [vmem:[#allocation5 + $0x88] sm:$0xf]
  %v3189 = vld [vmem:[#allocation5 + $0x4] sm:$0x1]
  %v3190 = vld [vmem:[#allocation5 + $0xc] sm:$0x1]
  %v3191 = vld [vmem:[#allocation5 + $0x14] sm:$0x1]
  %v3192 = vld [vmem:[#allocation5 + $0x1c] sm:$0x1]
  %v3193 = vld [vmem:[#allocation5 + $0x24] sm:$0x1]
  %v3194 = vld [vmem:[#allocation5 + $0x2c] sm:$0x1]
  %v3195 = vld [vmem:[#allocation5 + $0x34] sm:$0x1]
  %v3196 = vld [vmem:[#allocation5 + $0x3c] sm:$0x1]
  %v3197 = vld [vmem:[#allocation5 + $0x54] sm:$0x1]
  %v3198 = vld [vmem:[#allocation5 + $0x5c] sm:$0x1]
  %v3199 = vld [vmem:[#allocation5 + $0x64] sm:$0x1]
  %v3200 = vld [vmem:[#allocation5 + $0x6c] sm:$0x1]
  %v3201 = vld [vmem:[#allocation5 + $0x74] sm:$0x1]
  %v3202 = vld [vmem:[#allocation5 + $0x7c] sm:$0x1]
  %v3203 = vld [vmem:[#allocation5 + $0x84] sm:$0x1]
  %v3204 = vld [vmem:[#allocation5 + $0x8c] sm:$0x1]
  %v3205 = vld [vmem:[#allocation5] sm:$0xe]
  %v3206 = vld [vmem:[#allocation5 + $0x8] sm:$0xe]
  %v3207 = vld [vmem:[#allocation5 + $0x10] sm:$0xe]
  %v3208 = vld [vmem:[#allocation5 + $0x18] sm:$0xe]
  %v3209 = vld [vmem:[#allocation5 + $0x20] sm:$0xe]
  %v3210 = vld [vmem:[#allocation5 + $0x28] sm:$0xe]
  %v3211 = vld [vmem:[#allocation5 + $0x30] sm:$0xe]
  %v3212 = vld [vmem:[#allocation5 + $0x38] sm:$0xe]
  %v3213 = vld [vmem:[#allocation5 + $0x50] sm:$0xe]
  %v3214 = vld [vmem:[#allocation5 + $0x58] sm:$0xe]
  %v3215 = vld [vmem:[#allocation5 + $0x60] sm:$0xe]
  %v3216 = vld [vmem:[#allocation5 + $0x68] sm:$0xe]
  %v3217 = vld [vmem:[#allocation5 + $0x70] sm:$0xe]
  %v3218 = vld [vmem:[#allocation5 + $0x78] sm:$0xe]
  %v3219 = vld [vmem:[#allocation5 + $0x80] sm:$0xe]
  %v3220 = vld [vmem:[#allocation5 + $0x88] sm:$0xe]
  %v3221 = vld [vmem:[%s3072] sm:$0xf]
  %v3222 = vld [vmem:[%s3072 + $0x8] sm:$0xf]
  %v3223 = vld [vmem:[%s3072 + $0x10] sm:$0xf]
  %v3224 = vld [vmem:[%s3072 + $0x18] sm:$0xf]
  %v3225 = vld [vmem:[%s3072 + $0x20] sm:$0xf]
  %v3226 = vld [vmem:[%s3072 + $0x28] sm:$0xf]
  %v3227 = vld [vmem:[%s3072 + $0x30] sm:$0xf]
  %v3228 = vld [vmem:[%s3072 + $0x38] sm:$0xf]
  %v3229 = vld [vmem:[%s3072 + $0x50] sm:$0xf]
  %v3230 = vld [vmem:[%s3072 + $0x58] sm:$0xf]
  %v3231 = vld [vmem:[%s3072 + $0x60] sm:$0xf]
  %v3232 = vld [vmem:[%s3072 + $0x68] sm:$0xf]
  %v3233 = vld [vmem:[%s3072 + $0x70] sm:$0xf]
  %v3234 = vld [vmem:[%s3072 + $0x78] sm:$0xf]
  %v3235 = vld [vmem:[%s3072 + $0x80] sm:$0xf]
  %v3236 = vld [vmem:[%s3072 + $0x88] sm:$0xf]
  %v3237 = vld [vmem:[%s3072 + $0x4] sm:$0x1]
  %v3238 = vld [vmem:[%s3072 + $0xc] sm:$0x1]
  %v3239 = vld [vmem:[%s3072 + $0x14] sm:$0x1]
  %v3240 = vld [vmem:[%s3072 + $0x1c] sm:$0x1]
  %v3241 = vld [vmem:[%s3072 + $0x24] sm:$0x1]
  %v3242 = vld [vmem:[%s3072 + $0x2c] sm:$0x1]
  %v3243 = vld [vmem:[%s3072 + $0x34] sm:$0x1]
  %v3244 = vld [vmem:[%s3072 + $0x3c] sm:$0x1]
  %v3245 = vld [vmem:[%s3072 + $0x54] sm:$0x1]
  %v3246 = vld [vmem:[%s3072 + $0x5c] sm:$0x1]
  %v3247 = vld [vmem:[%s3072 + $0x64] sm:$0x1]
  %v3248 = vld [vmem:[%s3072 + $0x6c] sm:$0x1]
  %v3249 = vld [vmem:[%s3072 + $0x74] sm:$0x1]
  %v3250 = vld [vmem:[%s3072 + $0x7c] sm:$0x1]
  %v3251 = vld [vmem:[%s3072 + $0x84] sm:$0x1]
  %v3252 = vld [vmem:[%s3072 + $0x8c] sm:$0x1]
  %v3253 = vld [vmem:[%s3072] sm:$0xe]
  %v3254 = vld [vmem:[%s3072 + $0x8] sm:$0xe]
  %v3255 = vld [vmem:[%s3072 + $0x10] sm:$0xe]
  %v3256 = vld [vmem:[%s3072 + $0x18] sm:$0xe]
  %v3257 = vld [vmem:[%s3072 + $0x20] sm:$0xe]
  %v3258 = vld [vmem:[%s3072 + $0x28] sm:$0xe]
  %v3259 = vld [vmem:[%s3072 + $0x30] sm:$0xe]
  %v3260 = vld [vmem:[%s3072 + $0x38] sm:$0xe]
  %v3261 = vld [vmem:[%s3072 + $0x50] sm:$0xe]
  %v3262 = vld [vmem:[%s3072 + $0x58] sm:$0xe]
  %v3263 = vld [vmem:[%s3072 + $0x60] sm:$0xe]
  %v3264 = vld [vmem:[%s3072 + $0x68] sm:$0xe]
  %v3265 = vld [vmem:[%s3072 + $0x70] sm:$0xe]
  %v3266 = vld [vmem:[%s3072 + $0x78] sm:$0xe]
  %v3267 = vld [vmem:[%s3072 + $0x80] sm:$0xe]
  %v3268 = vld [vmem:[%s3072 + $0x88] sm:$0xe]
  %s3269 = scalar_lea.vmem [#allocation5], 16
  %v3270 = vld [vmem:[%s3269] sm:$0xf]
  %v3271 = vld [vmem:[%s3269 + $0x8] sm:$0xf]
  %v3272 = vld [vmem:[%s3269 + $0x10] sm:$0xf]
  %v3273 = vld [vmem:[%s3269 + $0x18] sm:$0xf]
  %v3274 = vld [vmem:[%s3269 + $0x20] sm:$0xf]
  %v3275 = vld [vmem:[%s3269 + $0x28] sm:$0xf]
  %v3276 = vld [vmem:[%s3269 + $0x30] sm:$0xf]
  %v3277 = vld [vmem:[%s3269 + $0x38] sm:$0xf]
  %v3278 = vld [vmem:[%s3269 + $0x50] sm:$0xf]
  %v3279 = vld [vmem:[%s3269 + $0x58] sm:$0xf]
  %v3280 = vld [vmem:[%s3269 + $0x60] sm:$0xf]
  %v3281 = vld [vmem:[%s3269 + $0x68] sm:$0xf]
  %v3282 = vld [vmem:[%s3269 + $0x70] sm:$0xf]
  %v3283 = vld [vmem:[%s3269 + $0x78] sm:$0xf]
  %v3284 = vld [vmem:[%s3269 + $0x80] sm:$0xf]
  %v3285 = vld [vmem:[%s3269 + $0x88] sm:$0xf]
  %v3286 = vld [vmem:[%s3269 + $0x4] sm:$0x1]
  %v3287 = vld [vmem:[%s3269 + $0xc] sm:$0x1]
  %v3288 = vld [vmem:[%s3269 + $0x14] sm:$0x1]
  %v3289 = vld [vmem:[%s3269 + $0x1c] sm:$0x1]
  %v3290 = vld [vmem:[%s3269 + $0x24] sm:$0x1]
  %v3291 = vld [vmem:[%s3269 + $0x2c] sm:$0x1]
  %v3292 = vld [vmem:[%s3269 + $0x34] sm:$0x1]
  %v3293 = vld [vmem:[%s3269 + $0x3c] sm:$0x1]
  %v3294 = vld [vmem:[%s3269 + $0x54] sm:$0x1]
  %v3295 = vld [vmem:[%s3269 + $0x5c] sm:$0x1]
  %v3296 = vld [vmem:[%s3269 + $0x64] sm:$0x1]
  %v3297 = vld [vmem:[%s3269 + $0x6c] sm:$0x1]
  %v3298 = vld [vmem:[%s3269 + $0x74] sm:$0x1]
  %v3299 = vld [vmem:[%s3269 + $0x7c] sm:$0x1]
  %v3300 = vld [vmem:[%s3269 + $0x84] sm:$0x1]
  %v3301 = vld [vmem:[%s3269 + $0x8c] sm:$0x1]
  %v3302 = vld [vmem:[%s3269] sm:$0xe]
  %v3303 = vld [vmem:[%s3269 + $0x8] sm:$0xe]
  %v3304 = vld [vmem:[%s3269 + $0x10] sm:$0xe]
  %v3305 = vld [vmem:[%s3269 + $0x18] sm:$0xe]
  %v3306 = vld [vmem:[%s3269 + $0x20] sm:$0xe]
  %v3307 = vld [vmem:[%s3269 + $0x28] sm:$0xe]
  %v3308 = vld [vmem:[%s3269 + $0x30] sm:$0xe]
  %v3309 = vld [vmem:[%s3269 + $0x38] sm:$0xe]
  %v3310 = vld [vmem:[%s3269 + $0x50] sm:$0xe]
  %v3311 = vld [vmem:[%s3269 + $0x58] sm:$0xe]
  %v3312 = vld [vmem:[%s3269 + $0x60] sm:$0xe]
  %v3313 = vld [vmem:[%s3269 + $0x68] sm:$0xe]
  %v3314 = vld [vmem:[%s3269 + $0x70] sm:$0xe]
  %v3315 = vld [vmem:[%s3269 + $0x78] sm:$0xe]
  %v3316 = vld [vmem:[%s3269 + $0x80] sm:$0xe]
  %v3317 = vld [vmem:[%s3269 + $0x88] sm:$0xe]
  %v3319 = vshrl.u32 %v3173, 16
  %v3321 = vrot.slane %v3319, 4
  %v3322 = vshll.u32 %v3173, 16
  %v3324 = vrot.slane %v3322, 5
  %v3325 = vor.u32 %v3321, %v3324
  %v3326 = vrot.slane %v3325, 4
  %v3328 = vshll.u32 %v3189, 16
  %v3330 = vrot.slane %v3328, 5
  %v3331 = vsel %vm1391, %v3326, %v3330
  %v3333 = vshrl.u32 %v3174, 16
  %v3335 = vrot.slane %v3333, 4
  %v3336 = vshll.u32 %v3174, 16
  %v3338 = vrot.slane %v3336, 5
  %v3339 = vor.u32 %v3335, %v3338
  %v3340 = vrot.slane %v3339, 4
  %v3342 = vshll.u32 %v3190, 16
  %v3344 = vrot.slane %v3342, 5
  %v3345 = vsel %vm1391, %v3340, %v3344
  %v3347 = vshrl.u32 %v3175, 16
  %v3349 = vrot.slane %v3347, 4
  %v3350 = vshll.u32 %v3175, 16
  %v3352 = vrot.slane %v3350, 5
  %v3353 = vor.u32 %v3349, %v3352
  %v3354 = vrot.slane %v3353, 4
  %v3356 = vshll.u32 %v3191, 16
  %v3358 = vrot.slane %v3356, 5
  %v3359 = vsel %vm1391, %v3354, %v3358
  %v3361 = vshrl.u32 %v3176, 16
  %v3363 = vrot.slane %v3361, 4
  %v3364 = vshll.u32 %v3176, 16
  %v3366 = vrot.slane %v3364, 5
  %v3367 = vor.u32 %v3363, %v3366
  %v3368 = vrot.slane %v3367, 4
  %v3370 = vshll.u32 %v3192, 16
  %v3372 = vrot.slane %v3370, 5
  %v3373 = vsel %vm1391, %v3368, %v3372
  %v3375 = vshrl.u32 %v3177, 16
  %v3377 = vrot.slane %v3375, 4
  %v3378 = vshll.u32 %v3177, 16
  %v3380 = vrot.slane %v3378, 5
  %v3381 = vor.u32 %v3377, %v3380
  %v3382 = vrot.slane %v3381, 4
  %v3384 = vshll.u32 %v3193, 16
  %v3386 = vrot.slane %v3384, 5
  %v3387 = vsel %vm1391, %v3382, %v3386
  %v3389 = vshrl.u32 %v3178, 16
  %v3391 = vrot.slane %v3389, 4
  %v3392 = vshll.u32 %v3178, 16
  %v3394 = vrot.slane %v3392, 5
  %v3395 = vor.u32 %v3391, %v3394
  %v3396 = vrot.slane %v3395, 4
  %v3398 = vshll.u32 %v3194, 16
  %v3400 = vrot.slane %v3398, 5
  %v3401 = vsel %vm1391, %v3396, %v3400
  %v3403 = vshrl.u32 %v3179, 16
  %v3405 = vrot.slane %v3403, 4
  %v3406 = vshll.u32 %v3179, 16
  %v3408 = vrot.slane %v3406, 5
  %v3409 = vor.u32 %v3405, %v3408
  %v3410 = vrot.slane %v3409, 4
  %v3412 = vshll.u32 %v3195, 16
  %v3414 = vrot.slane %v3412, 5
  %v3415 = vsel %vm1391, %v3410, %v3414
  %v3417 = vshrl.u32 %v3180, 16
  %v3419 = vrot.slane %v3417, 4
  %v3420 = vshll.u32 %v3180, 16
  %v3422 = vrot.slane %v3420, 5
  %v3423 = vor.u32 %v3419, %v3422
  %v3424 = vrot.slane %v3423, 4
  %v3426 = vshll.u32 %v3196, 16
  %v3428 = vrot.slane %v3426, 5
  %v3429 = vsel %vm1391, %v3424, %v3428
  %v3431 = vshrl.u32 %v3181, 16
  %v3433 = vrot.slane %v3431, 4
  %v3434 = vshll.u32 %v3181, 16
  %v3436 = vrot.slane %v3434, 5
  %v3437 = vor.u32 %v3433, %v3436
  %v3438 = vrot.slane %v3437, 4
  %v3440 = vshll.u32 %v3197, 16
  %v3442 = vrot.slane %v3440, 5
  %v3443 = vsel %vm1391, %v3438, %v3442
  %v3445 = vshrl.u32 %v3182, 16
  %v3447 = vrot.slane %v3445, 4
  %v3448 = vshll.u32 %v3182, 16
  %v3450 = vrot.slane %v3448, 5
  %v3451 = vor.u32 %v3447, %v3450
  %v3452 = vrot.slane %v3451, 4
  %v3454 = vshll.u32 %v3198, 16
  %v3456 = vrot.slane %v3454, 5
  %v3457 = vsel %vm1391, %v3452, %v3456
  %v3459 = vshrl.u32 %v3183, 16
  %v3461 = vrot.slane %v3459, 4
  %v3462 = vshll.u32 %v3183, 16
  %v3464 = vrot.slane %v3462, 5
  %v3465 = vor.u32 %v3461, %v3464
  %v3466 = vrot.slane %v3465, 4
  %v3468 = vshll.u32 %v3199, 16
  %v3470 = vrot.slane %v3468, 5
  %v3471 = vsel %vm1391, %v3466, %v3470
  %v3473 = vshrl.u32 %v3184, 16
  %v3475 = vrot.slane %v3473, 4
  %v3476 = vshll.u32 %v3184, 16
  %v3478 = vrot.slane %v3476, 5
  %v3479 = vor.u32 %v3475, %v3478
  %v3480 = vrot.slane %v3479, 4
  %v3482 = vshll.u32 %v3200, 16
  %v3484 = vrot.slane %v3482, 5
  %v3485 = vsel %vm1391, %v3480, %v3484
  %v3487 = vshrl.u32 %v3185, 16
  %v3489 = vrot.slane %v3487, 4
  %v3490 = vshll.u32 %v3185, 16
  %v3492 = vrot.slane %v3490, 5
  %v3493 = vor.u32 %v3489, %v3492
  %v3494 = vrot.slane %v3493, 4
  %v3496 = vshll.u32 %v3201, 16
  %v3498 = vrot.slane %v3496, 5
  %v3499 = vsel %vm1391, %v3494, %v3498
  %v3501 = vshrl.u32 %v3186, 16
  %v3503 = vrot.slane %v3501, 4
  %v3504 = vshll.u32 %v3186, 16
  %v3506 = vrot.slane %v3504, 5
  %v3507 = vor.u32 %v3503, %v3506
  %v3508 = vrot.slane %v3507, 4
  %v3510 = vshll.u32 %v3202, 16
  %v3512 = vrot.slane %v3510, 5
  %v3513 = vsel %vm1391, %v3508, %v3512
  %v3515 = vshrl.u32 %v3187, 16
  %v3517 = vrot.slane %v3515, 4
  %v3518 = vshll.u32 %v3187, 16
  %v3520 = vrot.slane %v3518, 5
  %v3521 = vor.u32 %v3517, %v3520
  %v3522 = vrot.slane %v3521, 4
  %v3524 = vshll.u32 %v3203, 16
  %v3526 = vrot.slane %v3524, 5
  %v3527 = vsel %vm1391, %v3522, %v3526
  %v3529 = vshrl.u32 %v3188, 16
  %v3531 = vrot.slane %v3529, 4
  %v3532 = vshll.u32 %v3188, 16
  %v3534 = vrot.slane %v3532, 5
  %v3535 = vor.u32 %v3531, %v3534
  %v3536 = vrot.slane %v3535, 4
  %v3538 = vshll.u32 %v3204, 16
  %v3540 = vrot.slane %v3538, 5
  %v3541 = vsel %vm1391, %v3536, %v3540
  %vm3574 = vcmask 1042432
  %vm3575 = vcmask 1046532
  %vm3576 = vmor %vm3574, %vm3575
  %v3577 = vrot.slane %v3205, 5
  %v3578 = vrot.slane %v3577, 4
  %v3579 = vrot.slane %v3189, 5
  %v3580 = vsel %vm3576, %v3578, %v3579
  %v3581 = vrot.slane %v3206, 5
  %v3582 = vrot.slane %v3581, 4
  %v3583 = vrot.slane %v3190, 5
  %v3584 = vsel %vm3576, %v3582, %v3583
  %v3585 = vrot.slane %v3207, 5
  %v3586 = vrot.slane %v3585, 4
  %v3587 = vrot.slane %v3191, 5
  %v3588 = vsel %vm3576, %v3586, %v3587
  %v3589 = vrot.slane %v3208, 5
  %v3590 = vrot.slane %v3589, 4
  %v3591 = vrot.slane %v3192, 5
  %v3592 = vsel %vm3576, %v3590, %v3591
  %v3593 = vrot.slane %v3209, 5
  %v3594 = vrot.slane %v3593, 4
  %v3595 = vrot.slane %v3193, 5
  %v3596 = vsel %vm3576, %v3594, %v3595
  %v3597 = vrot.slane %v3210, 5
  %v3598 = vrot.slane %v3597, 4
  %v3599 = vrot.slane %v3194, 5
  %v3600 = vsel %vm3576, %v3598, %v3599
  %v3601 = vrot.slane %v3211, 5
  %v3602 = vrot.slane %v3601, 4
  %v3603 = vrot.slane %v3195, 5
  %v3604 = vsel %vm3576, %v3602, %v3603
  %v3605 = vrot.slane %v3212, 5
  %v3606 = vrot.slane %v3605, 4
  %v3607 = vrot.slane %v3196, 5
  %v3608 = vsel %vm3576, %v3606, %v3607
  %v3609 = vrot.slane %v3213, 5
  %v3610 = vrot.slane %v3609, 4
  %v3611 = vrot.slane %v3197, 5
  %v3612 = vsel %vm3576, %v3610, %v3611
  %v3613 = vrot.slane %v3214, 5
  %v3614 = vrot.slane %v3613, 4
  %v3615 = vrot.slane %v3198, 5
  %v3616 = vsel %vm3576, %v3614, %v3615
  %v3617 = vrot.slane %v3215, 5
  %v3618 = vrot.slane %v3617, 4
  %v3619 = vrot.slane %v3199, 5
  %v3620 = vsel %vm3576, %v3618, %v3619
  %v3621 = vrot.slane %v3216, 5
  %v3622 = vrot.slane %v3621, 4
  %v3623 = vrot.slane %v3200, 5
  %v3624 = vsel %vm3576, %v3622, %v3623
  %v3625 = vrot.slane %v3217, 5
  %v3626 = vrot.slane %v3625, 4
  %v3627 = vrot.slane %v3201, 5
  %v3628 = vsel %vm3576, %v3626, %v3627
  %v3629 = vrot.slane %v3218, 5
  %v3630 = vrot.slane %v3629, 4
  %v3631 = vrot.slane %v3202, 5
  %v3632 = vsel %vm3576, %v3630, %v3631
  %v3633 = vrot.slane %v3219, 5
  %v3634 = vrot.slane %v3633, 4
  %v3635 = vrot.slane %v3203, 5
  %v3636 = vsel %vm3576, %v3634, %v3635
  %v3637 = vrot.slane %v3220, 5
  %v3638 = vrot.slane %v3637, 4
  %v3639 = vrot.slane %v3204, 5
  %v3640 = vsel %vm3576, %v3638, %v3639
  %v3642 = vshrl.u32 %v3221, 16
  %v3644 = vrot.slane %v3642, 4
  %v3645 = vshll.u32 %v3221, 16
  %v3647 = vrot.slane %v3645, 5
  %v3648 = vor.u32 %v3644, %v3647
  %v3649 = vrot.slane %v3648, 4
  %v3651 = vshll.u32 %v3237, 16
  %v3653 = vrot.slane %v3651, 5
  %v3654 = vsel %vm1391, %v3649, %v3653
  %v3656 = vshrl.u32 %v3222, 16
  %v3658 = vrot.slane %v3656, 4
  %v3659 = vshll.u32 %v3222, 16
  %v3661 = vrot.slane %v3659, 5
  %v3662 = vor.u32 %v3658, %v3661
  %v3663 = vrot.slane %v3662, 4
  %v3665 = vshll.u32 %v3238, 16
  %v3667 = vrot.slane %v3665, 5
  %v3668 = vsel %vm1391, %v3663, %v3667
  %v3670 = vshrl.u32 %v3223, 16
  %v3672 = vrot.slane %v3670, 4
  %v3673 = vshll.u32 %v3223, 16
  %v3675 = vrot.slane %v3673, 5
  %v3676 = vor.u32 %v3672, %v3675
  %v3677 = vrot.slane %v3676, 4
  %v3679 = vshll.u32 %v3239, 16
  %v3681 = vrot.slane %v3679, 5
  %v3682 = vsel %vm1391, %v3677, %v3681
  %v3684 = vshrl.u32 %v3224, 16
  %v3686 = vrot.slane %v3684, 4
  %v3687 = vshll.u32 %v3224, 16
  %v3689 = vrot.slane %v3687, 5
  %v3690 = vor.u32 %v3686, %v3689
  %v3691 = vrot.slane %v3690, 4
  %v3693 = vshll.u32 %v3240, 16
  %v3695 = vrot.slane %v3693, 5
  %v3696 = vsel %vm1391, %v3691, %v3695
  %v3698 = vshrl.u32 %v3225, 16
  %v3700 = vrot.slane %v3698, 4
  %v3701 = vshll.u32 %v3225, 16
  %v3703 = vrot.slane %v3701, 5
  %v3704 = vor.u32 %v3700, %v3703
  %v3705 = vrot.slane %v3704, 4
  %v3707 = vshll.u32 %v3241, 16
  %v3709 = vrot.slane %v3707, 5
  %v3710 = vsel %vm1391, %v3705, %v3709
  %v3712 = vshrl.u32 %v3226, 16
  %v3714 = vrot.slane %v3712, 4
  %v3715 = vshll.u32 %v3226, 16
  %v3717 = vrot.slane %v3715, 5
  %v3718 = vor.u32 %v3714, %v3717
  %v3719 = vrot.slane %v3718, 4
  %v3721 = vshll.u32 %v3242, 16
  %v3723 = vrot.slane %v3721, 5
  %v3724 = vsel %vm1391, %v3719, %v3723
  %v3726 = vshrl.u32 %v3227, 16
  %v3728 = vrot.slane %v3726, 4
  %v3729 = vshll.u32 %v3227, 16
  %v3731 = vrot.slane %v3729, 5
  %v3732 = vor.u32 %v3728, %v3731
  %v3733 = vrot.slane %v3732, 4
  %v3735 = vshll.u32 %v3243, 16
  %v3737 = vrot.slane %v3735, 5
  %v3738 = vsel %vm1391, %v3733, %v3737
  %v3740 = vshrl.u32 %v3228, 16
  %v3742 = vrot.slane %v3740, 4
  %v3743 = vshll.u32 %v3228, 16
  %v3745 = vrot.slane %v3743, 5
  %v3746 = vor.u32 %v3742, %v3745
  %v3747 = vrot.slane %v3746, 4
  %v3749 = vshll.u32 %v3244, 16
  %v3751 = vrot.slane %v3749, 5
  %v3752 = vsel %vm1391, %v3747, %v3751
  %v3754 = vshrl.u32 %v3229, 16
  %v3756 = vrot.slane %v3754, 4
  %v3757 = vshll.u32 %v3229, 16
  %v3759 = vrot.slane %v3757, 5
  %v3760 = vor.u32 %v3756, %v3759
  %v3761 = vrot.slane %v3760, 4
  %v3763 = vshll.u32 %v3245, 16
  %v3765 = vrot.slane %v3763, 5
  %v3766 = vsel %vm1391, %v3761, %v3765
  %v3768 = vshrl.u32 %v3230, 16
  %v3770 = vrot.slane %v3768, 4
  %v3771 = vshll.u32 %v3230, 16
  %v3773 = vrot.slane %v3771, 5
  %v3774 = vor.u32 %v3770, %v3773
  %v3775 = vrot.slane %v3774, 4
  %v3777 = vshll.u32 %v3246, 16
  %v3779 = vrot.slane %v3777, 5
  %v3780 = vsel %vm1391, %v3775, %v3779
  %v3782 = vshrl.u32 %v3231, 16
  %v3784 = vrot.slane %v3782, 4
  %v3785 = vshll.u32 %v3231, 16
  %v3787 = vrot.slane %v3785, 5
  %v3788 = vor.u32 %v3784, %v3787
  %v3789 = vrot.slane %v3788, 4
  %v3791 = vshll.u32 %v3247, 16
  %v3793 = vrot.slane %v3791, 5
  %v3794 = vsel %vm1391, %v3789, %v3793
  %v3796 = vshrl.u32 %v3232, 16
  %v3798 = vrot.slane %v3796, 4
  %v3799 = vshll.u32 %v3232, 16
  %v3801 = vrot.slane %v3799, 5
  %v3802 = vor.u32 %v3798, %v3801
  %v3803 = vrot.slane %v3802, 4
  %v3805 = vshll.u32 %v3248, 16
  %v3807 = vrot.slane %v3805, 5
  %v3808 = vsel %vm1391, %v3803, %v3807
  %v3810 = vshrl.u32 %v3233, 16
  %v3812 = vrot.slane %v3810, 4
  %v3813 = vshll.u32 %v3233, 16
  %v3815 = vrot.slane %v3813, 5
  %v3816 = vor.u32 %v3812, %v3815
  %v3817 = vrot.slane %v3816, 4
  %v3819 = vshll.u32 %v3249, 16
  %v3821 = vrot.slane %v3819, 5
  %v3822 = vsel %vm1391, %v3817, %v3821
  %v3824 = vshrl.u32 %v3234, 16
  %v3826 = vrot.slane %v3824, 4
  %v3827 = vshll.u32 %v3234, 16
  %v3829 = vrot.slane %v3827, 5
  %v3830 = vor.u32 %v3826, %v3829
  %v3831 = vrot.slane %v3830, 4
  %v3833 = vshll.u32 %v3250, 16
  %v3835 = vrot.slane %v3833, 5
  %v3836 = vsel %vm1391, %v3831, %v3835
  %v3838 = vshrl.u32 %v3235, 16
  %v3840 = vrot.slane %v3838, 4
  %v3841 = vshll.u32 %v3235, 16
  %v3843 = vrot.slane %v3841, 5
  %v3844 = vor.u32 %v3840, %v3843
  %v3845 = vrot.slane %v3844, 4
  %v3847 = vshll.u32 %v3251, 16
  %v3849 = vrot.slane %v3847, 5
  %v3850 = vsel %vm1391, %v3845, %v3849
  %v3852 = vshrl.u32 %v3236, 16
  %v3854 = vrot.slane %v3852, 4
  %v3855 = vshll.u32 %v3236, 16
  %v3857 = vrot.slane %v3855, 5
  %v3858 = vor.u32 %v3854, %v3857
  %v3859 = vrot.slane %v3858, 4
  %v3861 = vshll.u32 %v3252, 16
  %v3863 = vrot.slane %v3861, 5
  %v3864 = vsel %vm1391, %v3859, %v3863
  %v3897 = vrot.slane %v3253, 5
  %v3898 = vrot.slane %v3897, 4
  %v3899 = vrot.slane %v3237, 5
  %v3900 = vsel %vm3576, %v3898, %v3899
  %v3901 = vrot.slane %v3254, 5
  %v3902 = vrot.slane %v3901, 4
  %v3903 = vrot.slane %v3238, 5
  %v3904 = vsel %vm3576, %v3902, %v3903
  %v3905 = vrot.slane %v3255, 5
  %v3906 = vrot.slane %v3905, 4
  %v3907 = vrot.slane %v3239, 5
  %v3908 = vsel %vm3576, %v3906, %v3907
  %v3909 = vrot.slane %v3256, 5
  %v3910 = vrot.slane %v3909, 4
  %v3911 = vrot.slane %v3240, 5
  %v3912 = vsel %vm3576, %v3910, %v3911
  %v3913 = vrot.slane %v3257, 5
  %v3914 = vrot.slane %v3913, 4
  %v3915 = vrot.slane %v3241, 5
  %v3916 = vsel %vm3576, %v3914, %v3915
  %v3917 = vrot.slane %v3258, 5
  %v3918 = vrot.slane %v3917, 4
  %v3919 = vrot.slane %v3242, 5
  %v3920 = vsel %vm3576, %v3918, %v3919
  %v3921 = vrot.slane %v3259, 5
  %v3922 = vrot.slane %v3921, 4
  %v3923 = vrot.slane %v3243, 5
  %v3924 = vsel %vm3576, %v3922, %v3923
  %v3925 = vrot.slane %v3260, 5
  %v3926 = vrot.slane %v3925, 4
  %v3927 = vrot.slane %v3244, 5
  %v3928 = vsel %vm3576, %v3926, %v3927
  %v3929 = vrot.slane %v3261, 5
  %v3930 = vrot.slane %v3929, 4
  %v3931 = vrot.slane %v3245, 5
  %v3932 = vsel %vm3576, %v3930, %v3931
  %v3933 = vrot.slane %v3262, 5
  %v3934 = vrot.slane %v3933, 4
  %v3935 = vrot.slane %v3246, 5
  %v3936 = vsel %vm3576, %v3934, %v3935
  %v3937 = vrot.slane %v3263, 5
  %v3938 = vrot.slane %v3937, 4
  %v3939 = vrot.slane %v3247, 5
  %v3940 = vsel %vm3576, %v3938, %v3939
  %v3941 = vrot.slane %v3264, 5
  %v3942 = vrot.slane %v3941, 4
  %v3943 = vrot.slane %v3248, 5
  %v3944 = vsel %vm3576, %v3942, %v3943
  %v3945 = vrot.slane %v3265, 5
  %v3946 = vrot.slane %v3945, 4
  %v3947 = vrot.slane %v3249, 5
  %v3948 = vsel %vm3576, %v3946, %v3947
  %v3949 = vrot.slane %v3266, 5
  %v3950 = vrot.slane %v3949, 4
  %v3951 = vrot.slane %v3250, 5
  %v3952 = vsel %vm3576, %v3950, %v3951
  %v3953 = vrot.slane %v3267, 5
  %v3954 = vrot.slane %v3953, 4
  %v3955 = vrot.slane %v3251, 5
  %v3956 = vsel %vm3576, %v3954, %v3955
  %v3957 = vrot.slane %v3268, 5
  %v3958 = vrot.slane %v3957, 4
  %v3959 = vrot.slane %v3252, 5
  %v3960 = vsel %vm3576, %v3958, %v3959
  %v3962 = vshrl.u32 %v3270, 16
  %v3964 = vrot.slane %v3962, 4
  %v3965 = vshll.u32 %v3270, 16
  %v3967 = vrot.slane %v3965, 5
  %v3968 = vor.u32 %v3964, %v3967
  %v3969 = vrot.slane %v3968, 4
  %v3971 = vshll.u32 %v3286, 16
  %v3973 = vrot.slane %v3971, 5
  %v3974 = vsel %vm1391, %v3969, %v3973
  %v3976 = vshrl.u32 %v3271, 16
  %v3978 = vrot.slane %v3976, 4
  %v3979 = vshll.u32 %v3271, 16
  %v3981 = vrot.slane %v3979, 5
  %v3982 = vor.u32 %v3978, %v3981
  %v3983 = vrot.slane %v3982, 4
  %v3985 = vshll.u32 %v3287, 16
  %v3987 = vrot.slane %v3985, 5
  %v3988 = vsel %vm1391, %v3983, %v3987
  %v3990 = vshrl.u32 %v3272, 16
  %v3992 = vrot.slane %v3990, 4
  %v3993 = vshll.u32 %v3272, 16
  %v3995 = vrot.slane %v3993, 5
  %v3996 = vor.u32 %v3992, %v3995
  %v3997 = vrot.slane %v3996, 4
  %v3999 = vshll.u32 %v3288, 16
  %v4001 = vrot.slane %v3999, 5
  %v4002 = vsel %vm1391, %v3997, %v4001
  %v4004 = vshrl.u32 %v3273, 16
  %v4006 = vrot.slane %v4004, 4
  %v4007 = vshll.u32 %v3273, 16
  %v4009 = vrot.slane %v4007, 5
  %v4010 = vor.u32 %v4006, %v4009
  %v4011 = vrot.slane %v4010, 4
  %v4013 = vshll.u32 %v3289, 16
  %v4015 = vrot.slane %v4013, 5
  %v4016 = vsel %vm1391, %v4011, %v4015
  %v4018 = vshrl.u32 %v3274, 16
  %v4020 = vrot.slane %v4018, 4
  %v4021 = vshll.u32 %v3274, 16
  %v4023 = vrot.slane %v4021, 5
  %v4024 = vor.u32 %v4020, %v4023
  %v4025 = vrot.slane %v4024, 4
  %v4027 = vshll.u32 %v3290, 16
  %v4029 = vrot.slane %v4027, 5
  %v4030 = vsel %vm1391, %v4025, %v4029
  %v4032 = vshrl.u32 %v3275, 16
  %v4034 = vrot.slane %v4032, 4
  %v4035 = vshll.u32 %v3275, 16
  %v4037 = vrot.slane %v4035, 5
  %v4038 = vor.u32 %v4034, %v4037
  %v4039 = vrot.slane %v4038, 4
  %v4041 = vshll.u32 %v3291, 16
  %v4043 = vrot.slane %v4041, 5
  %v4044 = vsel %vm1391, %v4039, %v4043
  %v4046 = vshrl.u32 %v3276, 16
  %v4048 = vrot.slane %v4046, 4
  %v4049 = vshll.u32 %v3276, 16
  %v4051 = vrot.slane %v4049, 5
  %v4052 = vor.u32 %v4048, %v4051
  %v4053 = vrot.slane %v4052, 4
  %v4055 = vshll.u32 %v3292, 16
  %v4057 = vrot.slane %v4055, 5
  %v4058 = vsel %vm1391, %v4053, %v4057
  %v4060 = vshrl.u32 %v3277, 16
  %v4062 = vrot.slane %v4060, 4
  %v4063 = vshll.u32 %v3277, 16
  %v4065 = vrot.slane %v4063, 5
  %v4066 = vor.u32 %v4062, %v4065
  %v4067 = vrot.slane %v4066, 4
  %v4069 = vshll.u32 %v3293, 16
  %v4071 = vrot.slane %v4069, 5
  %v4072 = vsel %vm1391, %v4067, %v4071
  %v4074 = vshrl.u32 %v3278, 16
  %v4076 = vrot.slane %v4074, 4
  %v4077 = vshll.u32 %v3278, 16
  %v4079 = vrot.slane %v4077, 5
  %v4080 = vor.u32 %v4076, %v4079
  %v4081 = vrot.slane %v4080, 4
  %v4083 = vshll.u32 %v3294, 16
  %v4085 = vrot.slane %v4083, 5
  %v4086 = vsel %vm1391, %v4081, %v4085
  %v4088 = vshrl.u32 %v3279, 16
  %v4090 = vrot.slane %v4088, 4
  %v4091 = vshll.u32 %v3279, 16
  %v4093 = vrot.slane %v4091, 5
  %v4094 = vor.u32 %v4090, %v4093
  %v4095 = vrot.slane %v4094, 4
  %v4097 = vshll.u32 %v3295, 16
  %v4099 = vrot.slane %v4097, 5
  %v4100 = vsel %vm1391, %v4095, %v4099
  %v4102 = vshrl.u32 %v3280, 16
  %v4104 = vrot.slane %v4102, 4
  %v4105 = vshll.u32 %v3280, 16
  %v4107 = vrot.slane %v4105, 5
  %v4108 = vor.u32 %v4104, %v4107
  %v4109 = vrot.slane %v4108, 4
  %v4111 = vshll.u32 %v3296, 16
  %v4113 = vrot.slane %v4111, 5
  %v4114 = vsel %vm1391, %v4109, %v4113
  %v4116 = vshrl.u32 %v3281, 16
  %v4118 = vrot.slane %v4116, 4
  %v4119 = vshll.u32 %v3281, 16
  %v4121 = vrot.slane %v4119, 5
  %v4122 = vor.u32 %v4118, %v4121
  %v4123 = vrot.slane %v4122, 4
  %v4125 = vshll.u32 %v3297, 16
  %v4127 = vrot.slane %v4125, 5
  %v4128 = vsel %vm1391, %v4123, %v4127
  %v4130 = vshrl.u32 %v3282, 16
  %v4132 = vrot.slane %v4130, 4
  %v4133 = vshll.u32 %v3282, 16
  %v4135 = vrot.slane %v4133, 5
  %v4136 = vor.u32 %v4132, %v4135
  %v4137 = vrot.slane %v4136, 4
  %v4139 = vshll.u32 %v3298, 16
  %v4141 = vrot.slane %v4139, 5
  %v4142 = vsel %vm1391, %v4137, %v4141
  %v4144 = vshrl.u32 %v3283, 16
  %v4146 = vrot.slane %v4144, 4
  %v4147 = vshll.u32 %v3283, 16
  %v4149 = vrot.slane %v4147, 5
  %v4150 = vor.u32 %v4146, %v4149
  %v4151 = vrot.slane %v4150, 4
  %v4153 = vshll.u32 %v3299, 16
  %v4155 = vrot.slane %v4153, 5
  %v4156 = vsel %vm1391, %v4151, %v4155
  %v4158 = vshrl.u32 %v3284, 16
  %v4160 = vrot.slane %v4158, 4
  %v4161 = vshll.u32 %v3284, 16
  %v4163 = vrot.slane %v4161, 5
  %v4164 = vor.u32 %v4160, %v4163
  %v4165 = vrot.slane %v4164, 4
  %v4167 = vshll.u32 %v3300, 16
  %v4169 = vrot.slane %v4167, 5
  %v4170 = vsel %vm1391, %v4165, %v4169
  %v4172 = vshrl.u32 %v3285, 16
  %v4174 = vrot.slane %v4172, 4
  %v4175 = vshll.u32 %v3285, 16
  %v4177 = vrot.slane %v4175, 5
  %v4178 = vor.u32 %v4174, %v4177
  %v4179 = vrot.slane %v4178, 4
  %v4181 = vshll.u32 %v3301, 16
  %v4183 = vrot.slane %v4181, 5
  %v4184 = vsel %vm1391, %v4179, %v4183
  %v4217 = vrot.slane %v3302, 5
  %v4218 = vrot.slane %v4217, 4
  %v4219 = vrot.slane %v3286, 5
  %v4220 = vsel %vm3576, %v4218, %v4219
  %v4221 = vrot.slane %v3303, 5
  %v4222 = vrot.slane %v4221, 4
  %v4223 = vrot.slane %v3287, 5
  %v4224 = vsel %vm3576, %v4222, %v4223
  %v4225 = vrot.slane %v3304, 5
  %v4226 = vrot.slane %v4225, 4
  %v4227 = vrot.slane %v3288, 5
  %v4228 = vsel %vm3576, %v4226, %v4227
  %v4229 = vrot.slane %v3305, 5
  %v4230 = vrot.slane %v4229, 4
  %v4231 = vrot.slane %v3289, 5
  %v4232 = vsel %vm3576, %v4230, %v4231
  %v4233 = vrot.slane %v3306, 5
  %v4234 = vrot.slane %v4233, 4
  %v4235 = vrot.slane %v3290, 5
  %v4236 = vsel %vm3576, %v4234, %v4235
  %v4237 = vrot.slane %v3307, 5
  %v4238 = vrot.slane %v4237, 4
  %v4239 = vrot.slane %v3291, 5
  %v4240 = vsel %vm3576, %v4238, %v4239
  %v4241 = vrot.slane %v3308, 5
  %v4242 = vrot.slane %v4241, 4
  %v4243 = vrot.slane %v3292, 5
  %v4244 = vsel %vm3576, %v4242, %v4243
  %v4245 = vrot.slane %v3309, 5
  %v4246 = vrot.slane %v4245, 4
  %v4247 = vrot.slane %v3293, 5
  %v4248 = vsel %vm3576, %v4246, %v4247
  %v4249 = vrot.slane %v3310, 5
  %v4250 = vrot.slane %v4249, 4
  %v4251 = vrot.slane %v3294, 5
  %v4252 = vsel %vm3576, %v4250, %v4251
  %v4253 = vrot.slane %v3311, 5
  %v4254 = vrot.slane %v4253, 4
  %v4255 = vrot.slane %v3295, 5
  %v4256 = vsel %vm3576, %v4254, %v4255
  %v4257 = vrot.slane %v3312, 5
  %v4258 = vrot.slane %v4257, 4
  %v4259 = vrot.slane %v3296, 5
  %v4260 = vsel %vm3576, %v4258, %v4259
  %v4261 = vrot.slane %v3313, 5
  %v4262 = vrot.slane %v4261, 4
  %v4263 = vrot.slane %v3297, 5
  %v4264 = vsel %vm3576, %v4262, %v4263
  %v4265 = vrot.slane %v3314, 5
  %v4266 = vrot.slane %v4265, 4
  %v4267 = vrot.slane %v3298, 5
  %v4268 = vsel %vm3576, %v4266, %v4267
  %v4269 = vrot.slane %v3315, 5
  %v4270 = vrot.slane %v4269, 4
  %v4271 = vrot.slane %v3299, 5
  %v4272 = vsel %vm3576, %v4270, %v4271
  %v4273 = vrot.slane %v3316, 5
  %v4274 = vrot.slane %v4273, 4
  %v4275 = vrot.slane %v3300, 5
  %v4276 = vsel %vm3576, %v4274, %v4275
  %v4277 = vrot.slane %v3317, 5
  %v4278 = vrot.slane %v4277, 4
  %v4279 = vrot.slane %v3301, 5
  %v4280 = vsel %vm3576, %v4278, %v4279
  %v4297 = vunpack.c.l.b16 %v3173
  %v4298 = vunpack.c.l.b16 %v3174
  %v4299 = vunpack.c.l.b16 %v3175
  %v4300 = vunpack.c.l.b16 %v3176
  %v4301 = vunpack.c.l.b16 %v3177
  %v4302 = vunpack.c.l.b16 %v3178
  %v4303 = vunpack.c.l.b16 %v3179
  %v4304 = vunpack.c.l.b16 %v3180
  %v4305 = vunpack.c.l.b16 %v3181
  %v4306 = vunpack.c.l.b16 %v3182
  %v4307 = vunpack.c.l.b16 %v3183
  %v4308 = vunpack.c.l.b16 %v3184
  %v4309 = vunpack.c.l.b16 %v3185
  %v4310 = vunpack.c.l.b16 %v3186
  %v4311 = vunpack.c.l.b16 %v3187
  %v4312 = vunpack.c.l.b16 %v3188
  %v4313 = vpack.c.b16 %v4298, %v4297
  %v4314 = vpack.c.b16 %v4300, %v4299
  %v4315 = vpack.c.b16 %v4302, %v4301
  %v4316 = vpack.c.b16 %v4304, %v4303
  %v4317 = vpack.c.b16 %v4306, %v4305
  %v4318 = vpack.c.b16 %v4308, %v4307
  %v4319 = vpack.c.b16 %v4310, %v4309
  %v4320 = vpack.c.b16 %v4312, %v4311
  %v4321 = vunpack.c.l.b16 %v3331
  %v4322 = vunpack.c.l.b16 %v3345
  %v4323 = vunpack.c.l.b16 %v3359
  %v4324 = vunpack.c.l.b16 %v3373
  %v4325 = vunpack.c.l.b16 %v3387
  %v4326 = vunpack.c.l.b16 %v3401
  %v4327 = vunpack.c.l.b16 %v3415
  %v4328 = vunpack.c.l.b16 %v3429
  %v4329 = vunpack.c.l.b16 %v3443
  %v4330 = vunpack.c.l.b16 %v3457
  %v4331 = vunpack.c.l.b16 %v3471
  %v4332 = vunpack.c.l.b16 %v3485
  %v4333 = vunpack.c.l.b16 %v3499
  %v4334 = vunpack.c.l.b16 %v3513
  %v4335 = vunpack.c.l.b16 %v3527
  %v4336 = vunpack.c.l.b16 %v3541
  %v4337 = vpack.c.b16 %v4322, %v4321
  %v4338 = vpack.c.b16 %v4324, %v4323
  %v4339 = vpack.c.b16 %v4326, %v4325
  %v4340 = vpack.c.b16 %v4328, %v4327
  %v4341 = vpack.c.b16 %v4330, %v4329
  %v4342 = vpack.c.b16 %v4332, %v4331
  %v4343 = vpack.c.b16 %v4334, %v4333
  %v4344 = vpack.c.b16 %v4336, %v4335
  %4345 = vrot.lane.b32.xlu0 %v4337, 8
  %v4346 = vpop.permute.xlu0 %4345
  %4347 = vrot.lane.b32.xlu0 %v4338, 8
  %v4348 = vpop.permute.xlu0 %4347
  %4349 = vrot.lane.b32.xlu0 %v4339, 8
  %v4350 = vpop.permute.xlu0 %4349
  %4351 = vrot.lane.b32.xlu0 %v4340, 8
  %v4352 = vpop.permute.xlu0 %4351
  %4353 = vrot.lane.b32.xlu0 %v4341, 8
  %v4354 = vpop.permute.xlu0 %4353
  %4355 = vrot.lane.b32.xlu0 %v4342, 8
  %v4356 = vpop.permute.xlu0 %4355
  %4357 = vrot.lane.b32.xlu0 %v4343, 8
  %v4358 = vpop.permute.xlu0 %4357
  %4359 = vrot.lane.b32.xlu0 %v4344, 8
  %v4360 = vpop.permute.xlu0 %4359
  %v4361 = vunpack.c.l.b16 %v3580
  %v4362 = vunpack.c.l.b16 %v3584
  %v4363 = vunpack.c.l.b16 %v3588
  %v4364 = vunpack.c.l.b16 %v3592
  %v4365 = vunpack.c.l.b16 %v3596
  %v4366 = vunpack.c.l.b16 %v3600
  %v4367 = vunpack.c.l.b16 %v3604
  %v4368 = vunpack.c.l.b16 %v3608
  %v4369 = vunpack.c.l.b16 %v3612
  %v4370 = vunpack.c.l.b16 %v3616
  %v4371 = vunpack.c.l.b16 %v3620
  %v4372 = vunpack.c.l.b16 %v3624
  %v4373 = vunpack.c.l.b16 %v3628
  %v4374 = vunpack.c.l.b16 %v3632
  %v4375 = vunpack.c.l.b16 %v3636
  %v4376 = vunpack.c.l.b16 %v3640
  %v4377 = vpack.c.b16 %v4362, %v4361
  %v4378 = vpack.c.b16 %v4364, %v4363
  %v4379 = vpack.c.b16 %v4366, %v4365
  %v4380 = vpack.c.b16 %v4368, %v4367
  %v4381 = vpack.c.b16 %v4370, %v4369
  %v4382 = vpack.c.b16 %v4372, %v4371
  %v4383 = vpack.c.b16 %v4374, %v4373
  %v4384 = vpack.c.b16 %v4376, %v4375
  %4385 = vrot.lane.b32.xlu0 %v4377, 16
  %v4386 = vpop.permute.xlu0 %4385
  %4387 = vrot.lane.b32.xlu0 %v4378, 16
  %v4388 = vpop.permute.xlu0 %4387
  %4389 = vrot.lane.b32.xlu0 %v4379, 16
  %v4390 = vpop.permute.xlu0 %4389
  %4391 = vrot.lane.b32.xlu0 %v4380, 16
  %v4392 = vpop.permute.xlu0 %4391
  %4393 = vrot.lane.b32.xlu0 %v4381, 16
  %v4394 = vpop.permute.xlu0 %4393
  %4395 = vrot.lane.b32.xlu0 %v4382, 16
  %v4396 = vpop.permute.xlu0 %4395
  %4397 = vrot.lane.b32.xlu0 %v4383, 16
  %v4398 = vpop.permute.xlu0 %4397
  %4399 = vrot.lane.b32.xlu0 %v4384, 16
  %v4400 = vpop.permute.xlu0 %4399
  %v4417 = vunpack.c.l.b16 %v3221
  %v4418 = vunpack.c.l.b16 %v3222
  %v4419 = vunpack.c.l.b16 %v3223
  %v4420 = vunpack.c.l.b16 %v3224
  %v4421 = vunpack.c.l.b16 %v3225
  %v4422 = vunpack.c.l.b16 %v3226
  %v4423 = vunpack.c.l.b16 %v3227
  %v4424 = vunpack.c.l.b16 %v3228
  %v4425 = vunpack.c.l.b16 %v3229
  %v4426 = vunpack.c.l.b16 %v3230
  %v4427 = vunpack.c.l.b16 %v3231
  %v4428 = vunpack.c.l.b16 %v3232
  %v4429 = vunpack.c.l.b16 %v3233
  %v4430 = vunpack.c.l.b16 %v3234
  %v4431 = vunpack.c.l.b16 %v3235
  %v4432 = vunpack.c.l.b16 %v3236
  %v4433 = vpack.c.b16 %v4418, %v4417
  %v4434 = vpack.c.b16 %v4420, %v4419
  %v4435 = vpack.c.b16 %v4422, %v4421
  %v4436 = vpack.c.b16 %v4424, %v4423
  %v4437 = vpack.c.b16 %v4426, %v4425
  %v4438 = vpack.c.b16 %v4428, %v4427
  %v4439 = vpack.c.b16 %v4430, %v4429
  %v4440 = vpack.c.b16 %v4432, %v4431
  %4441 = vrot.lane.b32.xlu0 %v4433, 24
  %v4442 = vpop.permute.xlu0 %4441
  %4443 = vrot.lane.b32.xlu0 %v4434, 24
  %v4444 = vpop.permute.xlu0 %4443
  %4445 = vrot.lane.b32.xlu0 %v4435, 24
  %v4446 = vpop.permute.xlu0 %4445
  %4447 = vrot.lane.b32.xlu0 %v4436, 24
  %v4448 = vpop.permute.xlu0 %4447
  %4449 = vrot.lane.b32.xlu0 %v4437, 24
  %v4450 = vpop.permute.xlu0 %4449
  %4451 = vrot.lane.b32.xlu0 %v4438, 24
  %v4452 = vpop.permute.xlu0 %4451
  %4453 = vrot.lane.b32.xlu0 %v4439, 24
  %v4454 = vpop.permute.xlu0 %4453
  %4455 = vrot.lane.b32.xlu0 %v4440, 24
  %v4456 = vpop.permute.xlu0 %4455
  %v4457 = vunpack.c.l.b16 %v3654
  %v4458 = vunpack.c.l.b16 %v3668
  %v4459 = vunpack.c.l.b16 %v3682
  %v4460 = vunpack.c.l.b16 %v3696
  %v4461 = vunpack.c.l.b16 %v3710
  %v4462 = vunpack.c.l.b16 %v3724
  %v4463 = vunpack.c.l.b16 %v3738
  %v4464 = vunpack.c.l.b16 %v3752
  %v4465 = vunpack.c.l.b16 %v3766
  %v4466 = vunpack.c.l.b16 %v3780
  %v4467 = vunpack.c.l.b16 %v3794
  %v4468 = vunpack.c.l.b16 %v3808
  %v4469 = vunpack.c.l.b16 %v3822
  %v4470 = vunpack.c.l.b16 %v3836
  %v4471 = vunpack.c.l.b16 %v3850
  %v4472 = vunpack.c.l.b16 %v3864
  %v4473 = vpack.c.b16 %v4458, %v4457
  %v4474 = vpack.c.b16 %v4460, %v4459
  %v4475 = vpack.c.b16 %v4462, %v4461
  %v4476 = vpack.c.b16 %v4464, %v4463
  %v4477 = vpack.c.b16 %v4466, %v4465
  %v4478 = vpack.c.b16 %v4468, %v4467
  %v4479 = vpack.c.b16 %v4470, %v4469
  %v4480 = vpack.c.b16 %v4472, %v4471
  %4481 = vrot.lane.b32.xlu0 %v4473, 32
  %v4482 = vpop.permute.xlu0 %4481
  %4483 = vrot.lane.b32.xlu0 %v4474, 32
  %v4484 = vpop.permute.xlu0 %4483
  %4485 = vrot.lane.b32.xlu0 %v4475, 32
  %v4486 = vpop.permute.xlu0 %4485
  %4487 = vrot.lane.b32.xlu0 %v4476, 32
  %v4488 = vpop.permute.xlu0 %4487
  %4489 = vrot.lane.b32.xlu0 %v4477, 32
  %v4490 = vpop.permute.xlu0 %4489
  %4491 = vrot.lane.b32.xlu0 %v4478, 32
  %v4492 = vpop.permute.xlu0 %4491
  %4493 = vrot.lane.b32.xlu0 %v4479, 32
  %v4494 = vpop.permute.xlu0 %4493
  %4495 = vrot.lane.b32.xlu0 %v4480, 32
  %v4496 = vpop.permute.xlu0 %4495
  %v4497 = vunpack.c.l.b16 %v3900
  %v4498 = vunpack.c.l.b16 %v3904
  %v4499 = vunpack.c.l.b16 %v3908
  %v4500 = vunpack.c.l.b16 %v3912
  %v4501 = vunpack.c.l.b16 %v3916
  %v4502 = vunpack.c.l.b16 %v3920
  %v4503 = vunpack.c.l.b16 %v3924
  %v4504 = vunpack.c.l.b16 %v3928
  %v4505 = vunpack.c.l.b16 %v3932
  %v4506 = vunpack.c.l.b16 %v3936
  %v4507 = vunpack.c.l.b16 %v3940
  %v4508 = vunpack.c.l.b16 %v3944
  %v4509 = vunpack.c.l.b16 %v3948
  %v4510 = vunpack.c.l.b16 %v3952
  %v4511 = vunpack.c.l.b16 %v3956
  %v4512 = vunpack.c.l.b16 %v3960
  %v4513 = vpack.c.b16 %v4498, %v4497
  %v4514 = vpack.c.b16 %v4500, %v4499
  %v4515 = vpack.c.b16 %v4502, %v4501
  %v4516 = vpack.c.b16 %v4504, %v4503
  %v4517 = vpack.c.b16 %v4506, %v4505
  %v4518 = vpack.c.b16 %v4508, %v4507
  %v4519 = vpack.c.b16 %v4510, %v4509
  %v4520 = vpack.c.b16 %v4512, %v4511
  %4521 = vrot.lane.b32.xlu0 %v4513, 40
  %v4522 = vpop.permute.xlu0 %4521
  %4523 = vrot.lane.b32.xlu0 %v4514, 40
  %v4524 = vpop.permute.xlu0 %4523
  %4525 = vrot.lane.b32.xlu0 %v4515, 40
  %v4526 = vpop.permute.xlu0 %4525
  %4527 = vrot.lane.b32.xlu0 %v4516, 40
  %v4528 = vpop.permute.xlu0 %4527
  %4529 = vrot.lane.b32.xlu0 %v4517, 40
  %v4530 = vpop.permute.xlu0 %4529
  %4531 = vrot.lane.b32.xlu0 %v4518, 40
  %v4532 = vpop.permute.xlu0 %4531
  %4533 = vrot.lane.b32.xlu0 %v4519, 40
  %v4534 = vpop.permute.xlu0 %4533
  %4535 = vrot.lane.b32.xlu0 %v4520, 40
  %v4536 = vpop.permute.xlu0 %4535
  %v4553 = vunpack.c.l.b16 %v3270
  %v4554 = vunpack.c.l.b16 %v3271
  %v4555 = vunpack.c.l.b16 %v3272
  %v4556 = vunpack.c.l.b16 %v3273
  %v4557 = vunpack.c.l.b16 %v3274
  %v4558 = vunpack.c.l.b16 %v3275
  %v4559 = vunpack.c.l.b16 %v3276
  %v4560 = vunpack.c.l.b16 %v3277
  %v4561 = vunpack.c.l.b16 %v3278
  %v4562 = vunpack.c.l.b16 %v3279
  %v4563 = vunpack.c.l.b16 %v3280
  %v4564 = vunpack.c.l.b16 %v3281
  %v4565 = vunpack.c.l.b16 %v3282
  %v4566 = vunpack.c.l.b16 %v3283
  %v4567 = vunpack.c.l.b16 %v3284
  %v4568 = vunpack.c.l.b16 %v3285
  %v4569 = vpack.c.b16 %v4554, %v4553
  %v4570 = vpack.c.b16 %v4556, %v4555
  %v4571 = vpack.c.b16 %v4558, %v4557
  %v4572 = vpack.c.b16 %v4560, %v4559
  %v4573 = vpack.c.b16 %v4562, %v4561
  %v4574 = vpack.c.b16 %v4564, %v4563
  %v4575 = vpack.c.b16 %v4566, %v4565
  %v4576 = vpack.c.b16 %v4568, %v4567
  %4577 = vrot.lane.b32.xlu0 %v4569, 48
  %v4578 = vpop.permute.xlu0 %4577
  %4579 = vrot.lane.b32.xlu0 %v4570, 48
  %v4580 = vpop.permute.xlu0 %4579
  %4581 = vrot.lane.b32.xlu0 %v4571, 48
  %v4582 = vpop.permute.xlu0 %4581
  %4583 = vrot.lane.b32.xlu0 %v4572, 48
  %v4584 = vpop.permute.xlu0 %4583
  %4585 = vrot.lane.b32.xlu0 %v4573, 48
  %v4586 = vpop.permute.xlu0 %4585
  %4587 = vrot.lane.b32.xlu0 %v4574, 48
  %v4588 = vpop.permute.xlu0 %4587
  %4589 = vrot.lane.b32.xlu0 %v4575, 48
  %v4590 = vpop.permute.xlu0 %4589
  %4591 = vrot.lane.b32.xlu0 %v4576, 48
  %v4592 = vpop.permute.xlu0 %4591
  %v4593 = vunpack.c.l.b16 %v3974
  %v4594 = vunpack.c.l.b16 %v3988
  %v4595 = vunpack.c.l.b16 %v4002
  %v4596 = vunpack.c.l.b16 %v4016
  %v4597 = vunpack.c.l.b16 %v4030
  %v4598 = vunpack.c.l.b16 %v4044
  %v4599 = vunpack.c.l.b16 %v4058
  %v4600 = vunpack.c.l.b16 %v4072
  %v4601 = vunpack.c.l.b16 %v4086
  %v4602 = vunpack.c.l.b16 %v4100
  %v4603 = vunpack.c.l.b16 %v4114
  %v4604 = vunpack.c.l.b16 %v4128
  %v4605 = vunpack.c.l.b16 %v4142
  %v4606 = vunpack.c.l.b16 %v4156
  %v4607 = vunpack.c.l.b16 %v4170
  %v4608 = vunpack.c.l.b16 %v4184
  %v4609 = vpack.c.b16 %v4594, %v4593
  %v4610 = vpack.c.b16 %v4596, %v4595
  %v4611 = vpack.c.b16 %v4598, %v4597
  %v4612 = vpack.c.b16 %v4600, %v4599
  %v4613 = vpack.c.b16 %v4602, %v4601
  %v4614 = vpack.c.b16 %v4604, %v4603
  %v4615 = vpack.c.b16 %v4606, %v4605
  %v4616 = vpack.c.b16 %v4608, %v4607
  %4617 = vrot.lane.b32.xlu0 %v4609, 56
  %v4618 = vpop.permute.xlu0 %4617
  %4619 = vrot.lane.b32.xlu0 %v4610, 56
  %v4620 = vpop.permute.xlu0 %4619
  %4621 = vrot.lane.b32.xlu0 %v4611, 56
  %v4622 = vpop.permute.xlu0 %4621
  %4623 = vrot.lane.b32.xlu0 %v4612, 56
  %v4624 = vpop.permute.xlu0 %4623
  %4625 = vrot.lane.b32.xlu0 %v4613, 56
  %v4626 = vpop.permute.xlu0 %4625
  %4627 = vrot.lane.b32.xlu0 %v4614, 56
  %v4628 = vpop.permute.xlu0 %4627
  %4629 = vrot.lane.b32.xlu0 %v4615, 56
  %v4630 = vpop.permute.xlu0 %4629
  %4631 = vrot.lane.b32.xlu0 %v4616, 56
  %v4632 = vpop.permute.xlu0 %4631
  %v4633 = vunpack.c.l.b16 %v4220
  %v4634 = vunpack.c.l.b16 %v4224
  %v4635 = vunpack.c.l.b16 %v4228
  %v4636 = vunpack.c.l.b16 %v4232
  %v4637 = vunpack.c.l.b16 %v4236
  %v4638 = vunpack.c.l.b16 %v4240
  %v4639 = vunpack.c.l.b16 %v4244
  %v4640 = vunpack.c.l.b16 %v4248
  %v4641 = vunpack.c.l.b16 %v4252
  %v4642 = vunpack.c.l.b16 %v4256
  %v4643 = vunpack.c.l.b16 %v4260
  %v4644 = vunpack.c.l.b16 %v4264
  %v4645 = vunpack.c.l.b16 %v4268
  %v4646 = vunpack.c.l.b16 %v4272
  %v4647 = vunpack.c.l.b16 %v4276
  %v4648 = vunpack.c.l.b16 %v4280
  %v4649 = vpack.c.b16 %v4634, %v4633
  %v4650 = vpack.c.b16 %v4636, %v4635
  %v4651 = vpack.c.b16 %v4638, %v4637
  %v4652 = vpack.c.b16 %v4640, %v4639
  %v4653 = vpack.c.b16 %v4642, %v4641
  %v4654 = vpack.c.b16 %v4644, %v4643
  %v4655 = vpack.c.b16 %v4646, %v4645
  %v4656 = vpack.c.b16 %v4648, %v4647
  %4657 = vrot.lane.b32.xlu0 %v4649, 64
  %v4658 = vpop.permute.xlu0 %4657
  %4659 = vrot.lane.b32.xlu0 %v4650, 64
  %v4660 = vpop.permute.xlu0 %4659
  %4661 = vrot.lane.b32.xlu0 %v4651, 64
  %v4662 = vpop.permute.xlu0 %4661
  %4663 = vrot.lane.b32.xlu0 %v4652, 64
  %v4664 = vpop.permute.xlu0 %4663
  %4665 = vrot.lane.b32.xlu0 %v4653, 64
  %v4666 = vpop.permute.xlu0 %4665
  %4667 = vrot.lane.b32.xlu0 %v4654, 64
  %v4668 = vpop.permute.xlu0 %4667
  %4669 = vrot.lane.b32.xlu0 %v4655, 64
  %v4670 = vpop.permute.xlu0 %4669
  %4671 = vrot.lane.b32.xlu0 %v4656, 64
  %v4672 = vpop.permute.xlu0 %4671
  %v4675 = vsel %vm2529, %v4313, %v4346
  %v4678 = vsel %vm2529, %v4314, %v4348
  %v4681 = vsel %vm2529, %v4315, %v4350
  %v4684 = vsel %vm2529, %v4316, %v4352
  %v4687 = vsel %vm2529, %v4317, %v4354
  %v4690 = vsel %vm2529, %v4318, %v4356
  %v4693 = vsel %vm2529, %v4319, %v4358
  %v4696 = vsel %vm2529, %v4320, %v4360
  %v4698 = vsel %vm2563, %v4675, %v4386
  %v4700 = vsel %vm2563, %v4678, %v4388
  %v4702 = vsel %vm2563, %v4681, %v4390
  %v4704 = vsel %vm2563, %v4684, %v4392
  %v4706 = vsel %vm2563, %v4687, %v4394
  %v4708 = vsel %vm2563, %v4690, %v4396
  %v4710 = vsel %vm2563, %v4693, %v4398
  %v4712 = vsel %vm2563, %v4696, %v4400
  %v4714 = vsel %vm2597, %v4698, %v4442
  %v4716 = vsel %vm2597, %v4700, %v4444
  %v4718 = vsel %vm2597, %v4702, %v4446
  %v4720 = vsel %vm2597, %v4704, %v4448
  %v4722 = vsel %vm2597, %v4706, %v4450
  %v4724 = vsel %vm2597, %v4708, %v4452
  %v4726 = vsel %vm2597, %v4710, %v4454
  %v4728 = vsel %vm2597, %v4712, %v4456
  %v4730 = vsel %vm2631, %v4714, %v4482
  %v4732 = vsel %vm2631, %v4716, %v4484
  %v4734 = vsel %vm2631, %v4718, %v4486
  %v4736 = vsel %vm2631, %v4720, %v4488
  %v4738 = vsel %vm2631, %v4722, %v4490
  %v4740 = vsel %vm2631, %v4724, %v4492
  %v4742 = vsel %vm2631, %v4726, %v4494
  %v4744 = vsel %vm2631, %v4728, %v4496
  %vm4745 = vcmask 326656
  %v4747 = vsel %vm4745, %v4730, %v4522
  %v4749 = vsel %vm4745, %v4732, %v4524
  %v4751 = vsel %vm4745, %v4734, %v4526
  %v4753 = vsel %vm4745, %v4736, %v4528
  %v4755 = vsel %vm4745, %v4738, %v4530
  %v4757 = vsel %vm4745, %v4740, %v4532
  %v4759 = vsel %vm4745, %v4742, %v4534
  %v4761 = vsel %vm4745, %v4744, %v4536
  %vm4762 = vcmask 392192
  %v4764 = vsel %vm4762, %v4747, %v4578
  %v4766 = vsel %vm4762, %v4749, %v4580
  %v4768 = vsel %vm4762, %v4751, %v4582
  %v4770 = vsel %vm4762, %v4753, %v4584
  %v4772 = vsel %vm4762, %v4755, %v4586
  %v4774 = vsel %vm4762, %v4757, %v4588
  %v4776 = vsel %vm4762, %v4759, %v4590
  %v4778 = vsel %vm4762, %v4761, %v4592
  %vm4779 = vcmask 457728
  %v4781 = vsel %vm4779, %v4764, %v4618
  %v4783 = vsel %vm4779, %v4766, %v4620
  %v4785 = vsel %vm4779, %v4768, %v4622
  %v4787 = vsel %vm4779, %v4770, %v4624
  %v4789 = vsel %vm4779, %v4772, %v4626
  %v4791 = vsel %vm4779, %v4774, %v4628
  %v4793 = vsel %vm4779, %v4776, %v4630
  %v4795 = vsel %vm4779, %v4778, %v4632
  %vm4796 = vcmask 523264
  %v4798 = vsel %vm4796, %v4781, %v4658
  %v4800 = vsel %vm4796, %v4783, %v4660
  %v4802 = vsel %vm4796, %v4785, %v4662
  %v4804 = vsel %vm4796, %v4787, %v4664
  %v4806 = vsel %vm4796, %v4789, %v4666
  %v4808 = vsel %vm4796, %v4791, %v4668
  %v4810 = vsel %vm4796, %v4793, %v4670
  %v4812 = vsel %vm4796, %v4795, %v4672
  %v4813 = vld [vmem:[%s9] sm:$0xf]
  %v4814 = vld [vmem:[%s9 + $0x4] sm:$0xf]
  %v4815 = vld [vmem:[%s9 + $0x8] sm:$0xf]
  %v4816 = vld [vmem:[%s9 + $0xc] sm:$0xf]
  %v4817 = vld [vmem:[%s9 + $0x10] sm:$0xf]
  %v4818 = vld [vmem:[%s9 + $0x14] sm:$0xf]
  %v4819 = vld [vmem:[%s9 + $0x18] sm:$0xf]
  %v4820 = vld [vmem:[%s9 + $0x1c] sm:$0xf]
  %v4821 = vld [vmem:[%s9 + $0x20] sm:$0xf]
  %v4822 = vld [vmem:[%s10] sm:$0x3]
  %v4824 = vsel %vm2504, %v2288, 0
  %v4827 = vsel %vm2504, %v2289, 0
  %v4830 = vsel %vm2504, %v2290, 0
  %v4833 = vsel %vm2504, %v2291, 0
  %v4836 = vsel %vm2504, %v2292, 0
  %v4839 = vsel %vm2504, %v2293, 0
  %v4842 = vsel %vm2504, %v2294, 0
  %v4845 = vsel %vm2504, %v2295, 0
  %v4848 = vsel %vm2685, %v4822, 0
  %4850 = vmatprep.subr.bf16.mxu0 0
  %4851 = vmatpush1.bf16.msra.mxu0 %v4848
  %4852 = vmatprep.subr.bf16.mxu0 0
  %4853 = vmatpush1.bf16.msra.mxu0 0
  %4854 = vmatprep.subr.bf16.mxu0 0
  %4855 = vmatpush1.bf16.msra.mxu0 0
  %4856 = vmatprep.subr.bf16.mxu0 0
  %4857 = vmatpush1.bf16.msra.mxu0 0
  %4858 = vmatprep.subr.bf16.mxu0 0
  %4859 = vmatpush1.bf16.msra.mxu0 0
  %4860 = vmatprep.subr.bf16.mxu0 0
  %4861 = vmatpush1.bf16.msra.mxu0 0
  %4862 = vmatprep.subr.bf16.mxu0 0
  %4863 = vmatpush1.bf16.msra.mxu0 0
  %4864 = vmatprep.subr.bf16.mxu0 0
  %4865 = vmatpush1.bf16.msra.mxu0 0
  %4866 = vmatprep.subr.bf16.mxu0 0
  %4867 = vmatpush1.bf16.msra.mxu0 0
  %4868 = vmatprep.subr.bf16.mxu0 0
  %4869 = vmatpush1.bf16.msra.mxu0 0
  %4870 = vmatprep.subr.bf16.mxu0 0
  %4871 = vmatpush1.bf16.msra.mxu0 0
  %4872 = vmatprep.subr.bf16.mxu0 0
  %4873 = vmatpush1.bf16.msra.mxu0 0
  %4874 = vmatprep.subr.bf16.mxu0 0
  %4875 = vmatpush1.bf16.msra.mxu0 0
  %4876 = vmatprep.subr.bf16.mxu0 0
  %4877 = vmatpush1.bf16.msra.mxu0 0
  %4878 = vmatprep.subr.bf16.mxu0 0
  %4879 = vmatpush1.bf16.msra.mxu0 0
  %4880 = vmatprep.subr.bf16.mxu0 0
  %4881 = vmatpush1.bf16.msra.mxu0 0
  %4882 = vmatprep.mubr.bf16.mxu0 0
  %4883 = vmatmul.mubr.bf16.gmra.mrb[0].mxu0 %v4824
  %v4884 = vpop.f32.mrb[0].mxu0
  %v4885 = vadd.f32 0.0, %v4884
  %v4886 = vpop.f32.mrb[0].mxu0
  %v4887 = vpop.f32.mrb[0].mxu0
  %v4888 = vadd.f32 0.0, %v4887
  %v4889 = vpop.f32.mrb[0].mxu0
  %4890 = vmatprep.mubr.bf16.mxu0 0
  %4891 = vmatmul.mubr.bf16.gmra.mrb[0].mxu0 %v4827
  %v4892 = vpop.f32.mrb[0].mxu0
  %v4893 = vadd.f32 0.0, %v4892
  %v4894 = vpop.f32.mrb[0].mxu0
  %v4895 = vpop.f32.mrb[0].mxu0
  %v4896 = vadd.f32 0.0, %v4895
  %v4897 = vpop.f32.mrb[0].mxu0
  %4898 = vmatprep.mubr.bf16.mxu0 0
  %4899 = vmatmul.mubr.bf16.gmra.mrb[0].mxu0 %v4830
  %v4900 = vpop.f32.mrb[0].mxu0
  %v4901 = vadd.f32 0.0, %v4900
  %v4902 = vpop.f32.mrb[0].mxu0
  %v4903 = vpop.f32.mrb[0].mxu0
  %v4904 = vadd.f32 0.0, %v4903
  %v4905 = vpop.f32.mrb[0].mxu0
  %4906 = vmatprep.mubr.bf16.mxu0 0
  %4907 = vmatmul.mubr.bf16.gmra.mrb[0].mxu0 %v4833
  %v4908 = vpop.f32.mrb[0].mxu0
  %v4909 = vadd.f32 0.0, %v4908
  %v4910 = vpop.f32.mrb[0].mxu0
  %v4911 = vpop.f32.mrb[0].mxu0
  %v4912 = vadd.f32 0.0, %v4911
  %v4913 = vpop.f32.mrb[0].mxu0
  %4914 = vmatprep.mubr.bf16.mxu0 0
  %4915 = vmatmul.mubr.bf16.gmra.mrb[0].mxu0 %v4836
  %v4916 = vpop.f32.mrb[0].mxu0
  %v4917 = vadd.f32 0.0, %v4916
  %v4918 = vpop.f32.mrb[0].mxu0
  %v4919 = vpop.f32.mrb[0].mxu0
  %v4920 = vadd.f32 0.0, %v4919
  %v4921 = vpop.f32.mrb[0].mxu0
  %4922 = vmatprep.mubr.bf16.mxu0 0
  %4923 = vmatmul.mubr.bf16.gmra.mrb[0].mxu0 %v4839
  %v4924 = vpop.f32.mrb[0].mxu0
  %v4925 = vadd.f32 0.0, %v4924
  %v4926 = vpop.f32.mrb[0].mxu0
  %v4927 = vpop.f32.mrb[0].mxu0
  %v4928 = vadd.f32 0.0, %v4927
  %v4929 = vpop.f32.mrb[0].mxu0
  %4930 = vmatprep.mubr.bf16.mxu0 0
  %4931 = vmatmul.mubr.bf16.gmra.mrb[0].mxu0 %v4842
  %v4932 = vpop.f32.mrb[0].mxu0
  %v4933 = vadd.f32 0.0, %v4932
  %v4934 = vpop.f32.mrb[0].mxu0
  %v4935 = vpop.f32.mrb[0].mxu0
  %v4936 = vadd.f32 0.0, %v4935
  %v4937 = vpop.f32.mrb[0].mxu0
  %4938 = vmatprep.mubr.bf16.mxu0 0
  %4939 = vmatmul.mubr.bf16.gmra.mrb[0].mxu0 %v4845
  %v4940 = vpop.f32.mrb[0].mxu0
  %v4941 = vadd.f32 0.0, %v4940
  %v4942 = vpop.f32.mrb[0].mxu0
  %v4943 = vpop.f32.mrb[0].mxu0
  %v4944 = vadd.f32 0.0, %v4943
  %v4945 = vpop.f32.mrb[0].mxu0
  %4946 = vdwg.mxu0
  %v4956 = vunpack.c.l.b16 %v4813
  %v4957 = vunpack.c.l.b16 %v4814
  %v4958 = vunpack.c.l.b16 %v4815
  %v4959 = vunpack.c.l.b16 %v4816
  %v4960 = vunpack.c.l.b16 %v4817
  %v4961 = vunpack.c.l.b16 %v4818
  %v4962 = vunpack.c.l.b16 %v4819
  %v4963 = vunpack.c.l.b16 %v4820
  %v4964 = vunpack.c.l.b16 %v4821
  %v4965 = vpack.c.b16 %v4957, %v4956
  %v4966 = vpack.c.b16 %v4959, %v4958
  %v4967 = vpack.c.b16 %v4961, %v4960
  %v4968 = vpack.c.b16 %v4963, %v4962
  %v4969 = vpack.c.b16 %v4964, %v4964
  %vm4974 = vcmask 588800
  %v4975 = vsel %vm4974, %v4798, 0
  %v4977 = vsel %vm4974, %v4800, 0
  %v4979 = vsel %vm4974, %v4802, 0
  %v4981 = vsel %vm4974, %v4804, 0
  %v4983 = vsel %vm4974, %v4806, 0
  %v4985 = vsel %vm4974, %v4808, 0
  %v4987 = vsel %vm4974, %v4810, 0
  %v4989 = vsel %vm4974, %v4812, 0
  %vm4991 = vcmask 1043456
  %v4993 = vsel %vm4991, %v4969, 0
  %4995 = vmatprep.subr.bf16.mxu0 0
  %4996 = vmatpush1.bf16.msra.mxu0 %v4965
  %4997 = vmatprep.subr.bf16.mxu0 0
  %4998 = vmatpush1.bf16.msra.mxu0 %v4966
  %4999 = vmatprep.subr.bf16.mxu0 0
  %5000 = vmatpush1.bf16.msra.mxu0 %v4967
  %5001 = vmatprep.subr.bf16.mxu0 0
  %5002 = vmatpush1.bf16.msra.mxu0 %v4968
  %5003 = vmatprep.subr.bf16.mxu0 0
  %5004 = vmatpush1.bf16.msra.mxu0 %v4993
  %5005 = vmatprep.subr.bf16.mxu0 0
  %5006 = vmatpush1.bf16.msra.mxu0 0
  %5007 = vmatprep.subr.bf16.mxu0 0
  %5008 = vmatpush1.bf16.msra.mxu0 0
  %5009 = vmatprep.subr.bf16.mxu0 0
  %5010 = vmatpush1.bf16.msra.mxu0 0
  %5011 = vmatprep.subr.bf16.mxu0 0
  %5012 = vmatpush1.bf16.msra.mxu0 0
  %5013 = vmatprep.subr.bf16.mxu0 0
  %5014 = vmatpush1.bf16.msra.mxu0 0
  %5015 = vmatprep.subr.bf16.mxu0 0
  %5016 = vmatpush1.bf16.msra.mxu0 0
  %5017 = vmatprep.subr.bf16.mxu0 0
  %5018 = vmatpush1.bf16.msra.mxu0 0
  %5019 = vmatprep.subr.bf16.mxu0 0
  %5020 = vmatpush1.bf16.msra.mxu0 0
  %5021 = vmatprep.subr.bf16.mxu0 0
  %5022 = vmatpush1.bf16.msra.mxu0 0
  %5023 = vmatprep.subr.bf16.mxu0 0
  %5024 = vmatpush1.bf16.msra.mxu0 0
  %5025 = vmatprep.subr.bf16.mxu0 0
  %5026 = vmatpush1.bf16.msra.mxu0 0
  %5027 = vmatprep.mubr.bf16.mxu0 0
  %5028 = vmatmul.mubr.bf16.gmra.mrb[0].mxu0 %v4975
  %v5029 = vpop.f32.mrb[0].mxu0
  %v5030 = vadd.f32 %v4885, %v5029
  %v5031 = vpop.f32.mrb[0].mxu0
  %v5032 = vpop.f32.mrb[0].mxu0
  %v5033 = vadd.f32 %v4888, %v5032
  %v5034 = vpop.f32.mrb[0].mxu0
  %5035 = vmatprep.mubr.bf16.mxu0 0
  %5036 = vmatmul.mubr.bf16.gmra.mrb[0].mxu0 %v4977
  %v5037 = vpop.f32.mrb[0].mxu0
  %v5038 = vadd.f32 %v4893, %v5037
  %v5039 = vpop.f32.mrb[0].mxu0
  %v5040 = vpop.f32.mrb[0].mxu0
  %v5041 = vadd.f32 %v4896, %v5040
  %v5042 = vpop.f32.mrb[0].mxu0
  %5043 = vmatprep.mubr.bf16.mxu0 0
  %5044 = vmatmul.mubr.bf16.gmra.mrb[0].mxu0 %v4979
  %v5045 = vpop.f32.mrb[0].mxu0
  %v5046 = vadd.f32 %v4901, %v5045
  %v5047 = vpop.f32.mrb[0].mxu0
  %v5048 = vpop.f32.mrb[0].mxu0
  %v5049 = vadd.f32 %v4904, %v5048
  %v5050 = vpop.f32.mrb[0].mxu0
  %5051 = vmatprep.mubr.bf16.mxu0 0
  %5052 = vmatmul.mubr.bf16.gmra.mrb[0].mxu0 %v4981
  %v5053 = vpop.f32.mrb[0].mxu0
  %v5054 = vadd.f32 %v4909, %v5053
  %v5055 = vpop.f32.mrb[0].mxu0
  %v5056 = vpop.f32.mrb[0].mxu0
  %v5057 = vadd.f32 %v4912, %v5056
  %v5058 = vpop.f32.mrb[0].mxu0
  %5059 = vmatprep.mubr.bf16.mxu0 0
  %5060 = vmatmul.mubr.bf16.gmra.mrb[0].mxu0 %v4983
  %v5061 = vpop.f32.mrb[0].mxu0
  %v5062 = vadd.f32 %v4917, %v5061
  %v5063 = vpop.f32.mrb[0].mxu0
  %v5064 = vpop.f32.mrb[0].mxu0
  %v5065 = vadd.f32 %v4920, %v5064
  %v5066 = vpop.f32.mrb[0].mxu0
  %5067 = vmatprep.mubr.bf16.mxu0 0
  %5068 = vmatmul.mubr.bf16.gmra.mrb[0].mxu0 %v4985
  %v5069 = vpop.f32.mrb[0].mxu0
  %v5070 = vadd.f32 %v4925, %v5069
  %v5071 = vpop.f32.mrb[0].mxu0
  %v5072 = vpop.f32.mrb[0].mxu0
  %v5073 = vadd.f32 %v4928, %v5072
  %v5074 = vpop.f32.mrb[0].mxu0
  %5075 = vmatprep.mubr.bf16.mxu0 0
  %5076 = vmatmul.mubr.bf16.gmra.mrb[0].mxu0 %v4987
  %v5077 = vpop.f32.mrb[0].mxu0
  %v5078 = vadd.f32 %v4933, %v5077
  %v5079 = vpop.f32.mrb[0].mxu0
  %v5080 = vpop.f32.mrb[0].mxu0
  %v5081 = vadd.f32 %v4936, %v5080
  %v5082 = vpop.f32.mrb[0].mxu0
  %5083 = vmatprep.mubr.bf16.mxu0 0
  %5084 = vmatmul.mubr.bf16.gmra.mrb[0].mxu0 %v4989
  %v5085 = vpop.f32.mrb[0].mxu0
  %v5086 = vadd.f32 %v4941, %v5085
  %v5087 = vpop.f32.mrb[0].mxu0
  %v5088 = vpop.f32.mrb[0].mxu0
  %v5089 = vadd.f32 %v4944, %v5088
  %v5090 = vpop.f32.mrb[0].mxu0
  %5091 = vdwg.mxu0
  %5092 = vst.msk [vmem:[%s11] sm:$0xff] %vm2529, %v5030
  %5093 = vst.msk [vmem:[%s11 + $0x8] sm:$0xff] %vm2529, %v5033
  %5094 = vst.msk [vmem:[%s11 + $0x10] sm:$0xff] %vm2529, %v5038
  %5095 = vst.msk [vmem:[%s11 + $0x18] sm:$0xff] %vm2529, %v5041
  %5096 = vst.msk [vmem:[%s11 + $0x20] sm:$0xff] %vm2529, %v5046
  %5097 = vst.msk [vmem:[%s11 + $0x28] sm:$0xff] %vm2529, %v5049
  %5098 = vst.msk [vmem:[%s11 + $0x30] sm:$0xff] %vm2529, %v5054
  %5099 = vst.msk [vmem:[%s11 + $0x38] sm:$0xff] %vm2529, %v5057
  %5100 = vst.msk [vmem:[%s11 + $0x40] sm:$0xff] %vm2529, %v5062
  %5101 = vst.msk [vmem:[%s11 + $0x48] sm:$0xff] %vm2529, %v5065
  %5102 = vst.msk [vmem:[%s11 + $0x50] sm:$0xff] %vm2529, %v5070
  %5103 = vst.msk [vmem:[%s11 + $0x58] sm:$0xff] %vm2529, %v5073
  %5104 = vst.msk [vmem:[%s11 + $0x60] sm:$0xff] %vm2529, %v5078
  %5105 = vst.msk [vmem:[%s11 + $0x68] sm:$0xff] %vm2529, %v5081
  %5106 = vst.msk [vmem:[%s11 + $0x70] sm:$0xff] %vm2529, %v5086
  %5107 = vst.msk [vmem:[%s11 + $0x78] sm:$0xff] %vm2529, %v5089
  // Predicated region
  $region50: #{network_block_forward.2} parent=0 // pred_check
    _
  $region51: #{network_block_forward.2} parent=0 // pred_check_branch
    %5109 = sbr.rel (0) target = $region53
  $region52: #{network_block_forward.2} parent=0 // pred_region
    _
  $region53: #{network_block_forward.2} parent=0 // pred_fallthru
    _
  // Predicated region
  $region54: #{network_block_forward.2} parent=0 // pred_check
    _
  $region55: #{network_block_forward.2} parent=0 // pred_check_branch
    %5111 = sbr.rel (0) target = $region57
  $region56: #{network_block_forward.2} parent=0 // pred_region
    _
  $region57: #{network_block_forward.2} parent=0 // pred_fallthru
    _

</llo_original>
